<compile_context>
chip_gen: v7x
topology: tpu7x:2x2x1
jax: 0.10.0
libtpu: 0.0.40
codegen_flags: <defaults>
</compile_context>

<pallas_src>
import functools
import math

import numpy as np
import jax
import jax.numpy as jnp
from jax.experimental import pallas as pl
from jax.experimental.pallas import tpu as pltpu


def _layernorm_cf(y, gamma, beta, eps=1e-5):
    """LayerNorm over the channel (sublane) axis of a channel-first (C, N) slab.

    Fused-moment form: sum and sum-of-squares are independent XLU reductions and
    the (y - mean) pre-pass of the two-pass form is avoided.
    """
    c = y.shape[0]
    inv_c = 1.0 / c
    s1 = jnp.sum(y, axis=0, keepdims=True)            # (1, N)  XLU
    s2 = jnp.sum(y * y, axis=0, keepdims=True)        # (1, N)  XLU (independent)
    mean = s1 * inv_c
    var = jnp.maximum(s2 * inv_c - mean * mean, 0.0)
    return (y - mean) * jax.lax.rsqrt(var + eps) * gamma + beta   # gamma/beta: (C, 1)


def transformer_block_kernel(x_ref, win_ref, bin_ref, wo_ref, bo_ref,
                             ln1g_ref, ln1b_ref, w1_ref, b1_ref, w2_ref, b2_ref,
                             ln2g_ref, ln2b_ref, o_ref, *, num_heads):
    b, c, ts = x_ref.shape
    hd = c // num_heads
    scale = 1.0 / math.sqrt(hd)
    cdt = win_ref.dtype                      # MXU operand dtype (bf16)

    # ---- x: (B, C, ts) -> channel-first (C, B*ts) via lane-aligned concat ----
    xc = jnp.concatenate([x_ref[i] for i in range(b)], axis=1).astype(jnp.float32)

    # ---- fused QKV projection: one (3C, C) @ (C, B*ts) MXU matmul ----
    qkv = jnp.dot(win_ref[...], xc.astype(cdt),
                  preferred_element_type=jnp.float32) + bin_ref[...]   # (3C, B*ts) f32

    # Slice qkv directly where it is consumed: sublane slice per head, lane
    # slice per batch (both (8,128)-aligned).  No intermediate full-size
    # q/k/v slabs, no (H, hd, ts) reshape chain.
    def piece(which, h, j):
        r0 = which * c + h * hd
        return qkv[r0:r0 + hd, j * ts:(j + 1) * ts]                    # (hd, ts)

    qh = [[piece(0, h, j) for j in range(b)] for h in range(num_heads)]
    kh = [[piece(1, h, j) for j in range(b)] for h in range(num_heads)]
    vh = [[piece(2, h, j) for j in range(b)] for h in range(num_heads)]

    # ---- attention over the batch axis (sequence length == B, tiny) ----
    # B x B scores per (head, spatial position) via VPU multiply + sublane
    # (XLU) reduction; softmax denominator via EUP approx reciprocal.
    out_cols = []
    for i in range(b):                                  # query batch index
        head_outs = []
        for h in range(num_heads):
            sc = [jnp.sum(qh[h][i] * kh[h][j], axis=0, keepdims=True) * scale
                  for j in range(b)]                                    # each (1, ts)
            m = sc[0]
            for j in range(1, b):
                m = jnp.maximum(m, sc[j])
            ps = [jnp.exp(s_ - m) for s_ in sc]
            denom = ps[0]
            for j in range(1, b):
                denom = denom + ps[j]
            inv = pl.reciprocal(denom, approx=True)                     # (1, ts)
            acc = (ps[0] * inv) * vh[h][0]                              # (hd, ts)
            for j in range(1, b):
                acc = acc + (ps[j] * inv) * vh[h][j]
            head_outs.append(acc)
        # Concat heads along channels; cast to bf16 *before* the lane concat
        # that feeds the out-projection matmul.
        out_cols.append(jnp.concatenate(head_outs, axis=0).astype(cdt))  # (C, ts)
    attn_cd = jnp.concatenate(out_cols, axis=1)                          # (C, B*ts) bf16

    # ---- output projection: one (C, C) @ (C, B*ts) MXU matmul ----
    attn = jnp.dot(wo_ref[...], attn_cd,
                   preferred_element_type=jnp.float32) + bo_ref[...]

    # ---- residual + layernorm 1 (over channels) ----
    y = _layernorm_cf(xc + attn, ln1g_ref[...], ln1b_ref[...])

    # ---- feed-forward: (FF, C) @ (C, N) -> ReLU -> (C, FF) @ (FF, N) ----
    h1 = jnp.dot(w1_ref[...], y.astype(cdt),
                 preferred_element_type=jnp.float32) + b1_ref[...]
    h1 = jnp.maximum(h1, 0.0)
    f = jnp.dot(w2_ref[...], h1.astype(cdt),
                preferred_element_type=jnp.float32) + b2_ref[...]

    # ---- residual + layernorm 2 ----
    zc = _layernorm_cf(y + f, ln2g_ref[...], ln2b_ref[...])

    # ---- store back in the (B, C, ts) channel-first HBM layout (lane-dense) ----
    for i in range(b):
        o_ref[i, :, :] = zc[:, i * ts:(i + 1) * ts].astype(o_ref.dtype)


def _default_seq_tile(b, s, target_lanes=1024):
    """Pick ts so B*ts ~= target_lanes (128-aligned) and the grid has >= 2 steps
    when S allows it (pipelining + v7x dual-TensorCore sharding)."""
    ts = max(128, min(s, (target_lanes // b) // 128 * 128))
    while ts > 128 and (s % ts != 0 or (s // ts) < 2):
        ts -= 128
    if s % ts != 0:
        ts = s          # fall back to a single full-extent step
    return ts


def _vmem_budget_bytes(b, c, ff_dim, ts, kparams):
    """Explicit scoped-VMEM budget for the chosen tile (with headroom), clamped
    below v7x's 64 MiB physical VMEM."""
    n = b * ts
    io_blocks = 2 * 2 * b * c * ts * 4                                 # in+out, double-buffered, f32
    weights = 2 * sum(int(p.size) * p.dtype.itemsize for p in kparams)
    temps = (14 * c + 3 * ff_dim) * n * 4                              # generous in-kernel live set
    est = io_blocks + weights + temps
    return int(min(max(2 * est, 32 << 20), 56 << 20))


def prepare_params(params, compute_dtype=jnp.bfloat16):
    """One-time re-layout of the parameters for the kernel: (out, in) MXU lhs
    matrices pre-cast to bf16, column-vector biases / LN affines in f32.
    Done once, outside the forward call (not on the critical path)."""
    win, bin_, wo, bo, ln1, w1, b1, w2, b2, ln2 = params
    col = lambda v: jnp.asarray(v, jnp.float32).reshape(-1, 1)
    return (
        jnp.asarray(win).T.astype(compute_dtype), col(bin_),
        jnp.asarray(wo).T.astype(compute_dtype), col(bo),
        col(ln1[0]), col(ln1[1]),
        jnp.asarray(w1).T.astype(compute_dtype), col(b1),
        jnp.asarray(w2).T.astype(compute_dtype), col(b2),
        col(ln2[0]), col(ln2[1]),
    )


def unet_transformer_forward(x5d, kparams, num_heads, *, seq_tile=None):
    b, c, h, w, z = x5d.shape
    s = h * w * z
    assert s == h * w, "the PyTorch .view(b, c, h, w) requires z == 1"
    assert c % num_heads == 0
    assert (c // num_heads) % 8 == 0, "head_dim must be a multiple of 8 (sublane tiling)"
    assert c % 8 == 0
    assert s % 128 == 0, "spatial extent must be lane-aligned (multiple of 128)"

    ts = seq_tile if seq_tile is not None else _default_seq_tile(b, s)
    assert s % ts == 0 and ts % 128 == 0

    # (B, C, H, W, Z) -> (B, C, S): a free reshape; no HBM transpose round trip.
    # TODO(synk): for v5e, storing x / the output as bf16 in HBM would halve DMA
    # volume; kept f32 here for parity with the f32 PyTorch module.
    x = x5d.reshape(b, c, s)

    grid = (s // ts,)
    ff_dim = kparams[6].shape[0]                  # w1^T is (FF, C)
    vmem_bytes = _vmem_budget_bytes(b, c, ff_dim, ts, kparams)

    def full_spec(a):
        # Constant index map: the weight block never changes across the grid, so
        # it is DMA'd once and stays resident.
        return pl.BlockSpec(a.shape, lambda i, _nd=a.ndim: (0,) * _nd)

    kernel = functools.partial(transformer_block_kernel, num_heads=num_heads)

    out = pl.pallas_call(
        kernel,
        out_shape=jax.ShapeDtypeStruct((b, c, s), x.dtype),
        grid_spec=pltpu.PrefetchScalarGridSpec(
            num_scalar_prefetch=0,
            grid=grid,
            in_specs=[pl.BlockSpec((b, c, ts), lambda i: (0, 0, i))]
                     + [full_spec(a) for a in kparams],
            out_specs=pl.BlockSpec((b, c, ts), lambda i: (0, 0, i)),
        ),
        compiler_params=pltpu.CompilerParams(
            dimension_semantics=("parallel",),
            vmem_limit_bytes=vmem_bytes),
    )(x, *kparams)

    # (B, C, S) -> (B, C, H, W): free reshape.
    return out.reshape(b, c, h, w)


def init_params(key, c, ff_dim):
    ks = jax.random.split(key, 8)
    sc = lambda fan_in: 1.0 / math.sqrt(fan_in)
    win = jax.random.normal(ks[0], (c, 3 * c), jnp.float32) * sc(c)   # in_proj (y = x @ W)
    bin_ = jax.random.normal(ks[1], (1, 3 * c), jnp.float32) * 0.02
    wo = jax.random.normal(ks[2], (c, c), jnp.float32) * sc(c)        # out_proj
    bo = jax.random.normal(ks[3], (1, c), jnp.float32) * 0.02
    ln1 = jnp.stack([jnp.ones((c,)), jnp.zeros((c,))]).astype(jnp.float32)  # gamma; beta
    w1 = jax.random.normal(ks[4], (c, ff_dim), jnp.float32) * sc(c)
    b1 = jax.random.normal(ks[5], (1, ff_dim), jnp.float32) * 0.02
    w2 = jax.random.normal(ks[6], (ff_dim, c), jnp.float32) * sc(ff_dim)
    b2 = jax.random.normal(ks[7], (1, c), jnp.float32) * 0.02
    ln2 = jnp.stack([jnp.ones((c,)), jnp.zeros((c,))]).astype(jnp.float32)
    return (win, bin_, wo, bo, ln1, w1, b1, w2, b2, ln2)


def reference_forward(x5d, params, num_heads):
    """Pure-JAX reference reproducing the PyTorch forward (eval mode).

    The four projection matmuls use bf16 operands with f32 accumulation to
    mirror the kernel's MXU dtype choice, so the comparison is apples-to-apples.
    """
    b, c, h, w, z = x5d.shape
    s = h * w * z
    win, bin_, wo, bo, ln1, w1, b1, w2, b2, ln2 = params
    bf = lambda t: t.astype(jnp.bfloat16)
    mm = lambda a, m: jnp.dot(bf(a), bf(m), preferred_element_type=jnp.float32)

    xs = x5d.reshape(b, c, s).transpose(2, 0, 1)              # (S, B, C) seq-first view
    x2 = xs.reshape(s * b, c)
    qkv = mm(x2, win) + bin_                                  # (S*B, 3C)
    q, k, v = jnp.split(qkv.reshape(s, b, 3 * c), 3, axis=-1)
    hd = c // num_heads
    heads = lambda t: t.reshape(s, b, num_heads, hd).transpose(0, 2, 1, 3)  # (S,H,B,hd)
    qh, kh, vh = heads(q), heads(k), heads(v)
    sc = jnp.einsum('shbd,shcd->shbc', qh, kh) / math.sqrt(hd)
    p = jax.nn.softmax(sc, axis=-1)
    oh = jnp.einsum('shbc,shcd->shbd', p, vh)
    attn = mm(oh.transpose(0, 2, 1, 3).reshape(s * b, c), wo) + bo

    def ln(y, g):
        m = y.mean(-1, keepdims=True)
        va = ((y - m) ** 2).mean(-1, keepdims=True)
        return (y - m) / jnp.sqrt(va + 1e-5) * g[0] + g[1]

    y = ln(x2 + attn, ln1)
    f = mm(jnp.maximum(mm(y, w1) + b1, 0.0), w2) + b2
    zo = ln(y + f, ln2)
    return zo.reshape(s, b, c).transpose(1, 2, 0).reshape(b, c, h, w)


if __name__ == "__main__":
    # Lane-friendly small shapes: C = 128, S = 32*32 = 1024 spatial positions.
    # Default tiling picks ts = 512 -> grid of 2 "parallel" steps with a
    # B*ts = 1024-lane slab per step (256-aligned, fills the 256-deep MXU well
    # on v6e/v7x, and gives both v7x TensorCores a step each).
    B, C, H, W, Z = 2, 128, 32, 32, 1
    NUM_HEADS, FF_DIM = 4, 256

    key = jax.random.PRNGKey(0)
    kx, kp = jax.random.split(key)
    x = jax.random.normal(kx, (B, C, H, W, Z), jnp.float32)
    params = init_params(kp, C, FF_DIM)

    # One-time weight re-layout (transpose + bf16 cast) outside the forward call.
    kparams = jax.block_until_ready(prepare_params(params))

    out = unet_transformer_forward(x, kparams, NUM_HEADS)
    out = jax.block_until_ready(out)
    assert out.shape == (B, C, H, W)

    ref = reference_forward(x, params, NUM_HEADS)
    # Tolerance accounts for bf16 MXU operands (shared with the reference), the
    # EUP approx-reciprocal softmax denominator, and the fused-moment LayerNorm;
    # structural bugs would show up as O(1) errors on these LayerNorm-ed outputs.
    np.testing.assert_allclose(np.asarray(out), np.asarray(ref), rtol=5e-2, atol=5e-2)

    print("KERNEL_OK")
</pallas_src>

<mosaic_0001>
module attributes {stable_mosaic.version = 11 : i64} {
  func.func @transformer_block_kernel(%arg0: i32, %arg1: memref<2x128x512xf32, #tpu.memory_space<vmem>>, %arg2: memref<384x128xbf16, #tpu.memory_space<vmem>>, %arg3: memref<384x1xf32, #tpu.memory_space<vmem>>, %arg4: memref<128x128xbf16, #tpu.memory_space<vmem>>, %arg5: memref<128x1xf32, #tpu.memory_space<vmem>>, %arg6: memref<128x1xf32, #tpu.memory_space<vmem>>, %arg7: memref<128x1xf32, #tpu.memory_space<vmem>>, %arg8: memref<256x128xbf16, #tpu.memory_space<vmem>>, %arg9: memref<256x1xf32, #tpu.memory_space<vmem>>, %arg10: memref<128x256xbf16, #tpu.memory_space<vmem>>, %arg11: memref<128x1xf32, #tpu.memory_space<vmem>>, %arg12: memref<128x1xf32, #tpu.memory_space<vmem>>, %arg13: memref<128x1xf32, #tpu.memory_space<vmem>>, %arg14: memref<2x128x512xf32, #tpu.memory_space<vmem>>) attributes {dimension_semantics = [#tpu.dimension_semantics<parallel>], iteration_bounds = array<i64: 2>, scalar_prefetch = 0 : i64, scratch_operands = 0 : i64, tpu.core_type = #tpu.core_type<tc>, window_params = [{transform_indices = @transform_0, window_bounds = array<i64: 2, 128, 512>}, {pipeline_mode = #tpu.pipeline_mode<synchronous>, transform_indices = @transform_1, window_bounds = array<i64: 384, 128>}, {pipeline_mode = #tpu.pipeline_mode<synchronous>, transform_indices = @transform_2, window_bounds = array<i64: 384, 1>}, {pipeline_mode = #tpu.pipeline_mode<synchronous>, transform_indices = @transform_3, window_bounds = array<i64: 128, 128>}, {pipeline_mode = #tpu.pipeline_mode<synchronous>, transform_indices = @transform_4, window_bounds = array<i64: 128, 1>}, {pipeline_mode = #tpu.pipeline_mode<synchronous>, transform_indices = @transform_5, window_bounds = array<i64: 128, 1>}, {pipeline_mode = #tpu.pipeline_mode<synchronous>, transform_indices = @transform_6, window_bounds = array<i64: 128, 1>}, {pipeline_mode = #tpu.pipeline_mode<synchronous>, transform_indices = @transform_7, window_bounds = array<i64: 256, 128>}, {pipeline_mode = #tpu.pipeline_mode<synchronous>, transform_indices = @transform_8, window_bounds = array<i64: 256, 1>}, {pipeline_mode = #tpu.pipeline_mode<synchronous>, transform_indices = @transform_9, window_bounds = array<i64: 128, 256>}, {pipeline_mode = #tpu.pipeline_mode<synchronous>, transform_indices = @transform_10, window_bounds = array<i64: 128, 1>}, {pipeline_mode = #tpu.pipeline_mode<synchronous>, transform_indices = @transform_11, window_bounds = array<i64: 128, 1>}, {pipeline_mode = #tpu.pipeline_mode<synchronous>, transform_indices = @transform_12, window_bounds = array<i64: 128, 1>}, {transform_indices = @transform_13, window_bounds = array<i64: 2, 128, 512>}]} {
    %c0 = arith.constant 0 : index
    %c0_0 = arith.constant 0 : index
    %c0_1 = arith.constant 0 : index
    %0 = vector.load %arg1[%c0, %c0_0, %c0_1] : memref<2x128x512xf32, #tpu.memory_space<vmem>>, vector<1x128x512xf32>
    %1 = vector.shape_cast %0 : vector<1x128x512xf32> to vector<128x512xf32>
    %c1 = arith.constant 1 : index
    %c0_2 = arith.constant 0 : index
    %c0_3 = arith.constant 0 : index
    %2 = vector.load %arg1[%c1, %c0_2, %c0_3] : memref<2x128x512xf32, #tpu.memory_space<vmem>>, vector<1x128x512xf32>
    %3 = vector.shape_cast %2 : vector<1x128x512xf32> to vector<128x512xf32>
    %4 = tpu.concatenate %1, %3 in 1 : vector<128x512xf32>, vector<128x512xf32> -> vector<128x1024xf32>
    %c0_4 = arith.constant 0 : index
    %c0_5 = arith.constant 0 : index
    %5 = vector.load %arg2[%c0_4, %c0_5] : memref<384x128xbf16, #tpu.memory_space<vmem>>, vector<384x128xbf16>
    %6 = arith.truncf %4 : vector<128x1024xf32> to vector<128x1024xbf16>
    %cst = arith.constant dense<0.000000e+00> : vector<384x1024xf32>
    %7 = tpu.matmul %5, %6, %cst {dimension_numbers = #tpu.dot_dimension_numbers<[1], [0], [0], [1], [0, 0, 1, 1], [], []>} : vector<384x128xbf16>, vector<128x1024xbf16>, vector<384x1024xf32> -> vector<384x1024xf32>
    %c0_6 = arith.constant 0 : index
    %c0_7 = arith.constant 0 : index
    %8 = vector.load %arg3[%c0_6, %c0_7] : memref<384x1xf32, #tpu.memory_space<vmem>>, vector<384x1xf32>
    %9 = vector.broadcast %8 : vector<384x1xf32> to vector<384x1024xf32>
    %10 = arith.addf %7, %9 : vector<384x1024xf32>
    %11 = vector.extract_strided_slice %10 {offsets = [0, 0], sizes = [32, 512], strides = [1, 1]} : vector<384x1024xf32> to vector<32x512xf32>
    %12 = vector.extract_strided_slice %10 {offsets = [0, 512], sizes = [32, 512], strides = [1, 1]} : vector<384x1024xf32> to vector<32x512xf32>
    %13 = vector.extract_strided_slice %10 {offsets = [32, 0], sizes = [32, 512], strides = [1, 1]} : vector<384x1024xf32> to vector<32x512xf32>
    %14 = vector.extract_strided_slice %10 {offsets = [32, 512], sizes = [32, 512], strides = [1, 1]} : vector<384x1024xf32> to vector<32x512xf32>
    %15 = vector.extract_strided_slice %10 {offsets = [64, 0], sizes = [32, 512], strides = [1, 1]} : vector<384x1024xf32> to vector<32x512xf32>
    %16 = vector.extract_strided_slice %10 {offsets = [64, 512], sizes = [32, 512], strides = [1, 1]} : vector<384x1024xf32> to vector<32x512xf32>
    %17 = vector.extract_strided_slice %10 {offsets = [96, 0], sizes = [32, 512], strides = [1, 1]} : vector<384x1024xf32> to vector<32x512xf32>
    %18 = vector.extract_strided_slice %10 {offsets = [96, 512], sizes = [32, 512], strides = [1, 1]} : vector<384x1024xf32> to vector<32x512xf32>
    %19 = vector.extract_strided_slice %10 {offsets = [128, 0], sizes = [32, 512], strides = [1, 1]} : vector<384x1024xf32> to vector<32x512xf32>
    %20 = vector.extract_strided_slice %10 {offsets = [128, 512], sizes = [32, 512], strides = [1, 1]} : vector<384x1024xf32> to vector<32x512xf32>
    %21 = vector.extract_strided_slice %10 {offsets = [160, 0], sizes = [32, 512], strides = [1, 1]} : vector<384x1024xf32> to vector<32x512xf32>
    %22 = vector.extract_strided_slice %10 {offsets = [160, 512], sizes = [32, 512], strides = [1, 1]} : vector<384x1024xf32> to vector<32x512xf32>
    %23 = vector.extract_strided_slice %10 {offsets = [192, 0], sizes = [32, 512], strides = [1, 1]} : vector<384x1024xf32> to vector<32x512xf32>
    %24 = vector.extract_strided_slice %10 {offsets = [192, 512], sizes = [32, 512], strides = [1, 1]} : vector<384x1024xf32> to vector<32x512xf32>
    %25 = vector.extract_strided_slice %10 {offsets = [224, 0], sizes = [32, 512], strides = [1, 1]} : vector<384x1024xf32> to vector<32x512xf32>
    %26 = vector.extract_strided_slice %10 {offsets = [224, 512], sizes = [32, 512], strides = [1, 1]} : vector<384x1024xf32> to vector<32x512xf32>
    %27 = vector.extract_strided_slice %10 {offsets = [256, 0], sizes = [32, 512], strides = [1, 1]} : vector<384x1024xf32> to vector<32x512xf32>
    %28 = vector.extract_strided_slice %10 {offsets = [256, 512], sizes = [32, 512], strides = [1, 1]} : vector<384x1024xf32> to vector<32x512xf32>
    %29 = vector.extract_strided_slice %10 {offsets = [288, 0], sizes = [32, 512], strides = [1, 1]} : vector<384x1024xf32> to vector<32x512xf32>
    %30 = vector.extract_strided_slice %10 {offsets = [288, 512], sizes = [32, 512], strides = [1, 1]} : vector<384x1024xf32> to vector<32x512xf32>
    %31 = vector.extract_strided_slice %10 {offsets = [320, 0], sizes = [32, 512], strides = [1, 1]} : vector<384x1024xf32> to vector<32x512xf32>
    %32 = vector.extract_strided_slice %10 {offsets = [320, 512], sizes = [32, 512], strides = [1, 1]} : vector<384x1024xf32> to vector<32x512xf32>
    %33 = vector.extract_strided_slice %10 {offsets = [352, 0], sizes = [32, 512], strides = [1, 1]} : vector<384x1024xf32> to vector<32x512xf32>
    %34 = vector.extract_strided_slice %10 {offsets = [352, 512], sizes = [32, 512], strides = [1, 1]} : vector<384x1024xf32> to vector<32x512xf32>
    %35 = arith.mulf %11, %19 : vector<32x512xf32>
    %cst_8 = arith.constant dense<0.000000e+00> : vector<512xf32>
    %36 = vector.multi_reduction <add>, %35, %cst_8 [0] : vector<32x512xf32> to vector<512xf32>
    %37 = vector.shape_cast %36 : vector<512xf32> to vector<1x512xf32>
    %cst_9 = arith.constant 0.176776692 : f32
    %38 = vector.broadcast %cst_9 : f32 to vector<1x512xf32>
    %39 = arith.mulf %37, %38 : vector<1x512xf32>
    %40 = arith.mulf %11, %20 : vector<32x512xf32>
    %cst_10 = arith.constant dense<0.000000e+00> : vector<512xf32>
    %41 = vector.multi_reduction <add>, %40, %cst_10 [0] : vector<32x512xf32> to vector<512xf32>
    %42 = vector.shape_cast %41 : vector<512xf32> to vector<1x512xf32>
    %cst_11 = arith.constant 0.176776692 : f32
    %43 = vector.broadcast %cst_11 : f32 to vector<1x512xf32>
    %44 = arith.mulf %42, %43 : vector<1x512xf32>
    %45 = arith.maximumf %39, %44 : vector<1x512xf32>
    %46 = arith.subf %39, %45 : vector<1x512xf32>
    %47 = math.exp %46 : vector<1x512xf32>
    %48 = arith.subf %44, %45 : vector<1x512xf32>
    %49 = math.exp %48 : vector<1x512xf32>
    %50 = arith.addf %47, %49 : vector<1x512xf32>
    %51 = tpu.reciprocal %50 {approx = true} : vector<1x512xf32> -> vector<1x512xf32>
    %52 = arith.mulf %47, %51 : vector<1x512xf32>
    %53 = vector.broadcast %52 : vector<1x512xf32> to vector<32x512xf32>
    %54 = arith.mulf %53, %27 : vector<32x512xf32>
    %55 = arith.mulf %49, %51 : vector<1x512xf32>
    %56 = vector.broadcast %55 : vector<1x512xf32> to vector<32x512xf32>
    %57 = arith.mulf %56, %28 : vector<32x512xf32>
    %58 = arith.addf %54, %57 : vector<32x512xf32>
    %59 = arith.mulf %13, %21 : vector<32x512xf32>
    %cst_12 = arith.constant dense<0.000000e+00> : vector<512xf32>
    %60 = vector.multi_reduction <add>, %59, %cst_12 [0] : vector<32x512xf32> to vector<512xf32>
    %61 = vector.shape_cast %60 : vector<512xf32> to vector<1x512xf32>
    %cst_13 = arith.constant 0.176776692 : f32
    %62 = vector.broadcast %cst_13 : f32 to vector<1x512xf32>
    %63 = arith.mulf %61, %62 : vector<1x512xf32>
    %64 = arith.mulf %13, %22 : vector<32x512xf32>
    %cst_14 = arith.constant dense<0.000000e+00> : vector<512xf32>
    %65 = vector.multi_reduction <add>, %64, %cst_14 [0] : vector<32x512xf32> to vector<512xf32>
    %66 = vector.shape_cast %65 : vector<512xf32> to vector<1x512xf32>
    %cst_15 = arith.constant 0.176776692 : f32
    %67 = vector.broadcast %cst_15 : f32 to vector<1x512xf32>
    %68 = arith.mulf %66, %67 : vector<1x512xf32>
    %69 = arith.maximumf %63, %68 : vector<1x512xf32>
    %70 = arith.subf %63, %69 : vector<1x512xf32>
    %71 = math.exp %70 : vector<1x512xf32>
    %72 = arith.subf %68, %69 : vector<1x512xf32>
    %73 = math.exp %72 : vector<1x512xf32>
    %74 = arith.addf %71, %73 : vector<1x512xf32>
    %75 = tpu.reciprocal %74 {approx = true} : vector<1x512xf32> -> vector<1x512xf32>
    %76 = arith.mulf %71, %75 : vector<1x512xf32>
    %77 = vector.broadcast %76 : vector<1x512xf32> to vector<32x512xf32>
    %78 = arith.mulf %77, %29 : vector<32x512xf32>
    %79 = arith.mulf %73, %75 : vector<1x512xf32>
    %80 = vector.broadcast %79 : vector<1x512xf32> to vector<32x512xf32>
    %81 = arith.mulf %80, %30 : vector<32x512xf32>
    %82 = arith.addf %78, %81 : vector<32x512xf32>
    %83 = arith.mulf %15, %23 : vector<32x512xf32>
    %cst_16 = arith.constant dense<0.000000e+00> : vector<512xf32>
    %84 = vector.multi_reduction <add>, %83, %cst_16 [0] : vector<32x512xf32> to vector<512xf32>
    %85 = vector.shape_cast %84 : vector<512xf32> to vector<1x512xf32>
    %cst_17 = arith.constant 0.176776692 : f32
    %86 = vector.broadcast %cst_17 : f32 to vector<1x512xf32>
    %87 = arith.mulf %85, %86 : vector<1x512xf32>
    %88 = arith.mulf %15, %24 : vector<32x512xf32>
    %cst_18 = arith.constant dense<0.000000e+00> : vector<512xf32>
    %89 = vector.multi_reduction <add>, %88, %cst_18 [0] : vector<32x512xf32> to vector<512xf32>
    %90 = vector.shape_cast %89 : vector<512xf32> to vector<1x512xf32>
    %cst_19 = arith.constant 0.176776692 : f32
    %91 = vector.broadcast %cst_19 : f32 to vector<1x512xf32>
    %92 = arith.mulf %90, %91 : vector<1x512xf32>
    %93 = arith.maximumf %87, %92 : vector<1x512xf32>
    %94 = arith.subf %87, %93 : vector<1x512xf32>
    %95 = math.exp %94 : vector<1x512xf32>
    %96 = arith.subf %92, %93 : vector<1x512xf32>
    %97 = math.exp %96 : vector<1x512xf32>
    %98 = arith.addf %95, %97 : vector<1x512xf32>
    %99 = tpu.reciprocal %98 {approx = true} : vector<1x512xf32> -> vector<1x512xf32>
    %100 = arith.mulf %95, %99 : vector<1x512xf32>
    %101 = vector.broadcast %100 : vector<1x512xf32> to vector<32x512xf32>
    %102 = arith.mulf %101, %31 : vector<32x512xf32>
    %103 = arith.mulf %97, %99 : vector<1x512xf32>
    %104 = vector.broadcast %103 : vector<1x512xf32> to vector<32x512xf32>
    %105 = arith.mulf %104, %32 : vector<32x512xf32>
    %106 = arith.addf %102, %105 : vector<32x512xf32>
    %107 = arith.mulf %17, %25 : vector<32x512xf32>
    %cst_20 = arith.constant dense<0.000000e+00> : vector<512xf32>
    %108 = vector.multi_reduction <add>, %107, %cst_20 [0] : vector<32x512xf32> to vector<512xf32>
    %109 = vector.shape_cast %108 : vector<512xf32> to vector<1x512xf32>
    %cst_21 = arith.constant 0.176776692 : f32
    %110 = vector.broadcast %cst_21 : f32 to vector<1x512xf32>
    %111 = arith.mulf %109, %110 : vector<1x512xf32>
    %112 = arith.mulf %17, %26 : vector<32x512xf32>
    %cst_22 = arith.constant dense<0.000000e+00> : vector<512xf32>
    %113 = vector.multi_reduction <add>, %112, %cst_22 [0] : vector<32x512xf32> to vector<512xf32>
    %114 = vector.shape_cast %113 : vector<512xf32> to vector<1x512xf32>
    %cst_23 = arith.constant 0.176776692 : f32
    %115 = vector.broadcast %cst_23 : f32 to vector<1x512xf32>
    %116 = arith.mulf %114, %115 : vector<1x512xf32>
    %117 = arith.maximumf %111, %116 : vector<1x512xf32>
    %118 = arith.subf %111, %117 : vector<1x512xf32>
    %119 = math.exp %118 : vector<1x512xf32>
    %120 = arith.subf %116, %117 : vector<1x512xf32>
    %121 = math.exp %120 : vector<1x512xf32>
    %122 = arith.addf %119, %121 : vector<1x512xf32>
    %123 = tpu.reciprocal %122 {approx = true} : vector<1x512xf32> -> vector<1x512xf32>
    %124 = arith.mulf %119, %123 : vector<1x512xf32>
    %125 = vector.broadcast %124 : vector<1x512xf32> to vector<32x512xf32>
    %126 = arith.mulf %125, %33 : vector<32x512xf32>
    %127 = arith.mulf %121, %123 : vector<1x512xf32>
    %128 = vector.broadcast %127 : vector<1x512xf32> to vector<32x512xf32>
    %129 = arith.mulf %128, %34 : vector<32x512xf32>
    %130 = arith.addf %126, %129 : vector<32x512xf32>
    %131 = tpu.concatenate %58, %82, %106, %130 in 0 : vector<32x512xf32>, vector<32x512xf32>, vector<32x512xf32>, vector<32x512xf32> -> vector<128x512xf32>
    %132 = arith.truncf %131 : vector<128x512xf32> to vector<128x512xbf16>
    %133 = arith.mulf %12, %19 : vector<32x512xf32>
    %cst_24 = arith.constant dense<0.000000e+00> : vector<512xf32>
    %134 = vector.multi_reduction <add>, %133, %cst_24 [0] : vector<32x512xf32> to vector<512xf32>
    %135 = vector.shape_cast %134 : vector<512xf32> to vector<1x512xf32>
    %cst_25 = arith.constant 0.176776692 : f32
    %136 = vector.broadcast %cst_25 : f32 to vector<1x512xf32>
    %137 = arith.mulf %135, %136 : vector<1x512xf32>
    %138 = arith.mulf %12, %20 : vector<32x512xf32>
    %cst_26 = arith.constant dense<0.000000e+00> : vector<512xf32>
    %139 = vector.multi_reduction <add>, %138, %cst_26 [0] : vector<32x512xf32> to vector<512xf32>
    %140 = vector.shape_cast %139 : vector<512xf32> to vector<1x512xf32>
    %cst_27 = arith.constant 0.176776692 : f32
    %141 = vector.broadcast %cst_27 : f32 to vector<1x512xf32>
    %142 = arith.mulf %140, %141 : vector<1x512xf32>
    %143 = arith.maximumf %137, %142 : vector<1x512xf32>
    %144 = arith.subf %137, %143 : vector<1x512xf32>
    %145 = math.exp %144 : vector<1x512xf32>
    %146 = arith.subf %142, %143 : vector<1x512xf32>
    %147 = math.exp %146 : vector<1x512xf32>
    %148 = arith.addf %145, %147 : vector<1x512xf32>
    %149 = tpu.reciprocal %148 {approx = true} : vector<1x512xf32> -> vector<1x512xf32>
    %150 = arith.mulf %145, %149 : vector<1x512xf32>
    %151 = vector.broadcast %150 : vector<1x512xf32> to vector<32x512xf32>
    %152 = arith.mulf %151, %27 : vector<32x512xf32>
    %153 = arith.mulf %147, %149 : vector<1x512xf32>
    %154 = vector.broadcast %153 : vector<1x512xf32> to vector<32x512xf32>
    %155 = arith.mulf %154, %28 : vector<32x512xf32>
    %156 = arith.addf %152, %155 : vector<32x512xf32>
    %157 = arith.mulf %14, %21 : vector<32x512xf32>
    %cst_28 = arith.constant dense<0.000000e+00> : vector<512xf32>
    %158 = vector.multi_reduction <add>, %157, %cst_28 [0] : vector<32x512xf32> to vector<512xf32>
    %159 = vector.shape_cast %158 : vector<512xf32> to vector<1x512xf32>
    %cst_29 = arith.constant 0.176776692 : f32
    %160 = vector.broadcast %cst_29 : f32 to vector<1x512xf32>
    %161 = arith.mulf %159, %160 : vector<1x512xf32>
    %162 = arith.mulf %14, %22 : vector<32x512xf32>
    %cst_30 = arith.constant dense<0.000000e+00> : vector<512xf32>
    %163 = vector.multi_reduction <add>, %162, %cst_30 [0] : vector<32x512xf32> to vector<512xf32>
    %164 = vector.shape_cast %163 : vector<512xf32> to vector<1x512xf32>
    %cst_31 = arith.constant 0.176776692 : f32
    %165 = vector.broadcast %cst_31 : f32 to vector<1x512xf32>
    %166 = arith.mulf %164, %165 : vector<1x512xf32>
    %167 = arith.maximumf %161, %166 : vector<1x512xf32>
    %168 = arith.subf %161, %167 : vector<1x512xf32>
    %169 = math.exp %168 : vector<1x512xf32>
    %170 = arith.subf %166, %167 : vector<1x512xf32>
    %171 = math.exp %170 : vector<1x512xf32>
    %172 = arith.addf %169, %171 : vector<1x512xf32>
    %173 = tpu.reciprocal %172 {approx = true} : vector<1x512xf32> -> vector<1x512xf32>
    %174 = arith.mulf %169, %173 : vector<1x512xf32>
    %175 = vector.broadcast %174 : vector<1x512xf32> to vector<32x512xf32>
    %176 = arith.mulf %175, %29 : vector<32x512xf32>
    %177 = arith.mulf %171, %173 : vector<1x512xf32>
    %178 = vector.broadcast %177 : vector<1x512xf32> to vector<32x512xf32>
    %179 = arith.mulf %178, %30 : vector<32x512xf32>
    %180 = arith.addf %176, %179 : vector<32x512xf32>
    %181 = arith.mulf %16, %23 : vector<32x512xf32>
    %cst_32 = arith.constant dense<0.000000e+00> : vector<512xf32>
    %182 = vector.multi_reduction <add>, %181, %cst_32 [0] : vector<32x512xf32> to vector<512xf32>
    %183 = vector.shape_cast %182 : vector<512xf32> to vector<1x512xf32>
    %cst_33 = arith.constant 0.176776692 : f32
    %184 = vector.broadcast %cst_33 : f32 to vector<1x512xf32>
    %185 = arith.mulf %183, %184 : vector<1x512xf32>
    %186 = arith.mulf %16, %24 : vector<32x512xf32>
    %cst_34 = arith.constant dense<0.000000e+00> : vector<512xf32>
    %187 = vector.multi_reduction <add>, %186, %cst_34 [0] : vector<32x512xf32> to vector<512xf32>
    %188 = vector.shape_cast %187 : vector<512xf32> to vector<1x512xf32>
    %cst_35 = arith.constant 0.176776692 : f32
    %189 = vector.broadcast %cst_35 : f32 to vector<1x512xf32>
    %190 = arith.mulf %188, %189 : vector<1x512xf32>
    %191 = arith.maximumf %185, %190 : vector<1x512xf32>
    %192 = arith.subf %185, %191 : vector<1x512xf32>
    %193 = math.exp %192 : vector<1x512xf32>
    %194 = arith.subf %190, %191 : vector<1x512xf32>
    %195 = math.exp %194 : vector<1x512xf32>
    %196 = arith.addf %193, %195 : vector<1x512xf32>
    %197 = tpu.reciprocal %196 {approx = true} : vector<1x512xf32> -> vector<1x512xf32>
    %198 = arith.mulf %193, %197 : vector<1x512xf32>
    %199 = vector.broadcast %198 : vector<1x512xf32> to vector<32x512xf32>
    %200 = arith.mulf %199, %31 : vector<32x512xf32>
    %201 = arith.mulf %195, %197 : vector<1x512xf32>
    %202 = vector.broadcast %201 : vector<1x512xf32> to vector<32x512xf32>
    %203 = arith.mulf %202, %32 : vector<32x512xf32>
    %204 = arith.addf %200, %203 : vector<32x512xf32>
    %205 = arith.mulf %18, %25 : vector<32x512xf32>
    %cst_36 = arith.constant dense<0.000000e+00> : vector<512xf32>
    %206 = vector.multi_reduction <add>, %205, %cst_36 [0] : vector<32x512xf32> to vector<512xf32>
    %207 = vector.shape_cast %206 : vector<512xf32> to vector<1x512xf32>
    %cst_37 = arith.constant 0.176776692 : f32
    %208 = vector.broadcast %cst_37 : f32 to vector<1x512xf32>
    %209 = arith.mulf %207, %208 : vector<1x512xf32>
    %210 = arith.mulf %18, %26 : vector<32x512xf32>
    %cst_38 = arith.constant dense<0.000000e+00> : vector<512xf32>
    %211 = vector.multi_reduction <add>, %210, %cst_38 [0] : vector<32x512xf32> to vector<512xf32>
    %212 = vector.shape_cast %211 : vector<512xf32> to vector<1x512xf32>
    %cst_39 = arith.constant 0.176776692 : f32
    %213 = vector.broadcast %cst_39 : f32 to vector<1x512xf32>
    %214 = arith.mulf %212, %213 : vector<1x512xf32>
    %215 = arith.maximumf %209, %214 : vector<1x512xf32>
    %216 = arith.subf %209, %215 : vector<1x512xf32>
    %217 = math.exp %216 : vector<1x512xf32>
    %218 = arith.subf %214, %215 : vector<1x512xf32>
    %219 = math.exp %218 : vector<1x512xf32>
    %220 = arith.addf %217, %219 : vector<1x512xf32>
    %221 = tpu.reciprocal %220 {approx = true} : vector<1x512xf32> -> vector<1x512xf32>
    %222 = arith.mulf %217, %221 : vector<1x512xf32>
    %223 = vector.broadcast %222 : vector<1x512xf32> to vector<32x512xf32>
    %224 = arith.mulf %223, %33 : vector<32x512xf32>
    %225 = arith.mulf %219, %221 : vector<1x512xf32>
    %226 = vector.broadcast %225 : vector<1x512xf32> to vector<32x512xf32>
    %227 = arith.mulf %226, %34 : vector<32x512xf32>
    %228 = arith.addf %224, %227 : vector<32x512xf32>
    %229 = tpu.concatenate %156, %180, %204, %228 in 0 : vector<32x512xf32>, vector<32x512xf32>, vector<32x512xf32>, vector<32x512xf32> -> vector<128x512xf32>
    %230 = arith.truncf %229 : vector<128x512xf32> to vector<128x512xbf16>
    %231 = tpu.concatenate %132, %230 in 1 : vector<128x512xbf16>, vector<128x512xbf16> -> vector<128x1024xbf16>
    %c0_40 = arith.constant 0 : index
    %c0_41 = arith.constant 0 : index
    %232 = vector.load %arg4[%c0_40, %c0_41] : memref<128x128xbf16, #tpu.memory_space<vmem>>, vector<128x128xbf16>
    %cst_42 = arith.constant dense<0.000000e+00> : vector<128x1024xf32>
    %233 = tpu.matmul %232, %231, %cst_42 {dimension_numbers = #tpu.dot_dimension_numbers<[1], [0], [0], [1], [0, 0, 1, 1], [], []>} : vector<128x128xbf16>, vector<128x1024xbf16>, vector<128x1024xf32> -> vector<128x1024xf32>
    %c0_43 = arith.constant 0 : index
    %c0_44 = arith.constant 0 : index
    %234 = vector.load %arg5[%c0_43, %c0_44] : memref<128x1xf32, #tpu.memory_space<vmem>>, vector<128x1xf32>
    %235 = vector.broadcast %234 : vector<128x1xf32> to vector<128x1024xf32>
    %236 = arith.addf %233, %235 : vector<128x1024xf32>
    %237 = arith.addf %4, %236 : vector<128x1024xf32>
    %c0_45 = arith.constant 0 : index
    %c0_46 = arith.constant 0 : index
    %238 = vector.load %arg6[%c0_45, %c0_46] : memref<128x1xf32, #tpu.memory_space<vmem>>, vector<128x1xf32>
    %c0_47 = arith.constant 0 : index
    %c0_48 = arith.constant 0 : index
    %239 = vector.load %arg7[%c0_47, %c0_48] : memref<128x1xf32, #tpu.memory_space<vmem>>, vector<128x1xf32>
    %cst_49 = arith.constant dense<0.000000e+00> : vector<1024xf32>
    %240 = vector.multi_reduction <add>, %237, %cst_49 [0] : vector<128x1024xf32> to vector<1024xf32>
    %241 = vector.shape_cast %240 : vector<1024xf32> to vector<1x1024xf32>
    %242 = arith.mulf %237, %237 : vector<128x1024xf32>
    %cst_50 = arith.constant dense<0.000000e+00> : vector<1024xf32>
    %243 = vector.multi_reduction <add>, %242, %cst_50 [0] : vector<128x1024xf32> to vector<1024xf32>
    %244 = vector.shape_cast %243 : vector<1024xf32> to vector<1x1024xf32>
    %cst_51 = arith.constant 7.812500e-03 : f32
    %245 = vector.broadcast %cst_51 : f32 to vector<1x1024xf32>
    %246 = arith.mulf %241, %245 : vector<1x1024xf32>
    %cst_52 = arith.constant 7.812500e-03 : f32
    %247 = vector.broadcast %cst_52 : f32 to vector<1x1024xf32>
    %248 = arith.mulf %244, %247 : vector<1x1024xf32>
    %249 = arith.mulf %246, %246 : vector<1x1024xf32>
    %250 = arith.subf %248, %249 : vector<1x1024xf32>
    %cst_53 = arith.constant 0.000000e+00 : f32
    %251 = vector.broadcast %cst_53 : f32 to vector<1x1024xf32>
    %252 = arith.maximumf %250, %251 : vector<1x1024xf32>
    %253 = vector.broadcast %246 : vector<1x1024xf32> to vector<128x1024xf32>
    %254 = arith.subf %237, %253 : vector<128x1024xf32>
    %cst_54 = arith.constant 9.99999974E-6 : f32
    %255 = vector.broadcast %cst_54 : f32 to vector<1x1024xf32>
    %256 = arith.addf %252, %255 : vector<1x1024xf32>
    %257 = math.rsqrt %256 : vector<1x1024xf32>
    %258 = vector.broadcast %257 : vector<1x1024xf32> to vector<128x1024xf32>
    %259 = arith.mulf %254, %258 : vector<128x1024xf32>
    %260 = vector.broadcast %238 : vector<128x1xf32> to vector<128x1024xf32>
    %261 = arith.mulf %259, %260 : vector<128x1024xf32>
    %262 = vector.broadcast %239 : vector<128x1xf32> to vector<128x1024xf32>
    %263 = arith.addf %261, %262 : vector<128x1024xf32>
    %c0_55 = arith.constant 0 : index
    %c0_56 = arith.constant 0 : index
    %264 = vector.load %arg8[%c0_55, %c0_56] : memref<256x128xbf16, #tpu.memory_space<vmem>>, vector<256x128xbf16>
    %265 = arith.truncf %263 : vector<128x1024xf32> to vector<128x1024xbf16>
    %cst_57 = arith.constant dense<0.000000e+00> : vector<256x1024xf32>
    %266 = tpu.matmul %264, %265, %cst_57 {dimension_numbers = #tpu.dot_dimension_numbers<[1], [0], [0], [1], [0, 0, 1, 1], [], []>} : vector<256x128xbf16>, vector<128x1024xbf16>, vector<256x1024xf32> -> vector<256x1024xf32>
    %c0_58 = arith.constant 0 : index
    %c0_59 = arith.constant 0 : index
    %267 = vector.load %arg9[%c0_58, %c0_59] : memref<256x1xf32, #tpu.memory_space<vmem>>, vector<256x1xf32>
    %268 = vector.broadcast %267 : vector<256x1xf32> to vector<256x1024xf32>
    %269 = arith.addf %266, %268 : vector<256x1024xf32>
    %cst_60 = arith.constant 0.000000e+00 : f32
    %270 = vector.broadcast %cst_60 : f32 to vector<256x1024xf32>
    %271 = arith.maximumf %269, %270 : vector<256x1024xf32>
    %c0_61 = arith.constant 0 : index
    %c0_62 = arith.constant 0 : index
    %272 = vector.load %arg10[%c0_61, %c0_62] : memref<128x256xbf16, #tpu.memory_space<vmem>>, vector<128x256xbf16>
    %273 = arith.truncf %271 : vector<256x1024xf32> to vector<256x1024xbf16>
    %cst_63 = arith.constant dense<0.000000e+00> : vector<128x1024xf32>
    %274 = tpu.matmul %272, %273, %cst_63 {dimension_numbers = #tpu.dot_dimension_numbers<[1], [0], [0], [1], [0, 0, 1, 1], [], []>} : vector<128x256xbf16>, vector<256x1024xbf16>, vector<128x1024xf32> -> vector<128x1024xf32>
    %c0_64 = arith.constant 0 : index
    %c0_65 = arith.constant 0 : index
    %275 = vector.load %arg11[%c0_64, %c0_65] : memref<128x1xf32, #tpu.memory_space<vmem>>, vector<128x1xf32>
    %276 = vector.broadcast %275 : vector<128x1xf32> to vector<128x1024xf32>
    %277 = arith.addf %274, %276 : vector<128x1024xf32>
    %278 = arith.addf %263, %277 : vector<128x1024xf32>
    %c0_66 = arith.constant 0 : index
    %c0_67 = arith.constant 0 : index
    %279 = vector.load %arg12[%c0_66, %c0_67] : memref<128x1xf32, #tpu.memory_space<vmem>>, vector<128x1xf32>
    %c0_68 = arith.constant 0 : index
    %c0_69 = arith.constant 0 : index
    %280 = vector.load %arg13[%c0_68, %c0_69] : memref<128x1xf32, #tpu.memory_space<vmem>>, vector<128x1xf32>
    %cst_70 = arith.constant dense<0.000000e+00> : vector<1024xf32>
    %281 = vector.multi_reduction <add>, %278, %cst_70 [0] : vector<128x1024xf32> to vector<1024xf32>
    %282 = vector.shape_cast %281 : vector<1024xf32> to vector<1x1024xf32>
    %283 = arith.mulf %278, %278 : vector<128x1024xf32>
    %cst_71 = arith.constant dense<0.000000e+00> : vector<1024xf32>
    %284 = vector.multi_reduction <add>, %283, %cst_71 [0] : vector<128x1024xf32> to vector<1024xf32>
    %285 = vector.shape_cast %284 : vector<1024xf32> to vector<1x1024xf32>
    %cst_72 = arith.constant 7.812500e-03 : f32
    %286 = vector.broadcast %cst_72 : f32 to vector<1x1024xf32>
    %287 = arith.mulf %282, %286 : vector<1x1024xf32>
    %cst_73 = arith.constant 7.812500e-03 : f32
    %288 = vector.broadcast %cst_73 : f32 to vector<1x1024xf32>
    %289 = arith.mulf %285, %288 : vector<1x1024xf32>
    %290 = arith.mulf %287, %287 : vector<1x1024xf32>
    %291 = arith.subf %289, %290 : vector<1x1024xf32>
    %cst_74 = arith.constant 0.000000e+00 : f32
    %292 = vector.broadcast %cst_74 : f32 to vector<1x1024xf32>
    %293 = arith.maximumf %291, %292 : vector<1x1024xf32>
    %294 = vector.broadcast %287 : vector<1x1024xf32> to vector<128x1024xf32>
    %295 = arith.subf %278, %294 : vector<128x1024xf32>
    %cst_75 = arith.constant 9.99999974E-6 : f32
    %296 = vector.broadcast %cst_75 : f32 to vector<1x1024xf32>
    %297 = arith.addf %293, %296 : vector<1x1024xf32>
    %298 = math.rsqrt %297 : vector<1x1024xf32>
    %299 = vector.broadcast %298 : vector<1x1024xf32> to vector<128x1024xf32>
    %300 = arith.mulf %295, %299 : vector<128x1024xf32>
    %301 = vector.broadcast %279 : vector<128x1xf32> to vector<128x1024xf32>
    %302 = arith.mulf %300, %301 : vector<128x1024xf32>
    %303 = vector.broadcast %280 : vector<128x1xf32> to vector<128x1024xf32>
    %304 = arith.addf %302, %303 : vector<128x1024xf32>
    %305 = vector.extract_strided_slice %304 {offsets = [0, 0], sizes = [128, 512], strides = [1, 1]} : vector<128x1024xf32> to vector<128x512xf32>
    %c0_76 = arith.constant 0 : index
    %c0_77 = arith.constant 0 : index
    %c0_78 = arith.constant 0 : index
    %306 = vector.load %arg14[%c0_76, %c0_77, %c0_78] : memref<2x128x512xf32, #tpu.memory_space<vmem>>, vector<1x128x512xf32>
    %307 = vector.shape_cast %306 : vector<1x128x512xf32> to vector<128x512xf32>
    %308 = vector.shape_cast %305 : vector<128x512xf32> to vector<1x128x512xf32>
    tpu.vector_store %arg14[%c0_76, %c0_77, %c0_78], %308 {strides = array<i32>} : memref<2x128x512xf32, #tpu.memory_space<vmem>>, vector<1x128x512xf32>,
    %309 = vector.extract_strided_slice %304 {offsets = [0, 512], sizes = [128, 512], strides = [1, 1]} : vector<128x1024xf32> to vector<128x512xf32>
    %c1_79 = arith.constant 1 : index
    %c0_80 = arith.constant 0 : index
    %c0_81 = arith.constant 0 : index
    %310 = vector.load %arg14[%c1_79, %c0_80, %c0_81] : memref<2x128x512xf32, #tpu.memory_space<vmem>>, vector<1x128x512xf32>
    %311 = vector.shape_cast %310 : vector<1x128x512xf32> to vector<128x512xf32>
    %312 = vector.shape_cast %309 : vector<128x512xf32> to vector<1x128x512xf32>
    tpu.vector_store %arg14[%c1_79, %c0_80, %c0_81], %312 {strides = array<i32>} : memref<2x128x512xf32, #tpu.memory_space<vmem>>, vector<1x128x512xf32>,
    return
  }
  func.func @transform_0(%arg0: i32) -> (i32, i32, i32) {
    %c0_i32 = arith.constant 0 : i32
    %c0_i32_0 = arith.constant 0 : i32
    %c0_i32_1 = arith.constant 0 : i32
    return %c0_i32, %c0_i32_0, %arg0 : i32, i32, i32
  }
  func.func @transform_1(%arg0: i32) -> (i32, i32) {
    %c0_i32 = arith.constant 0 : i32
    %c0_i32_0 = arith.constant 0 : i32
    %c0_i32_1 = arith.constant 0 : i32
    return %c0_i32, %c0_i32_0 : i32, i32
  }
  func.func @transform_2(%arg0: i32) -> (i32, i32) {
    %c0_i32 = arith.constant 0 : i32
    %c0_i32_0 = arith.constant 0 : i32
    %c0_i32_1 = arith.constant 0 : i32
    return %c0_i32, %c0_i32_0 : i32, i32
  }
  func.func @transform_3(%arg0: i32) -> (i32, i32) {
    %c0_i32 = arith.constant 0 : i32
    %c0_i32_0 = arith.constant 0 : i32
    %c0_i32_1 = arith.constant 0 : i32
    return %c0_i32, %c0_i32_0 : i32, i32
  }
  func.func @transform_4(%arg0: i32) -> (i32, i32) {
    %c0_i32 = arith.constant 0 : i32
    %c0_i32_0 = arith.constant 0 : i32
    %c0_i32_1 = arith.constant 0 : i32
    return %c0_i32, %c0_i32_0 : i32, i32
  }
  func.func @transform_5(%arg0: i32) -> (i32, i32) {
    %c0_i32 = arith.constant 0 : i32
    %c0_i32_0 = arith.constant 0 : i32
    %c0_i32_1 = arith.constant 0 : i32
    return %c0_i32, %c0_i32_0 : i32, i32
  }
  func.func @transform_6(%arg0: i32) -> (i32, i32) {
    %c0_i32 = arith.constant 0 : i32
    %c0_i32_0 = arith.constant 0 : i32
    %c0_i32_1 = arith.constant 0 : i32
    return %c0_i32, %c0_i32_0 : i32, i32
  }
  func.func @transform_7(%arg0: i32) -> (i32, i32) {
    %c0_i32 = arith.constant 0 : i32
    %c0_i32_0 = arith.constant 0 : i32
    %c0_i32_1 = arith.constant 0 : i32
    return %c0_i32, %c0_i32_0 : i32, i32
  }
  func.func @transform_8(%arg0: i32) -> (i32, i32) {
    %c0_i32 = arith.constant 0 : i32
    %c0_i32_0 = arith.constant 0 : i32
    %c0_i32_1 = arith.constant 0 : i32
    return %c0_i32, %c0_i32_0 : i32, i32
  }
  func.func @transform_9(%arg0: i32) -> (i32, i32) {
    %c0_i32 = arith.constant 0 : i32
    %c0_i32_0 = arith.constant 0 : i32
    %c0_i32_1 = arith.constant 0 : i32
    return %c0_i32, %c0_i32_0 : i32, i32
  }
  func.func @transform_10(%arg0: i32) -> (i32, i32) {
    %c0_i32 = arith.constant 0 : i32
    %c0_i32_0 = arith.constant 0 : i32
    %c0_i32_1 = arith.constant 0 : i32
    return %c0_i32, %c0_i32_0 : i32, i32
  }
  func.func @transform_11(%arg0: i32) -> (i32, i32) {
    %c0_i32 = arith.constant 0 : i32
    %c0_i32_0 = arith.constant 0 : i32
    %c0_i32_1 = arith.constant 0 : i32
    return %c0_i32, %c0_i32_0 : i32, i32
  }
  func.func @transform_12(%arg0: i32) -> (i32, i32) {
    %c0_i32 = arith.constant 0 : i32
    %c0_i32_0 = arith.constant 0 : i32
    %c0_i32_1 = arith.constant 0 : i32
    return %c0_i32, %c0_i32_0 : i32, i32
  }
  func.func @transform_13(%arg0: i32) -> (i32, i32, i32) {
    %c0_i32 = arith.constant 0 : i32
    %c0_i32_0 = arith.constant 0 : i32
    %c0_i32_1 = arith.constant 0 : i32
    return %c0_i32, %c0_i32_0, %arg0 : i32, i32, i32
  }
}

</mosaic_0001>

<llo_original>
// kernel: tpu_custom_call.1
$region0: #{tpu_custom_call.1}
  #allocation0 [shape = 'u32[]', space=smem, size = 0x4, offset = 0x4, fixed_abs, tag = 'smem constant byte address 0x4 - core index']
  #allocation1 [shape = 'u32[144,128]{1,0:T(1,128)}', space=vmem, size = 0x12000, scoped, tag = 'internal scratch']
  %s0 = inlined_call_operand.hbm [shape: f32[2,128,1024], index: 0, kind: input, shape index: {}]
  %s1 = inlined_call_operand.vmem [shape: bf16[384,128], index: 1, kind: input, shape index: {}]
  %s2 = inlined_call_operand.vmem [shape: f32[384,1], index: 2, kind: input, shape index: {}]
  %s3 = inlined_call_operand.vmem [shape: bf16[128,128], index: 3, kind: input, shape index: {}]
  %s4 = inlined_call_operand.vmem [shape: f32[128,1], index: 4, kind: input, shape index: {}]
  %s5 = inlined_call_operand.vmem [shape: f32[128,1], index: 5, kind: input, shape index: {}]
  %s6 = inlined_call_operand.vmem [shape: f32[128,1], index: 6, kind: input, shape index: {}]
  %s7 = inlined_call_operand.vmem [shape: bf16[256,128], index: 7, kind: input, shape index: {}]
  %s8 = inlined_call_operand.vmem [shape: f32[256,1], index: 8, kind: input, shape index: {}]
  %s9 = inlined_call_operand.vmem [shape: bf16[128,256], index: 9, kind: input, shape index: {}]
  %s10 = inlined_call_operand.vmem [shape: f32[128,1], index: 10, kind: input, shape index: {}]
  %s11 = inlined_call_operand.vmem [shape: f32[128,1], index: 11, kind: input, shape index: {}]
  %s12 = inlined_call_operand.vmem [shape: f32[128,1], index: 12, kind: input, shape index: {}]
  %s13 = inlined_call_operand.hbm [shape: f32[2,128,1024], index: 13, kind: output, shape index: {}]
  %s14 = sld [smem:[#allocation0]]
  $region89: #{tpu_custom_call.1} parent=0
    _
  %s16 = ssub.s32 1, %s14
  %s17 = scalar_select 0, %s16, %s14
  $region1: #{tpu_custom_call.1} parent=0
    #allocation2 [shape = 'u8[1048576]{0}', space=vmem, size = 0x100000, scoped, tag = 'input window, operand 0']
    #allocation3 [shape = 's32[2]{0}', space=sflag, size = 0x8, scoped, tag = 'scoped memory for tpu_custom_call.1']
    #allocation4 [shape = 's32[2]{0}', space=sflag, size = 0x8, scoped, tag = 'scoped memory for tpu_custom_call.1']
    #allocation5 [shape = 'u8[1048576]{0}', space=vmem, size = 0x100000, scoped, tag = 'output window, operand 0']
    %18 = vsyncpa [#allocation3], 0
    %s19 = scalar_lea.sflag [#allocation3], 1
    %20 = vsyncpa %s19, 0
    %21 = vsyncpa [#allocation4], 0
    %s22 = scalar_lea.sflag [#allocation4], 1
    %23 = vsyncpa %s22, 0
    loop: start=0, step=1, limit=4
    $region2: #{tpu_custom_call.1} parent=1 // loop_pre_header
      _
    $region3: #{tpu_custom_call.1} parent=1 // loop_header
      %s25 = sphi 0, %s29
      %p26 = scmp.ge.s32.totalorder %s25, 4
      %s35 = sphi 0, %s37
      %s38 = sphi 0, %s35
      %s39 = sphi 0, %s38
      %s55 = sphi 0, %s39
      %s59 = sphi 0, %s59
      %s61 = sphi 0, %s59
      %s62 = sphi 0, %s61
      %s76 = sphi 0, %s62
      %s80 = sphi 0, %s80
      %s82 = sphi 0, %s80
      %s83 = sphi 0, %s82
      %s97 = sphi 0, %s83
      %s101 = sphi 0, %s101
      %s103 = sphi 0, %s101
      %s104 = sphi 0, %s103
      %s118 = sphi 0, %s104
      %s122 = sphi 0, %s122
      %s124 = sphi 0, %s122
      %s125 = sphi 0, %s124
      %s139 = sphi 0, %s125
      %s143 = sphi 0, %s143
      %s145 = sphi 0, %s143
      %s146 = sphi 0, %s145
      %s160 = sphi 0, %s146
      %s164 = sphi 0, %s164
      %s166 = sphi 0, %s164
      %s167 = sphi 0, %s166
      %s181 = sphi 0, %s167
      %s185 = sphi 0, %s185
      %s187 = sphi 0, %s185
      %s188 = sphi 0, %s187
      %s202 = sphi 0, %s188
      %s206 = sphi 0, %s206
      %s208 = sphi 0, %s206
      %s209 = sphi 0, %s208
      %s223 = sphi 0, %s209
      %s227 = sphi 0, %s227
      %s229 = sphi 0, %s227
      %s230 = sphi 0, %s229
      %s244 = sphi 0, %s230
      %s248 = sphi 0, %s248
      %s250 = sphi 0, %s248
      %s251 = sphi 0, %s250
      %s265 = sphi 0, %s251
      %s269 = sphi 0, %s269
      %s271 = sphi 0, %s269
      %s272 = sphi 0, %s271
      %s286 = sphi 0, %s272
      %s290 = sphi 0, %s290
      %s292 = sphi 0, %s290
      %s293 = sphi 0, %s292
      %s307 = sphi 0, %s293
      %s313 = sphi 0, %s315
      %s316 = sphi 0, %s313
      %s317 = sphi 0, %s316
      %s333 = sphi 0, %s317
    $region4: #{tpu_custom_call.1} parent=1 // loop_header_branch
      %28 = sbr.rel (%p26) target = $region8
    $region5: #{tpu_custom_call.1} parent=1 // loop_body
      %s30 = ssub.s32 %s25, 1
      %s31 = ssub.s32 %s25, 2
      %s32 = sadd.s32 %s25, 1
      %s33 = ssub.s32 %s25, %s32
      %p34 = scmp.eq.s32.totalorder %s33, 0
      %s36 = sadd.s32 %s35, 1
      %s37 = scalar_select %p34, %s35, %s36
      %p40 = pneg %p34
      %p41 = scmp.eq.s32.totalorder %s25, 1
      %p42 = por %p40, %p41
      %p43 = scmp.ne.s32.totalorder %s35, %s38
      %p44 = scmp.eq.s32.totalorder %s25, 0
      %p45 = por %p43, %p44
      %p46 = scmp.ne.s32.totalorder %s35, %s38
      %p47 = scmp.eq.s32.totalorder %s30, 1
      %p48 = por %p46, %p47
      %p49 = scmp.ne.s32.totalorder %s38, %s39
      %p50 = scmp.eq.s32.totalorder %s30, 0
      %p51 = por %p49, %p50
      %p52 = scmp.ne.s32.totalorder %s38, %s39
      %p53 = scmp.eq.s32.totalorder %s31, 1
      %p54 = por %p52, %p53
      %p56 = scmp.ne.s32.totalorder %s39, %s55
      %p57 = scmp.eq.s32.totalorder %s31, 0
      %p58 = por %p56, %p57
      %s60 = sadd.s32 %s59, 1
      %p63 = scmp.eq.s32.totalorder %s25, 1
      %p64 = scmp.ne.s32.totalorder %s59, %s61
      %p65 = scmp.eq.s32.totalorder %s25, 0
      %p66 = por %p64, %p65
      %p67 = scmp.ne.s32.totalorder %s59, %s61
      %p68 = scmp.eq.s32.totalorder %s30, 1
      %p69 = por %p67, %p68
      %p70 = scmp.ne.s32.totalorder %s61, %s62
      %p71 = scmp.eq.s32.totalorder %s30, 0
      %p72 = por %p70, %p71
      %p73 = scmp.ne.s32.totalorder %s61, %s62
      %p74 = scmp.eq.s32.totalorder %s31, 1
      %p75 = por %p73, %p74
      %p77 = scmp.ne.s32.totalorder %s62, %s76
      %p78 = scmp.eq.s32.totalorder %s31, 0
      %p79 = por %p77, %p78
      %s81 = sadd.s32 %s80, 1
      %p84 = scmp.eq.s32.totalorder %s25, 1
      %p85 = scmp.ne.s32.totalorder %s80, %s82
      %p86 = scmp.eq.s32.totalorder %s25, 0
      %p87 = por %p85, %p86
      %p88 = scmp.ne.s32.totalorder %s80, %s82
      %p89 = scmp.eq.s32.totalorder %s30, 1
      %p90 = por %p88, %p89
      %p91 = scmp.ne.s32.totalorder %s82, %s83
      %p92 = scmp.eq.s32.totalorder %s30, 0
      %p93 = por %p91, %p92
      %p94 = scmp.ne.s32.totalorder %s82, %s83
      %p95 = scmp.eq.s32.totalorder %s31, 1
      %p96 = por %p94, %p95
      %p98 = scmp.ne.s32.totalorder %s83, %s97
      %p99 = scmp.eq.s32.totalorder %s31, 0
      %p100 = por %p98, %p99
      %s102 = sadd.s32 %s101, 1
      %p105 = scmp.eq.s32.totalorder %s25, 1
      %p106 = scmp.ne.s32.totalorder %s101, %s103
      %p107 = scmp.eq.s32.totalorder %s25, 0
      %p108 = por %p106, %p107
      %p109 = scmp.ne.s32.totalorder %s101, %s103
      %p110 = scmp.eq.s32.totalorder %s30, 1
      %p111 = por %p109, %p110
      %p112 = scmp.ne.s32.totalorder %s103, %s104
      %p113 = scmp.eq.s32.totalorder %s30, 0
      %p114 = por %p112, %p113
      %p115 = scmp.ne.s32.totalorder %s103, %s104
      %p116 = scmp.eq.s32.totalorder %s31, 1
      %p117 = por %p115, %p116
      %p119 = scmp.ne.s32.totalorder %s104, %s118
      %p120 = scmp.eq.s32.totalorder %s31, 0
      %p121 = por %p119, %p120
      %s123 = sadd.s32 %s122, 1
      %p126 = scmp.eq.s32.totalorder %s25, 1
      %p127 = scmp.ne.s32.totalorder %s122, %s124
      %p128 = scmp.eq.s32.totalorder %s25, 0
      %p129 = por %p127, %p128
      %p130 = scmp.ne.s32.totalorder %s122, %s124
      %p131 = scmp.eq.s32.totalorder %s30, 1
      %p132 = por %p130, %p131
      %p133 = scmp.ne.s32.totalorder %s124, %s125
      %p134 = scmp.eq.s32.totalorder %s30, 0
      %p135 = por %p133, %p134
      %p136 = scmp.ne.s32.totalorder %s124, %s125
      %p137 = scmp.eq.s32.totalorder %s31, 1
      %p138 = por %p136, %p137
      %p140 = scmp.ne.s32.totalorder %s125, %s139
      %p141 = scmp.eq.s32.totalorder %s31, 0
      %p142 = por %p140, %p141
      %s144 = sadd.s32 %s143, 1
      %p147 = scmp.eq.s32.totalorder %s25, 1
      %p148 = scmp.ne.s32.totalorder %s143, %s145
      %p149 = scmp.eq.s32.totalorder %s25, 0
      %p150 = por %p148, %p149
      %p151 = scmp.ne.s32.totalorder %s143, %s145
      %p152 = scmp.eq.s32.totalorder %s30, 1
      %p153 = por %p151, %p152
      %p154 = scmp.ne.s32.totalorder %s145, %s146
      %p155 = scmp.eq.s32.totalorder %s30, 0
      %p156 = por %p154, %p155
      %p157 = scmp.ne.s32.totalorder %s145, %s146
      %p158 = scmp.eq.s32.totalorder %s31, 1
      %p159 = por %p157, %p158
      %p161 = scmp.ne.s32.totalorder %s146, %s160
      %p162 = scmp.eq.s32.totalorder %s31, 0
      %p163 = por %p161, %p162
      %s165 = sadd.s32 %s164, 1
      %p168 = scmp.eq.s32.totalorder %s25, 1
      %p169 = scmp.ne.s32.totalorder %s164, %s166
      %p170 = scmp.eq.s32.totalorder %s25, 0
      %p171 = por %p169, %p170
      %p172 = scmp.ne.s32.totalorder %s164, %s166
      %p173 = scmp.eq.s32.totalorder %s30, 1
      %p174 = por %p172, %p173
      %p175 = scmp.ne.s32.totalorder %s166, %s167
      %p176 = scmp.eq.s32.totalorder %s30, 0
      %p177 = por %p175, %p176
      %p178 = scmp.ne.s32.totalorder %s166, %s167
      %p179 = scmp.eq.s32.totalorder %s31, 1
      %p180 = por %p178, %p179
      %p182 = scmp.ne.s32.totalorder %s167, %s181
      %p183 = scmp.eq.s32.totalorder %s31, 0
      %p184 = por %p182, %p183
      %s186 = sadd.s32 %s185, 1
      %p189 = scmp.eq.s32.totalorder %s25, 1
      %p190 = scmp.ne.s32.totalorder %s185, %s187
      %p191 = scmp.eq.s32.totalorder %s25, 0
      %p192 = por %p190, %p191
      %p193 = scmp.ne.s32.totalorder %s185, %s187
      %p194 = scmp.eq.s32.totalorder %s30, 1
      %p195 = por %p193, %p194
      %p196 = scmp.ne.s32.totalorder %s187, %s188
      %p197 = scmp.eq.s32.totalorder %s30, 0
      %p198 = por %p196, %p197
      %p199 = scmp.ne.s32.totalorder %s187, %s188
      %p200 = scmp.eq.s32.totalorder %s31, 1
      %p201 = por %p199, %p200
      %p203 = scmp.ne.s32.totalorder %s188, %s202
      %p204 = scmp.eq.s32.totalorder %s31, 0
      %p205 = por %p203, %p204
      %s207 = sadd.s32 %s206, 1
      %p210 = scmp.eq.s32.totalorder %s25, 1
      %p211 = scmp.ne.s32.totalorder %s206, %s208
      %p212 = scmp.eq.s32.totalorder %s25, 0
      %p213 = por %p211, %p212
      %p214 = scmp.ne.s32.totalorder %s206, %s208
      %p215 = scmp.eq.s32.totalorder %s30, 1
      %p216 = por %p214, %p215
      %p217 = scmp.ne.s32.totalorder %s208, %s209
      %p218 = scmp.eq.s32.totalorder %s30, 0
      %p219 = por %p217, %p218
      %p220 = scmp.ne.s32.totalorder %s208, %s209
      %p221 = scmp.eq.s32.totalorder %s31, 1
      %p222 = por %p220, %p221
      %p224 = scmp.ne.s32.totalorder %s209, %s223
      %p225 = scmp.eq.s32.totalorder %s31, 0
      %p226 = por %p224, %p225
      %s228 = sadd.s32 %s227, 1
      %p231 = scmp.eq.s32.totalorder %s25, 1
      %p232 = scmp.ne.s32.totalorder %s227, %s229
      %p233 = scmp.eq.s32.totalorder %s25, 0
      %p234 = por %p232, %p233
      %p235 = scmp.ne.s32.totalorder %s227, %s229
      %p236 = scmp.eq.s32.totalorder %s30, 1
      %p237 = por %p235, %p236
      %p238 = scmp.ne.s32.totalorder %s229, %s230
      %p239 = scmp.eq.s32.totalorder %s30, 0
      %p240 = por %p238, %p239
      %p241 = scmp.ne.s32.totalorder %s229, %s230
      %p242 = scmp.eq.s32.totalorder %s31, 1
      %p243 = por %p241, %p242
      %p245 = scmp.ne.s32.totalorder %s230, %s244
      %p246 = scmp.eq.s32.totalorder %s31, 0
      %p247 = por %p245, %p246
      %s249 = sadd.s32 %s248, 1
      %p252 = scmp.eq.s32.totalorder %s25, 1
      %p253 = scmp.ne.s32.totalorder %s248, %s250
      %p254 = scmp.eq.s32.totalorder %s25, 0
      %p255 = por %p253, %p254
      %p256 = scmp.ne.s32.totalorder %s248, %s250
      %p257 = scmp.eq.s32.totalorder %s30, 1
      %p258 = por %p256, %p257
      %p259 = scmp.ne.s32.totalorder %s250, %s251
      %p260 = scmp.eq.s32.totalorder %s30, 0
      %p261 = por %p259, %p260
      %p262 = scmp.ne.s32.totalorder %s250, %s251
      %p263 = scmp.eq.s32.totalorder %s31, 1
      %p264 = por %p262, %p263
      %p266 = scmp.ne.s32.totalorder %s251, %s265
      %p267 = scmp.eq.s32.totalorder %s31, 0
      %p268 = por %p266, %p267
      %s270 = sadd.s32 %s269, 1
      %p273 = scmp.eq.s32.totalorder %s25, 1
      %p274 = scmp.ne.s32.totalorder %s269, %s271
      %p275 = scmp.eq.s32.totalorder %s25, 0
      %p276 = por %p274, %p275
      %p277 = scmp.ne.s32.totalorder %s269, %s271
      %p278 = scmp.eq.s32.totalorder %s30, 1
      %p279 = por %p277, %p278
      %p280 = scmp.ne.s32.totalorder %s271, %s272
      %p281 = scmp.eq.s32.totalorder %s30, 0
      %p282 = por %p280, %p281
      %p283 = scmp.ne.s32.totalorder %s271, %s272
      %p284 = scmp.eq.s32.totalorder %s31, 1
      %p285 = por %p283, %p284
      %p287 = scmp.ne.s32.totalorder %s272, %s286
      %p288 = scmp.eq.s32.totalorder %s31, 0
      %p289 = por %p287, %p288
      %s291 = sadd.s32 %s290, 1
      %p294 = scmp.eq.s32.totalorder %s25, 1
      %p295 = scmp.ne.s32.totalorder %s290, %s292
      %p296 = scmp.eq.s32.totalorder %s25, 0
      %p297 = por %p295, %p296
      %p298 = scmp.ne.s32.totalorder %s290, %s292
      %p299 = scmp.eq.s32.totalorder %s30, 1
      %p300 = por %p298, %p299
      %p301 = scmp.ne.s32.totalorder %s292, %s293
      %p302 = scmp.eq.s32.totalorder %s30, 0
      %p303 = por %p301, %p302
      %p304 = scmp.ne.s32.totalorder %s292, %s293
      %p305 = scmp.eq.s32.totalorder %s31, 1
      %p306 = por %p304, %p305
      %p308 = scmp.ne.s32.totalorder %s293, %s307
      %p309 = scmp.eq.s32.totalorder %s31, 0
      %p310 = por %p308, %p309
      %s311 = ssub.s32 %s25, %s32
      %p312 = scmp.eq.s32.totalorder %s311, 0
      %s314 = sadd.s32 %s313, 1
      %s315 = scalar_select %p312, %s313, %s314
      %p318 = pneg %p312
      %p319 = scmp.eq.s32.totalorder %s25, 1
      %p320 = por %p318, %p319
      %p321 = scmp.ne.s32.totalorder %s313, %s316
      %p322 = scmp.eq.s32.totalorder %s25, 0
      %p323 = por %p321, %p322
      %p324 = scmp.ne.s32.totalorder %s313, %s316
      %p325 = scmp.eq.s32.totalorder %s30, 1
      %p326 = por %p324, %p325
      %p327 = scmp.ne.s32.totalorder %s316, %s317
      %p328 = scmp.eq.s32.totalorder %s30, 0
      %p329 = por %p327, %p328
      %p330 = scmp.ne.s32.totalorder %s316, %s317
      %p331 = scmp.eq.s32.totalorder %s31, 1
      %p332 = por %p330, %p331
      %p334 = scmp.ne.s32.totalorder %s317, %s333
      %p335 = scmp.eq.s32.totalorder %s31, 0
      %p336 = por %p334, %p335
      %p337 = scmp.le.s32.totalorder 1, %s25
      %p338 = scmp.lt.s32.totalorder %s25, 3
      %p339 = pnand %p337, %p338
      %p340 = pneg %p339
      // Predicated region
      $region9: #{tpu_custom_call.1} parent=5 // pred_check
        _
      $region10: #{tpu_custom_call.1} parent=5 // pred_check_branch
        %342 = sbr.rel (%p339) target = $region12
      $region11: #{tpu_custom_call.1} parent=5 // pred_region
        %s343 = ssub.s32 %s25, 1
        // Predicated region
        $region13: #{tpu_custom_call.1} parent=11 // pred_check
          %p344 = pneg %p72
        $region14: #{tpu_custom_call.1} parent=11 // pred_check_branch
          %346 = sbr.rel (%p344) target = $region16
        $region15: #{tpu_custom_call.1} parent=11 // pred_region
          _
        $region16: #{tpu_custom_call.1} parent=11 // pred_fallthru
          _
        // Predicated region
        $region17: #{tpu_custom_call.1} parent=11 // pred_check
          %p347 = pneg %p93
        $region18: #{tpu_custom_call.1} parent=11 // pred_check_branch
          %349 = sbr.rel (%p347) target = $region20
        $region19: #{tpu_custom_call.1} parent=11 // pred_region
          _
        $region20: #{tpu_custom_call.1} parent=11 // pred_fallthru
          _
        // Predicated region
        $region21: #{tpu_custom_call.1} parent=11 // pred_check
          %p350 = pneg %p114
        $region22: #{tpu_custom_call.1} parent=11 // pred_check_branch
          %352 = sbr.rel (%p350) target = $region24
        $region23: #{tpu_custom_call.1} parent=11 // pred_region
          _
        $region24: #{tpu_custom_call.1} parent=11 // pred_fallthru
          _
        // Predicated region
        $region25: #{tpu_custom_call.1} parent=11 // pred_check
          %p353 = pneg %p135
        $region26: #{tpu_custom_call.1} parent=11 // pred_check_branch
          %355 = sbr.rel (%p353) target = $region28
        $region27: #{tpu_custom_call.1} parent=11 // pred_region
          _
        $region28: #{tpu_custom_call.1} parent=11 // pred_fallthru
          _
        // Predicated region
        $region29: #{tpu_custom_call.1} parent=11 // pred_check
          %p356 = pneg %p156
        $region30: #{tpu_custom_call.1} parent=11 // pred_check_branch
          %358 = sbr.rel (%p356) target = $region32
        $region31: #{tpu_custom_call.1} parent=11 // pred_region
          _
        $region32: #{tpu_custom_call.1} parent=11 // pred_fallthru
          _
        // Predicated region
        $region33: #{tpu_custom_call.1} parent=11 // pred_check
          %p359 = pneg %p177
        $region34: #{tpu_custom_call.1} parent=11 // pred_check_branch
          %361 = sbr.rel (%p359) target = $region36
        $region35: #{tpu_custom_call.1} parent=11 // pred_region
          _
        $region36: #{tpu_custom_call.1} parent=11 // pred_fallthru
          _
        // Predicated region
        $region37: #{tpu_custom_call.1} parent=11 // pred_check
          %p362 = pneg %p198
        $region38: #{tpu_custom_call.1} parent=11 // pred_check_branch
          %364 = sbr.rel (%p362) target = $region40
        $region39: #{tpu_custom_call.1} parent=11 // pred_region
          _
        $region40: #{tpu_custom_call.1} parent=11 // pred_fallthru
          _
        // Predicated region
        $region41: #{tpu_custom_call.1} parent=11 // pred_check
          %p365 = pneg %p219
        $region42: #{tpu_custom_call.1} parent=11 // pred_check_branch
          %367 = sbr.rel (%p365) target = $region44
        $region43: #{tpu_custom_call.1} parent=11 // pred_region
          _
        $region44: #{tpu_custom_call.1} parent=11 // pred_fallthru
          _
        // Predicated region
        $region45: #{tpu_custom_call.1} parent=11 // pred_check
          %p368 = pneg %p240
        $region46: #{tpu_custom_call.1} parent=11 // pred_check_branch
          %370 = sbr.rel (%p368) target = $region48
        $region47: #{tpu_custom_call.1} parent=11 // pred_region
          _
        $region48: #{tpu_custom_call.1} parent=11 // pred_fallthru
          _
        // Predicated region
        $region49: #{tpu_custom_call.1} parent=11 // pred_check
          %p371 = pneg %p261
        $region50: #{tpu_custom_call.1} parent=11 // pred_check_branch
          %373 = sbr.rel (%p371) target = $region52
        $region51: #{tpu_custom_call.1} parent=11 // pred_region
          _
        $region52: #{tpu_custom_call.1} parent=11 // pred_fallthru
          _
        // Predicated region
        $region53: #{tpu_custom_call.1} parent=11 // pred_check
          %p374 = pneg %p282
        $region54: #{tpu_custom_call.1} parent=11 // pred_check_branch
          %376 = sbr.rel (%p374) target = $region56
        $region55: #{tpu_custom_call.1} parent=11 // pred_region
          _
        $region56: #{tpu_custom_call.1} parent=11 // pred_fallthru
          _
        // Predicated region
        $region57: #{tpu_custom_call.1} parent=11 // pred_check
          %p377 = pneg %p303
        $region58: #{tpu_custom_call.1} parent=11 // pred_check_branch
          %379 = sbr.rel (%p377) target = $region60
        $region59: #{tpu_custom_call.1} parent=11 // pred_region
          _
        $region60: #{tpu_custom_call.1} parent=11 // pred_fallthru
          _
      $region12: #{tpu_custom_call.1} parent=5 // pred_fallthru
        _
      %p380 = scmp.lt.s32.totalorder %s25, 2
      // Predicated region
      $region61: #{tpu_custom_call.1} parent=5 // pred_check
        %p381 = pneg %p380
      $region62: #{tpu_custom_call.1} parent=5 // pred_check_branch
        %383 = sbr.rel (%p381) target = $region64
      $region63: #{tpu_custom_call.1} parent=5 // pred_region
        // Predicated region
        $region65: #{tpu_custom_call.1} parent=63 // pred_check
          %p384 = pneg %p45
        $region66: #{tpu_custom_call.1} parent=63 // pred_check_branch
          %386 = sbr.rel (%p384) target = $region68
        $region67: #{tpu_custom_call.1} parent=63 // pred_region
          %s387 = sand.u32 %s35, 1
          %s388 = scalar_lea.sflag [#allocation3], %s387
          %s389 = sand.u32 %s35, 1
          %s390 = smul.addr %s389, 1024
          %s391 = scalar_lea.vmem [#allocation2], %s390
          %s392 = smul.u32 4, %s25
          %s394 = ssub.s32 16384, 16384
          %395 = vsyncadd %s388, %s394
          %s396 = smul.addr %s392, 128
          %s397 = scalar_lea.hbm %s0, %s396
          %s398 = sshll.u32 %s391, 4
          %s399 = int_to_ptr.vmem [resolvable:$true] %s398
          %404 = dma.hbm_to_vmem [thread:$0]  %s397, 16384, %s399, %s388, 1024, 512, 32
        $region68: #{tpu_custom_call.1} parent=63 // pred_fallthru
          _
      $region64: #{tpu_custom_call.1} parent=5 // pred_fallthru
        _
      %p405 = scmp.le.s32.totalorder 1, %s25
      %p406 = scmp.lt.s32.totalorder %s25, 3
      %p407 = pnand %p405, %p406
      %p408 = pneg %p407
      // Predicated region
      $region69: #{tpu_custom_call.1} parent=5 // pred_check
        _
      $region70: #{tpu_custom_call.1} parent=5 // pred_check_branch
        %410 = sbr.rel (%p407) target = $region72
      $region71: #{tpu_custom_call.1} parent=5 // pred_region
        %s411 = ssub.s32 %s25, 1
        %s412 = sand.u32 %s38, 1
        %s413 = scalar_lea.sflag [#allocation3], %s412
        %s414 = sand.u32 %s38, 1
        %s415 = smul.addr %s414, 1024
        %s416 = scalar_lea.vmem [#allocation2], %s415
        // Predicated region
        $region73: #{tpu_custom_call.1} parent=71 // pred_check
          %p417 = pneg %p51
        $region74: #{tpu_custom_call.1} parent=71 // pred_check_branch
          %419 = sbr.rel (%p417) target = $region76
        $region75: #{tpu_custom_call.1} parent=71 // pred_region
          %420 = dma.done %s413, 16384
        $region76: #{tpu_custom_call.1} parent=71 // pred_fallthru
          _
        %s421 = sand.u32 %s38, 1
        %s422 = scalar_lea.sflag [#allocation3], %s421
        %s423 = sand.u32 %s38, 1
        %s424 = smul.addr %s423, 1024
        %s425 = scalar_lea.vmem [#allocation2], %s424
        %p426 = pneg %p51
        %p427 = pneg %p48
        %p428 = pneg %p72
        %p429 = pneg %p69
        %p430 = pneg %p93
        %p431 = pneg %p90
        %p432 = pneg %p114
        %p433 = pneg %p111
        %p434 = pneg %p135
        %p435 = pneg %p132
        %p436 = pneg %p156
        %p437 = pneg %p153
        %p438 = pneg %p177
        %p439 = pneg %p174
        %p440 = pneg %p198
        %p441 = pneg %p195
        %p442 = pneg %p219
        %p443 = pneg %p216
        %p444 = pneg %p240
        %p445 = pneg %p237
        %p446 = pneg %p261
        %p447 = pneg %p258
        %p448 = pneg %p282
        %p449 = pneg %p279
        %p450 = pneg %p303
        %p451 = pneg %p300
        %p452 = pneg %p329
        %p453 = pneg %p326
        %s454 = sand.u32 %s316, 1
        %s455 = scalar_lea.sflag [#allocation4], %s454
        %s456 = sand.u32 %s316, 1
        %s457 = smul.addr %s456, 1024
        %s458 = scalar_lea.vmem [#allocation5], %s457
        %s459 = smul.u32 4, %s30
        %s460 = smul.u32 4, %s30
        %v462 = vld [vmem:[%s416] sm:$0xff]
        %v463 = vld [vmem:[%s416 + $0x8] sm:$0xff]
        %v464 = vld [vmem:[%s416 + $0x10] sm:$0xff]
        %v465 = vld [vmem:[%s416 + $0x18] sm:$0xff]
        %v466 = vld [vmem:[%s416 + $0x20] sm:$0xff]
        %v467 = vld [vmem:[%s416 + $0x28] sm:$0xff]
        %v468 = vld [vmem:[%s416 + $0x30] sm:$0xff]
        %v469 = vld [vmem:[%s416 + $0x38] sm:$0xff]
        %v470 = vld [vmem:[%s416 + $0x40] sm:$0xff]
        %v471 = vld [vmem:[%s416 + $0x48] sm:$0xff]
        %v472 = vld [vmem:[%s416 + $0x50] sm:$0xff]
        %v473 = vld [vmem:[%s416 + $0x58] sm:$0xff]
        %v474 = vld [vmem:[%s416 + $0x60] sm:$0xff]
        %v475 = vld [vmem:[%s416 + $0x68] sm:$0xff]
        %v476 = vld [vmem:[%s416 + $0x70] sm:$0xff]
        %v477 = vld [vmem:[%s416 + $0x78] sm:$0xff]
        %v478 = vld [vmem:[%s416 + $0x80] sm:$0xff]
        %v479 = vld [vmem:[%s416 + $0x88] sm:$0xff]
        %v480 = vld [vmem:[%s416 + $0x90] sm:$0xff]
        %v481 = vld [vmem:[%s416 + $0x98] sm:$0xff]
        %v482 = vld [vmem:[%s416 + $0xa0] sm:$0xff]
        %v483 = vld [vmem:[%s416 + $0xa8] sm:$0xff]
        %v484 = vld [vmem:[%s416 + $0xb0] sm:$0xff]
        %v485 = vld [vmem:[%s416 + $0xb8] sm:$0xff]
        %v486 = vld [vmem:[%s416 + $0xc0] sm:$0xff]
        %v487 = vld [vmem:[%s416 + $0xc8] sm:$0xff]
        %v488 = vld [vmem:[%s416 + $0xd0] sm:$0xff]
        %v489 = vld [vmem:[%s416 + $0xd8] sm:$0xff]
        %v490 = vld [vmem:[%s416 + $0xe0] sm:$0xff]
        %v491 = vld [vmem:[%s416 + $0xe8] sm:$0xff]
        %v492 = vld [vmem:[%s416 + $0xf0] sm:$0xff]
        %v493 = vld [vmem:[%s416 + $0xf8] sm:$0xff]
        %v494 = vld [vmem:[%s416 + $0x100] sm:$0xff]
        %v495 = vld [vmem:[%s416 + $0x108] sm:$0xff]
        %v496 = vld [vmem:[%s416 + $0x110] sm:$0xff]
        %v497 = vld [vmem:[%s416 + $0x118] sm:$0xff]
        %v498 = vld [vmem:[%s416 + $0x120] sm:$0xff]
        %v499 = vld [vmem:[%s416 + $0x128] sm:$0xff]
        %v500 = vld [vmem:[%s416 + $0x130] sm:$0xff]
        %v501 = vld [vmem:[%s416 + $0x138] sm:$0xff]
        %v502 = vld [vmem:[%s416 + $0x140] sm:$0xff]
        %v503 = vld [vmem:[%s416 + $0x148] sm:$0xff]
        %v504 = vld [vmem:[%s416 + $0x150] sm:$0xff]
        %v505 = vld [vmem:[%s416 + $0x158] sm:$0xff]
        %v506 = vld [vmem:[%s416 + $0x160] sm:$0xff]
        %v507 = vld [vmem:[%s416 + $0x168] sm:$0xff]
        %v508 = vld [vmem:[%s416 + $0x170] sm:$0xff]
        %v509 = vld [vmem:[%s416 + $0x178] sm:$0xff]
        %v510 = vld [vmem:[%s416 + $0x180] sm:$0xff]
        %v511 = vld [vmem:[%s416 + $0x188] sm:$0xff]
        %v512 = vld [vmem:[%s416 + $0x190] sm:$0xff]
        %v513 = vld [vmem:[%s416 + $0x198] sm:$0xff]
        %v514 = vld [vmem:[%s416 + $0x1a0] sm:$0xff]
        %v515 = vld [vmem:[%s416 + $0x1a8] sm:$0xff]
        %v516 = vld [vmem:[%s416 + $0x1b0] sm:$0xff]
        %v517 = vld [vmem:[%s416 + $0x1b8] sm:$0xff]
        %v518 = vld [vmem:[%s416 + $0x1c0] sm:$0xff]
        %v519 = vld [vmem:[%s416 + $0x1c8] sm:$0xff]
        %v520 = vld [vmem:[%s416 + $0x1d0] sm:$0xff]
        %v521 = vld [vmem:[%s416 + $0x1d8] sm:$0xff]
        %v522 = vld [vmem:[%s416 + $0x1e0] sm:$0xff]
        %v523 = vld [vmem:[%s416 + $0x1e8] sm:$0xff]
        %v524 = vld [vmem:[%s416 + $0x1f0] sm:$0xff]
        %v525 = vld [vmem:[%s416 + $0x1f8] sm:$0xff]
        %s526 = scalar_lea.vmem %s416, 512 [#allocation2]
        %v527 = vld [vmem:[%s526] sm:$0xff]
        %v528 = vld [vmem:[%s526 + $0x8] sm:$0xff]
        %v529 = vld [vmem:[%s526 + $0x10] sm:$0xff]
        %v530 = vld [vmem:[%s526 + $0x18] sm:$0xff]
        %v531 = vld [vmem:[%s526 + $0x20] sm:$0xff]
        %v532 = vld [vmem:[%s526 + $0x28] sm:$0xff]
        %v533 = vld [vmem:[%s526 + $0x30] sm:$0xff]
        %v534 = vld [vmem:[%s526 + $0x38] sm:$0xff]
        %v535 = vld [vmem:[%s526 + $0x40] sm:$0xff]
        %v536 = vld [vmem:[%s526 + $0x48] sm:$0xff]
        %v537 = vld [vmem:[%s526 + $0x50] sm:$0xff]
        %v538 = vld [vmem:[%s526 + $0x58] sm:$0xff]
        %v539 = vld [vmem:[%s526 + $0x60] sm:$0xff]
        %v540 = vld [vmem:[%s526 + $0x68] sm:$0xff]
        %v541 = vld [vmem:[%s526 + $0x70] sm:$0xff]
        %v542 = vld [vmem:[%s526 + $0x78] sm:$0xff]
        %v543 = vld [vmem:[%s526 + $0x80] sm:$0xff]
        %v544 = vld [vmem:[%s526 + $0x88] sm:$0xff]
        %v545 = vld [vmem:[%s526 + $0x90] sm:$0xff]
        %v546 = vld [vmem:[%s526 + $0x98] sm:$0xff]
        %v547 = vld [vmem:[%s526 + $0xa0] sm:$0xff]
        %v548 = vld [vmem:[%s526 + $0xa8] sm:$0xff]
        %v549 = vld [vmem:[%s526 + $0xb0] sm:$0xff]
        %v550 = vld [vmem:[%s526 + $0xb8] sm:$0xff]
        %v551 = vld [vmem:[%s526 + $0xc0] sm:$0xff]
        %v552 = vld [vmem:[%s526 + $0xc8] sm:$0xff]
        %v553 = vld [vmem:[%s526 + $0xd0] sm:$0xff]
        %v554 = vld [vmem:[%s526 + $0xd8] sm:$0xff]
        %v555 = vld [vmem:[%s526 + $0xe0] sm:$0xff]
        %v556 = vld [vmem:[%s526 + $0xe8] sm:$0xff]
        %v557 = vld [vmem:[%s526 + $0xf0] sm:$0xff]
        %v558 = vld [vmem:[%s526 + $0xf8] sm:$0xff]
        %v559 = vld [vmem:[%s526 + $0x100] sm:$0xff]
        %v560 = vld [vmem:[%s526 + $0x108] sm:$0xff]
        %v561 = vld [vmem:[%s526 + $0x110] sm:$0xff]
        %v562 = vld [vmem:[%s526 + $0x118] sm:$0xff]
        %v563 = vld [vmem:[%s526 + $0x120] sm:$0xff]
        %v564 = vld [vmem:[%s526 + $0x128] sm:$0xff]
        %v565 = vld [vmem:[%s526 + $0x130] sm:$0xff]
        %v566 = vld [vmem:[%s526 + $0x138] sm:$0xff]
        %v567 = vld [vmem:[%s526 + $0x140] sm:$0xff]
        %v568 = vld [vmem:[%s526 + $0x148] sm:$0xff]
        %v569 = vld [vmem:[%s526 + $0x150] sm:$0xff]
        %v570 = vld [vmem:[%s526 + $0x158] sm:$0xff]
        %v571 = vld [vmem:[%s526 + $0x160] sm:$0xff]
        %v572 = vld [vmem:[%s526 + $0x168] sm:$0xff]
        %v573 = vld [vmem:[%s526 + $0x170] sm:$0xff]
        %v574 = vld [vmem:[%s526 + $0x178] sm:$0xff]
        %v575 = vld [vmem:[%s526 + $0x180] sm:$0xff]
        %v576 = vld [vmem:[%s526 + $0x188] sm:$0xff]
        %v577 = vld [vmem:[%s526 + $0x190] sm:$0xff]
        %v578 = vld [vmem:[%s526 + $0x198] sm:$0xff]
        %v579 = vld [vmem:[%s526 + $0x1a0] sm:$0xff]
        %v580 = vld [vmem:[%s526 + $0x1a8] sm:$0xff]
        %v581 = vld [vmem:[%s526 + $0x1b0] sm:$0xff]
        %v582 = vld [vmem:[%s526 + $0x1b8] sm:$0xff]
        %v583 = vld [vmem:[%s526 + $0x1c0] sm:$0xff]
        %v584 = vld [vmem:[%s526 + $0x1c8] sm:$0xff]
        %v585 = vld [vmem:[%s526 + $0x1d0] sm:$0xff]
        %v586 = vld [vmem:[%s526 + $0x1d8] sm:$0xff]
        %v587 = vld [vmem:[%s526 + $0x1e0] sm:$0xff]
        %v588 = vld [vmem:[%s526 + $0x1e8] sm:$0xff]
        %v589 = vld [vmem:[%s526 + $0x1f0] sm:$0xff]
        %v590 = vld [vmem:[%s526 + $0x1f8] sm:$0xff]
        %v591 = vld [vmem:[%s1] sm:$0xf]
        %v592 = vld [vmem:[%s1 + $0x4] sm:$0xf]
        %v593 = vld [vmem:[%s1 + $0x8] sm:$0xf]
        %v594 = vld [vmem:[%s1 + $0xc] sm:$0xf]
        %v595 = vld [vmem:[%s1 + $0x10] sm:$0xf]
        %v596 = vld [vmem:[%s1 + $0x14] sm:$0xf]
        %v597 = vld [vmem:[%s1 + $0x18] sm:$0xf]
        %v598 = vld [vmem:[%s1 + $0x1c] sm:$0xf]
        %v599 = vld [vmem:[%s1 + $0x20] sm:$0xf]
        %v600 = vld [vmem:[%s1 + $0x24] sm:$0xf]
        %v601 = vld [vmem:[%s1 + $0x28] sm:$0xf]
        %v602 = vld [vmem:[%s1 + $0x2c] sm:$0xf]
        %v603 = vld [vmem:[%s1 + $0x30] sm:$0xf]
        %v604 = vld [vmem:[%s1 + $0x34] sm:$0xf]
        %v605 = vld [vmem:[%s1 + $0x38] sm:$0xf]
        %v606 = vld [vmem:[%s1 + $0x3c] sm:$0xf]
        %v607 = vld [vmem:[%s1 + $0x40] sm:$0xf]
        %v608 = vld [vmem:[%s1 + $0x44] sm:$0xf]
        %v609 = vld [vmem:[%s1 + $0x48] sm:$0xf]
        %v610 = vld [vmem:[%s1 + $0x4c] sm:$0xf]
        %v611 = vld [vmem:[%s1 + $0x50] sm:$0xf]
        %v612 = vld [vmem:[%s1 + $0x54] sm:$0xf]
        %v613 = vld [vmem:[%s1 + $0x58] sm:$0xf]
        %v614 = vld [vmem:[%s1 + $0x5c] sm:$0xf]
        %v615 = vld [vmem:[%s1 + $0x60] sm:$0xf]
        %v616 = vld [vmem:[%s1 + $0x64] sm:$0xf]
        %v617 = vld [vmem:[%s1 + $0x68] sm:$0xf]
        %v618 = vld [vmem:[%s1 + $0x6c] sm:$0xf]
        %v619 = vld [vmem:[%s1 + $0x70] sm:$0xf]
        %v620 = vld [vmem:[%s1 + $0x74] sm:$0xf]
        %v621 = vld [vmem:[%s1 + $0x78] sm:$0xf]
        %v622 = vld [vmem:[%s1 + $0x7c] sm:$0xf]
        %v623 = vld [vmem:[%s1 + $0x80] sm:$0xf]
        %v624 = vld [vmem:[%s1 + $0x84] sm:$0xf]
        %v625 = vld [vmem:[%s1 + $0x88] sm:$0xf]
        %v626 = vld [vmem:[%s1 + $0x8c] sm:$0xf]
        %v627 = vld [vmem:[%s1 + $0x90] sm:$0xf]
        %v628 = vld [vmem:[%s1 + $0x94] sm:$0xf]
        %v629 = vld [vmem:[%s1 + $0x98] sm:$0xf]
        %v630 = vld [vmem:[%s1 + $0x9c] sm:$0xf]
        %v631 = vld [vmem:[%s1 + $0xa0] sm:$0xf]
        %v632 = vld [vmem:[%s1 + $0xa4] sm:$0xf]
        %v633 = vld [vmem:[%s1 + $0xa8] sm:$0xf]
        %v634 = vld [vmem:[%s1 + $0xac] sm:$0xf]
        %v635 = vld [vmem:[%s1 + $0xb0] sm:$0xf]
        %v636 = vld [vmem:[%s1 + $0xb4] sm:$0xf]
        %v637 = vld [vmem:[%s1 + $0xb8] sm:$0xf]
        %v638 = vld [vmem:[%s1 + $0xbc] sm:$0xf]
        %v639 = vpack.c.bf16 %v466, %v462
        %v640 = vpack.c.bf16 %v467, %v463
        %v641 = vpack.c.bf16 %v468, %v464
        %v642 = vpack.c.bf16 %v469, %v465
        %v643 = vpack.c.bf16 %v531, %v527
        %v644 = vpack.c.bf16 %v532, %v528
        %v645 = vpack.c.bf16 %v533, %v529
        %v646 = vpack.c.bf16 %v534, %v530
        %v647 = vpack.c.bf16 %v474, %v470
        %v648 = vpack.c.bf16 %v475, %v471
        %v649 = vpack.c.bf16 %v476, %v472
        %v650 = vpack.c.bf16 %v477, %v473
        %v651 = vpack.c.bf16 %v539, %v535
        %v652 = vpack.c.bf16 %v540, %v536
        %v653 = vpack.c.bf16 %v541, %v537
        %v654 = vpack.c.bf16 %v542, %v538
        %v655 = vpack.c.bf16 %v482, %v478
        %v656 = vpack.c.bf16 %v483, %v479
        %v657 = vpack.c.bf16 %v484, %v480
        %v658 = vpack.c.bf16 %v485, %v481
        %v659 = vpack.c.bf16 %v547, %v543
        %v660 = vpack.c.bf16 %v548, %v544
        %v661 = vpack.c.bf16 %v549, %v545
        %v662 = vpack.c.bf16 %v550, %v546
        %v663 = vpack.c.bf16 %v490, %v486
        %v664 = vpack.c.bf16 %v491, %v487
        %v665 = vpack.c.bf16 %v492, %v488
        %v666 = vpack.c.bf16 %v493, %v489
        %v667 = vpack.c.bf16 %v555, %v551
        %v668 = vpack.c.bf16 %v556, %v552
        %v669 = vpack.c.bf16 %v557, %v553
        %v670 = vpack.c.bf16 %v558, %v554
        %v671 = vpack.c.bf16 %v498, %v494
        %v672 = vpack.c.bf16 %v499, %v495
        %v673 = vpack.c.bf16 %v500, %v496
        %v674 = vpack.c.bf16 %v501, %v497
        %v675 = vpack.c.bf16 %v563, %v559
        %v676 = vpack.c.bf16 %v564, %v560
        %v677 = vpack.c.bf16 %v565, %v561
        %v678 = vpack.c.bf16 %v566, %v562
        %v679 = vpack.c.bf16 %v506, %v502
        %v680 = vpack.c.bf16 %v507, %v503
        %v681 = vpack.c.bf16 %v508, %v504
        %v682 = vpack.c.bf16 %v509, %v505
        %v683 = vpack.c.bf16 %v571, %v567
        %v684 = vpack.c.bf16 %v572, %v568
        %v685 = vpack.c.bf16 %v573, %v569
        %v686 = vpack.c.bf16 %v574, %v570
        %v687 = vpack.c.bf16 %v514, %v510
        %v688 = vpack.c.bf16 %v515, %v511
        %v689 = vpack.c.bf16 %v516, %v512
        %v690 = vpack.c.bf16 %v517, %v513
        %v691 = vpack.c.bf16 %v579, %v575
        %v692 = vpack.c.bf16 %v580, %v576
        %v693 = vpack.c.bf16 %v581, %v577
        %v694 = vpack.c.bf16 %v582, %v578
        %v695 = vpack.c.bf16 %v522, %v518
        %v696 = vpack.c.bf16 %v523, %v519
        %v697 = vpack.c.bf16 %v524, %v520
        %v698 = vpack.c.bf16 %v525, %v521
        %v699 = vpack.c.bf16 %v587, %v583
        %v700 = vpack.c.bf16 %v588, %v584
        %v701 = vpack.c.bf16 %v589, %v585
        %v702 = vpack.c.bf16 %v590, %v586
        %v703 = vld [vmem:[%s2] sm:$0xff]
        %v704 = vld [vmem:[%s2 + $0x8] sm:$0xff]
        %v705 = vld [vmem:[%s2 + $0x10] sm:$0xff]
        %v706 = vld [vmem:[%s2 + $0x18] sm:$0xff]
        %v707 = vld [vmem:[%s2 + $0x20] sm:$0xff]
        %v708 = vld [vmem:[%s2 + $0x28] sm:$0xff]
        %v709 = vld [vmem:[%s2 + $0x30] sm:$0xff]
        %v710 = vld [vmem:[%s2 + $0x38] sm:$0xff]
        %v711 = vld [vmem:[%s2 + $0x40] sm:$0xff]
        %v712 = vld [vmem:[%s2 + $0x48] sm:$0xff]
        %v713 = vld [vmem:[%s2 + $0x50] sm:$0xff]
        %v714 = vld [vmem:[%s2 + $0x58] sm:$0xff]
        %v715 = vld [vmem:[%s2 + $0x60] sm:$0xff]
        %v716 = vld [vmem:[%s2 + $0x68] sm:$0xff]
        %v717 = vld [vmem:[%s2 + $0x70] sm:$0xff]
        %v718 = vld [vmem:[%s2 + $0x78] sm:$0xff]
        %v719 = vld [vmem:[%s2 + $0x80] sm:$0xff]
        %v720 = vld [vmem:[%s2 + $0x88] sm:$0xff]
        %v721 = vld [vmem:[%s2 + $0x90] sm:$0xff]
        %v722 = vld [vmem:[%s2 + $0x98] sm:$0xff]
        %v723 = vld [vmem:[%s2 + $0xa0] sm:$0xff]
        %v724 = vld [vmem:[%s2 + $0xa8] sm:$0xff]
        %v725 = vld [vmem:[%s2 + $0xb0] sm:$0xff]
        %v726 = vld [vmem:[%s2 + $0xb8] sm:$0xff]
        %v727 = vld [vmem:[%s2 + $0xc0] sm:$0xff]
        %v728 = vld [vmem:[%s2 + $0xc8] sm:$0xff]
        %v729 = vld [vmem:[%s2 + $0xd0] sm:$0xff]
        %v730 = vld [vmem:[%s2 + $0xd8] sm:$0xff]
        %v731 = vld [vmem:[%s2 + $0xe0] sm:$0xff]
        %v732 = vld [vmem:[%s2 + $0xe8] sm:$0xff]
        %v733 = vld [vmem:[%s2 + $0xf0] sm:$0xff]
        %v734 = vld [vmem:[%s2 + $0xf8] sm:$0xff]
        %v735 = vld [vmem:[%s2 + $0x100] sm:$0xff]
        %v736 = vld [vmem:[%s2 + $0x108] sm:$0xff]
        %v737 = vld [vmem:[%s2 + $0x110] sm:$0xff]
        %v738 = vld [vmem:[%s2 + $0x118] sm:$0xff]
        %v739 = vld [vmem:[%s2 + $0x120] sm:$0xff]
        %v740 = vld [vmem:[%s2 + $0x128] sm:$0xff]
        %v741 = vld [vmem:[%s2 + $0x130] sm:$0xff]
        %v742 = vld [vmem:[%s2 + $0x138] sm:$0xff]
        %v743 = vld [vmem:[%s2 + $0x140] sm:$0xff]
        %v744 = vld [vmem:[%s2 + $0x148] sm:$0xff]
        %v745 = vld [vmem:[%s2 + $0x150] sm:$0xff]
        %v746 = vld [vmem:[%s2 + $0x158] sm:$0xff]
        %v747 = vld [vmem:[%s2 + $0x160] sm:$0xff]
        %v748 = vld [vmem:[%s2 + $0x168] sm:$0xff]
        %v749 = vld [vmem:[%s2 + $0x170] sm:$0xff]
        %v750 = vld [vmem:[%s2 + $0x178] sm:$0xff]
        %752 = vset.pattern.permute.xlu0 0
        %753 = vperm.xlu0 %752, %v703
        %v754 = vpop.permute.xlu0 %753
        %757 = vset.pattern.permute.xlu0 0
        %758 = vperm.xlu0 %757, %v704
        %v759 = vpop.permute.xlu0 %758
        %762 = vset.pattern.permute.xlu0 0
        %763 = vperm.xlu0 %762, %v705
        %v764 = vpop.permute.xlu0 %763
        %767 = vset.pattern.permute.xlu0 0
        %768 = vperm.xlu0 %767, %v706
        %v769 = vpop.permute.xlu0 %768
        %772 = vset.pattern.permute.xlu0 0
        %773 = vperm.xlu0 %772, %v707
        %v774 = vpop.permute.xlu0 %773
        %777 = vset.pattern.permute.xlu0 0
        %778 = vperm.xlu0 %777, %v708
        %v779 = vpop.permute.xlu0 %778
        %782 = vset.pattern.permute.xlu0 0
        %783 = vperm.xlu0 %782, %v709
        %v784 = vpop.permute.xlu0 %783
        %787 = vset.pattern.permute.xlu0 0
        %788 = vperm.xlu0 %787, %v710
        %v789 = vpop.permute.xlu0 %788
        %792 = vset.pattern.permute.xlu0 0
        %793 = vperm.xlu0 %792, %v711
        %v794 = vpop.permute.xlu0 %793
        %797 = vset.pattern.permute.xlu0 0
        %798 = vperm.xlu0 %797, %v712
        %v799 = vpop.permute.xlu0 %798
        %802 = vset.pattern.permute.xlu0 0
        %803 = vperm.xlu0 %802, %v713
        %v804 = vpop.permute.xlu0 %803
        %807 = vset.pattern.permute.xlu0 0
        %808 = vperm.xlu0 %807, %v714
        %v809 = vpop.permute.xlu0 %808
        %812 = vset.pattern.permute.xlu0 0
        %813 = vperm.xlu0 %812, %v715
        %v814 = vpop.permute.xlu0 %813
        %817 = vset.pattern.permute.xlu0 0
        %818 = vperm.xlu0 %817, %v716
        %v819 = vpop.permute.xlu0 %818
        %822 = vset.pattern.permute.xlu0 0
        %823 = vperm.xlu0 %822, %v717
        %v824 = vpop.permute.xlu0 %823
        %827 = vset.pattern.permute.xlu0 0
        %828 = vperm.xlu0 %827, %v718
        %v829 = vpop.permute.xlu0 %828
        %832 = vset.pattern.permute.xlu0 0
        %833 = vperm.xlu0 %832, %v719
        %v834 = vpop.permute.xlu0 %833
        %837 = vset.pattern.permute.xlu0 0
        %838 = vperm.xlu0 %837, %v720
        %v839 = vpop.permute.xlu0 %838
        %842 = vset.pattern.permute.xlu0 0
        %843 = vperm.xlu0 %842, %v721
        %v844 = vpop.permute.xlu0 %843
        %847 = vset.pattern.permute.xlu0 0
        %848 = vperm.xlu0 %847, %v722
        %v849 = vpop.permute.xlu0 %848
        %852 = vset.pattern.permute.xlu0 0
        %853 = vperm.xlu0 %852, %v723
        %v854 = vpop.permute.xlu0 %853
        %857 = vset.pattern.permute.xlu0 0
        %858 = vperm.xlu0 %857, %v724
        %v859 = vpop.permute.xlu0 %858
        %862 = vset.pattern.permute.xlu0 0
        %863 = vperm.xlu0 %862, %v725
        %v864 = vpop.permute.xlu0 %863
        %867 = vset.pattern.permute.xlu0 0
        %868 = vperm.xlu0 %867, %v726
        %v869 = vpop.permute.xlu0 %868
        %872 = vset.pattern.permute.xlu0 0
        %873 = vperm.xlu0 %872, %v727
        %v874 = vpop.permute.xlu0 %873
        %877 = vset.pattern.permute.xlu0 0
        %878 = vperm.xlu0 %877, %v728
        %v879 = vpop.permute.xlu0 %878
        %882 = vset.pattern.permute.xlu0 0
        %883 = vperm.xlu0 %882, %v729
        %v884 = vpop.permute.xlu0 %883
        %887 = vset.pattern.permute.xlu0 0
        %888 = vperm.xlu0 %887, %v730
        %v889 = vpop.permute.xlu0 %888
        %892 = vset.pattern.permute.xlu0 0
        %893 = vperm.xlu0 %892, %v731
        %v894 = vpop.permute.xlu0 %893
        %897 = vset.pattern.permute.xlu0 0
        %898 = vperm.xlu0 %897, %v732
        %v899 = vpop.permute.xlu0 %898
        %902 = vset.pattern.permute.xlu0 0
        %903 = vperm.xlu0 %902, %v733
        %v904 = vpop.permute.xlu0 %903
        %907 = vset.pattern.permute.xlu0 0
        %908 = vperm.xlu0 %907, %v734
        %v909 = vpop.permute.xlu0 %908
        %912 = vset.pattern.permute.xlu0 0
        %913 = vperm.xlu0 %912, %v735
        %v914 = vpop.permute.xlu0 %913
        %917 = vset.pattern.permute.xlu0 0
        %918 = vperm.xlu0 %917, %v736
        %v919 = vpop.permute.xlu0 %918
        %922 = vset.pattern.permute.xlu0 0
        %923 = vperm.xlu0 %922, %v737
        %v924 = vpop.permute.xlu0 %923
        %927 = vset.pattern.permute.xlu0 0
        %928 = vperm.xlu0 %927, %v738
        %v929 = vpop.permute.xlu0 %928
        %932 = vset.pattern.permute.xlu0 0
        %933 = vperm.xlu0 %932, %v739
        %v934 = vpop.permute.xlu0 %933
        %937 = vset.pattern.permute.xlu0 0
        %938 = vperm.xlu0 %937, %v740
        %v939 = vpop.permute.xlu0 %938
        %942 = vset.pattern.permute.xlu0 0
        %943 = vperm.xlu0 %942, %v741
        %v944 = vpop.permute.xlu0 %943
        %947 = vset.pattern.permute.xlu0 0
        %948 = vperm.xlu0 %947, %v742
        %v949 = vpop.permute.xlu0 %948
        %952 = vset.pattern.permute.xlu0 0
        %953 = vperm.xlu0 %952, %v743
        %v954 = vpop.permute.xlu0 %953
        %957 = vset.pattern.permute.xlu0 0
        %958 = vperm.xlu0 %957, %v744
        %v959 = vpop.permute.xlu0 %958
        %962 = vset.pattern.permute.xlu0 0
        %963 = vperm.xlu0 %962, %v745
        %v964 = vpop.permute.xlu0 %963
        %967 = vset.pattern.permute.xlu0 0
        %968 = vperm.xlu0 %967, %v746
        %v969 = vpop.permute.xlu0 %968
        %972 = vset.pattern.permute.xlu0 0
        %973 = vperm.xlu0 %972, %v747
        %v974 = vpop.permute.xlu0 %973
        %977 = vset.pattern.permute.xlu0 0
        %978 = vperm.xlu0 %977, %v748
        %v979 = vpop.permute.xlu0 %978
        %982 = vset.pattern.permute.xlu0 0
        %983 = vperm.xlu0 %982, %v749
        %v984 = vpop.permute.xlu0 %983
        %987 = vset.pattern.permute.xlu0 0
        %988 = vperm.xlu0 %987, %v750
        %v989 = vpop.permute.xlu0 %988
        %v1039 = vunpack.c.l.b16 %v591
        %v1040 = vunpack.c.l.b16 %v592
        %v1041 = vunpack.c.l.b16 %v593
        %v1042 = vunpack.c.l.b16 %v594
        %v1043 = vunpack.c.l.b16 %v595
        %v1044 = vunpack.c.l.b16 %v596
        %v1045 = vunpack.c.l.b16 %v597
        %v1046 = vunpack.c.l.b16 %v598
        %v1047 = vunpack.c.l.b16 %v599
        %v1048 = vunpack.c.l.b16 %v600
        %v1049 = vunpack.c.l.b16 %v601
        %v1050 = vunpack.c.l.b16 %v602
        %v1051 = vunpack.c.l.b16 %v603
        %v1052 = vunpack.c.l.b16 %v604
        %v1053 = vunpack.c.l.b16 %v605
        %v1054 = vunpack.c.l.b16 %v606
        %v1055 = vunpack.c.l.b16 %v607
        %v1056 = vunpack.c.l.b16 %v608
        %v1057 = vunpack.c.l.b16 %v609
        %v1058 = vunpack.c.l.b16 %v610
        %v1059 = vunpack.c.l.b16 %v611
        %v1060 = vunpack.c.l.b16 %v612
        %v1061 = vunpack.c.l.b16 %v613
        %v1062 = vunpack.c.l.b16 %v614
        %v1063 = vunpack.c.l.b16 %v615
        %v1064 = vunpack.c.l.b16 %v616
        %v1065 = vunpack.c.l.b16 %v617
        %v1066 = vunpack.c.l.b16 %v618
        %v1067 = vunpack.c.l.b16 %v619
        %v1068 = vunpack.c.l.b16 %v620
        %v1069 = vunpack.c.l.b16 %v621
        %v1070 = vunpack.c.l.b16 %v622
        %v1071 = vunpack.c.l.b16 %v623
        %v1072 = vunpack.c.l.b16 %v624
        %v1073 = vunpack.c.l.b16 %v625
        %v1074 = vunpack.c.l.b16 %v626
        %v1075 = vunpack.c.l.b16 %v627
        %v1076 = vunpack.c.l.b16 %v628
        %v1077 = vunpack.c.l.b16 %v629
        %v1078 = vunpack.c.l.b16 %v630
        %v1079 = vunpack.c.l.b16 %v631
        %v1080 = vunpack.c.l.b16 %v632
        %v1081 = vunpack.c.l.b16 %v633
        %v1082 = vunpack.c.l.b16 %v634
        %v1083 = vunpack.c.l.b16 %v635
        %v1084 = vunpack.c.l.b16 %v636
        %v1085 = vunpack.c.l.b16 %v637
        %v1086 = vunpack.c.l.b16 %v638
        %v1087 = vpack.c.b16 %v1040, %v1039
        %v1088 = vpack.c.b16 %v1042, %v1041
        %v1089 = vpack.c.b16 %v1044, %v1043
        %v1090 = vpack.c.b16 %v1046, %v1045
        %v1091 = vpack.c.b16 %v1048, %v1047
        %v1092 = vpack.c.b16 %v1050, %v1049
        %v1093 = vpack.c.b16 %v1052, %v1051
        %v1094 = vpack.c.b16 %v1054, %v1053
        %v1095 = vpack.c.b16 %v1056, %v1055
        %v1096 = vpack.c.b16 %v1058, %v1057
        %v1097 = vpack.c.b16 %v1060, %v1059
        %v1098 = vpack.c.b16 %v1062, %v1061
        %v1099 = vpack.c.b16 %v1064, %v1063
        %v1100 = vpack.c.b16 %v1066, %v1065
        %v1101 = vpack.c.b16 %v1068, %v1067
        %v1102 = vpack.c.b16 %v1070, %v1069
        %v1103 = vpack.c.b16 %v1072, %v1071
        %v1104 = vpack.c.b16 %v1074, %v1073
        %v1105 = vpack.c.b16 %v1076, %v1075
        %v1106 = vpack.c.b16 %v1078, %v1077
        %v1107 = vpack.c.b16 %v1080, %v1079
        %v1108 = vpack.c.b16 %v1082, %v1081
        %v1109 = vpack.c.b16 %v1084, %v1083
        %v1110 = vpack.c.b16 %v1086, %v1085
        %1135 = vmatprep.subr.bf16.mxu0 %v640
        %1136 = vmatpush1.bf16.msra.mxu0 %v639
        %1137 = vmatprep.subr.bf16.mxu0 %v648
        %1138 = vmatpush1.bf16.msra.mxu0 %v647
        %1139 = vmatprep.subr.bf16.mxu0 %v656
        %1140 = vmatpush1.bf16.msra.mxu0 %v655
        %1141 = vmatprep.subr.bf16.mxu0 %v664
        %1142 = vmatpush1.bf16.msra.mxu0 %v663
        %1143 = vmatprep.subr.bf16.mxu0 %v672
        %1144 = vmatpush1.bf16.msra.mxu0 %v671
        %1145 = vmatprep.subr.bf16.mxu0 %v680
        %1146 = vmatpush1.bf16.msra.mxu0 %v679
        %1147 = vmatprep.subr.bf16.mxu0 %v688
        %1148 = vmatpush1.bf16.msra.mxu0 %v687
        %1149 = vmatprep.subr.bf16.mxu0 %v696
        %1150 = vmatpush1.bf16.msra.mxu0 %v695
        %1151 = vmatprep.subr.bf16.mxu0 0
        %1152 = vmatpush1.bf16.msra.mxu0 0
        %1153 = vmatprep.subr.bf16.mxu0 0
        %1154 = vmatpush1.bf16.msra.mxu0 0
        %1155 = vmatprep.subr.bf16.mxu0 0
        %1156 = vmatpush1.bf16.msra.mxu0 0
        %1157 = vmatprep.subr.bf16.mxu0 0
        %1158 = vmatpush1.bf16.msra.mxu0 0
        %1159 = vmatprep.subr.bf16.mxu0 0
        %1160 = vmatpush1.bf16.msra.mxu0 0
        %1161 = vmatprep.subr.bf16.mxu0 0
        %1162 = vmatpush1.bf16.msra.mxu0 0
        %1163 = vmatprep.subr.bf16.mxu0 0
        %1164 = vmatpush1.bf16.msra.mxu0 0
        %1165 = vmatprep.subr.bf16.mxu0 0
        %1166 = vmatpush1.bf16.msra.mxu0 0
        %1167 = vmatprep.mubr.bf16.mxu0 0
        %1168 = vmatmul.mubr.bf16.gmra.mrb[0].mxu0 %v1087
        %v1169 = vpop.f32.mrb[0].mxu0
        %v1170 = vadd.f32 %v754, %v1169
        %v1171 = vpop.f32.mrb[0].mxu0
        %v1172 = vadd.f32 %v754, %v1171
        %v1173 = vpop.f32.mrb[0].mxu0
        %v1174 = vadd.f32 %v759, %v1173
        %v1175 = vpop.f32.mrb[0].mxu0
        %v1176 = vadd.f32 %v759, %v1175
        %1177 = vmatprep.mubr.bf16.mxu0 0
        %1178 = vmatmul.mubr.bf16.gmra.mrb[0].mxu0 %v1088
        %v1179 = vpop.f32.mrb[0].mxu0
        %v1180 = vadd.f32 %v764, %v1179
        %v1181 = vpop.f32.mrb[0].mxu0
        %v1182 = vadd.f32 %v764, %v1181
        %v1183 = vpop.f32.mrb[0].mxu0
        %v1184 = vadd.f32 %v769, %v1183
        %v1185 = vpop.f32.mrb[0].mxu0
        %v1186 = vadd.f32 %v769, %v1185
        %1187 = vmatprep.mubr.bf16.mxu0 0
        %1188 = vmatmul.mubr.bf16.gmra.mrb[0].mxu0 %v1089
        %v1189 = vpop.f32.mrb[0].mxu0
        %v1190 = vadd.f32 %v774, %v1189
        %v1191 = vpop.f32.mrb[0].mxu0
        %v1192 = vadd.f32 %v774, %v1191
        %v1193 = vpop.f32.mrb[0].mxu0
        %v1194 = vadd.f32 %v779, %v1193
        %v1195 = vpop.f32.mrb[0].mxu0
        %v1196 = vadd.f32 %v779, %v1195
        %1197 = vmatprep.mubr.bf16.mxu0 0
        %1198 = vmatmul.mubr.bf16.gmra.mrb[0].mxu0 %v1090
        %v1199 = vpop.f32.mrb[0].mxu0
        %v1200 = vadd.f32 %v784, %v1199
        %v1201 = vpop.f32.mrb[0].mxu0
        %v1202 = vadd.f32 %v784, %v1201
        %v1203 = vpop.f32.mrb[0].mxu0
        %v1204 = vadd.f32 %v789, %v1203
        %v1205 = vpop.f32.mrb[0].mxu0
        %v1206 = vadd.f32 %v789, %v1205
        %1207 = vmatprep.mubr.bf16.mxu0 0
        %1208 = vmatmul.mubr.bf16.gmra.mrb[0].mxu0 %v1091
        %v1209 = vpop.f32.mrb[0].mxu0
        %v1210 = vadd.f32 %v794, %v1209
        %v1211 = vpop.f32.mrb[0].mxu0
        %v1212 = vadd.f32 %v794, %v1211
        %v1213 = vpop.f32.mrb[0].mxu0
        %v1214 = vadd.f32 %v799, %v1213
        %v1215 = vpop.f32.mrb[0].mxu0
        %v1216 = vadd.f32 %v799, %v1215
        %1217 = vmatprep.mubr.bf16.mxu0 0
        %1218 = vmatmul.mubr.bf16.gmra.mrb[0].mxu0 %v1092
        %v1219 = vpop.f32.mrb[0].mxu0
        %v1220 = vadd.f32 %v804, %v1219
        %v1221 = vpop.f32.mrb[0].mxu0
        %v1222 = vadd.f32 %v804, %v1221
        %v1223 = vpop.f32.mrb[0].mxu0
        %v1224 = vadd.f32 %v809, %v1223
        %v1225 = vpop.f32.mrb[0].mxu0
        %v1226 = vadd.f32 %v809, %v1225
        %1227 = vmatprep.mubr.bf16.mxu0 0
        %1228 = vmatmul.mubr.bf16.gmra.mrb[0].mxu0 %v1093
        %v1229 = vpop.f32.mrb[0].mxu0
        %v1230 = vadd.f32 %v814, %v1229
        %v1231 = vpop.f32.mrb[0].mxu0
        %v1232 = vadd.f32 %v814, %v1231
        %v1233 = vpop.f32.mrb[0].mxu0
        %v1234 = vadd.f32 %v819, %v1233
        %v1235 = vpop.f32.mrb[0].mxu0
        %v1236 = vadd.f32 %v819, %v1235
        %1237 = vmatprep.mubr.bf16.mxu0 0
        %1238 = vmatmul.mubr.bf16.gmra.mrb[0].mxu0 %v1094
        %v1239 = vpop.f32.mrb[0].mxu0
        %v1240 = vadd.f32 %v824, %v1239
        %v1241 = vpop.f32.mrb[0].mxu0
        %v1242 = vadd.f32 %v824, %v1241
        %v1243 = vpop.f32.mrb[0].mxu0
        %v1244 = vadd.f32 %v829, %v1243
        %v1245 = vpop.f32.mrb[0].mxu0
        %v1246 = vadd.f32 %v829, %v1245
        %1247 = vmatprep.mubr.bf16.mxu0 0
        %1248 = vmatmul.mubr.bf16.gmra.mrb[0].mxu0 %v1095
        %v1249 = vpop.f32.mrb[0].mxu0
        %v1250 = vadd.f32 %v834, %v1249
        %v1251 = vpop.f32.mrb[0].mxu0
        %v1252 = vadd.f32 %v834, %v1251
        %v1253 = vpop.f32.mrb[0].mxu0
        %v1254 = vadd.f32 %v839, %v1253
        %v1255 = vpop.f32.mrb[0].mxu0
        %v1256 = vadd.f32 %v839, %v1255
        %1257 = vmatprep.mubr.bf16.mxu0 0
        %1258 = vmatmul.mubr.bf16.gmra.mrb[0].mxu0 %v1096
        %v1259 = vpop.f32.mrb[0].mxu0
        %v1260 = vadd.f32 %v844, %v1259
        %v1261 = vpop.f32.mrb[0].mxu0
        %v1262 = vadd.f32 %v844, %v1261
        %v1263 = vpop.f32.mrb[0].mxu0
        %v1264 = vadd.f32 %v849, %v1263
        %v1265 = vpop.f32.mrb[0].mxu0
        %v1266 = vadd.f32 %v849, %v1265
        %1267 = vmatprep.mubr.bf16.mxu0 0
        %1268 = vmatmul.mubr.bf16.gmra.mrb[0].mxu0 %v1097
        %v1269 = vpop.f32.mrb[0].mxu0
        %v1270 = vadd.f32 %v854, %v1269
        %v1271 = vpop.f32.mrb[0].mxu0
        %v1272 = vadd.f32 %v854, %v1271
        %v1273 = vpop.f32.mrb[0].mxu0
        %v1274 = vadd.f32 %v859, %v1273
        %v1275 = vpop.f32.mrb[0].mxu0
        %v1276 = vadd.f32 %v859, %v1275
        %1277 = vmatprep.mubr.bf16.mxu0 0
        %1278 = vmatmul.mubr.bf16.gmra.mrb[0].mxu0 %v1098
        %v1279 = vpop.f32.mrb[0].mxu0
        %v1280 = vadd.f32 %v864, %v1279
        %v1281 = vpop.f32.mrb[0].mxu0
        %v1282 = vadd.f32 %v864, %v1281
        %v1283 = vpop.f32.mrb[0].mxu0
        %v1284 = vadd.f32 %v869, %v1283
        %v1285 = vpop.f32.mrb[0].mxu0
        %v1286 = vadd.f32 %v869, %v1285
        %1287 = vmatprep.mubr.bf16.mxu0 0
        %1288 = vmatmul.mubr.bf16.gmra.mrb[0].mxu0 %v1099
        %v1289 = vpop.f32.mrb[0].mxu0
        %v1290 = vadd.f32 %v874, %v1289
        %v1291 = vpop.f32.mrb[0].mxu0
        %v1292 = vadd.f32 %v874, %v1291
        %v1293 = vpop.f32.mrb[0].mxu0
        %v1294 = vadd.f32 %v879, %v1293
        %v1295 = vpop.f32.mrb[0].mxu0
        %v1296 = vadd.f32 %v879, %v1295
        %1297 = vmatprep.mubr.bf16.mxu0 0
        %1298 = vmatmul.mubr.bf16.gmra.mrb[0].mxu0 %v1100
        %v1299 = vpop.f32.mrb[0].mxu0
        %v1300 = vadd.f32 %v884, %v1299
        %v1301 = vpop.f32.mrb[0].mxu0
        %v1302 = vadd.f32 %v884, %v1301
        %v1303 = vpop.f32.mrb[0].mxu0
        %v1304 = vadd.f32 %v889, %v1303
        %v1305 = vpop.f32.mrb[0].mxu0
        %v1306 = vadd.f32 %v889, %v1305
        %1307 = vmatprep.mubr.bf16.mxu0 0
        %1308 = vmatmul.mubr.bf16.gmra.mrb[0].mxu0 %v1101
        %v1309 = vpop.f32.mrb[0].mxu0
        %v1310 = vadd.f32 %v894, %v1309
        %v1311 = vpop.f32.mrb[0].mxu0
        %v1312 = vadd.f32 %v894, %v1311
        %v1313 = vpop.f32.mrb[0].mxu0
        %v1314 = vadd.f32 %v899, %v1313
        %v1315 = vpop.f32.mrb[0].mxu0
        %v1316 = vadd.f32 %v899, %v1315
        %1317 = vmatprep.mubr.bf16.mxu0 0
        %1318 = vmatmul.mubr.bf16.gmra.mrb[0].mxu0 %v1102
        %v1319 = vpop.f32.mrb[0].mxu0
        %v1320 = vadd.f32 %v904, %v1319
        %v1321 = vpop.f32.mrb[0].mxu0
        %v1322 = vadd.f32 %v904, %v1321
        %v1323 = vpop.f32.mrb[0].mxu0
        %v1324 = vadd.f32 %v909, %v1323
        %v1325 = vpop.f32.mrb[0].mxu0
        %v1326 = vadd.f32 %v909, %v1325
        %1327 = vmatprep.mubr.bf16.mxu0 0
        %1328 = vmatmul.mubr.bf16.gmra.mrb[0].mxu0 %v1103
        %v1329 = vpop.f32.mrb[0].mxu0
        %v1330 = vadd.f32 %v914, %v1329
        %v1331 = vpop.f32.mrb[0].mxu0
        %v1332 = vadd.f32 %v914, %v1331
        %v1333 = vpop.f32.mrb[0].mxu0
        %v1334 = vadd.f32 %v919, %v1333
        %v1335 = vpop.f32.mrb[0].mxu0
        %v1336 = vadd.f32 %v919, %v1335
        %1337 = vmatprep.mubr.bf16.mxu0 0
        %1338 = vmatmul.mubr.bf16.gmra.mrb[0].mxu0 %v1104
        %v1339 = vpop.f32.mrb[0].mxu0
        %v1340 = vadd.f32 %v924, %v1339
        %v1341 = vpop.f32.mrb[0].mxu0
        %v1342 = vadd.f32 %v924, %v1341
        %v1343 = vpop.f32.mrb[0].mxu0
        %v1344 = vadd.f32 %v929, %v1343
        %v1345 = vpop.f32.mrb[0].mxu0
        %v1346 = vadd.f32 %v929, %v1345
        %1347 = vmatprep.mubr.bf16.mxu0 0
        %1348 = vmatmul.mubr.bf16.gmra.mrb[0].mxu0 %v1105
        %v1349 = vpop.f32.mrb[0].mxu0
        %v1350 = vadd.f32 %v934, %v1349
        %v1351 = vpop.f32.mrb[0].mxu0
        %v1352 = vadd.f32 %v934, %v1351
        %v1353 = vpop.f32.mrb[0].mxu0
        %v1354 = vadd.f32 %v939, %v1353
        %v1355 = vpop.f32.mrb[0].mxu0
        %v1356 = vadd.f32 %v939, %v1355
        %1357 = vmatprep.mubr.bf16.mxu0 0
        %1358 = vmatmul.mubr.bf16.gmra.mrb[0].mxu0 %v1106
        %v1359 = vpop.f32.mrb[0].mxu0
        %v1360 = vadd.f32 %v944, %v1359
        %v1361 = vpop.f32.mrb[0].mxu0
        %v1362 = vadd.f32 %v944, %v1361
        %v1363 = vpop.f32.mrb[0].mxu0
        %v1364 = vadd.f32 %v949, %v1363
        %v1365 = vpop.f32.mrb[0].mxu0
        %v1366 = vadd.f32 %v949, %v1365
        %1367 = vmatprep.mubr.bf16.mxu0 0
        %1368 = vmatmul.mubr.bf16.gmra.mrb[0].mxu0 %v1107
        %v1369 = vpop.f32.mrb[0].mxu0
        %v1370 = vadd.f32 %v954, %v1369
        %v1371 = vpop.f32.mrb[0].mxu0
        %v1372 = vadd.f32 %v954, %v1371
        %v1373 = vpop.f32.mrb[0].mxu0
        %v1374 = vadd.f32 %v959, %v1373
        %v1375 = vpop.f32.mrb[0].mxu0
        %v1376 = vadd.f32 %v959, %v1375
        %1377 = vmatprep.mubr.bf16.mxu0 0
        %1378 = vmatmul.mubr.bf16.gmra.mrb[0].mxu0 %v1108
        %v1379 = vpop.f32.mrb[0].mxu0
        %v1380 = vadd.f32 %v964, %v1379
        %v1381 = vpop.f32.mrb[0].mxu0
        %v1382 = vadd.f32 %v964, %v1381
        %v1383 = vpop.f32.mrb[0].mxu0
        %v1384 = vadd.f32 %v969, %v1383
        %v1385 = vpop.f32.mrb[0].mxu0
        %v1386 = vadd.f32 %v969, %v1385
        %1387 = vmatprep.mubr.bf16.mxu0 0
        %1388 = vmatmul.mubr.bf16.gmra.mrb[0].mxu0 %v1109
        %v1389 = vpop.f32.mrb[0].mxu0
        %v1390 = vadd.f32 %v974, %v1389
        %v1391 = vpop.f32.mrb[0].mxu0
        %v1392 = vadd.f32 %v974, %v1391
        %v1393 = vpop.f32.mrb[0].mxu0
        %v1394 = vadd.f32 %v979, %v1393
        %v1395 = vpop.f32.mrb[0].mxu0
        %v1396 = vadd.f32 %v979, %v1395
        %1397 = vmatprep.mubr.bf16.mxu0 0
        %1398 = vmatmul.mubr.bf16.gmra.mrb[0].mxu0 %v1110
        %v1399 = vpop.f32.mrb[0].mxu0
        %v1400 = vadd.f32 %v984, %v1399
        %v1401 = vpop.f32.mrb[0].mxu0
        %v1402 = vadd.f32 %v984, %v1401
        %v1403 = vpop.f32.mrb[0].mxu0
        %v1404 = vadd.f32 %v989, %v1403
        %v1405 = vpop.f32.mrb[0].mxu0
        %v1406 = vadd.f32 %v989, %v1405
        %1407 = vdwg.mxu0
        %1408 = vmatprep.subr.bf16.mxu0 %v642
        %1409 = vmatpush1.bf16.msra.mxu0 %v641
        %1410 = vmatprep.subr.bf16.mxu0 %v650
        %1411 = vmatpush1.bf16.msra.mxu0 %v649
        %1412 = vmatprep.subr.bf16.mxu0 %v658
        %1413 = vmatpush1.bf16.msra.mxu0 %v657
        %1414 = vmatprep.subr.bf16.mxu0 %v666
        %1415 = vmatpush1.bf16.msra.mxu0 %v665
        %1416 = vmatprep.subr.bf16.mxu0 %v674
        %1417 = vmatpush1.bf16.msra.mxu0 %v673
        %1418 = vmatprep.subr.bf16.mxu0 %v682
        %1419 = vmatpush1.bf16.msra.mxu0 %v681
        %1420 = vmatprep.subr.bf16.mxu0 %v690
        %1421 = vmatpush1.bf16.msra.mxu0 %v689
        %1422 = vmatprep.subr.bf16.mxu0 %v698
        %1423 = vmatpush1.bf16.msra.mxu0 %v697
        %1424 = vmatprep.subr.bf16.mxu0 0
        %1425 = vmatpush1.bf16.msra.mxu0 0
        %1426 = vmatprep.subr.bf16.mxu0 0
        %1427 = vmatpush1.bf16.msra.mxu0 0
        %1428 = vmatprep.subr.bf16.mxu0 0
        %1429 = vmatpush1.bf16.msra.mxu0 0
        %1430 = vmatprep.subr.bf16.mxu0 0
        %1431 = vmatpush1.bf16.msra.mxu0 0
        %1432 = vmatprep.subr.bf16.mxu0 0
        %1433 = vmatpush1.bf16.msra.mxu0 0
        %1434 = vmatprep.subr.bf16.mxu0 0
        %1435 = vmatpush1.bf16.msra.mxu0 0
        %1436 = vmatprep.subr.bf16.mxu0 0
        %1437 = vmatpush1.bf16.msra.mxu0 0
        %1438 = vmatprep.subr.bf16.mxu0 0
        %1439 = vmatpush1.bf16.msra.mxu0 0
        %1440 = vmatprep.mubr.bf16.mxu0 0
        %1441 = vmatmul.mubr.bf16.gmra.mrb[0].mxu0 %v1087
        %v1442 = vpop.f32.mrb[0].mxu0
        %v1443 = vadd.f32 %v754, %v1442
        %v1444 = vpop.f32.mrb[0].mxu0
        %v1445 = vadd.f32 %v754, %v1444
        %v1446 = vpop.f32.mrb[0].mxu0
        %v1447 = vadd.f32 %v759, %v1446
        %v1448 = vpop.f32.mrb[0].mxu0
        %v1449 = vadd.f32 %v759, %v1448
        %1450 = vmatprep.mubr.bf16.mxu0 0
        %1451 = vmatmul.mubr.bf16.gmra.mrb[0].mxu0 %v1088
        %v1452 = vpop.f32.mrb[0].mxu0
        %v1453 = vadd.f32 %v764, %v1452
        %v1454 = vpop.f32.mrb[0].mxu0
        %v1455 = vadd.f32 %v764, %v1454
        %v1456 = vpop.f32.mrb[0].mxu0
        %v1457 = vadd.f32 %v769, %v1456
        %v1458 = vpop.f32.mrb[0].mxu0
        %v1459 = vadd.f32 %v769, %v1458
        %1460 = vmatprep.mubr.bf16.mxu0 0
        %1461 = vmatmul.mubr.bf16.gmra.mrb[0].mxu0 %v1089
        %v1462 = vpop.f32.mrb[0].mxu0
        %v1463 = vadd.f32 %v774, %v1462
        %v1464 = vpop.f32.mrb[0].mxu0
        %v1465 = vadd.f32 %v774, %v1464
        %v1466 = vpop.f32.mrb[0].mxu0
        %v1467 = vadd.f32 %v779, %v1466
        %v1468 = vpop.f32.mrb[0].mxu0
        %v1469 = vadd.f32 %v779, %v1468
        %1470 = vmatprep.mubr.bf16.mxu0 0
        %1471 = vmatmul.mubr.bf16.gmra.mrb[0].mxu0 %v1090
        %v1472 = vpop.f32.mrb[0].mxu0
        %v1473 = vadd.f32 %v784, %v1472
        %v1474 = vpop.f32.mrb[0].mxu0
        %v1475 = vadd.f32 %v784, %v1474
        %v1476 = vpop.f32.mrb[0].mxu0
        %v1477 = vadd.f32 %v789, %v1476
        %v1478 = vpop.f32.mrb[0].mxu0
        %v1479 = vadd.f32 %v789, %v1478
        %1480 = vmatprep.mubr.bf16.mxu0 0
        %1481 = vmatmul.mubr.bf16.gmra.mrb[0].mxu0 %v1091
        %v1482 = vpop.f32.mrb[0].mxu0
        %v1483 = vadd.f32 %v794, %v1482
        %v1484 = vpop.f32.mrb[0].mxu0
        %v1485 = vadd.f32 %v794, %v1484
        %v1486 = vpop.f32.mrb[0].mxu0
        %v1487 = vadd.f32 %v799, %v1486
        %v1488 = vpop.f32.mrb[0].mxu0
        %v1489 = vadd.f32 %v799, %v1488
        %1490 = vmatprep.mubr.bf16.mxu0 0
        %1491 = vmatmul.mubr.bf16.gmra.mrb[0].mxu0 %v1092
        %v1492 = vpop.f32.mrb[0].mxu0
        %v1493 = vadd.f32 %v804, %v1492
        %v1494 = vpop.f32.mrb[0].mxu0
        %v1495 = vadd.f32 %v804, %v1494
        %v1496 = vpop.f32.mrb[0].mxu0
        %v1497 = vadd.f32 %v809, %v1496
        %v1498 = vpop.f32.mrb[0].mxu0
        %v1499 = vadd.f32 %v809, %v1498
        %1500 = vmatprep.mubr.bf16.mxu0 0
        %1501 = vmatmul.mubr.bf16.gmra.mrb[0].mxu0 %v1093
        %v1502 = vpop.f32.mrb[0].mxu0
        %v1503 = vadd.f32 %v814, %v1502
        %v1504 = vpop.f32.mrb[0].mxu0
        %v1505 = vadd.f32 %v814, %v1504
        %v1506 = vpop.f32.mrb[0].mxu0
        %v1507 = vadd.f32 %v819, %v1506
        %v1508 = vpop.f32.mrb[0].mxu0
        %v1509 = vadd.f32 %v819, %v1508
        %1510 = vmatprep.mubr.bf16.mxu0 0
        %1511 = vmatmul.mubr.bf16.gmra.mrb[0].mxu0 %v1094
        %v1512 = vpop.f32.mrb[0].mxu0
        %v1513 = vadd.f32 %v824, %v1512
        %v1514 = vpop.f32.mrb[0].mxu0
        %v1515 = vadd.f32 %v824, %v1514
        %v1516 = vpop.f32.mrb[0].mxu0
        %v1517 = vadd.f32 %v829, %v1516
        %v1518 = vpop.f32.mrb[0].mxu0
        %v1519 = vadd.f32 %v829, %v1518
        %1520 = vmatprep.mubr.bf16.mxu0 0
        %1521 = vmatmul.mubr.bf16.gmra.mrb[0].mxu0 %v1095
        %v1522 = vpop.f32.mrb[0].mxu0
        %v1523 = vadd.f32 %v834, %v1522
        %v1524 = vpop.f32.mrb[0].mxu0
        %v1525 = vadd.f32 %v834, %v1524
        %v1526 = vpop.f32.mrb[0].mxu0
        %v1527 = vadd.f32 %v839, %v1526
        %v1528 = vpop.f32.mrb[0].mxu0
        %v1529 = vadd.f32 %v839, %v1528
        %1530 = vmatprep.mubr.bf16.mxu0 0
        %1531 = vmatmul.mubr.bf16.gmra.mrb[0].mxu0 %v1096
        %v1532 = vpop.f32.mrb[0].mxu0
        %v1533 = vadd.f32 %v844, %v1532
        %v1534 = vpop.f32.mrb[0].mxu0
        %v1535 = vadd.f32 %v844, %v1534
        %v1536 = vpop.f32.mrb[0].mxu0
        %v1537 = vadd.f32 %v849, %v1536
        %v1538 = vpop.f32.mrb[0].mxu0
        %v1539 = vadd.f32 %v849, %v1538
        %1540 = vmatprep.mubr.bf16.mxu0 0
        %1541 = vmatmul.mubr.bf16.gmra.mrb[0].mxu0 %v1097
        %v1542 = vpop.f32.mrb[0].mxu0
        %v1543 = vadd.f32 %v854, %v1542
        %v1544 = vpop.f32.mrb[0].mxu0
        %v1545 = vadd.f32 %v854, %v1544
        %v1546 = vpop.f32.mrb[0].mxu0
        %v1547 = vadd.f32 %v859, %v1546
        %v1548 = vpop.f32.mrb[0].mxu0
        %v1549 = vadd.f32 %v859, %v1548
        %1550 = vmatprep.mubr.bf16.mxu0 0
        %1551 = vmatmul.mubr.bf16.gmra.mrb[0].mxu0 %v1098
        %v1552 = vpop.f32.mrb[0].mxu0
        %v1553 = vadd.f32 %v864, %v1552
        %v1554 = vpop.f32.mrb[0].mxu0
        %v1555 = vadd.f32 %v864, %v1554
        %v1556 = vpop.f32.mrb[0].mxu0
        %v1557 = vadd.f32 %v869, %v1556
        %v1558 = vpop.f32.mrb[0].mxu0
        %v1559 = vadd.f32 %v869, %v1558
        %1560 = vmatprep.mubr.bf16.mxu0 0
        %1561 = vmatmul.mubr.bf16.gmra.mrb[0].mxu0 %v1099
        %v1562 = vpop.f32.mrb[0].mxu0
        %v1563 = vadd.f32 %v874, %v1562
        %v1564 = vpop.f32.mrb[0].mxu0
        %v1565 = vadd.f32 %v874, %v1564
        %v1566 = vpop.f32.mrb[0].mxu0
        %v1567 = vadd.f32 %v879, %v1566
        %v1568 = vpop.f32.mrb[0].mxu0
        %v1569 = vadd.f32 %v879, %v1568
        %1570 = vmatprep.mubr.bf16.mxu0 0
        %1571 = vmatmul.mubr.bf16.gmra.mrb[0].mxu0 %v1100
        %v1572 = vpop.f32.mrb[0].mxu0
        %v1573 = vadd.f32 %v884, %v1572
        %v1574 = vpop.f32.mrb[0].mxu0
        %v1575 = vadd.f32 %v884, %v1574
        %v1576 = vpop.f32.mrb[0].mxu0
        %v1577 = vadd.f32 %v889, %v1576
        %v1578 = vpop.f32.mrb[0].mxu0
        %v1579 = vadd.f32 %v889, %v1578
        %1580 = vmatprep.mubr.bf16.mxu0 0
        %1581 = vmatmul.mubr.bf16.gmra.mrb[0].mxu0 %v1101
        %v1582 = vpop.f32.mrb[0].mxu0
        %v1583 = vadd.f32 %v894, %v1582
        %v1584 = vpop.f32.mrb[0].mxu0
        %v1585 = vadd.f32 %v894, %v1584
        %v1586 = vpop.f32.mrb[0].mxu0
        %v1587 = vadd.f32 %v899, %v1586
        %v1588 = vpop.f32.mrb[0].mxu0
        %v1589 = vadd.f32 %v899, %v1588
        %1590 = vmatprep.mubr.bf16.mxu0 0
        %1591 = vmatmul.mubr.bf16.gmra.mrb[0].mxu0 %v1102
        %v1592 = vpop.f32.mrb[0].mxu0
        %v1593 = vadd.f32 %v904, %v1592
        %v1594 = vpop.f32.mrb[0].mxu0
        %v1595 = vadd.f32 %v904, %v1594
        %v1596 = vpop.f32.mrb[0].mxu0
        %v1597 = vadd.f32 %v909, %v1596
        %v1598 = vpop.f32.mrb[0].mxu0
        %v1599 = vadd.f32 %v909, %v1598
        %1600 = vmatprep.mubr.bf16.mxu0 0
        %1601 = vmatmul.mubr.bf16.gmra.mrb[0].mxu0 %v1103
        %v1602 = vpop.f32.mrb[0].mxu0
        %v1603 = vadd.f32 %v914, %v1602
        %v1604 = vpop.f32.mrb[0].mxu0
        %v1605 = vadd.f32 %v914, %v1604
        %v1606 = vpop.f32.mrb[0].mxu0
        %v1607 = vadd.f32 %v919, %v1606
        %v1608 = vpop.f32.mrb[0].mxu0
        %v1609 = vadd.f32 %v919, %v1608
        %1610 = vmatprep.mubr.bf16.mxu0 0
        %1611 = vmatmul.mubr.bf16.gmra.mrb[0].mxu0 %v1104
        %v1612 = vpop.f32.mrb[0].mxu0
        %v1613 = vadd.f32 %v924, %v1612
        %v1614 = vpop.f32.mrb[0].mxu0
        %v1615 = vadd.f32 %v924, %v1614
        %v1616 = vpop.f32.mrb[0].mxu0
        %v1617 = vadd.f32 %v929, %v1616
        %v1618 = vpop.f32.mrb[0].mxu0
        %v1619 = vadd.f32 %v929, %v1618
        %1620 = vmatprep.mubr.bf16.mxu0 0
        %1621 = vmatmul.mubr.bf16.gmra.mrb[0].mxu0 %v1105
        %v1622 = vpop.f32.mrb[0].mxu0
        %v1623 = vadd.f32 %v934, %v1622
        %v1624 = vpop.f32.mrb[0].mxu0
        %v1625 = vadd.f32 %v934, %v1624
        %v1626 = vpop.f32.mrb[0].mxu0
        %v1627 = vadd.f32 %v939, %v1626
        %v1628 = vpop.f32.mrb[0].mxu0
        %v1629 = vadd.f32 %v939, %v1628
        %1630 = vmatprep.mubr.bf16.mxu0 0
        %1631 = vmatmul.mubr.bf16.gmra.mrb[0].mxu0 %v1106
        %v1632 = vpop.f32.mrb[0].mxu0
        %v1633 = vadd.f32 %v944, %v1632
        %v1634 = vpop.f32.mrb[0].mxu0
        %v1635 = vadd.f32 %v944, %v1634
        %v1636 = vpop.f32.mrb[0].mxu0
        %v1637 = vadd.f32 %v949, %v1636
        %v1638 = vpop.f32.mrb[0].mxu0
        %v1639 = vadd.f32 %v949, %v1638
        %1640 = vmatprep.mubr.bf16.mxu0 0
        %1641 = vmatmul.mubr.bf16.gmra.mrb[0].mxu0 %v1107
        %v1642 = vpop.f32.mrb[0].mxu0
        %v1643 = vadd.f32 %v954, %v1642
        %v1644 = vpop.f32.mrb[0].mxu0
        %v1645 = vadd.f32 %v954, %v1644
        %v1646 = vpop.f32.mrb[0].mxu0
        %v1647 = vadd.f32 %v959, %v1646
        %v1648 = vpop.f32.mrb[0].mxu0
        %v1649 = vadd.f32 %v959, %v1648
        %1650 = vmatprep.mubr.bf16.mxu0 0
        %1651 = vmatmul.mubr.bf16.gmra.mrb[0].mxu0 %v1108
        %v1652 = vpop.f32.mrb[0].mxu0
        %v1653 = vadd.f32 %v964, %v1652
        %v1654 = vpop.f32.mrb[0].mxu0
        %v1655 = vadd.f32 %v964, %v1654
        %v1656 = vpop.f32.mrb[0].mxu0
        %v1657 = vadd.f32 %v969, %v1656
        %v1658 = vpop.f32.mrb[0].mxu0
        %v1659 = vadd.f32 %v969, %v1658
        %1660 = vmatprep.mubr.bf16.mxu0 0
        %1661 = vmatmul.mubr.bf16.gmra.mrb[0].mxu0 %v1109
        %v1662 = vpop.f32.mrb[0].mxu0
        %v1663 = vadd.f32 %v974, %v1662
        %v1664 = vpop.f32.mrb[0].mxu0
        %v1665 = vadd.f32 %v974, %v1664
        %v1666 = vpop.f32.mrb[0].mxu0
        %v1667 = vadd.f32 %v979, %v1666
        %v1668 = vpop.f32.mrb[0].mxu0
        %v1669 = vadd.f32 %v979, %v1668
        %1670 = vmatprep.mubr.bf16.mxu0 0
        %1671 = vmatmul.mubr.bf16.gmra.mrb[0].mxu0 %v1110
        %v1672 = vpop.f32.mrb[0].mxu0
        %v1673 = vadd.f32 %v984, %v1672
        %v1674 = vpop.f32.mrb[0].mxu0
        %v1675 = vadd.f32 %v984, %v1674
        %v1676 = vpop.f32.mrb[0].mxu0
        %v1677 = vadd.f32 %v989, %v1676
        %v1678 = vpop.f32.mrb[0].mxu0
        %v1679 = vadd.f32 %v989, %v1678
        %1680 = vdwg.mxu0
        %1681 = vmatprep.subr.bf16.mxu0 %v644
        %1682 = vmatpush1.bf16.msra.mxu0 %v643
        %1683 = vmatprep.subr.bf16.mxu0 %v652
        %1684 = vmatpush1.bf16.msra.mxu0 %v651
        %1685 = vmatprep.subr.bf16.mxu0 %v660
        %1686 = vmatpush1.bf16.msra.mxu0 %v659
        %1687 = vmatprep.subr.bf16.mxu0 %v668
        %1688 = vmatpush1.bf16.msra.mxu0 %v667
        %1689 = vmatprep.subr.bf16.mxu0 %v676
        %1690 = vmatpush1.bf16.msra.mxu0 %v675
        %1691 = vmatprep.subr.bf16.mxu0 %v684
        %1692 = vmatpush1.bf16.msra.mxu0 %v683
        %1693 = vmatprep.subr.bf16.mxu0 %v692
        %1694 = vmatpush1.bf16.msra.mxu0 %v691
        %1695 = vmatprep.subr.bf16.mxu0 %v700
        %1696 = vmatpush1.bf16.msra.mxu0 %v699
        %1697 = vmatprep.subr.bf16.mxu0 0
        %1698 = vmatpush1.bf16.msra.mxu0 0
        %1699 = vmatprep.subr.bf16.mxu0 0
        %1700 = vmatpush1.bf16.msra.mxu0 0
        %1701 = vmatprep.subr.bf16.mxu0 0
        %1702 = vmatpush1.bf16.msra.mxu0 0
        %1703 = vmatprep.subr.bf16.mxu0 0
        %1704 = vmatpush1.bf16.msra.mxu0 0
        %1705 = vmatprep.subr.bf16.mxu0 0
        %1706 = vmatpush1.bf16.msra.mxu0 0
        %1707 = vmatprep.subr.bf16.mxu0 0
        %1708 = vmatpush1.bf16.msra.mxu0 0
        %1709 = vmatprep.subr.bf16.mxu0 0
        %1710 = vmatpush1.bf16.msra.mxu0 0
        %1711 = vmatprep.subr.bf16.mxu0 0
        %1712 = vmatpush1.bf16.msra.mxu0 0
        %1713 = vmatprep.mubr.bf16.mxu0 0
        %1714 = vmatmul.mubr.bf16.gmra.mrb[0].mxu0 %v1087
        %v1715 = vpop.f32.mrb[0].mxu0
        %v1716 = vadd.f32 %v754, %v1715
        %v1717 = vpop.f32.mrb[0].mxu0
        %v1718 = vadd.f32 %v754, %v1717
        %v1719 = vpop.f32.mrb[0].mxu0
        %v1720 = vadd.f32 %v759, %v1719
        %v1721 = vpop.f32.mrb[0].mxu0
        %v1722 = vadd.f32 %v759, %v1721
        %1723 = vmatprep.mubr.bf16.mxu0 0
        %1724 = vmatmul.mubr.bf16.gmra.mrb[0].mxu0 %v1088
        %v1725 = vpop.f32.mrb[0].mxu0
        %v1726 = vadd.f32 %v764, %v1725
        %v1727 = vpop.f32.mrb[0].mxu0
        %v1728 = vadd.f32 %v764, %v1727
        %v1729 = vpop.f32.mrb[0].mxu0
        %v1730 = vadd.f32 %v769, %v1729
        %v1731 = vpop.f32.mrb[0].mxu0
        %v1732 = vadd.f32 %v769, %v1731
        %1733 = vmatprep.mubr.bf16.mxu0 0
        %1734 = vmatmul.mubr.bf16.gmra.mrb[0].mxu0 %v1089
        %v1735 = vpop.f32.mrb[0].mxu0
        %v1736 = vadd.f32 %v774, %v1735
        %v1737 = vpop.f32.mrb[0].mxu0
        %v1738 = vadd.f32 %v774, %v1737
        %v1739 = vpop.f32.mrb[0].mxu0
        %v1740 = vadd.f32 %v779, %v1739
        %v1741 = vpop.f32.mrb[0].mxu0
        %v1742 = vadd.f32 %v779, %v1741
        %1743 = vmatprep.mubr.bf16.mxu0 0
        %1744 = vmatmul.mubr.bf16.gmra.mrb[0].mxu0 %v1090
        %v1745 = vpop.f32.mrb[0].mxu0
        %v1746 = vadd.f32 %v784, %v1745
        %v1747 = vpop.f32.mrb[0].mxu0
        %v1748 = vadd.f32 %v784, %v1747
        %v1749 = vpop.f32.mrb[0].mxu0
        %v1750 = vadd.f32 %v789, %v1749
        %v1751 = vpop.f32.mrb[0].mxu0
        %v1752 = vadd.f32 %v789, %v1751
        %1753 = vmatprep.mubr.bf16.mxu0 0
        %1754 = vmatmul.mubr.bf16.gmra.mrb[0].mxu0 %v1091
        %v1755 = vpop.f32.mrb[0].mxu0
        %v1756 = vadd.f32 %v794, %v1755
        %v1757 = vpop.f32.mrb[0].mxu0
        %v1758 = vadd.f32 %v794, %v1757
        %v1759 = vpop.f32.mrb[0].mxu0
        %v1760 = vadd.f32 %v799, %v1759
        %v1761 = vpop.f32.mrb[0].mxu0
        %v1762 = vadd.f32 %v799, %v1761
        %1763 = vmatprep.mubr.bf16.mxu0 0
        %1764 = vmatmul.mubr.bf16.gmra.mrb[0].mxu0 %v1092
        %v1765 = vpop.f32.mrb[0].mxu0
        %v1766 = vadd.f32 %v804, %v1765
        %v1767 = vpop.f32.mrb[0].mxu0
        %v1768 = vadd.f32 %v804, %v1767
        %v1769 = vpop.f32.mrb[0].mxu0
        %v1770 = vadd.f32 %v809, %v1769
        %v1771 = vpop.f32.mrb[0].mxu0
        %v1772 = vadd.f32 %v809, %v1771
        %1773 = vmatprep.mubr.bf16.mxu0 0
        %1774 = vmatmul.mubr.bf16.gmra.mrb[0].mxu0 %v1093
        %v1775 = vpop.f32.mrb[0].mxu0
        %v1776 = vadd.f32 %v814, %v1775
        %v1777 = vpop.f32.mrb[0].mxu0
        %v1778 = vadd.f32 %v814, %v1777
        %v1779 = vpop.f32.mrb[0].mxu0
        %v1780 = vadd.f32 %v819, %v1779
        %v1781 = vpop.f32.mrb[0].mxu0
        %v1782 = vadd.f32 %v819, %v1781
        %1783 = vmatprep.mubr.bf16.mxu0 0
        %1784 = vmatmul.mubr.bf16.gmra.mrb[0].mxu0 %v1094
        %v1785 = vpop.f32.mrb[0].mxu0
        %v1786 = vadd.f32 %v824, %v1785
        %v1787 = vpop.f32.mrb[0].mxu0
        %v1788 = vadd.f32 %v824, %v1787
        %v1789 = vpop.f32.mrb[0].mxu0
        %v1790 = vadd.f32 %v829, %v1789
        %v1791 = vpop.f32.mrb[0].mxu0
        %v1792 = vadd.f32 %v829, %v1791
        %1793 = vmatprep.mubr.bf16.mxu0 0
        %1794 = vmatmul.mubr.bf16.gmra.mrb[0].mxu0 %v1095
        %v1795 = vpop.f32.mrb[0].mxu0
        %v1796 = vadd.f32 %v834, %v1795
        %v1797 = vpop.f32.mrb[0].mxu0
        %v1798 = vadd.f32 %v834, %v1797
        %v1799 = vpop.f32.mrb[0].mxu0
        %v1800 = vadd.f32 %v839, %v1799
        %v1801 = vpop.f32.mrb[0].mxu0
        %v1802 = vadd.f32 %v839, %v1801
        %1803 = vmatprep.mubr.bf16.mxu0 0
        %1804 = vmatmul.mubr.bf16.gmra.mrb[0].mxu0 %v1096
        %v1805 = vpop.f32.mrb[0].mxu0
        %v1806 = vadd.f32 %v844, %v1805
        %v1807 = vpop.f32.mrb[0].mxu0
        %v1808 = vadd.f32 %v844, %v1807
        %v1809 = vpop.f32.mrb[0].mxu0
        %v1810 = vadd.f32 %v849, %v1809
        %v1811 = vpop.f32.mrb[0].mxu0
        %v1812 = vadd.f32 %v849, %v1811
        %1813 = vmatprep.mubr.bf16.mxu0 0
        %1814 = vmatmul.mubr.bf16.gmra.mrb[0].mxu0 %v1097
        %v1815 = vpop.f32.mrb[0].mxu0
        %v1816 = vadd.f32 %v854, %v1815
        %v1817 = vpop.f32.mrb[0].mxu0
        %v1818 = vadd.f32 %v854, %v1817
        %v1819 = vpop.f32.mrb[0].mxu0
        %v1820 = vadd.f32 %v859, %v1819
        %v1821 = vpop.f32.mrb[0].mxu0
        %v1822 = vadd.f32 %v859, %v1821
        %1823 = vmatprep.mubr.bf16.mxu0 0
        %1824 = vmatmul.mubr.bf16.gmra.mrb[0].mxu0 %v1098
        %v1825 = vpop.f32.mrb[0].mxu0
        %v1826 = vadd.f32 %v864, %v1825
        %v1827 = vpop.f32.mrb[0].mxu0
        %v1828 = vadd.f32 %v864, %v1827
        %v1829 = vpop.f32.mrb[0].mxu0
        %v1830 = vadd.f32 %v869, %v1829
        %v1831 = vpop.f32.mrb[0].mxu0
        %v1832 = vadd.f32 %v869, %v1831
        %1833 = vmatprep.mubr.bf16.mxu0 0
        %1834 = vmatmul.mubr.bf16.gmra.mrb[0].mxu0 %v1099
        %v1835 = vpop.f32.mrb[0].mxu0
        %v1836 = vadd.f32 %v874, %v1835
        %v1837 = vpop.f32.mrb[0].mxu0
        %v1838 = vadd.f32 %v874, %v1837
        %v1839 = vpop.f32.mrb[0].mxu0
        %v1840 = vadd.f32 %v879, %v1839
        %v1841 = vpop.f32.mrb[0].mxu0
        %v1842 = vadd.f32 %v879, %v1841
        %1843 = vmatprep.mubr.bf16.mxu0 0
        %1844 = vmatmul.mubr.bf16.gmra.mrb[0].mxu0 %v1100
        %v1845 = vpop.f32.mrb[0].mxu0
        %v1846 = vadd.f32 %v884, %v1845
        %v1847 = vpop.f32.mrb[0].mxu0
        %v1848 = vadd.f32 %v884, %v1847
        %v1849 = vpop.f32.mrb[0].mxu0
        %v1850 = vadd.f32 %v889, %v1849
        %v1851 = vpop.f32.mrb[0].mxu0
        %v1852 = vadd.f32 %v889, %v1851
        %1853 = vmatprep.mubr.bf16.mxu0 0
        %1854 = vmatmul.mubr.bf16.gmra.mrb[0].mxu0 %v1101
        %v1855 = vpop.f32.mrb[0].mxu0
        %v1856 = vadd.f32 %v894, %v1855
        %v1857 = vpop.f32.mrb[0].mxu0
        %v1858 = vadd.f32 %v894, %v1857
        %v1859 = vpop.f32.mrb[0].mxu0
        %v1860 = vadd.f32 %v899, %v1859
        %v1861 = vpop.f32.mrb[0].mxu0
        %v1862 = vadd.f32 %v899, %v1861
        %1863 = vmatprep.mubr.bf16.mxu0 0
        %1864 = vmatmul.mubr.bf16.gmra.mrb[0].mxu0 %v1102
        %v1865 = vpop.f32.mrb[0].mxu0
        %v1866 = vadd.f32 %v904, %v1865
        %v1867 = vpop.f32.mrb[0].mxu0
        %v1868 = vadd.f32 %v904, %v1867
        %v1869 = vpop.f32.mrb[0].mxu0
        %v1870 = vadd.f32 %v909, %v1869
        %v1871 = vpop.f32.mrb[0].mxu0
        %v1872 = vadd.f32 %v909, %v1871
        %1873 = vmatprep.mubr.bf16.mxu0 0
        %1874 = vmatmul.mubr.bf16.gmra.mrb[0].mxu0 %v1103
        %v1875 = vpop.f32.mrb[0].mxu0
        %v1876 = vadd.f32 %v914, %v1875
        %v1877 = vpop.f32.mrb[0].mxu0
        %v1878 = vadd.f32 %v914, %v1877
        %v1879 = vpop.f32.mrb[0].mxu0
        %v1880 = vadd.f32 %v919, %v1879
        %v1881 = vpop.f32.mrb[0].mxu0
        %v1882 = vadd.f32 %v919, %v1881
        %1883 = vmatprep.mubr.bf16.mxu0 0
        %1884 = vmatmul.mubr.bf16.gmra.mrb[0].mxu0 %v1104
        %v1885 = vpop.f32.mrb[0].mxu0
        %v1886 = vadd.f32 %v924, %v1885
        %v1887 = vpop.f32.mrb[0].mxu0
        %v1888 = vadd.f32 %v924, %v1887
        %v1889 = vpop.f32.mrb[0].mxu0
        %v1890 = vadd.f32 %v929, %v1889
        %v1891 = vpop.f32.mrb[0].mxu0
        %v1892 = vadd.f32 %v929, %v1891
        %1893 = vmatprep.mubr.bf16.mxu0 0
        %1894 = vmatmul.mubr.bf16.gmra.mrb[0].mxu0 %v1105
        %v1895 = vpop.f32.mrb[0].mxu0
        %v1896 = vadd.f32 %v934, %v1895
        %v1897 = vpop.f32.mrb[0].mxu0
        %v1898 = vadd.f32 %v934, %v1897
        %v1899 = vpop.f32.mrb[0].mxu0
        %v1900 = vadd.f32 %v939, %v1899
        %v1901 = vpop.f32.mrb[0].mxu0
        %v1902 = vadd.f32 %v939, %v1901
        %1903 = vmatprep.mubr.bf16.mxu0 0
        %1904 = vmatmul.mubr.bf16.gmra.mrb[0].mxu0 %v1106
        %v1905 = vpop.f32.mrb[0].mxu0
        %v1906 = vadd.f32 %v944, %v1905
        %v1907 = vpop.f32.mrb[0].mxu0
        %v1908 = vadd.f32 %v944, %v1907
        %v1909 = vpop.f32.mrb[0].mxu0
        %v1910 = vadd.f32 %v949, %v1909
        %v1911 = vpop.f32.mrb[0].mxu0
        %v1912 = vadd.f32 %v949, %v1911
        %1913 = vmatprep.mubr.bf16.mxu0 0
        %1914 = vmatmul.mubr.bf16.gmra.mrb[0].mxu0 %v1107
        %v1915 = vpop.f32.mrb[0].mxu0
        %v1916 = vadd.f32 %v954, %v1915
        %v1917 = vpop.f32.mrb[0].mxu0
        %v1918 = vadd.f32 %v954, %v1917
        %v1919 = vpop.f32.mrb[0].mxu0
        %v1920 = vadd.f32 %v959, %v1919
        %v1921 = vpop.f32.mrb[0].mxu0
        %v1922 = vadd.f32 %v959, %v1921
        %1923 = vmatprep.mubr.bf16.mxu0 0
        %1924 = vmatmul.mubr.bf16.gmra.mrb[0].mxu0 %v1108
        %v1925 = vpop.f32.mrb[0].mxu0
        %v1926 = vadd.f32 %v964, %v1925
        %v1927 = vpop.f32.mrb[0].mxu0
        %v1928 = vadd.f32 %v964, %v1927
        %v1929 = vpop.f32.mrb[0].mxu0
        %v1930 = vadd.f32 %v969, %v1929
        %v1931 = vpop.f32.mrb[0].mxu0
        %v1932 = vadd.f32 %v969, %v1931
        %1933 = vmatprep.mubr.bf16.mxu0 0
        %1934 = vmatmul.mubr.bf16.gmra.mrb[0].mxu0 %v1109
        %v1935 = vpop.f32.mrb[0].mxu0
        %v1936 = vadd.f32 %v974, %v1935
        %v1937 = vpop.f32.mrb[0].mxu0
        %v1938 = vadd.f32 %v974, %v1937
        %v1939 = vpop.f32.mrb[0].mxu0
        %v1940 = vadd.f32 %v979, %v1939
        %v1941 = vpop.f32.mrb[0].mxu0
        %v1942 = vadd.f32 %v979, %v1941
        %1943 = vmatprep.mubr.bf16.mxu0 0
        %1944 = vmatmul.mubr.bf16.gmra.mrb[0].mxu0 %v1110
        %v1945 = vpop.f32.mrb[0].mxu0
        %v1946 = vadd.f32 %v984, %v1945
        %v1947 = vpop.f32.mrb[0].mxu0
        %v1948 = vadd.f32 %v984, %v1947
        %v1949 = vpop.f32.mrb[0].mxu0
        %v1950 = vadd.f32 %v989, %v1949
        %v1951 = vpop.f32.mrb[0].mxu0
        %v1952 = vadd.f32 %v989, %v1951
        %1953 = vdwg.mxu0
        %1954 = vmatprep.subr.bf16.mxu0 %v646
        %1955 = vmatpush1.bf16.msra.mxu0 %v645
        %1956 = vmatprep.subr.bf16.mxu0 %v654
        %1957 = vmatpush1.bf16.msra.mxu0 %v653
        %1958 = vmatprep.subr.bf16.mxu0 %v662
        %1959 = vmatpush1.bf16.msra.mxu0 %v661
        %1960 = vmatprep.subr.bf16.mxu0 %v670
        %1961 = vmatpush1.bf16.msra.mxu0 %v669
        %1962 = vmatprep.subr.bf16.mxu0 %v678
        %1963 = vmatpush1.bf16.msra.mxu0 %v677
        %1964 = vmatprep.subr.bf16.mxu0 %v686
        %1965 = vmatpush1.bf16.msra.mxu0 %v685
        %1966 = vmatprep.subr.bf16.mxu0 %v694
        %1967 = vmatpush1.bf16.msra.mxu0 %v693
        %1968 = vmatprep.subr.bf16.mxu0 %v702
        %1969 = vmatpush1.bf16.msra.mxu0 %v701
        %1970 = vmatprep.subr.bf16.mxu0 0
        %1971 = vmatpush1.bf16.msra.mxu0 0
        %1972 = vmatprep.subr.bf16.mxu0 0
        %1973 = vmatpush1.bf16.msra.mxu0 0
        %1974 = vmatprep.subr.bf16.mxu0 0
        %1975 = vmatpush1.bf16.msra.mxu0 0
        %1976 = vmatprep.subr.bf16.mxu0 0
        %1977 = vmatpush1.bf16.msra.mxu0 0
        %1978 = vmatprep.subr.bf16.mxu0 0
        %1979 = vmatpush1.bf16.msra.mxu0 0
        %1980 = vmatprep.subr.bf16.mxu0 0
        %1981 = vmatpush1.bf16.msra.mxu0 0
        %1982 = vmatprep.subr.bf16.mxu0 0
        %1983 = vmatpush1.bf16.msra.mxu0 0
        %1984 = vmatprep.subr.bf16.mxu0 0
        %1985 = vmatpush1.bf16.msra.mxu0 0
        %1986 = vmatprep.mubr.bf16.mxu0 0
        %1987 = vmatmul.mubr.bf16.gmra.mrb[0].mxu0 %v1087
        %v1988 = vpop.f32.mrb[0].mxu0
        %v1989 = vadd.f32 %v754, %v1988
        %v1990 = vpop.f32.mrb[0].mxu0
        %v1991 = vadd.f32 %v754, %v1990
        %v1992 = vpop.f32.mrb[0].mxu0
        %v1993 = vadd.f32 %v759, %v1992
        %v1994 = vpop.f32.mrb[0].mxu0
        %v1995 = vadd.f32 %v759, %v1994
        %1996 = vmatprep.mubr.bf16.mxu0 0
        %1997 = vmatmul.mubr.bf16.gmra.mrb[0].mxu0 %v1088
        %v1998 = vpop.f32.mrb[0].mxu0
        %v1999 = vadd.f32 %v764, %v1998
        %v2000 = vpop.f32.mrb[0].mxu0
        %v2001 = vadd.f32 %v764, %v2000
        %v2002 = vpop.f32.mrb[0].mxu0
        %v2003 = vadd.f32 %v769, %v2002
        %v2004 = vpop.f32.mrb[0].mxu0
        %v2005 = vadd.f32 %v769, %v2004
        %2006 = vmatprep.mubr.bf16.mxu0 0
        %2007 = vmatmul.mubr.bf16.gmra.mrb[0].mxu0 %v1089
        %v2008 = vpop.f32.mrb[0].mxu0
        %v2009 = vadd.f32 %v774, %v2008
        %v2010 = vpop.f32.mrb[0].mxu0
        %v2011 = vadd.f32 %v774, %v2010
        %v2012 = vpop.f32.mrb[0].mxu0
        %v2013 = vadd.f32 %v779, %v2012
        %v2014 = vpop.f32.mrb[0].mxu0
        %v2015 = vadd.f32 %v779, %v2014
        %2016 = vmatprep.mubr.bf16.mxu0 0
        %2017 = vmatmul.mubr.bf16.gmra.mrb[0].mxu0 %v1090
        %v2018 = vpop.f32.mrb[0].mxu0
        %v2019 = vadd.f32 %v784, %v2018
        %v2020 = vpop.f32.mrb[0].mxu0
        %v2021 = vadd.f32 %v784, %v2020
        %v2022 = vpop.f32.mrb[0].mxu0
        %v2023 = vadd.f32 %v789, %v2022
        %v2024 = vpop.f32.mrb[0].mxu0
        %v2025 = vadd.f32 %v789, %v2024
        %2026 = vmatprep.mubr.bf16.mxu0 0
        %2027 = vmatmul.mubr.bf16.gmra.mrb[0].mxu0 %v1091
        %v2028 = vpop.f32.mrb[0].mxu0
        %v2029 = vadd.f32 %v794, %v2028
        %v2030 = vpop.f32.mrb[0].mxu0
        %v2031 = vadd.f32 %v794, %v2030
        %v2032 = vpop.f32.mrb[0].mxu0
        %v2033 = vadd.f32 %v799, %v2032
        %v2034 = vpop.f32.mrb[0].mxu0
        %v2035 = vadd.f32 %v799, %v2034
        %2036 = vmatprep.mubr.bf16.mxu0 0
        %2037 = vmatmul.mubr.bf16.gmra.mrb[0].mxu0 %v1092
        %v2038 = vpop.f32.mrb[0].mxu0
        %v2039 = vadd.f32 %v804, %v2038
        %v2040 = vpop.f32.mrb[0].mxu0
        %v2041 = vadd.f32 %v804, %v2040
        %v2042 = vpop.f32.mrb[0].mxu0
        %v2043 = vadd.f32 %v809, %v2042
        %v2044 = vpop.f32.mrb[0].mxu0
        %v2045 = vadd.f32 %v809, %v2044
        %2046 = vmatprep.mubr.bf16.mxu0 0
        %2047 = vmatmul.mubr.bf16.gmra.mrb[0].mxu0 %v1093
        %v2048 = vpop.f32.mrb[0].mxu0
        %v2049 = vadd.f32 %v814, %v2048
        %v2050 = vpop.f32.mrb[0].mxu0
        %v2051 = vadd.f32 %v814, %v2050
        %v2052 = vpop.f32.mrb[0].mxu0
        %v2053 = vadd.f32 %v819, %v2052
        %v2054 = vpop.f32.mrb[0].mxu0
        %v2055 = vadd.f32 %v819, %v2054
        %2056 = vmatprep.mubr.bf16.mxu0 0
        %2057 = vmatmul.mubr.bf16.gmra.mrb[0].mxu0 %v1094
        %v2058 = vpop.f32.mrb[0].mxu0
        %v2059 = vadd.f32 %v824, %v2058
        %v2060 = vpop.f32.mrb[0].mxu0
        %v2061 = vadd.f32 %v824, %v2060
        %v2062 = vpop.f32.mrb[0].mxu0
        %v2063 = vadd.f32 %v829, %v2062
        %v2064 = vpop.f32.mrb[0].mxu0
        %v2065 = vadd.f32 %v829, %v2064
        %2066 = vmatprep.mubr.bf16.mxu0 0
        %2067 = vmatmul.mubr.bf16.gmra.mrb[0].mxu0 %v1095
        %v2068 = vpop.f32.mrb[0].mxu0
        %v2069 = vadd.f32 %v834, %v2068
        %v2070 = vpop.f32.mrb[0].mxu0
        %v2071 = vadd.f32 %v834, %v2070
        %v2072 = vpop.f32.mrb[0].mxu0
        %v2073 = vadd.f32 %v839, %v2072
        %v2074 = vpop.f32.mrb[0].mxu0
        %v2075 = vadd.f32 %v839, %v2074
        %2076 = vmatprep.mubr.bf16.mxu0 0
        %2077 = vmatmul.mubr.bf16.gmra.mrb[0].mxu0 %v1096
        %v2078 = vpop.f32.mrb[0].mxu0
        %v2079 = vadd.f32 %v844, %v2078
        %v2080 = vpop.f32.mrb[0].mxu0
        %v2081 = vadd.f32 %v844, %v2080
        %v2082 = vpop.f32.mrb[0].mxu0
        %v2083 = vadd.f32 %v849, %v2082
        %v2084 = vpop.f32.mrb[0].mxu0
        %v2085 = vadd.f32 %v849, %v2084
        %2086 = vmatprep.mubr.bf16.mxu0 0
        %2087 = vmatmul.mubr.bf16.gmra.mrb[0].mxu0 %v1097
        %v2088 = vpop.f32.mrb[0].mxu0
        %v2089 = vadd.f32 %v854, %v2088
        %v2090 = vpop.f32.mrb[0].mxu0
        %v2091 = vadd.f32 %v854, %v2090
        %v2092 = vpop.f32.mrb[0].mxu0
        %v2093 = vadd.f32 %v859, %v2092
        %v2094 = vpop.f32.mrb[0].mxu0
        %v2095 = vadd.f32 %v859, %v2094
        %2096 = vmatprep.mubr.bf16.mxu0 0
        %2097 = vmatmul.mubr.bf16.gmra.mrb[0].mxu0 %v1098
        %v2098 = vpop.f32.mrb[0].mxu0
        %v2099 = vadd.f32 %v864, %v2098
        %v2100 = vpop.f32.mrb[0].mxu0
        %v2101 = vadd.f32 %v864, %v2100
        %v2102 = vpop.f32.mrb[0].mxu0
        %v2103 = vadd.f32 %v869, %v2102
        %v2104 = vpop.f32.mrb[0].mxu0
        %v2105 = vadd.f32 %v869, %v2104
        %2106 = vmatprep.mubr.bf16.mxu0 0
        %2107 = vmatmul.mubr.bf16.gmra.mrb[0].mxu0 %v1099
        %v2108 = vpop.f32.mrb[0].mxu0
        %v2109 = vadd.f32 %v874, %v2108
        %v2110 = vpop.f32.mrb[0].mxu0
        %v2111 = vadd.f32 %v874, %v2110
        %v2112 = vpop.f32.mrb[0].mxu0
        %v2113 = vadd.f32 %v879, %v2112
        %v2114 = vpop.f32.mrb[0].mxu0
        %v2115 = vadd.f32 %v879, %v2114
        %2116 = vmatprep.mubr.bf16.mxu0 0
        %2117 = vmatmul.mubr.bf16.gmra.mrb[0].mxu0 %v1100
        %v2118 = vpop.f32.mrb[0].mxu0
        %v2119 = vadd.f32 %v884, %v2118
        %v2120 = vpop.f32.mrb[0].mxu0
        %v2121 = vadd.f32 %v884, %v2120
        %v2122 = vpop.f32.mrb[0].mxu0
        %v2123 = vadd.f32 %v889, %v2122
        %v2124 = vpop.f32.mrb[0].mxu0
        %v2125 = vadd.f32 %v889, %v2124
        %2126 = vmatprep.mubr.bf16.mxu0 0
        %2127 = vmatmul.mubr.bf16.gmra.mrb[0].mxu0 %v1101
        %v2128 = vpop.f32.mrb[0].mxu0
        %v2129 = vadd.f32 %v894, %v2128
        %v2130 = vpop.f32.mrb[0].mxu0
        %v2131 = vadd.f32 %v894, %v2130
        %v2132 = vpop.f32.mrb[0].mxu0
        %v2133 = vadd.f32 %v899, %v2132
        %v2134 = vpop.f32.mrb[0].mxu0
        %v2135 = vadd.f32 %v899, %v2134
        %2136 = vmatprep.mubr.bf16.mxu0 0
        %2137 = vmatmul.mubr.bf16.gmra.mrb[0].mxu0 %v1102
        %v2138 = vpop.f32.mrb[0].mxu0
        %v2139 = vadd.f32 %v904, %v2138
        %v2140 = vpop.f32.mrb[0].mxu0
        %v2141 = vadd.f32 %v904, %v2140
        %v2142 = vpop.f32.mrb[0].mxu0
        %v2143 = vadd.f32 %v909, %v2142
        %v2144 = vpop.f32.mrb[0].mxu0
        %v2145 = vadd.f32 %v909, %v2144
        %2146 = vmatprep.mubr.bf16.mxu0 0
        %2147 = vmatmul.mubr.bf16.gmra.mrb[0].mxu0 %v1103
        %v2148 = vpop.f32.mrb[0].mxu0
        %v2149 = vadd.f32 %v914, %v2148
        %v2150 = vpop.f32.mrb[0].mxu0
        %v2151 = vadd.f32 %v914, %v2150
        %v2152 = vpop.f32.mrb[0].mxu0
        %v2153 = vadd.f32 %v919, %v2152
        %v2154 = vpop.f32.mrb[0].mxu0
        %v2155 = vadd.f32 %v919, %v2154
        %2156 = vmatprep.mubr.bf16.mxu0 0
        %2157 = vmatmul.mubr.bf16.gmra.mrb[0].mxu0 %v1104
        %v2158 = vpop.f32.mrb[0].mxu0
        %v2159 = vadd.f32 %v924, %v2158
        %v2160 = vpop.f32.mrb[0].mxu0
        %v2161 = vadd.f32 %v924, %v2160
        %v2162 = vpop.f32.mrb[0].mxu0
        %v2163 = vadd.f32 %v929, %v2162
        %v2164 = vpop.f32.mrb[0].mxu0
        %v2165 = vadd.f32 %v929, %v2164
        %2166 = vmatprep.mubr.bf16.mxu0 0
        %2167 = vmatmul.mubr.bf16.gmra.mrb[0].mxu0 %v1105
        %v2168 = vpop.f32.mrb[0].mxu0
        %v2169 = vadd.f32 %v934, %v2168
        %v2170 = vpop.f32.mrb[0].mxu0
        %v2171 = vadd.f32 %v934, %v2170
        %v2172 = vpop.f32.mrb[0].mxu0
        %v2173 = vadd.f32 %v939, %v2172
        %v2174 = vpop.f32.mrb[0].mxu0
        %v2175 = vadd.f32 %v939, %v2174
        %2176 = vmatprep.mubr.bf16.mxu0 0
        %2177 = vmatmul.mubr.bf16.gmra.mrb[0].mxu0 %v1106
        %v2178 = vpop.f32.mrb[0].mxu0
        %v2179 = vadd.f32 %v944, %v2178
        %v2180 = vpop.f32.mrb[0].mxu0
        %v2181 = vadd.f32 %v944, %v2180
        %v2182 = vpop.f32.mrb[0].mxu0
        %v2183 = vadd.f32 %v949, %v2182
        %v2184 = vpop.f32.mrb[0].mxu0
        %v2185 = vadd.f32 %v949, %v2184
        %2186 = vmatprep.mubr.bf16.mxu0 0
        %2187 = vmatmul.mubr.bf16.gmra.mrb[0].mxu0 %v1107
        %v2188 = vpop.f32.mrb[0].mxu0
        %v2189 = vadd.f32 %v954, %v2188
        %v2190 = vpop.f32.mrb[0].mxu0
        %v2191 = vadd.f32 %v954, %v2190
        %v2192 = vpop.f32.mrb[0].mxu0
        %v2193 = vadd.f32 %v959, %v2192
        %v2194 = vpop.f32.mrb[0].mxu0
        %v2195 = vadd.f32 %v959, %v2194
        %2196 = vmatprep.mubr.bf16.mxu0 0
        %2197 = vmatmul.mubr.bf16.gmra.mrb[0].mxu0 %v1108
        %v2198 = vpop.f32.mrb[0].mxu0
        %v2199 = vadd.f32 %v964, %v2198
        %v2200 = vpop.f32.mrb[0].mxu0
        %v2201 = vadd.f32 %v964, %v2200
        %v2202 = vpop.f32.mrb[0].mxu0
        %v2203 = vadd.f32 %v969, %v2202
        %v2204 = vpop.f32.mrb[0].mxu0
        %v2205 = vadd.f32 %v969, %v2204
        %2206 = vmatprep.mubr.bf16.mxu0 0
        %2207 = vmatmul.mubr.bf16.gmra.mrb[0].mxu0 %v1109
        %v2208 = vpop.f32.mrb[0].mxu0
        %v2209 = vadd.f32 %v974, %v2208
        %v2210 = vpop.f32.mrb[0].mxu0
        %v2211 = vadd.f32 %v974, %v2210
        %v2212 = vpop.f32.mrb[0].mxu0
        %v2213 = vadd.f32 %v979, %v2212
        %v2214 = vpop.f32.mrb[0].mxu0
        %v2215 = vadd.f32 %v979, %v2214
        %2216 = vmatprep.mubr.bf16.mxu0 0
        %2217 = vmatmul.mubr.bf16.gmra.mrb[0].mxu0 %v1110
        %v2218 = vpop.f32.mrb[0].mxu0
        %v2219 = vadd.f32 %v984, %v2218
        %v2220 = vpop.f32.mrb[0].mxu0
        %v2221 = vadd.f32 %v984, %v2220
        %v2222 = vpop.f32.mrb[0].mxu0
        %v2223 = vadd.f32 %v989, %v2222
        %v2224 = vpop.f32.mrb[0].mxu0
        %v2225 = vadd.f32 %v989, %v2224
        %2226 = vdwg.mxu0
        %v2227 = vmul.f32 %v1170, %v1250
        %v2228 = vmul.f32 %v1172, %v1252
        %v2229 = vmul.f32 %v1443, %v1523
        %v2230 = vmul.f32 %v1445, %v1525
        %v2231 = vmul.f32 %v1174, %v1254
        %v2232 = vmul.f32 %v1176, %v1256
        %v2233 = vmul.f32 %v1447, %v1527
        %v2234 = vmul.f32 %v1449, %v1529
        %v2235 = vmul.f32 %v1180, %v1260
        %v2236 = vmul.f32 %v1182, %v1262
        %v2237 = vmul.f32 %v1453, %v1533
        %v2238 = vmul.f32 %v1455, %v1535
        %v2239 = vmul.f32 %v1184, %v1264
        %v2240 = vmul.f32 %v1186, %v1266
        %v2241 = vmul.f32 %v1457, %v1537
        %v2242 = vmul.f32 %v1459, %v1539
        %v2243 = vadd.f32 %v2227, %v2231
        %v2244 = vadd.f32 %v2243, %v2235
        %v2245 = vadd.f32 %v2244, %v2239
        %v2246 = vrot.slane %v2245, 4
        %v2247 = vadd.f32 %v2245, %v2246
        %v2248 = vrot.slane %v2247, 2
        %v2249 = vadd.f32 %v2247, %v2248
        %v2250 = vrot.slane %v2249, 1
        %v2251 = vadd.f32 %v2249, %v2250
        %v2252 = vadd.f32 %v2228, %v2232
        %v2253 = vadd.f32 %v2252, %v2236
        %v2254 = vadd.f32 %v2253, %v2240
        %v2255 = vrot.slane %v2254, 4
        %v2256 = vadd.f32 %v2254, %v2255
        %v2257 = vrot.slane %v2256, 2
        %v2258 = vadd.f32 %v2256, %v2257
        %v2259 = vrot.slane %v2258, 1
        %v2260 = vadd.f32 %v2258, %v2259
        %v2261 = vadd.f32 %v2229, %v2233
        %v2262 = vadd.f32 %v2261, %v2237
        %v2263 = vadd.f32 %v2262, %v2241
        %v2264 = vrot.slane %v2263, 4
        %v2265 = vadd.f32 %v2263, %v2264
        %v2266 = vrot.slane %v2265, 2
        %v2267 = vadd.f32 %v2265, %v2266
        %v2268 = vrot.slane %v2267, 1
        %v2269 = vadd.f32 %v2267, %v2268
        %v2270 = vadd.f32 %v2230, %v2234
        %v2271 = vadd.f32 %v2270, %v2238
        %v2272 = vadd.f32 %v2271, %v2242
        %v2273 = vrot.slane %v2272, 4
        %v2274 = vadd.f32 %v2272, %v2273
        %v2275 = vrot.slane %v2274, 2
        %v2276 = vadd.f32 %v2274, %v2275
        %v2277 = vrot.slane %v2276, 1
        %v2278 = vadd.f32 %v2276, %v2277
        %v2279 = vmul.f32 %v2251, 0.17677669
        %v2280 = vmul.f32 %v2260, 0.17677669
        %v2281 = vmul.f32 %v2269, 0.17677669
        %v2282 = vmul.f32 %v2278, 0.17677669
        %v2283 = vmul.f32 %v1170, %v1796
        %v2284 = vmul.f32 %v1172, %v1798
        %v2285 = vmul.f32 %v1443, %v2069
        %v2286 = vmul.f32 %v1445, %v2071
        %v2287 = vmul.f32 %v1174, %v1800
        %v2288 = vmul.f32 %v1176, %v1802
        %v2289 = vmul.f32 %v1447, %v2073
        %v2290 = vmul.f32 %v1449, %v2075
        %v2291 = vmul.f32 %v1180, %v1806
        %v2292 = vmul.f32 %v1182, %v1808
        %v2293 = vmul.f32 %v1453, %v2079
        %v2294 = vmul.f32 %v1455, %v2081
        %v2295 = vmul.f32 %v1184, %v1810
        %v2296 = vmul.f32 %v1186, %v1812
        %v2297 = vmul.f32 %v1457, %v2083
        %v2298 = vmul.f32 %v1459, %v2085
        %v2299 = vadd.f32 %v2283, %v2287
        %v2300 = vadd.f32 %v2299, %v2291
        %v2301 = vadd.f32 %v2300, %v2295
        %v2302 = vrot.slane %v2301, 4
        %v2303 = vadd.f32 %v2301, %v2302
        %v2304 = vrot.slane %v2303, 2
        %v2305 = vadd.f32 %v2303, %v2304
        %v2306 = vrot.slane %v2305, 1
        %v2307 = vadd.f32 %v2305, %v2306
        %v2308 = vadd.f32 %v2284, %v2288
        %v2309 = vadd.f32 %v2308, %v2292
        %v2310 = vadd.f32 %v2309, %v2296
        %v2311 = vrot.slane %v2310, 4
        %v2312 = vadd.f32 %v2310, %v2311
        %v2313 = vrot.slane %v2312, 2
        %v2314 = vadd.f32 %v2312, %v2313
        %v2315 = vrot.slane %v2314, 1
        %v2316 = vadd.f32 %v2314, %v2315
        %v2317 = vadd.f32 %v2285, %v2289
        %v2318 = vadd.f32 %v2317, %v2293
        %v2319 = vadd.f32 %v2318, %v2297
        %v2320 = vrot.slane %v2319, 4
        %v2321 = vadd.f32 %v2319, %v2320
        %v2322 = vrot.slane %v2321, 2
        %v2323 = vadd.f32 %v2321, %v2322
        %v2324 = vrot.slane %v2323, 1
        %v2325 = vadd.f32 %v2323, %v2324
        %v2326 = vadd.f32 %v2286, %v2290
        %v2327 = vadd.f32 %v2326, %v2294
        %v2328 = vadd.f32 %v2327, %v2298
        %v2329 = vrot.slane %v2328, 4
        %v2330 = vadd.f32 %v2328, %v2329
        %v2331 = vrot.slane %v2330, 2
        %v2332 = vadd.f32 %v2330, %v2331
        %v2333 = vrot.slane %v2332, 1
        %v2334 = vadd.f32 %v2332, %v2333
        %v2335 = vmul.f32 %v2307, 0.17677669
        %v2336 = vmul.f32 %v2316, 0.17677669
        %v2337 = vmul.f32 %v2325, 0.17677669
        %v2338 = vmul.f32 %v2334, 0.17677669
        %v2339 = vmax.f32 %v2279, %v2335
        %v2340 = vmax.f32 %v2280, %v2336
        %v2341 = vmax.f32 %v2281, %v2337
        %v2342 = vmax.f32 %v2282, %v2338
        %v2343 = vsub.f32 %v2279, %v2339
        %v2344 = vsub.f32 %v2280, %v2340
        %v2345 = vsub.f32 %v2281, %v2341
        %v2346 = vsub.f32 %v2282, %v2342
        %v2347 = vmul.f32 %v2343, 1.442695
        %v2348 = vpow.pop %v2347
        %v2349 = vmul.f32 %v2344, 1.442695
        %v2350 = vpow.pop %v2349
        %v2351 = vmul.f32 %v2345, 1.442695
        %v2352 = vpow.pop %v2351
        %v2353 = vmul.f32 %v2346, 1.442695
        %v2354 = vpow.pop %v2353
        %v2355 = vsub.f32 %v2335, %v2339
        %v2356 = vsub.f32 %v2336, %v2340
        %v2357 = vsub.f32 %v2337, %v2341
        %v2358 = vsub.f32 %v2338, %v2342
        %v2359 = vmul.f32 %v2355, 1.442695
        %v2360 = vpow.pop %v2359
        %v2361 = vmul.f32 %v2356, 1.442695
        %v2362 = vpow.pop %v2361
        %v2363 = vmul.f32 %v2357, 1.442695
        %v2364 = vpow.pop %v2363
        %v2365 = vmul.f32 %v2358, 1.442695
        %v2366 = vpow.pop %v2365
        %v2367 = vadd.f32 %v2348, %v2360
        %v2368 = vadd.f32 %v2350, %v2362
        %v2369 = vadd.f32 %v2352, %v2364
        %v2370 = vadd.f32 %v2354, %v2366
        %v2371 = vrcp.pop %v2367
        %v2372 = vrcp.pop %v2368
        %v2373 = vrcp.pop %v2369
        %v2374 = vrcp.pop %v2370
        %v2375 = vmul.f32 %v2348, %v2371
        %v2376 = vmul.f32 %v2350, %v2372
        %v2377 = vmul.f32 %v2352, %v2373
        %v2378 = vmul.f32 %v2354, %v2374
        %v2379 = vmul.f32 %v2375, %v1330
        %v2380 = vmul.f32 %v2376, %v1332
        %v2381 = vmul.f32 %v2377, %v1603
        %v2382 = vmul.f32 %v2378, %v1605
        %v2383 = vmul.f32 %v2375, %v1334
        %v2384 = vmul.f32 %v2376, %v1336
        %v2385 = vmul.f32 %v2377, %v1607
        %v2386 = vmul.f32 %v2378, %v1609
        %v2387 = vmul.f32 %v2375, %v1340
        %v2388 = vmul.f32 %v2376, %v1342
        %v2389 = vmul.f32 %v2377, %v1613
        %v2390 = vmul.f32 %v2378, %v1615
        %v2391 = vmul.f32 %v2375, %v1344
        %v2392 = vmul.f32 %v2376, %v1346
        %v2393 = vmul.f32 %v2377, %v1617
        %v2394 = vmul.f32 %v2378, %v1619
        %v2395 = vmul.f32 %v2360, %v2371
        %v2396 = vmul.f32 %v2362, %v2372
        %v2397 = vmul.f32 %v2364, %v2373
        %v2398 = vmul.f32 %v2366, %v2374
        %v2399 = vmul.f32 %v2395, %v1876
        %v2400 = vmul.f32 %v2396, %v1878
        %v2401 = vmul.f32 %v2397, %v2149
        %v2402 = vmul.f32 %v2398, %v2151
        %v2403 = vmul.f32 %v2395, %v1880
        %v2404 = vmul.f32 %v2396, %v1882
        %v2405 = vmul.f32 %v2397, %v2153
        %v2406 = vmul.f32 %v2398, %v2155
        %v2407 = vmul.f32 %v2395, %v1886
        %v2408 = vmul.f32 %v2396, %v1888
        %v2409 = vmul.f32 %v2397, %v2159
        %v2410 = vmul.f32 %v2398, %v2161
        %v2411 = vmul.f32 %v2395, %v1890
        %v2412 = vmul.f32 %v2396, %v1892
        %v2413 = vmul.f32 %v2397, %v2163
        %v2414 = vmul.f32 %v2398, %v2165
        %v2415 = vadd.f32 %v2379, %v2399
        %v2416 = vadd.f32 %v2380, %v2400
        %v2417 = vadd.f32 %v2381, %v2401
        %v2418 = vadd.f32 %v2382, %v2402
        %v2419 = vadd.f32 %v2383, %v2403
        %v2420 = vadd.f32 %v2384, %v2404
        %v2421 = vadd.f32 %v2385, %v2405
        %v2422 = vadd.f32 %v2386, %v2406
        %v2423 = vadd.f32 %v2387, %v2407
        %v2424 = vadd.f32 %v2388, %v2408
        %v2425 = vadd.f32 %v2389, %v2409
        %v2426 = vadd.f32 %v2390, %v2410
        %v2427 = vadd.f32 %v2391, %v2411
        %v2428 = vadd.f32 %v2392, %v2412
        %v2429 = vadd.f32 %v2393, %v2413
        %v2430 = vadd.f32 %v2394, %v2414
        %v2431 = vmul.f32 %v1190, %v1270
        %v2432 = vmul.f32 %v1192, %v1272
        %v2433 = vmul.f32 %v1463, %v1543
        %v2434 = vmul.f32 %v1465, %v1545
        %v2435 = vmul.f32 %v1194, %v1274
        %v2436 = vmul.f32 %v1196, %v1276
        %v2437 = vmul.f32 %v1467, %v1547
        %v2438 = vmul.f32 %v1469, %v1549
        %v2439 = vmul.f32 %v1200, %v1280
        %v2440 = vmul.f32 %v1202, %v1282
        %v2441 = vmul.f32 %v1473, %v1553
        %v2442 = vmul.f32 %v1475, %v1555
        %v2443 = vmul.f32 %v1204, %v1284
        %v2444 = vmul.f32 %v1206, %v1286
        %v2445 = vmul.f32 %v1477, %v1557
        %v2446 = vmul.f32 %v1479, %v1559
        %v2447 = vadd.f32 %v2431, %v2435
        %v2448 = vadd.f32 %v2447, %v2439
        %v2449 = vadd.f32 %v2448, %v2443
        %v2450 = vrot.slane %v2449, 4
        %v2451 = vadd.f32 %v2449, %v2450
        %v2452 = vrot.slane %v2451, 2
        %v2453 = vadd.f32 %v2451, %v2452
        %v2454 = vrot.slane %v2453, 1
        %v2455 = vadd.f32 %v2453, %v2454
        %v2456 = vadd.f32 %v2432, %v2436
        %v2457 = vadd.f32 %v2456, %v2440
        %v2458 = vadd.f32 %v2457, %v2444
        %v2459 = vrot.slane %v2458, 4
        %v2460 = vadd.f32 %v2458, %v2459
        %v2461 = vrot.slane %v2460, 2
        %v2462 = vadd.f32 %v2460, %v2461
        %v2463 = vrot.slane %v2462, 1
        %v2464 = vadd.f32 %v2462, %v2463
        %v2465 = vadd.f32 %v2433, %v2437
        %v2466 = vadd.f32 %v2465, %v2441
        %v2467 = vadd.f32 %v2466, %v2445
        %v2468 = vrot.slane %v2467, 4
        %v2469 = vadd.f32 %v2467, %v2468
        %v2470 = vrot.slane %v2469, 2
        %v2471 = vadd.f32 %v2469, %v2470
        %v2472 = vrot.slane %v2471, 1
        %v2473 = vadd.f32 %v2471, %v2472
        %v2474 = vadd.f32 %v2434, %v2438
        %v2475 = vadd.f32 %v2474, %v2442
        %v2476 = vadd.f32 %v2475, %v2446
        %v2477 = vrot.slane %v2476, 4
        %v2478 = vadd.f32 %v2476, %v2477
        %v2479 = vrot.slane %v2478, 2
        %v2480 = vadd.f32 %v2478, %v2479
        %v2481 = vrot.slane %v2480, 1
        %v2482 = vadd.f32 %v2480, %v2481
        %v2483 = vmul.f32 %v2455, 0.17677669
        %v2484 = vmul.f32 %v2464, 0.17677669
        %v2485 = vmul.f32 %v2473, 0.17677669
        %v2486 = vmul.f32 %v2482, 0.17677669
        %v2487 = vmul.f32 %v1190, %v1816
        %v2488 = vmul.f32 %v1192, %v1818
        %v2489 = vmul.f32 %v1463, %v2089
        %v2490 = vmul.f32 %v1465, %v2091
        %v2491 = vmul.f32 %v1194, %v1820
        %v2492 = vmul.f32 %v1196, %v1822
        %v2493 = vmul.f32 %v1467, %v2093
        %v2494 = vmul.f32 %v1469, %v2095
        %v2495 = vmul.f32 %v1200, %v1826
        %v2496 = vmul.f32 %v1202, %v1828
        %v2497 = vmul.f32 %v1473, %v2099
        %v2498 = vmul.f32 %v1475, %v2101
        %v2499 = vmul.f32 %v1204, %v1830
        %v2500 = vmul.f32 %v1206, %v1832
        %v2501 = vmul.f32 %v1477, %v2103
        %v2502 = vmul.f32 %v1479, %v2105
        %v2503 = vadd.f32 %v2487, %v2491
        %v2504 = vadd.f32 %v2503, %v2495
        %v2505 = vadd.f32 %v2504, %v2499
        %v2506 = vrot.slane %v2505, 4
        %v2507 = vadd.f32 %v2505, %v2506
        %v2508 = vrot.slane %v2507, 2
        %v2509 = vadd.f32 %v2507, %v2508
        %v2510 = vrot.slane %v2509, 1
        %v2511 = vadd.f32 %v2509, %v2510
        %v2512 = vadd.f32 %v2488, %v2492
        %v2513 = vadd.f32 %v2512, %v2496
        %v2514 = vadd.f32 %v2513, %v2500
        %v2515 = vrot.slane %v2514, 4
        %v2516 = vadd.f32 %v2514, %v2515
        %v2517 = vrot.slane %v2516, 2
        %v2518 = vadd.f32 %v2516, %v2517
        %v2519 = vrot.slane %v2518, 1
        %v2520 = vadd.f32 %v2518, %v2519
        %v2521 = vadd.f32 %v2489, %v2493
        %v2522 = vadd.f32 %v2521, %v2497
        %v2523 = vadd.f32 %v2522, %v2501
        %v2524 = vrot.slane %v2523, 4
        %v2525 = vadd.f32 %v2523, %v2524
        %v2526 = vrot.slane %v2525, 2
        %v2527 = vadd.f32 %v2525, %v2526
        %v2528 = vrot.slane %v2527, 1
        %v2529 = vadd.f32 %v2527, %v2528
        %v2530 = vadd.f32 %v2490, %v2494
        %v2531 = vadd.f32 %v2530, %v2498
        %v2532 = vadd.f32 %v2531, %v2502
        %v2533 = vrot.slane %v2532, 4
        %v2534 = vadd.f32 %v2532, %v2533
        %v2535 = vrot.slane %v2534, 2
        %v2536 = vadd.f32 %v2534, %v2535
        %v2537 = vrot.slane %v2536, 1
        %v2538 = vadd.f32 %v2536, %v2537
        %v2539 = vmul.f32 %v2511, 0.17677669
        %v2540 = vmul.f32 %v2520, 0.17677669
        %v2541 = vmul.f32 %v2529, 0.17677669
        %v2542 = vmul.f32 %v2538, 0.17677669
        %v2543 = vmax.f32 %v2483, %v2539
        %v2544 = vmax.f32 %v2484, %v2540
        %v2545 = vmax.f32 %v2485, %v2541
        %v2546 = vmax.f32 %v2486, %v2542
        %v2547 = vsub.f32 %v2483, %v2543
        %v2548 = vsub.f32 %v2484, %v2544
        %v2549 = vsub.f32 %v2485, %v2545
        %v2550 = vsub.f32 %v2486, %v2546
        %v2551 = vmul.f32 %v2547, 1.442695
        %v2552 = vpow.pop %v2551
        %v2553 = vmul.f32 %v2548, 1.442695
        %v2554 = vpow.pop %v2553
        %v2555 = vmul.f32 %v2549, 1.442695
        %v2556 = vpow.pop %v2555
        %v2557 = vmul.f32 %v2550, 1.442695
        %v2558 = vpow.pop %v2557
        %v2559 = vsub.f32 %v2539, %v2543
        %v2560 = vsub.f32 %v2540, %v2544
        %v2561 = vsub.f32 %v2541, %v2545
        %v2562 = vsub.f32 %v2542, %v2546
        %v2563 = vmul.f32 %v2559, 1.442695
        %v2564 = vpow.pop %v2563
        %v2565 = vmul.f32 %v2560, 1.442695
        %v2566 = vpow.pop %v2565
        %v2567 = vmul.f32 %v2561, 1.442695
        %v2568 = vpow.pop %v2567
        %v2569 = vmul.f32 %v2562, 1.442695
        %v2570 = vpow.pop %v2569
        %v2571 = vadd.f32 %v2552, %v2564
        %v2572 = vadd.f32 %v2554, %v2566
        %v2573 = vadd.f32 %v2556, %v2568
        %v2574 = vadd.f32 %v2558, %v2570
        %v2575 = vrcp.pop %v2571
        %v2576 = vrcp.pop %v2572
        %v2577 = vrcp.pop %v2573
        %v2578 = vrcp.pop %v2574
        %v2579 = vmul.f32 %v2552, %v2575
        %v2580 = vmul.f32 %v2554, %v2576
        %v2581 = vmul.f32 %v2556, %v2577
        %v2582 = vmul.f32 %v2558, %v2578
        %v2583 = vmul.f32 %v2579, %v1350
        %v2584 = vmul.f32 %v2580, %v1352
        %v2585 = vmul.f32 %v2581, %v1623
        %v2586 = vmul.f32 %v2582, %v1625
        %v2587 = vmul.f32 %v2579, %v1354
        %v2588 = vmul.f32 %v2580, %v1356
        %v2589 = vmul.f32 %v2581, %v1627
        %v2590 = vmul.f32 %v2582, %v1629
        %v2591 = vmul.f32 %v2579, %v1360
        %v2592 = vmul.f32 %v2580, %v1362
        %v2593 = vmul.f32 %v2581, %v1633
        %v2594 = vmul.f32 %v2582, %v1635
        %v2595 = vmul.f32 %v2579, %v1364
        %v2596 = vmul.f32 %v2580, %v1366
        %v2597 = vmul.f32 %v2581, %v1637
        %v2598 = vmul.f32 %v2582, %v1639
        %v2599 = vmul.f32 %v2564, %v2575
        %v2600 = vmul.f32 %v2566, %v2576
        %v2601 = vmul.f32 %v2568, %v2577
        %v2602 = vmul.f32 %v2570, %v2578
        %v2603 = vmul.f32 %v2599, %v1896
        %v2604 = vmul.f32 %v2600, %v1898
        %v2605 = vmul.f32 %v2601, %v2169
        %v2606 = vmul.f32 %v2602, %v2171
        %v2607 = vmul.f32 %v2599, %v1900
        %v2608 = vmul.f32 %v2600, %v1902
        %v2609 = vmul.f32 %v2601, %v2173
        %v2610 = vmul.f32 %v2602, %v2175
        %v2611 = vmul.f32 %v2599, %v1906
        %v2612 = vmul.f32 %v2600, %v1908
        %v2613 = vmul.f32 %v2601, %v2179
        %v2614 = vmul.f32 %v2602, %v2181
        %v2615 = vmul.f32 %v2599, %v1910
        %v2616 = vmul.f32 %v2600, %v1912
        %v2617 = vmul.f32 %v2601, %v2183
        %v2618 = vmul.f32 %v2602, %v2185
        %v2619 = vadd.f32 %v2583, %v2603
        %v2620 = vadd.f32 %v2584, %v2604
        %v2621 = vadd.f32 %v2585, %v2605
        %v2622 = vadd.f32 %v2586, %v2606
        %v2623 = vadd.f32 %v2587, %v2607
        %v2624 = vadd.f32 %v2588, %v2608
        %v2625 = vadd.f32 %v2589, %v2609
        %v2626 = vadd.f32 %v2590, %v2610
        %v2627 = vadd.f32 %v2591, %v2611
        %v2628 = vadd.f32 %v2592, %v2612
        %v2629 = vadd.f32 %v2593, %v2613
        %v2630 = vadd.f32 %v2594, %v2614
        %v2631 = vadd.f32 %v2595, %v2615
        %v2632 = vadd.f32 %v2596, %v2616
        %v2633 = vadd.f32 %v2597, %v2617
        %v2634 = vadd.f32 %v2598, %v2618
        %v2635 = vmul.f32 %v1210, %v1290
        %v2636 = vmul.f32 %v1212, %v1292
        %v2637 = vmul.f32 %v1483, %v1563
        %v2638 = vmul.f32 %v1485, %v1565
        %v2639 = vmul.f32 %v1214, %v1294
        %v2640 = vmul.f32 %v1216, %v1296
        %v2641 = vmul.f32 %v1487, %v1567
        %v2642 = vmul.f32 %v1489, %v1569
        %v2643 = vmul.f32 %v1220, %v1300
        %v2644 = vmul.f32 %v1222, %v1302
        %v2645 = vmul.f32 %v1493, %v1573
        %v2646 = vmul.f32 %v1495, %v1575
        %v2647 = vmul.f32 %v1224, %v1304
        %v2648 = vmul.f32 %v1226, %v1306
        %v2649 = vmul.f32 %v1497, %v1577
        %v2650 = vmul.f32 %v1499, %v1579
        %v2651 = vadd.f32 %v2635, %v2639
        %v2652 = vadd.f32 %v2651, %v2643
        %v2653 = vadd.f32 %v2652, %v2647
        %v2654 = vrot.slane %v2653, 4
        %v2655 = vadd.f32 %v2653, %v2654
        %v2656 = vrot.slane %v2655, 2
        %v2657 = vadd.f32 %v2655, %v2656
        %v2658 = vrot.slane %v2657, 1
        %v2659 = vadd.f32 %v2657, %v2658
        %v2660 = vadd.f32 %v2636, %v2640
        %v2661 = vadd.f32 %v2660, %v2644
        %v2662 = vadd.f32 %v2661, %v2648
        %v2663 = vrot.slane %v2662, 4
        %v2664 = vadd.f32 %v2662, %v2663
        %v2665 = vrot.slane %v2664, 2
        %v2666 = vadd.f32 %v2664, %v2665
        %v2667 = vrot.slane %v2666, 1
        %v2668 = vadd.f32 %v2666, %v2667
        %v2669 = vadd.f32 %v2637, %v2641
        %v2670 = vadd.f32 %v2669, %v2645
        %v2671 = vadd.f32 %v2670, %v2649
        %v2672 = vrot.slane %v2671, 4
        %v2673 = vadd.f32 %v2671, %v2672
        %v2674 = vrot.slane %v2673, 2
        %v2675 = vadd.f32 %v2673, %v2674
        %v2676 = vrot.slane %v2675, 1
        %v2677 = vadd.f32 %v2675, %v2676
        %v2678 = vadd.f32 %v2638, %v2642
        %v2679 = vadd.f32 %v2678, %v2646
        %v2680 = vadd.f32 %v2679, %v2650
        %v2681 = vrot.slane %v2680, 4
        %v2682 = vadd.f32 %v2680, %v2681
        %v2683 = vrot.slane %v2682, 2
        %v2684 = vadd.f32 %v2682, %v2683
        %v2685 = vrot.slane %v2684, 1
        %v2686 = vadd.f32 %v2684, %v2685
        %v2687 = vmul.f32 %v2659, 0.17677669
        %v2688 = vmul.f32 %v2668, 0.17677669
        %v2689 = vmul.f32 %v2677, 0.17677669
        %v2690 = vmul.f32 %v2686, 0.17677669
        %v2691 = vmul.f32 %v1210, %v1836
        %v2692 = vmul.f32 %v1212, %v1838
        %v2693 = vmul.f32 %v1483, %v2109
        %v2694 = vmul.f32 %v1485, %v2111
        %v2695 = vmul.f32 %v1214, %v1840
        %v2696 = vmul.f32 %v1216, %v1842
        %v2697 = vmul.f32 %v1487, %v2113
        %v2698 = vmul.f32 %v1489, %v2115
        %v2699 = vmul.f32 %v1220, %v1846
        %v2700 = vmul.f32 %v1222, %v1848
        %v2701 = vmul.f32 %v1493, %v2119
        %v2702 = vmul.f32 %v1495, %v2121
        %v2703 = vmul.f32 %v1224, %v1850
        %v2704 = vmul.f32 %v1226, %v1852
        %v2705 = vmul.f32 %v1497, %v2123
        %v2706 = vmul.f32 %v1499, %v2125
        %v2707 = vadd.f32 %v2691, %v2695
        %v2708 = vadd.f32 %v2707, %v2699
        %v2709 = vadd.f32 %v2708, %v2703
        %v2710 = vrot.slane %v2709, 4
        %v2711 = vadd.f32 %v2709, %v2710
        %v2712 = vrot.slane %v2711, 2
        %v2713 = vadd.f32 %v2711, %v2712
        %v2714 = vrot.slane %v2713, 1
        %v2715 = vadd.f32 %v2713, %v2714
        %v2716 = vadd.f32 %v2692, %v2696
        %v2717 = vadd.f32 %v2716, %v2700
        %v2718 = vadd.f32 %v2717, %v2704
        %v2719 = vrot.slane %v2718, 4
        %v2720 = vadd.f32 %v2718, %v2719
        %v2721 = vrot.slane %v2720, 2
        %v2722 = vadd.f32 %v2720, %v2721
        %v2723 = vrot.slane %v2722, 1
        %v2724 = vadd.f32 %v2722, %v2723
        %v2725 = vadd.f32 %v2693, %v2697
        %v2726 = vadd.f32 %v2725, %v2701
        %v2727 = vadd.f32 %v2726, %v2705
        %v2728 = vrot.slane %v2727, 4
        %v2729 = vadd.f32 %v2727, %v2728
        %v2730 = vrot.slane %v2729, 2
        %v2731 = vadd.f32 %v2729, %v2730
        %v2732 = vrot.slane %v2731, 1
        %v2733 = vadd.f32 %v2731, %v2732
        %v2734 = vadd.f32 %v2694, %v2698
        %v2735 = vadd.f32 %v2734, %v2702
        %v2736 = vadd.f32 %v2735, %v2706
        %v2737 = vrot.slane %v2736, 4
        %v2738 = vadd.f32 %v2736, %v2737
        %v2739 = vrot.slane %v2738, 2
        %v2740 = vadd.f32 %v2738, %v2739
        %v2741 = vrot.slane %v2740, 1
        %v2742 = vadd.f32 %v2740, %v2741
        %v2743 = vmul.f32 %v2715, 0.17677669
        %v2744 = vmul.f32 %v2724, 0.17677669
        %v2745 = vmul.f32 %v2733, 0.17677669
        %v2746 = vmul.f32 %v2742, 0.17677669
        %v2747 = vmax.f32 %v2687, %v2743
        %v2748 = vmax.f32 %v2688, %v2744
        %v2749 = vmax.f32 %v2689, %v2745
        %v2750 = vmax.f32 %v2690, %v2746
        %v2751 = vsub.f32 %v2687, %v2747
        %v2752 = vsub.f32 %v2688, %v2748
        %v2753 = vsub.f32 %v2689, %v2749
        %v2754 = vsub.f32 %v2690, %v2750
        %v2755 = vmul.f32 %v2751, 1.442695
        %v2756 = vpow.pop %v2755
        %v2757 = vmul.f32 %v2752, 1.442695
        %v2758 = vpow.pop %v2757
        %v2759 = vmul.f32 %v2753, 1.442695
        %v2760 = vpow.pop %v2759
        %v2761 = vmul.f32 %v2754, 1.442695
        %v2762 = vpow.pop %v2761
        %v2763 = vsub.f32 %v2743, %v2747
        %v2764 = vsub.f32 %v2744, %v2748
        %v2765 = vsub.f32 %v2745, %v2749
        %v2766 = vsub.f32 %v2746, %v2750
        %v2767 = vmul.f32 %v2763, 1.442695
        %v2768 = vpow.pop %v2767
        %v2769 = vmul.f32 %v2764, 1.442695
        %v2770 = vpow.pop %v2769
        %v2771 = vmul.f32 %v2765, 1.442695
        %v2772 = vpow.pop %v2771
        %v2773 = vmul.f32 %v2766, 1.442695
        %v2774 = vpow.pop %v2773
        %v2775 = vadd.f32 %v2756, %v2768
        %v2776 = vadd.f32 %v2758, %v2770
        %v2777 = vadd.f32 %v2760, %v2772
        %v2778 = vadd.f32 %v2762, %v2774
        %v2779 = vrcp.pop %v2775
        %v2780 = vrcp.pop %v2776
        %v2781 = vrcp.pop %v2777
        %v2782 = vrcp.pop %v2778
        %v2783 = vmul.f32 %v2756, %v2779
        %v2784 = vmul.f32 %v2758, %v2780
        %v2785 = vmul.f32 %v2760, %v2781
        %v2786 = vmul.f32 %v2762, %v2782
        %v2787 = vmul.f32 %v2783, %v1370
        %v2788 = vmul.f32 %v2784, %v1372
        %v2789 = vmul.f32 %v2785, %v1643
        %v2790 = vmul.f32 %v2786, %v1645
        %v2791 = vmul.f32 %v2783, %v1374
        %v2792 = vmul.f32 %v2784, %v1376
        %v2793 = vmul.f32 %v2785, %v1647
        %v2794 = vmul.f32 %v2786, %v1649
        %v2795 = vmul.f32 %v2783, %v1380
        %v2796 = vmul.f32 %v2784, %v1382
        %v2797 = vmul.f32 %v2785, %v1653
        %v2798 = vmul.f32 %v2786, %v1655
        %v2799 = vmul.f32 %v2783, %v1384
        %v2800 = vmul.f32 %v2784, %v1386
        %v2801 = vmul.f32 %v2785, %v1657
        %v2802 = vmul.f32 %v2786, %v1659
        %v2803 = vmul.f32 %v2768, %v2779
        %v2804 = vmul.f32 %v2770, %v2780
        %v2805 = vmul.f32 %v2772, %v2781
        %v2806 = vmul.f32 %v2774, %v2782
        %v2807 = vmul.f32 %v2803, %v1916
        %v2808 = vmul.f32 %v2804, %v1918
        %v2809 = vmul.f32 %v2805, %v2189
        %v2810 = vmul.f32 %v2806, %v2191
        %v2811 = vmul.f32 %v2803, %v1920
        %v2812 = vmul.f32 %v2804, %v1922
        %v2813 = vmul.f32 %v2805, %v2193
        %v2814 = vmul.f32 %v2806, %v2195
        %v2815 = vmul.f32 %v2803, %v1926
        %v2816 = vmul.f32 %v2804, %v1928
        %v2817 = vmul.f32 %v2805, %v2199
        %v2818 = vmul.f32 %v2806, %v2201
        %v2819 = vmul.f32 %v2803, %v1930
        %v2820 = vmul.f32 %v2804, %v1932
        %v2821 = vmul.f32 %v2805, %v2203
        %v2822 = vmul.f32 %v2806, %v2205
        %v2823 = vadd.f32 %v2787, %v2807
        %v2824 = vadd.f32 %v2788, %v2808
        %v2825 = vadd.f32 %v2789, %v2809
        %v2826 = vadd.f32 %v2790, %v2810
        %v2827 = vadd.f32 %v2791, %v2811
        %v2828 = vadd.f32 %v2792, %v2812
        %v2829 = vadd.f32 %v2793, %v2813
        %v2830 = vadd.f32 %v2794, %v2814
        %v2831 = vadd.f32 %v2795, %v2815
        %v2832 = vadd.f32 %v2796, %v2816
        %v2833 = vadd.f32 %v2797, %v2817
        %v2834 = vadd.f32 %v2798, %v2818
        %v2835 = vadd.f32 %v2799, %v2819
        %v2836 = vadd.f32 %v2800, %v2820
        %v2837 = vadd.f32 %v2801, %v2821
        %v2838 = vadd.f32 %v2802, %v2822
        %v2839 = vmul.f32 %v1230, %v1310
        %v2840 = vmul.f32 %v1232, %v1312
        %v2841 = vmul.f32 %v1503, %v1583
        %v2842 = vmul.f32 %v1505, %v1585
        %v2843 = vmul.f32 %v1234, %v1314
        %v2844 = vmul.f32 %v1236, %v1316
        %v2845 = vmul.f32 %v1507, %v1587
        %v2846 = vmul.f32 %v1509, %v1589
        %v2847 = vmul.f32 %v1240, %v1320
        %v2848 = vmul.f32 %v1242, %v1322
        %v2849 = vmul.f32 %v1513, %v1593
        %v2850 = vmul.f32 %v1515, %v1595
        %v2851 = vmul.f32 %v1244, %v1324
        %v2852 = vmul.f32 %v1246, %v1326
        %v2853 = vmul.f32 %v1517, %v1597
        %v2854 = vmul.f32 %v1519, %v1599
        %v2855 = vadd.f32 %v2839, %v2843
        %v2856 = vadd.f32 %v2855, %v2847
        %v2857 = vadd.f32 %v2856, %v2851
        %v2858 = vrot.slane %v2857, 4
        %v2859 = vadd.f32 %v2857, %v2858
        %v2860 = vrot.slane %v2859, 2
        %v2861 = vadd.f32 %v2859, %v2860
        %v2862 = vrot.slane %v2861, 1
        %v2863 = vadd.f32 %v2861, %v2862
        %v2864 = vadd.f32 %v2840, %v2844
        %v2865 = vadd.f32 %v2864, %v2848
        %v2866 = vadd.f32 %v2865, %v2852
        %v2867 = vrot.slane %v2866, 4
        %v2868 = vadd.f32 %v2866, %v2867
        %v2869 = vrot.slane %v2868, 2
        %v2870 = vadd.f32 %v2868, %v2869
        %v2871 = vrot.slane %v2870, 1
        %v2872 = vadd.f32 %v2870, %v2871
        %v2873 = vadd.f32 %v2841, %v2845
        %v2874 = vadd.f32 %v2873, %v2849
        %v2875 = vadd.f32 %v2874, %v2853
        %v2876 = vrot.slane %v2875, 4
        %v2877 = vadd.f32 %v2875, %v2876
        %v2878 = vrot.slane %v2877, 2
        %v2879 = vadd.f32 %v2877, %v2878
        %v2880 = vrot.slane %v2879, 1
        %v2881 = vadd.f32 %v2879, %v2880
        %v2882 = vadd.f32 %v2842, %v2846
        %v2883 = vadd.f32 %v2882, %v2850
        %v2884 = vadd.f32 %v2883, %v2854
        %v2885 = vrot.slane %v2884, 4
        %v2886 = vadd.f32 %v2884, %v2885
        %v2887 = vrot.slane %v2886, 2
        %v2888 = vadd.f32 %v2886, %v2887
        %v2889 = vrot.slane %v2888, 1
        %v2890 = vadd.f32 %v2888, %v2889
        %v2891 = vmul.f32 %v2863, 0.17677669
        %v2892 = vmul.f32 %v2872, 0.17677669
        %v2893 = vmul.f32 %v2881, 0.17677669
        %v2894 = vmul.f32 %v2890, 0.17677669
        %v2895 = vmul.f32 %v1230, %v1856
        %v2896 = vmul.f32 %v1232, %v1858
        %v2897 = vmul.f32 %v1503, %v2129
        %v2898 = vmul.f32 %v1505, %v2131
        %v2899 = vmul.f32 %v1234, %v1860
        %v2900 = vmul.f32 %v1236, %v1862
        %v2901 = vmul.f32 %v1507, %v2133
        %v2902 = vmul.f32 %v1509, %v2135
        %v2903 = vmul.f32 %v1240, %v1866
        %v2904 = vmul.f32 %v1242, %v1868
        %v2905 = vmul.f32 %v1513, %v2139
        %v2906 = vmul.f32 %v1515, %v2141
        %v2907 = vmul.f32 %v1244, %v1870
        %v2908 = vmul.f32 %v1246, %v1872
        %v2909 = vmul.f32 %v1517, %v2143
        %v2910 = vmul.f32 %v1519, %v2145
        %v2911 = vadd.f32 %v2895, %v2899
        %v2912 = vadd.f32 %v2911, %v2903
        %v2913 = vadd.f32 %v2912, %v2907
        %v2914 = vrot.slane %v2913, 4
        %v2915 = vadd.f32 %v2913, %v2914
        %v2916 = vrot.slane %v2915, 2
        %v2917 = vadd.f32 %v2915, %v2916
        %v2918 = vrot.slane %v2917, 1
        %v2919 = vadd.f32 %v2917, %v2918
        %v2920 = vadd.f32 %v2896, %v2900
        %v2921 = vadd.f32 %v2920, %v2904
        %v2922 = vadd.f32 %v2921, %v2908
        %v2923 = vrot.slane %v2922, 4
        %v2924 = vadd.f32 %v2922, %v2923
        %v2925 = vrot.slane %v2924, 2
        %v2926 = vadd.f32 %v2924, %v2925
        %v2927 = vrot.slane %v2926, 1
        %v2928 = vadd.f32 %v2926, %v2927
        %v2929 = vadd.f32 %v2897, %v2901
        %v2930 = vadd.f32 %v2929, %v2905
        %v2931 = vadd.f32 %v2930, %v2909
        %v2932 = vrot.slane %v2931, 4
        %v2933 = vadd.f32 %v2931, %v2932
        %v2934 = vrot.slane %v2933, 2
        %v2935 = vadd.f32 %v2933, %v2934
        %v2936 = vrot.slane %v2935, 1
        %v2937 = vadd.f32 %v2935, %v2936
        %v2938 = vadd.f32 %v2898, %v2902
        %v2939 = vadd.f32 %v2938, %v2906
        %v2940 = vadd.f32 %v2939, %v2910
        %v2941 = vrot.slane %v2940, 4
        %v2942 = vadd.f32 %v2940, %v2941
        %v2943 = vrot.slane %v2942, 2
        %v2944 = vadd.f32 %v2942, %v2943
        %v2945 = vrot.slane %v2944, 1
        %v2946 = vadd.f32 %v2944, %v2945
        %v2947 = vmul.f32 %v2919, 0.17677669
        %v2948 = vmul.f32 %v2928, 0.17677669
        %v2949 = vmul.f32 %v2937, 0.17677669
        %v2950 = vmul.f32 %v2946, 0.17677669
        %v2951 = vmax.f32 %v2891, %v2947
        %v2952 = vmax.f32 %v2892, %v2948
        %v2953 = vmax.f32 %v2893, %v2949
        %v2954 = vmax.f32 %v2894, %v2950
        %v2955 = vsub.f32 %v2891, %v2951
        %v2956 = vsub.f32 %v2892, %v2952
        %v2957 = vsub.f32 %v2893, %v2953
        %v2958 = vsub.f32 %v2894, %v2954
        %v2959 = vmul.f32 %v2955, 1.442695
        %v2960 = vpow.pop %v2959
        %v2961 = vmul.f32 %v2956, 1.442695
        %v2962 = vpow.pop %v2961
        %v2963 = vmul.f32 %v2957, 1.442695
        %v2964 = vpow.pop %v2963
        %v2965 = vmul.f32 %v2958, 1.442695
        %v2966 = vpow.pop %v2965
        %v2967 = vsub.f32 %v2947, %v2951
        %v2968 = vsub.f32 %v2948, %v2952
        %v2969 = vsub.f32 %v2949, %v2953
        %v2970 = vsub.f32 %v2950, %v2954
        %v2971 = vmul.f32 %v2967, 1.442695
        %v2972 = vpow.pop %v2971
        %v2973 = vmul.f32 %v2968, 1.442695
        %v2974 = vpow.pop %v2973
        %v2975 = vmul.f32 %v2969, 1.442695
        %v2976 = vpow.pop %v2975
        %v2977 = vmul.f32 %v2970, 1.442695
        %v2978 = vpow.pop %v2977
        %v2979 = vadd.f32 %v2960, %v2972
        %v2980 = vadd.f32 %v2962, %v2974
        %v2981 = vadd.f32 %v2964, %v2976
        %v2982 = vadd.f32 %v2966, %v2978
        %v2983 = vrcp.pop %v2979
        %v2984 = vrcp.pop %v2980
        %v2985 = vrcp.pop %v2981
        %v2986 = vrcp.pop %v2982
        %v2987 = vmul.f32 %v2960, %v2983
        %v2988 = vmul.f32 %v2962, %v2984
        %v2989 = vmul.f32 %v2964, %v2985
        %v2990 = vmul.f32 %v2966, %v2986
        %v2991 = vmul.f32 %v2987, %v1390
        %v2992 = vmul.f32 %v2988, %v1392
        %v2993 = vmul.f32 %v2989, %v1663
        %v2994 = vmul.f32 %v2990, %v1665
        %v2995 = vmul.f32 %v2987, %v1394
        %v2996 = vmul.f32 %v2988, %v1396
        %v2997 = vmul.f32 %v2989, %v1667
        %v2998 = vmul.f32 %v2990, %v1669
        %v2999 = vmul.f32 %v2987, %v1400
        %v3000 = vmul.f32 %v2988, %v1402
        %v3001 = vmul.f32 %v2989, %v1673
        %v3002 = vmul.f32 %v2990, %v1675
        %v3003 = vmul.f32 %v2987, %v1404
        %v3004 = vmul.f32 %v2988, %v1406
        %v3005 = vmul.f32 %v2989, %v1677
        %v3006 = vmul.f32 %v2990, %v1679
        %v3007 = vmul.f32 %v2972, %v2983
        %v3008 = vmul.f32 %v2974, %v2984
        %v3009 = vmul.f32 %v2976, %v2985
        %v3010 = vmul.f32 %v2978, %v2986
        %v3011 = vmul.f32 %v3007, %v1936
        %v3012 = vmul.f32 %v3008, %v1938
        %v3013 = vmul.f32 %v3009, %v2209
        %v3014 = vmul.f32 %v3010, %v2211
        %v3015 = vmul.f32 %v3007, %v1940
        %v3016 = vmul.f32 %v3008, %v1942
        %v3017 = vmul.f32 %v3009, %v2213
        %v3018 = vmul.f32 %v3010, %v2215
        %v3019 = vmul.f32 %v3007, %v1946
        %v3020 = vmul.f32 %v3008, %v1948
        %v3021 = vmul.f32 %v3009, %v2219
        %v3022 = vmul.f32 %v3010, %v2221
        %v3023 = vmul.f32 %v3007, %v1950
        %v3024 = vmul.f32 %v3008, %v1952
        %v3025 = vmul.f32 %v3009, %v2223
        %v3026 = vmul.f32 %v3010, %v2225
        %v3027 = vadd.f32 %v2991, %v3011
        %v3028 = vadd.f32 %v2992, %v3012
        %v3029 = vadd.f32 %v2993, %v3013
        %v3030 = vadd.f32 %v2994, %v3014
        %v3031 = vadd.f32 %v2995, %v3015
        %v3032 = vadd.f32 %v2996, %v3016
        %v3033 = vadd.f32 %v2997, %v3017
        %v3034 = vadd.f32 %v2998, %v3018
        %v3035 = vadd.f32 %v2999, %v3019
        %v3036 = vadd.f32 %v3000, %v3020
        %v3037 = vadd.f32 %v3001, %v3021
        %v3038 = vadd.f32 %v3002, %v3022
        %v3039 = vadd.f32 %v3003, %v3023
        %v3040 = vadd.f32 %v3004, %v3024
        %v3041 = vadd.f32 %v3005, %v3025
        %v3042 = vadd.f32 %v3006, %v3026
        %v3043 = vpack.c.bf16 %v2419, %v2415
        %v3044 = vpack.c.bf16 %v2420, %v2416
        %v3045 = vpack.c.bf16 %v2421, %v2417
        %v3046 = vpack.c.bf16 %v2422, %v2418
        %v3047 = vpack.c.bf16 %v2427, %v2423
        %v3048 = vpack.c.bf16 %v2428, %v2424
        %v3049 = vpack.c.bf16 %v2429, %v2425
        %v3050 = vpack.c.bf16 %v2430, %v2426
        %v3051 = vpack.c.bf16 %v2623, %v2619
        %v3052 = vpack.c.bf16 %v2624, %v2620
        %v3053 = vpack.c.bf16 %v2625, %v2621
        %v3054 = vpack.c.bf16 %v2626, %v2622
        %v3055 = vpack.c.bf16 %v2631, %v2627
        %v3056 = vpack.c.bf16 %v2632, %v2628
        %v3057 = vpack.c.bf16 %v2633, %v2629
        %v3058 = vpack.c.bf16 %v2634, %v2630
        %v3059 = vpack.c.bf16 %v2827, %v2823
        %v3060 = vpack.c.bf16 %v2828, %v2824
        %v3061 = vpack.c.bf16 %v2829, %v2825
        %v3062 = vpack.c.bf16 %v2830, %v2826
        %v3063 = vpack.c.bf16 %v2835, %v2831
        %v3064 = vpack.c.bf16 %v2836, %v2832
        %v3065 = vpack.c.bf16 %v2837, %v2833
        %v3066 = vpack.c.bf16 %v2838, %v2834
        %v3067 = vpack.c.bf16 %v3031, %v3027
        %v3068 = vpack.c.bf16 %v3032, %v3028
        %v3069 = vpack.c.bf16 %v3033, %v3029
        %v3070 = vpack.c.bf16 %v3034, %v3030
        %v3071 = vpack.c.bf16 %v3039, %v3035
        %v3072 = vpack.c.bf16 %v3040, %v3036
        %v3073 = vpack.c.bf16 %v3041, %v3037
        %v3074 = vpack.c.bf16 %v3042, %v3038
        %v3075 = vmul.f32 %v1716, %v1250
        %v3076 = vmul.f32 %v1718, %v1252
        %v3077 = vmul.f32 %v1989, %v1523
        %v3078 = vmul.f32 %v1991, %v1525
        %v3079 = vmul.f32 %v1720, %v1254
        %v3080 = vmul.f32 %v1722, %v1256
        %v3081 = vmul.f32 %v1993, %v1527
        %v3082 = vmul.f32 %v1995, %v1529
        %v3083 = vmul.f32 %v1726, %v1260
        %v3084 = vmul.f32 %v1728, %v1262
        %v3085 = vmul.f32 %v1999, %v1533
        %v3086 = vmul.f32 %v2001, %v1535
        %v3087 = vmul.f32 %v1730, %v1264
        %v3088 = vmul.f32 %v1732, %v1266
        %v3089 = vmul.f32 %v2003, %v1537
        %v3090 = vmul.f32 %v2005, %v1539
        %v3091 = vadd.f32 %v3075, %v3079
        %v3092 = vadd.f32 %v3091, %v3083
        %v3093 = vadd.f32 %v3092, %v3087
        %v3094 = vrot.slane %v3093, 4
        %v3095 = vadd.f32 %v3093, %v3094
        %v3096 = vrot.slane %v3095, 2
        %v3097 = vadd.f32 %v3095, %v3096
        %v3098 = vrot.slane %v3097, 1
        %v3099 = vadd.f32 %v3097, %v3098
        %v3100 = vadd.f32 %v3076, %v3080
        %v3101 = vadd.f32 %v3100, %v3084
        %v3102 = vadd.f32 %v3101, %v3088
        %v3103 = vrot.slane %v3102, 4
        %v3104 = vadd.f32 %v3102, %v3103
        %v3105 = vrot.slane %v3104, 2
        %v3106 = vadd.f32 %v3104, %v3105
        %v3107 = vrot.slane %v3106, 1
        %v3108 = vadd.f32 %v3106, %v3107
        %v3109 = vadd.f32 %v3077, %v3081
        %v3110 = vadd.f32 %v3109, %v3085
        %v3111 = vadd.f32 %v3110, %v3089
        %v3112 = vrot.slane %v3111, 4
        %v3113 = vadd.f32 %v3111, %v3112
        %v3114 = vrot.slane %v3113, 2
        %v3115 = vadd.f32 %v3113, %v3114
        %v3116 = vrot.slane %v3115, 1
        %v3117 = vadd.f32 %v3115, %v3116
        %v3118 = vadd.f32 %v3078, %v3082
        %v3119 = vadd.f32 %v3118, %v3086
        %v3120 = vadd.f32 %v3119, %v3090
        %v3121 = vrot.slane %v3120, 4
        %v3122 = vadd.f32 %v3120, %v3121
        %v3123 = vrot.slane %v3122, 2
        %v3124 = vadd.f32 %v3122, %v3123
        %v3125 = vrot.slane %v3124, 1
        %v3126 = vadd.f32 %v3124, %v3125
        %v3127 = vmul.f32 %v3099, 0.17677669
        %v3128 = vmul.f32 %v3108, 0.17677669
        %v3129 = vmul.f32 %v3117, 0.17677669
        %v3130 = vmul.f32 %v3126, 0.17677669
        %v3131 = vmul.f32 %v1716, %v1796
        %v3132 = vmul.f32 %v1718, %v1798
        %v3133 = vmul.f32 %v1989, %v2069
        %v3134 = vmul.f32 %v1991, %v2071
        %v3135 = vmul.f32 %v1720, %v1800
        %v3136 = vmul.f32 %v1722, %v1802
        %v3137 = vmul.f32 %v1993, %v2073
        %v3138 = vmul.f32 %v1995, %v2075
        %v3139 = vmul.f32 %v1726, %v1806
        %v3140 = vmul.f32 %v1728, %v1808
        %v3141 = vmul.f32 %v1999, %v2079
        %v3142 = vmul.f32 %v2001, %v2081
        %v3143 = vmul.f32 %v1730, %v1810
        %v3144 = vmul.f32 %v1732, %v1812
        %v3145 = vmul.f32 %v2003, %v2083
        %v3146 = vmul.f32 %v2005, %v2085
        %v3147 = vadd.f32 %v3131, %v3135
        %v3148 = vadd.f32 %v3147, %v3139
        %v3149 = vadd.f32 %v3148, %v3143
        %v3150 = vrot.slane %v3149, 4
        %v3151 = vadd.f32 %v3149, %v3150
        %v3152 = vrot.slane %v3151, 2
        %v3153 = vadd.f32 %v3151, %v3152
        %v3154 = vrot.slane %v3153, 1
        %v3155 = vadd.f32 %v3153, %v3154
        %v3156 = vadd.f32 %v3132, %v3136
        %v3157 = vadd.f32 %v3156, %v3140
        %v3158 = vadd.f32 %v3157, %v3144
        %v3159 = vrot.slane %v3158, 4
        %v3160 = vadd.f32 %v3158, %v3159
        %v3161 = vrot.slane %v3160, 2
        %v3162 = vadd.f32 %v3160, %v3161
        %v3163 = vrot.slane %v3162, 1
        %v3164 = vadd.f32 %v3162, %v3163
        %v3165 = vadd.f32 %v3133, %v3137
        %v3166 = vadd.f32 %v3165, %v3141
        %v3167 = vadd.f32 %v3166, %v3145
        %v3168 = vrot.slane %v3167, 4
        %v3169 = vadd.f32 %v3167, %v3168
        %v3170 = vrot.slane %v3169, 2
        %v3171 = vadd.f32 %v3169, %v3170
        %v3172 = vrot.slane %v3171, 1
        %v3173 = vadd.f32 %v3171, %v3172
        %v3174 = vadd.f32 %v3134, %v3138
        %v3175 = vadd.f32 %v3174, %v3142
        %v3176 = vadd.f32 %v3175, %v3146
        %v3177 = vrot.slane %v3176, 4
        %v3178 = vadd.f32 %v3176, %v3177
        %v3179 = vrot.slane %v3178, 2
        %v3180 = vadd.f32 %v3178, %v3179
        %v3181 = vrot.slane %v3180, 1
        %v3182 = vadd.f32 %v3180, %v3181
        %v3183 = vmul.f32 %v3155, 0.17677669
        %v3184 = vmul.f32 %v3164, 0.17677669
        %v3185 = vmul.f32 %v3173, 0.17677669
        %v3186 = vmul.f32 %v3182, 0.17677669
        %v3187 = vmax.f32 %v3127, %v3183
        %v3188 = vmax.f32 %v3128, %v3184
        %v3189 = vmax.f32 %v3129, %v3185
        %v3190 = vmax.f32 %v3130, %v3186
        %v3191 = vsub.f32 %v3127, %v3187
        %v3192 = vsub.f32 %v3128, %v3188
        %v3193 = vsub.f32 %v3129, %v3189
        %v3194 = vsub.f32 %v3130, %v3190
        %v3195 = vmul.f32 %v3191, 1.442695
        %v3196 = vpow.pop %v3195
        %v3197 = vmul.f32 %v3192, 1.442695
        %v3198 = vpow.pop %v3197
        %v3199 = vmul.f32 %v3193, 1.442695
        %v3200 = vpow.pop %v3199
        %v3201 = vmul.f32 %v3194, 1.442695
        %v3202 = vpow.pop %v3201
        %v3203 = vsub.f32 %v3183, %v3187
        %v3204 = vsub.f32 %v3184, %v3188
        %v3205 = vsub.f32 %v3185, %v3189
        %v3206 = vsub.f32 %v3186, %v3190
        %v3207 = vmul.f32 %v3203, 1.442695
        %v3208 = vpow.pop %v3207
        %v3209 = vmul.f32 %v3204, 1.442695
        %v3210 = vpow.pop %v3209
        %v3211 = vmul.f32 %v3205, 1.442695
        %v3212 = vpow.pop %v3211
        %v3213 = vmul.f32 %v3206, 1.442695
        %v3214 = vpow.pop %v3213
        %v3215 = vadd.f32 %v3196, %v3208
        %v3216 = vadd.f32 %v3198, %v3210
        %v3217 = vadd.f32 %v3200, %v3212
        %v3218 = vadd.f32 %v3202, %v3214
        %v3219 = vrcp.pop %v3215
        %v3220 = vrcp.pop %v3216
        %v3221 = vrcp.pop %v3217
        %v3222 = vrcp.pop %v3218
        %v3223 = vmul.f32 %v3196, %v3219
        %v3224 = vmul.f32 %v3198, %v3220
        %v3225 = vmul.f32 %v3200, %v3221
        %v3226 = vmul.f32 %v3202, %v3222
        %v3227 = vmul.f32 %v3223, %v1330
        %v3228 = vmul.f32 %v3224, %v1332
        %v3229 = vmul.f32 %v3225, %v1603
        %v3230 = vmul.f32 %v3226, %v1605
        %v3231 = vmul.f32 %v3223, %v1334
        %v3232 = vmul.f32 %v3224, %v1336
        %v3233 = vmul.f32 %v3225, %v1607
        %v3234 = vmul.f32 %v3226, %v1609
        %v3235 = vmul.f32 %v3223, %v1340
        %v3236 = vmul.f32 %v3224, %v1342
        %v3237 = vmul.f32 %v3225, %v1613
        %v3238 = vmul.f32 %v3226, %v1615
        %v3239 = vmul.f32 %v3223, %v1344
        %v3240 = vmul.f32 %v3224, %v1346
        %v3241 = vmul.f32 %v3225, %v1617
        %v3242 = vmul.f32 %v3226, %v1619
        %v3243 = vmul.f32 %v3208, %v3219
        %v3244 = vmul.f32 %v3210, %v3220
        %v3245 = vmul.f32 %v3212, %v3221
        %v3246 = vmul.f32 %v3214, %v3222
        %v3247 = vmul.f32 %v3243, %v1876
        %v3248 = vmul.f32 %v3244, %v1878
        %v3249 = vmul.f32 %v3245, %v2149
        %v3250 = vmul.f32 %v3246, %v2151
        %v3251 = vmul.f32 %v3243, %v1880
        %v3252 = vmul.f32 %v3244, %v1882
        %v3253 = vmul.f32 %v3245, %v2153
        %v3254 = vmul.f32 %v3246, %v2155
        %v3255 = vmul.f32 %v3243, %v1886
        %v3256 = vmul.f32 %v3244, %v1888
        %v3257 = vmul.f32 %v3245, %v2159
        %v3258 = vmul.f32 %v3246, %v2161
        %v3259 = vmul.f32 %v3243, %v1890
        %v3260 = vmul.f32 %v3244, %v1892
        %v3261 = vmul.f32 %v3245, %v2163
        %v3262 = vmul.f32 %v3246, %v2165
        %v3263 = vadd.f32 %v3227, %v3247
        %v3264 = vadd.f32 %v3228, %v3248
        %v3265 = vadd.f32 %v3229, %v3249
        %v3266 = vadd.f32 %v3230, %v3250
        %v3267 = vadd.f32 %v3231, %v3251
        %v3268 = vadd.f32 %v3232, %v3252
        %v3269 = vadd.f32 %v3233, %v3253
        %v3270 = vadd.f32 %v3234, %v3254
        %v3271 = vadd.f32 %v3235, %v3255
        %v3272 = vadd.f32 %v3236, %v3256
        %v3273 = vadd.f32 %v3237, %v3257
        %v3274 = vadd.f32 %v3238, %v3258
        %v3275 = vadd.f32 %v3239, %v3259
        %v3276 = vadd.f32 %v3240, %v3260
        %v3277 = vadd.f32 %v3241, %v3261
        %v3278 = vadd.f32 %v3242, %v3262
        %v3279 = vmul.f32 %v1736, %v1270
        %v3280 = vmul.f32 %v1738, %v1272
        %v3281 = vmul.f32 %v2009, %v1543
        %v3282 = vmul.f32 %v2011, %v1545
        %v3283 = vmul.f32 %v1740, %v1274
        %v3284 = vmul.f32 %v1742, %v1276
        %v3285 = vmul.f32 %v2013, %v1547
        %v3286 = vmul.f32 %v2015, %v1549
        %v3287 = vmul.f32 %v1746, %v1280
        %v3288 = vmul.f32 %v1748, %v1282
        %v3289 = vmul.f32 %v2019, %v1553
        %v3290 = vmul.f32 %v2021, %v1555
        %v3291 = vmul.f32 %v1750, %v1284
        %v3292 = vmul.f32 %v1752, %v1286
        %v3293 = vmul.f32 %v2023, %v1557
        %v3294 = vmul.f32 %v2025, %v1559
        %v3295 = vadd.f32 %v3279, %v3283
        %v3296 = vadd.f32 %v3295, %v3287
        %v3297 = vadd.f32 %v3296, %v3291
        %v3298 = vrot.slane %v3297, 4
        %v3299 = vadd.f32 %v3297, %v3298
        %v3300 = vrot.slane %v3299, 2
        %v3301 = vadd.f32 %v3299, %v3300
        %v3302 = vrot.slane %v3301, 1
        %v3303 = vadd.f32 %v3301, %v3302
        %v3304 = vadd.f32 %v3280, %v3284
        %v3305 = vadd.f32 %v3304, %v3288
        %v3306 = vadd.f32 %v3305, %v3292
        %v3307 = vrot.slane %v3306, 4
        %v3308 = vadd.f32 %v3306, %v3307
        %v3309 = vrot.slane %v3308, 2
        %v3310 = vadd.f32 %v3308, %v3309
        %v3311 = vrot.slane %v3310, 1
        %v3312 = vadd.f32 %v3310, %v3311
        %v3313 = vadd.f32 %v3281, %v3285
        %v3314 = vadd.f32 %v3313, %v3289
        %v3315 = vadd.f32 %v3314, %v3293
        %v3316 = vrot.slane %v3315, 4
        %v3317 = vadd.f32 %v3315, %v3316
        %v3318 = vrot.slane %v3317, 2
        %v3319 = vadd.f32 %v3317, %v3318
        %v3320 = vrot.slane %v3319, 1
        %v3321 = vadd.f32 %v3319, %v3320
        %v3322 = vadd.f32 %v3282, %v3286
        %v3323 = vadd.f32 %v3322, %v3290
        %v3324 = vadd.f32 %v3323, %v3294
        %v3325 = vrot.slane %v3324, 4
        %v3326 = vadd.f32 %v3324, %v3325
        %v3327 = vrot.slane %v3326, 2
        %v3328 = vadd.f32 %v3326, %v3327
        %v3329 = vrot.slane %v3328, 1
        %v3330 = vadd.f32 %v3328, %v3329
        %v3331 = vmul.f32 %v3303, 0.17677669
        %v3332 = vmul.f32 %v3312, 0.17677669
        %v3333 = vmul.f32 %v3321, 0.17677669
        %v3334 = vmul.f32 %v3330, 0.17677669
        %v3335 = vmul.f32 %v1736, %v1816
        %v3336 = vmul.f32 %v1738, %v1818
        %v3337 = vmul.f32 %v2009, %v2089
        %v3338 = vmul.f32 %v2011, %v2091
        %v3339 = vmul.f32 %v1740, %v1820
        %v3340 = vmul.f32 %v1742, %v1822
        %v3341 = vmul.f32 %v2013, %v2093
        %v3342 = vmul.f32 %v2015, %v2095
        %v3343 = vmul.f32 %v1746, %v1826
        %v3344 = vmul.f32 %v1748, %v1828
        %v3345 = vmul.f32 %v2019, %v2099
        %v3346 = vmul.f32 %v2021, %v2101
        %v3347 = vmul.f32 %v1750, %v1830
        %v3348 = vmul.f32 %v1752, %v1832
        %v3349 = vmul.f32 %v2023, %v2103
        %v3350 = vmul.f32 %v2025, %v2105
        %v3351 = vadd.f32 %v3335, %v3339
        %v3352 = vadd.f32 %v3351, %v3343
        %v3353 = vadd.f32 %v3352, %v3347
        %v3354 = vrot.slane %v3353, 4
        %v3355 = vadd.f32 %v3353, %v3354
        %v3356 = vrot.slane %v3355, 2
        %v3357 = vadd.f32 %v3355, %v3356
        %v3358 = vrot.slane %v3357, 1
        %v3359 = vadd.f32 %v3357, %v3358
        %v3360 = vadd.f32 %v3336, %v3340
        %v3361 = vadd.f32 %v3360, %v3344
        %v3362 = vadd.f32 %v3361, %v3348
        %v3363 = vrot.slane %v3362, 4
        %v3364 = vadd.f32 %v3362, %v3363
        %v3365 = vrot.slane %v3364, 2
        %v3366 = vadd.f32 %v3364, %v3365
        %v3367 = vrot.slane %v3366, 1
        %v3368 = vadd.f32 %v3366, %v3367
        %v3369 = vadd.f32 %v3337, %v3341
        %v3370 = vadd.f32 %v3369, %v3345
        %v3371 = vadd.f32 %v3370, %v3349
        %v3372 = vrot.slane %v3371, 4
        %v3373 = vadd.f32 %v3371, %v3372
        %v3374 = vrot.slane %v3373, 2
        %v3375 = vadd.f32 %v3373, %v3374
        %v3376 = vrot.slane %v3375, 1
        %v3377 = vadd.f32 %v3375, %v3376
        %v3378 = vadd.f32 %v3338, %v3342
        %v3379 = vadd.f32 %v3378, %v3346
        %v3380 = vadd.f32 %v3379, %v3350
        %v3381 = vrot.slane %v3380, 4
        %v3382 = vadd.f32 %v3380, %v3381
        %v3383 = vrot.slane %v3382, 2
        %v3384 = vadd.f32 %v3382, %v3383
        %v3385 = vrot.slane %v3384, 1
        %v3386 = vadd.f32 %v3384, %v3385
        %v3387 = vmul.f32 %v3359, 0.17677669
        %v3388 = vmul.f32 %v3368, 0.17677669
        %v3389 = vmul.f32 %v3377, 0.17677669
        %v3390 = vmul.f32 %v3386, 0.17677669
        %v3391 = vmax.f32 %v3331, %v3387
        %v3392 = vmax.f32 %v3332, %v3388
        %v3393 = vmax.f32 %v3333, %v3389
        %v3394 = vmax.f32 %v3334, %v3390
        %v3395 = vsub.f32 %v3331, %v3391
        %v3396 = vsub.f32 %v3332, %v3392
        %v3397 = vsub.f32 %v3333, %v3393
        %v3398 = vsub.f32 %v3334, %v3394
        %v3399 = vmul.f32 %v3395, 1.442695
        %v3400 = vpow.pop %v3399
        %v3401 = vmul.f32 %v3396, 1.442695
        %v3402 = vpow.pop %v3401
        %v3403 = vmul.f32 %v3397, 1.442695
        %v3404 = vpow.pop %v3403
        %v3405 = vmul.f32 %v3398, 1.442695
        %v3406 = vpow.pop %v3405
        %v3407 = vsub.f32 %v3387, %v3391
        %v3408 = vsub.f32 %v3388, %v3392
        %v3409 = vsub.f32 %v3389, %v3393
        %v3410 = vsub.f32 %v3390, %v3394
        %v3411 = vmul.f32 %v3407, 1.442695
        %v3412 = vpow.pop %v3411
        %v3413 = vmul.f32 %v3408, 1.442695
        %v3414 = vpow.pop %v3413
        %v3415 = vmul.f32 %v3409, 1.442695
        %v3416 = vpow.pop %v3415
        %v3417 = vmul.f32 %v3410, 1.442695
        %v3418 = vpow.pop %v3417
        %v3419 = vadd.f32 %v3400, %v3412
        %v3420 = vadd.f32 %v3402, %v3414
        %v3421 = vadd.f32 %v3404, %v3416
        %v3422 = vadd.f32 %v3406, %v3418
        %v3423 = vrcp.pop %v3419
        %v3424 = vrcp.pop %v3420
        %v3425 = vrcp.pop %v3421
        %v3426 = vrcp.pop %v3422
        %v3427 = vmul.f32 %v3400, %v3423
        %v3428 = vmul.f32 %v3402, %v3424
        %v3429 = vmul.f32 %v3404, %v3425
        %v3430 = vmul.f32 %v3406, %v3426
        %v3431 = vmul.f32 %v3427, %v1350
        %v3432 = vmul.f32 %v3428, %v1352
        %v3433 = vmul.f32 %v3429, %v1623
        %v3434 = vmul.f32 %v3430, %v1625
        %v3435 = vmul.f32 %v3427, %v1354
        %v3436 = vmul.f32 %v3428, %v1356
        %v3437 = vmul.f32 %v3429, %v1627
        %v3438 = vmul.f32 %v3430, %v1629
        %v3439 = vmul.f32 %v3427, %v1360
        %v3440 = vmul.f32 %v3428, %v1362
        %v3441 = vmul.f32 %v3429, %v1633
        %v3442 = vmul.f32 %v3430, %v1635
        %v3443 = vmul.f32 %v3427, %v1364
        %v3444 = vmul.f32 %v3428, %v1366
        %v3445 = vmul.f32 %v3429, %v1637
        %v3446 = vmul.f32 %v3430, %v1639
        %v3447 = vmul.f32 %v3412, %v3423
        %v3448 = vmul.f32 %v3414, %v3424
        %v3449 = vmul.f32 %v3416, %v3425
        %v3450 = vmul.f32 %v3418, %v3426
        %v3451 = vmul.f32 %v3447, %v1896
        %v3452 = vmul.f32 %v3448, %v1898
        %v3453 = vmul.f32 %v3449, %v2169
        %v3454 = vmul.f32 %v3450, %v2171
        %v3455 = vmul.f32 %v3447, %v1900
        %v3456 = vmul.f32 %v3448, %v1902
        %v3457 = vmul.f32 %v3449, %v2173
        %v3458 = vmul.f32 %v3450, %v2175
        %v3459 = vmul.f32 %v3447, %v1906
        %v3460 = vmul.f32 %v3448, %v1908
        %v3461 = vmul.f32 %v3449, %v2179
        %v3462 = vmul.f32 %v3450, %v2181
        %v3463 = vmul.f32 %v3447, %v1910
        %v3464 = vmul.f32 %v3448, %v1912
        %v3465 = vmul.f32 %v3449, %v2183
        %v3466 = vmul.f32 %v3450, %v2185
        %v3467 = vadd.f32 %v3431, %v3451
        %v3468 = vadd.f32 %v3432, %v3452
        %v3469 = vadd.f32 %v3433, %v3453
        %v3470 = vadd.f32 %v3434, %v3454
        %v3471 = vadd.f32 %v3435, %v3455
        %v3472 = vadd.f32 %v3436, %v3456
        %v3473 = vadd.f32 %v3437, %v3457
        %v3474 = vadd.f32 %v3438, %v3458
        %v3475 = vadd.f32 %v3439, %v3459
        %v3476 = vadd.f32 %v3440, %v3460
        %v3477 = vadd.f32 %v3441, %v3461
        %v3478 = vadd.f32 %v3442, %v3462
        %v3479 = vadd.f32 %v3443, %v3463
        %v3480 = vadd.f32 %v3444, %v3464
        %v3481 = vadd.f32 %v3445, %v3465
        %v3482 = vadd.f32 %v3446, %v3466
        %v3483 = vmul.f32 %v1756, %v1290
        %v3484 = vmul.f32 %v1758, %v1292
        %v3485 = vmul.f32 %v2029, %v1563
        %v3486 = vmul.f32 %v2031, %v1565
        %v3487 = vmul.f32 %v1760, %v1294
        %v3488 = vmul.f32 %v1762, %v1296
        %v3489 = vmul.f32 %v2033, %v1567
        %v3490 = vmul.f32 %v2035, %v1569
        %v3491 = vmul.f32 %v1766, %v1300
        %v3492 = vmul.f32 %v1768, %v1302
        %v3493 = vmul.f32 %v2039, %v1573
        %v3494 = vmul.f32 %v2041, %v1575
        %v3495 = vmul.f32 %v1770, %v1304
        %v3496 = vmul.f32 %v1772, %v1306
        %v3497 = vmul.f32 %v2043, %v1577
        %v3498 = vmul.f32 %v2045, %v1579
        %v3499 = vadd.f32 %v3483, %v3487
        %v3500 = vadd.f32 %v3499, %v3491
        %v3501 = vadd.f32 %v3500, %v3495
        %v3502 = vrot.slane %v3501, 4
        %v3503 = vadd.f32 %v3501, %v3502
        %v3504 = vrot.slane %v3503, 2
        %v3505 = vadd.f32 %v3503, %v3504
        %v3506 = vrot.slane %v3505, 1
        %v3507 = vadd.f32 %v3505, %v3506
        %v3508 = vadd.f32 %v3484, %v3488
        %v3509 = vadd.f32 %v3508, %v3492
        %v3510 = vadd.f32 %v3509, %v3496
        %v3511 = vrot.slane %v3510, 4
        %v3512 = vadd.f32 %v3510, %v3511
        %v3513 = vrot.slane %v3512, 2
        %v3514 = vadd.f32 %v3512, %v3513
        %v3515 = vrot.slane %v3514, 1
        %v3516 = vadd.f32 %v3514, %v3515
        %v3517 = vadd.f32 %v3485, %v3489
        %v3518 = vadd.f32 %v3517, %v3493
        %v3519 = vadd.f32 %v3518, %v3497
        %v3520 = vrot.slane %v3519, 4
        %v3521 = vadd.f32 %v3519, %v3520
        %v3522 = vrot.slane %v3521, 2
        %v3523 = vadd.f32 %v3521, %v3522
        %v3524 = vrot.slane %v3523, 1
        %v3525 = vadd.f32 %v3523, %v3524
        %v3526 = vadd.f32 %v3486, %v3490
        %v3527 = vadd.f32 %v3526, %v3494
        %v3528 = vadd.f32 %v3527, %v3498
        %v3529 = vrot.slane %v3528, 4
        %v3530 = vadd.f32 %v3528, %v3529
        %v3531 = vrot.slane %v3530, 2
        %v3532 = vadd.f32 %v3530, %v3531
        %v3533 = vrot.slane %v3532, 1
        %v3534 = vadd.f32 %v3532, %v3533
        %v3535 = vmul.f32 %v3507, 0.17677669
        %v3536 = vmul.f32 %v3516, 0.17677669
        %v3537 = vmul.f32 %v3525, 0.17677669
        %v3538 = vmul.f32 %v3534, 0.17677669
        %v3539 = vmul.f32 %v1756, %v1836
        %v3540 = vmul.f32 %v1758, %v1838
        %v3541 = vmul.f32 %v2029, %v2109
        %v3542 = vmul.f32 %v2031, %v2111
        %v3543 = vmul.f32 %v1760, %v1840
        %v3544 = vmul.f32 %v1762, %v1842
        %v3545 = vmul.f32 %v2033, %v2113
        %v3546 = vmul.f32 %v2035, %v2115
        %v3547 = vmul.f32 %v1766, %v1846
        %v3548 = vmul.f32 %v1768, %v1848
        %v3549 = vmul.f32 %v2039, %v2119
        %v3550 = vmul.f32 %v2041, %v2121
        %v3551 = vmul.f32 %v1770, %v1850
        %v3552 = vmul.f32 %v1772, %v1852
        %v3553 = vmul.f32 %v2043, %v2123
        %v3554 = vmul.f32 %v2045, %v2125
        %v3555 = vadd.f32 %v3539, %v3543
        %v3556 = vadd.f32 %v3555, %v3547
        %v3557 = vadd.f32 %v3556, %v3551
        %v3558 = vrot.slane %v3557, 4
        %v3559 = vadd.f32 %v3557, %v3558
        %v3560 = vrot.slane %v3559, 2
        %v3561 = vadd.f32 %v3559, %v3560
        %v3562 = vrot.slane %v3561, 1
        %v3563 = vadd.f32 %v3561, %v3562
        %v3564 = vadd.f32 %v3540, %v3544
        %v3565 = vadd.f32 %v3564, %v3548
        %v3566 = vadd.f32 %v3565, %v3552
        %v3567 = vrot.slane %v3566, 4
        %v3568 = vadd.f32 %v3566, %v3567
        %v3569 = vrot.slane %v3568, 2
        %v3570 = vadd.f32 %v3568, %v3569
        %v3571 = vrot.slane %v3570, 1
        %v3572 = vadd.f32 %v3570, %v3571
        %v3573 = vadd.f32 %v3541, %v3545
        %v3574 = vadd.f32 %v3573, %v3549
        %v3575 = vadd.f32 %v3574, %v3553
        %v3576 = vrot.slane %v3575, 4
        %v3577 = vadd.f32 %v3575, %v3576
        %v3578 = vrot.slane %v3577, 2
        %v3579 = vadd.f32 %v3577, %v3578
        %v3580 = vrot.slane %v3579, 1
        %v3581 = vadd.f32 %v3579, %v3580
        %v3582 = vadd.f32 %v3542, %v3546
        %v3583 = vadd.f32 %v3582, %v3550
        %v3584 = vadd.f32 %v3583, %v3554
        %v3585 = vrot.slane %v3584, 4
        %v3586 = vadd.f32 %v3584, %v3585
        %v3587 = vrot.slane %v3586, 2
        %v3588 = vadd.f32 %v3586, %v3587
        %v3589 = vrot.slane %v3588, 1
        %v3590 = vadd.f32 %v3588, %v3589
        %v3591 = vmul.f32 %v3563, 0.17677669
        %v3592 = vmul.f32 %v3572, 0.17677669
        %v3593 = vmul.f32 %v3581, 0.17677669
        %v3594 = vmul.f32 %v3590, 0.17677669
        %v3595 = vmax.f32 %v3535, %v3591
        %v3596 = vmax.f32 %v3536, %v3592
        %v3597 = vmax.f32 %v3537, %v3593
        %v3598 = vmax.f32 %v3538, %v3594
        %v3599 = vsub.f32 %v3535, %v3595
        %v3600 = vsub.f32 %v3536, %v3596
        %v3601 = vsub.f32 %v3537, %v3597
        %v3602 = vsub.f32 %v3538, %v3598
        %v3603 = vmul.f32 %v3599, 1.442695
        %v3604 = vpow.pop %v3603
        %v3605 = vmul.f32 %v3600, 1.442695
        %v3606 = vpow.pop %v3605
        %v3607 = vmul.f32 %v3601, 1.442695
        %v3608 = vpow.pop %v3607
        %v3609 = vmul.f32 %v3602, 1.442695
        %v3610 = vpow.pop %v3609
        %v3611 = vsub.f32 %v3591, %v3595
        %v3612 = vsub.f32 %v3592, %v3596
        %v3613 = vsub.f32 %v3593, %v3597
        %v3614 = vsub.f32 %v3594, %v3598
        %v3615 = vmul.f32 %v3611, 1.442695
        %v3616 = vpow.pop %v3615
        %v3617 = vmul.f32 %v3612, 1.442695
        %v3618 = vpow.pop %v3617
        %v3619 = vmul.f32 %v3613, 1.442695
        %v3620 = vpow.pop %v3619
        %v3621 = vmul.f32 %v3614, 1.442695
        %v3622 = vpow.pop %v3621
        %v3623 = vadd.f32 %v3604, %v3616
        %v3624 = vadd.f32 %v3606, %v3618
        %v3625 = vadd.f32 %v3608, %v3620
        %v3626 = vadd.f32 %v3610, %v3622
        %v3627 = vrcp.pop %v3623
        %v3628 = vrcp.pop %v3624
        %v3629 = vrcp.pop %v3625
        %v3630 = vrcp.pop %v3626
        %v3631 = vmul.f32 %v3604, %v3627
        %v3632 = vmul.f32 %v3606, %v3628
        %v3633 = vmul.f32 %v3608, %v3629
        %v3634 = vmul.f32 %v3610, %v3630
        %v3635 = vmul.f32 %v3631, %v1370
        %v3636 = vmul.f32 %v3632, %v1372
        %v3637 = vmul.f32 %v3633, %v1643
        %v3638 = vmul.f32 %v3634, %v1645
        %v3639 = vmul.f32 %v3631, %v1374
        %v3640 = vmul.f32 %v3632, %v1376
        %v3641 = vmul.f32 %v3633, %v1647
        %v3642 = vmul.f32 %v3634, %v1649
        %v3643 = vmul.f32 %v3631, %v1380
        %v3644 = vmul.f32 %v3632, %v1382
        %v3645 = vmul.f32 %v3633, %v1653
        %v3646 = vmul.f32 %v3634, %v1655
        %v3647 = vmul.f32 %v3631, %v1384
        %v3648 = vmul.f32 %v3632, %v1386
        %v3649 = vmul.f32 %v3633, %v1657
        %v3650 = vmul.f32 %v3634, %v1659
        %v3651 = vmul.f32 %v3616, %v3627
        %v3652 = vmul.f32 %v3618, %v3628
        %v3653 = vmul.f32 %v3620, %v3629
        %v3654 = vmul.f32 %v3622, %v3630
        %v3655 = vmul.f32 %v3651, %v1916
        %v3656 = vmul.f32 %v3652, %v1918
        %v3657 = vmul.f32 %v3653, %v2189
        %v3658 = vmul.f32 %v3654, %v2191
        %v3659 = vmul.f32 %v3651, %v1920
        %v3660 = vmul.f32 %v3652, %v1922
        %v3661 = vmul.f32 %v3653, %v2193
        %v3662 = vmul.f32 %v3654, %v2195
        %v3663 = vmul.f32 %v3651, %v1926
        %v3664 = vmul.f32 %v3652, %v1928
        %v3665 = vmul.f32 %v3653, %v2199
        %v3666 = vmul.f32 %v3654, %v2201
        %v3667 = vmul.f32 %v3651, %v1930
        %v3668 = vmul.f32 %v3652, %v1932
        %v3669 = vmul.f32 %v3653, %v2203
        %v3670 = vmul.f32 %v3654, %v2205
        %v3671 = vadd.f32 %v3635, %v3655
        %v3672 = vadd.f32 %v3636, %v3656
        %v3673 = vadd.f32 %v3637, %v3657
        %v3674 = vadd.f32 %v3638, %v3658
        %v3675 = vadd.f32 %v3639, %v3659
        %v3676 = vadd.f32 %v3640, %v3660
        %v3677 = vadd.f32 %v3641, %v3661
        %v3678 = vadd.f32 %v3642, %v3662
        %v3679 = vadd.f32 %v3643, %v3663
        %v3680 = vadd.f32 %v3644, %v3664
        %v3681 = vadd.f32 %v3645, %v3665
        %v3682 = vadd.f32 %v3646, %v3666
        %v3683 = vadd.f32 %v3647, %v3667
        %v3684 = vadd.f32 %v3648, %v3668
        %v3685 = vadd.f32 %v3649, %v3669
        %v3686 = vadd.f32 %v3650, %v3670
        %v3687 = vmul.f32 %v1776, %v1310
        %v3688 = vmul.f32 %v1778, %v1312
        %v3689 = vmul.f32 %v2049, %v1583
        %v3690 = vmul.f32 %v2051, %v1585
        %v3691 = vmul.f32 %v1780, %v1314
        %v3692 = vmul.f32 %v1782, %v1316
        %v3693 = vmul.f32 %v2053, %v1587
        %v3694 = vmul.f32 %v2055, %v1589
        %v3695 = vmul.f32 %v1786, %v1320
        %v3696 = vmul.f32 %v1788, %v1322
        %v3697 = vmul.f32 %v2059, %v1593
        %v3698 = vmul.f32 %v2061, %v1595
        %v3699 = vmul.f32 %v1790, %v1324
        %v3700 = vmul.f32 %v1792, %v1326
        %v3701 = vmul.f32 %v2063, %v1597
        %v3702 = vmul.f32 %v2065, %v1599
        %v3703 = vadd.f32 %v3687, %v3691
        %v3704 = vadd.f32 %v3703, %v3695
        %v3705 = vadd.f32 %v3704, %v3699
        %v3706 = vrot.slane %v3705, 4
        %v3707 = vadd.f32 %v3705, %v3706
        %v3708 = vrot.slane %v3707, 2
        %v3709 = vadd.f32 %v3707, %v3708
        %v3710 = vrot.slane %v3709, 1
        %v3711 = vadd.f32 %v3709, %v3710
        %v3712 = vadd.f32 %v3688, %v3692
        %v3713 = vadd.f32 %v3712, %v3696
        %v3714 = vadd.f32 %v3713, %v3700
        %v3715 = vrot.slane %v3714, 4
        %v3716 = vadd.f32 %v3714, %v3715
        %v3717 = vrot.slane %v3716, 2
        %v3718 = vadd.f32 %v3716, %v3717
        %v3719 = vrot.slane %v3718, 1
        %v3720 = vadd.f32 %v3718, %v3719
        %v3721 = vadd.f32 %v3689, %v3693
        %v3722 = vadd.f32 %v3721, %v3697
        %v3723 = vadd.f32 %v3722, %v3701
        %v3724 = vrot.slane %v3723, 4
        %v3725 = vadd.f32 %v3723, %v3724
        %v3726 = vrot.slane %v3725, 2
        %v3727 = vadd.f32 %v3725, %v3726
        %v3728 = vrot.slane %v3727, 1
        %v3729 = vadd.f32 %v3727, %v3728
        %v3730 = vadd.f32 %v3690, %v3694
        %v3731 = vadd.f32 %v3730, %v3698
        %v3732 = vadd.f32 %v3731, %v3702
        %v3733 = vrot.slane %v3732, 4
        %v3734 = vadd.f32 %v3732, %v3733
        %v3735 = vrot.slane %v3734, 2
        %v3736 = vadd.f32 %v3734, %v3735
        %v3737 = vrot.slane %v3736, 1
        %v3738 = vadd.f32 %v3736, %v3737
        %v3739 = vmul.f32 %v3711, 0.17677669
        %v3740 = vmul.f32 %v3720, 0.17677669
        %v3741 = vmul.f32 %v3729, 0.17677669
        %v3742 = vmul.f32 %v3738, 0.17677669
        %v3743 = vmul.f32 %v1776, %v1856
        %v3744 = vmul.f32 %v1778, %v1858
        %v3745 = vmul.f32 %v2049, %v2129
        %v3746 = vmul.f32 %v2051, %v2131
        %v3747 = vmul.f32 %v1780, %v1860
        %v3748 = vmul.f32 %v1782, %v1862
        %v3749 = vmul.f32 %v2053, %v2133
        %v3750 = vmul.f32 %v2055, %v2135
        %v3751 = vmul.f32 %v1786, %v1866
        %v3752 = vmul.f32 %v1788, %v1868
        %v3753 = vmul.f32 %v2059, %v2139
        %v3754 = vmul.f32 %v2061, %v2141
        %v3755 = vmul.f32 %v1790, %v1870
        %v3756 = vmul.f32 %v1792, %v1872
        %v3757 = vmul.f32 %v2063, %v2143
        %v3758 = vmul.f32 %v2065, %v2145
        %v3759 = vadd.f32 %v3743, %v3747
        %v3760 = vadd.f32 %v3759, %v3751
        %v3761 = vadd.f32 %v3760, %v3755
        %v3762 = vrot.slane %v3761, 4
        %v3763 = vadd.f32 %v3761, %v3762
        %v3764 = vrot.slane %v3763, 2
        %v3765 = vadd.f32 %v3763, %v3764
        %v3766 = vrot.slane %v3765, 1
        %v3767 = vadd.f32 %v3765, %v3766
        %v3768 = vadd.f32 %v3744, %v3748
        %v3769 = vadd.f32 %v3768, %v3752
        %v3770 = vadd.f32 %v3769, %v3756
        %v3771 = vrot.slane %v3770, 4
        %v3772 = vadd.f32 %v3770, %v3771
        %v3773 = vrot.slane %v3772, 2
        %v3774 = vadd.f32 %v3772, %v3773
        %v3775 = vrot.slane %v3774, 1
        %v3776 = vadd.f32 %v3774, %v3775
        %v3777 = vadd.f32 %v3745, %v3749
        %v3778 = vadd.f32 %v3777, %v3753
        %v3779 = vadd.f32 %v3778, %v3757
        %v3780 = vrot.slane %v3779, 4
        %v3781 = vadd.f32 %v3779, %v3780
        %v3782 = vrot.slane %v3781, 2
        %v3783 = vadd.f32 %v3781, %v3782
        %v3784 = vrot.slane %v3783, 1
        %v3785 = vadd.f32 %v3783, %v3784
        %v3786 = vadd.f32 %v3746, %v3750
        %v3787 = vadd.f32 %v3786, %v3754
        %v3788 = vadd.f32 %v3787, %v3758
        %v3789 = vrot.slane %v3788, 4
        %v3790 = vadd.f32 %v3788, %v3789
        %v3791 = vrot.slane %v3790, 2
        %v3792 = vadd.f32 %v3790, %v3791
        %v3793 = vrot.slane %v3792, 1
        %v3794 = vadd.f32 %v3792, %v3793
        %v3795 = vmul.f32 %v3767, 0.17677669
        %v3796 = vmul.f32 %v3776, 0.17677669
        %v3797 = vmul.f32 %v3785, 0.17677669
        %v3798 = vmul.f32 %v3794, 0.17677669
        %v3799 = vmax.f32 %v3739, %v3795
        %v3800 = vmax.f32 %v3740, %v3796
        %v3801 = vmax.f32 %v3741, %v3797
        %v3802 = vmax.f32 %v3742, %v3798
        %v3803 = vsub.f32 %v3739, %v3799
        %v3804 = vsub.f32 %v3740, %v3800
        %v3805 = vsub.f32 %v3741, %v3801
        %v3806 = vsub.f32 %v3742, %v3802
        %v3807 = vmul.f32 %v3803, 1.442695
        %v3808 = vpow.pop %v3807
        %v3809 = vmul.f32 %v3804, 1.442695
        %v3810 = vpow.pop %v3809
        %v3811 = vmul.f32 %v3805, 1.442695
        %v3812 = vpow.pop %v3811
        %v3813 = vmul.f32 %v3806, 1.442695
        %v3814 = vpow.pop %v3813
        %v3815 = vsub.f32 %v3795, %v3799
        %v3816 = vsub.f32 %v3796, %v3800
        %v3817 = vsub.f32 %v3797, %v3801
        %v3818 = vsub.f32 %v3798, %v3802
        %v3819 = vmul.f32 %v3815, 1.442695
        %v3820 = vpow.pop %v3819
        %v3821 = vmul.f32 %v3816, 1.442695
        %v3822 = vpow.pop %v3821
        %v3823 = vmul.f32 %v3817, 1.442695
        %v3824 = vpow.pop %v3823
        %v3825 = vmul.f32 %v3818, 1.442695
        %v3826 = vpow.pop %v3825
        %v3827 = vadd.f32 %v3808, %v3820
        %v3828 = vadd.f32 %v3810, %v3822
        %v3829 = vadd.f32 %v3812, %v3824
        %v3830 = vadd.f32 %v3814, %v3826
        %v3831 = vrcp.pop %v3827
        %v3832 = vrcp.pop %v3828
        %v3833 = vrcp.pop %v3829
        %v3834 = vrcp.pop %v3830
        %v3835 = vmul.f32 %v3808, %v3831
        %v3836 = vmul.f32 %v3810, %v3832
        %v3837 = vmul.f32 %v3812, %v3833
        %v3838 = vmul.f32 %v3814, %v3834
        %v3839 = vmul.f32 %v3835, %v1390
        %v3840 = vmul.f32 %v3836, %v1392
        %v3841 = vmul.f32 %v3837, %v1663
        %v3842 = vmul.f32 %v3838, %v1665
        %v3843 = vmul.f32 %v3835, %v1394
        %v3844 = vmul.f32 %v3836, %v1396
        %v3845 = vmul.f32 %v3837, %v1667
        %v3846 = vmul.f32 %v3838, %v1669
        %v3847 = vmul.f32 %v3835, %v1400
        %v3848 = vmul.f32 %v3836, %v1402
        %v3849 = vmul.f32 %v3837, %v1673
        %v3850 = vmul.f32 %v3838, %v1675
        %v3851 = vmul.f32 %v3835, %v1404
        %v3852 = vmul.f32 %v3836, %v1406
        %v3853 = vmul.f32 %v3837, %v1677
        %v3854 = vmul.f32 %v3838, %v1679
        %v3855 = vmul.f32 %v3820, %v3831
        %v3856 = vmul.f32 %v3822, %v3832
        %v3857 = vmul.f32 %v3824, %v3833
        %v3858 = vmul.f32 %v3826, %v3834
        %v3859 = vmul.f32 %v3855, %v1936
        %v3860 = vmul.f32 %v3856, %v1938
        %v3861 = vmul.f32 %v3857, %v2209
        %v3862 = vmul.f32 %v3858, %v2211
        %v3863 = vmul.f32 %v3855, %v1940
        %v3864 = vmul.f32 %v3856, %v1942
        %v3865 = vmul.f32 %v3857, %v2213
        %v3866 = vmul.f32 %v3858, %v2215
        %v3867 = vmul.f32 %v3855, %v1946
        %v3868 = vmul.f32 %v3856, %v1948
        %v3869 = vmul.f32 %v3857, %v2219
        %v3870 = vmul.f32 %v3858, %v2221
        %v3871 = vmul.f32 %v3855, %v1950
        %v3872 = vmul.f32 %v3856, %v1952
        %v3873 = vmul.f32 %v3857, %v2223
        %v3874 = vmul.f32 %v3858, %v2225
        %v3875 = vadd.f32 %v3839, %v3859
        %v3876 = vadd.f32 %v3840, %v3860
        %v3877 = vadd.f32 %v3841, %v3861
        %v3878 = vadd.f32 %v3842, %v3862
        %v3879 = vadd.f32 %v3843, %v3863
        %v3880 = vadd.f32 %v3844, %v3864
        %v3881 = vadd.f32 %v3845, %v3865
        %v3882 = vadd.f32 %v3846, %v3866
        %v3883 = vadd.f32 %v3847, %v3867
        %v3884 = vadd.f32 %v3848, %v3868
        %v3885 = vadd.f32 %v3849, %v3869
        %v3886 = vadd.f32 %v3850, %v3870
        %v3887 = vadd.f32 %v3851, %v3871
        %v3888 = vadd.f32 %v3852, %v3872
        %v3889 = vadd.f32 %v3853, %v3873
        %v3890 = vadd.f32 %v3854, %v3874
        %v3891 = vpack.c.bf16 %v3267, %v3263
        %v3892 = vpack.c.bf16 %v3268, %v3264
        %v3893 = vpack.c.bf16 %v3269, %v3265
        %v3894 = vpack.c.bf16 %v3270, %v3266
        %v3895 = vpack.c.bf16 %v3275, %v3271
        %v3896 = vpack.c.bf16 %v3276, %v3272
        %v3897 = vpack.c.bf16 %v3277, %v3273
        %v3898 = vpack.c.bf16 %v3278, %v3274
        %v3899 = vpack.c.bf16 %v3471, %v3467
        %v3900 = vpack.c.bf16 %v3472, %v3468
        %v3901 = vpack.c.bf16 %v3473, %v3469
        %v3902 = vpack.c.bf16 %v3474, %v3470
        %v3903 = vpack.c.bf16 %v3479, %v3475
        %v3904 = vpack.c.bf16 %v3480, %v3476
        %v3905 = vpack.c.bf16 %v3481, %v3477
        %v3906 = vpack.c.bf16 %v3482, %v3478
        %v3907 = vpack.c.bf16 %v3675, %v3671
        %v3908 = vpack.c.bf16 %v3676, %v3672
        %v3909 = vpack.c.bf16 %v3677, %v3673
        %v3910 = vpack.c.bf16 %v3678, %v3674
        %v3911 = vpack.c.bf16 %v3683, %v3679
        %v3912 = vpack.c.bf16 %v3684, %v3680
        %v3913 = vpack.c.bf16 %v3685, %v3681
        %v3914 = vpack.c.bf16 %v3686, %v3682
        %v3915 = vpack.c.bf16 %v3879, %v3875
        %v3916 = vpack.c.bf16 %v3880, %v3876
        %v3917 = vpack.c.bf16 %v3881, %v3877
        %v3918 = vpack.c.bf16 %v3882, %v3878
        %v3919 = vpack.c.bf16 %v3887, %v3883
        %v3920 = vpack.c.bf16 %v3888, %v3884
        %v3921 = vpack.c.bf16 %v3889, %v3885
        %v3922 = vpack.c.bf16 %v3890, %v3886
        %v3923 = vld [vmem:[%s3] sm:$0xf]
        %v3924 = vld [vmem:[%s3 + $0x4] sm:$0xf]
        %v3925 = vld [vmem:[%s3 + $0x8] sm:$0xf]
        %v3926 = vld [vmem:[%s3 + $0xc] sm:$0xf]
        %v3927 = vld [vmem:[%s3 + $0x10] sm:$0xf]
        %v3928 = vld [vmem:[%s3 + $0x14] sm:$0xf]
        %v3929 = vld [vmem:[%s3 + $0x18] sm:$0xf]
        %v3930 = vld [vmem:[%s3 + $0x1c] sm:$0xf]
        %v3931 = vld [vmem:[%s3 + $0x20] sm:$0xf]
        %v3932 = vld [vmem:[%s3 + $0x24] sm:$0xf]
        %v3933 = vld [vmem:[%s3 + $0x28] sm:$0xf]
        %v3934 = vld [vmem:[%s3 + $0x2c] sm:$0xf]
        %v3935 = vld [vmem:[%s3 + $0x30] sm:$0xf]
        %v3936 = vld [vmem:[%s3 + $0x34] sm:$0xf]
        %v3937 = vld [vmem:[%s3 + $0x38] sm:$0xf]
        %v3938 = vld [vmem:[%s3 + $0x3c] sm:$0xf]
        %v3939 = vld [vmem:[%s4] sm:$0xff]
        %v3940 = vld [vmem:[%s4 + $0x8] sm:$0xff]
        %v3941 = vld [vmem:[%s4 + $0x10] sm:$0xff]
        %v3942 = vld [vmem:[%s4 + $0x18] sm:$0xff]
        %v3943 = vld [vmem:[%s4 + $0x20] sm:$0xff]
        %v3944 = vld [vmem:[%s4 + $0x28] sm:$0xff]
        %v3945 = vld [vmem:[%s4 + $0x30] sm:$0xff]
        %v3946 = vld [vmem:[%s4 + $0x38] sm:$0xff]
        %v3947 = vld [vmem:[%s4 + $0x40] sm:$0xff]
        %v3948 = vld [vmem:[%s4 + $0x48] sm:$0xff]
        %v3949 = vld [vmem:[%s4 + $0x50] sm:$0xff]
        %v3950 = vld [vmem:[%s4 + $0x58] sm:$0xff]
        %v3951 = vld [vmem:[%s4 + $0x60] sm:$0xff]
        %v3952 = vld [vmem:[%s4 + $0x68] sm:$0xff]
        %v3953 = vld [vmem:[%s4 + $0x70] sm:$0xff]
        %v3954 = vld [vmem:[%s4 + $0x78] sm:$0xff]
        %3956 = vset.pattern.permute.xlu0 0
        %3957 = vperm.xlu0 %3956, %v3939
        %v3958 = vpop.permute.xlu0 %3957
        %3961 = vset.pattern.permute.xlu0 0
        %3962 = vperm.xlu0 %3961, %v3940
        %v3963 = vpop.permute.xlu0 %3962
        %3966 = vset.pattern.permute.xlu0 0
        %3967 = vperm.xlu0 %3966, %v3941
        %v3968 = vpop.permute.xlu0 %3967
        %3971 = vset.pattern.permute.xlu0 0
        %3972 = vperm.xlu0 %3971, %v3942
        %v3973 = vpop.permute.xlu0 %3972
        %3976 = vset.pattern.permute.xlu0 0
        %3977 = vperm.xlu0 %3976, %v3943
        %v3978 = vpop.permute.xlu0 %3977
        %3981 = vset.pattern.permute.xlu0 0
        %3982 = vperm.xlu0 %3981, %v3944
        %v3983 = vpop.permute.xlu0 %3982
        %3986 = vset.pattern.permute.xlu0 0
        %3987 = vperm.xlu0 %3986, %v3945
        %v3988 = vpop.permute.xlu0 %3987
        %3991 = vset.pattern.permute.xlu0 0
        %3992 = vperm.xlu0 %3991, %v3946
        %v3993 = vpop.permute.xlu0 %3992
        %3996 = vset.pattern.permute.xlu0 0
        %3997 = vperm.xlu0 %3996, %v3947
        %v3998 = vpop.permute.xlu0 %3997
        %4001 = vset.pattern.permute.xlu0 0
        %4002 = vperm.xlu0 %4001, %v3948
        %v4003 = vpop.permute.xlu0 %4002
        %4006 = vset.pattern.permute.xlu0 0
        %4007 = vperm.xlu0 %4006, %v3949
        %v4008 = vpop.permute.xlu0 %4007
        %4011 = vset.pattern.permute.xlu0 0
        %4012 = vperm.xlu0 %4011, %v3950
        %v4013 = vpop.permute.xlu0 %4012
        %4016 = vset.pattern.permute.xlu0 0
        %4017 = vperm.xlu0 %4016, %v3951
        %v4018 = vpop.permute.xlu0 %4017
        %4021 = vset.pattern.permute.xlu0 0
        %4022 = vperm.xlu0 %4021, %v3952
        %v4023 = vpop.permute.xlu0 %4022
        %4026 = vset.pattern.permute.xlu0 0
        %4027 = vperm.xlu0 %4026, %v3953
        %v4028 = vpop.permute.xlu0 %4027
        %4031 = vset.pattern.permute.xlu0 0
        %4032 = vperm.xlu0 %4031, %v3954
        %v4033 = vpop.permute.xlu0 %4032
        %v4051 = vunpack.c.l.b16 %v3923
        %v4052 = vunpack.c.l.b16 %v3924
        %v4053 = vunpack.c.l.b16 %v3925
        %v4054 = vunpack.c.l.b16 %v3926
        %v4055 = vunpack.c.l.b16 %v3927
        %v4056 = vunpack.c.l.b16 %v3928
        %v4057 = vunpack.c.l.b16 %v3929
        %v4058 = vunpack.c.l.b16 %v3930
        %v4059 = vunpack.c.l.b16 %v3931
        %v4060 = vunpack.c.l.b16 %v3932
        %v4061 = vunpack.c.l.b16 %v3933
        %v4062 = vunpack.c.l.b16 %v3934
        %v4063 = vunpack.c.l.b16 %v3935
        %v4064 = vunpack.c.l.b16 %v3936
        %v4065 = vunpack.c.l.b16 %v3937
        %v4066 = vunpack.c.l.b16 %v3938
        %v4067 = vpack.c.b16 %v4052, %v4051
        %v4068 = vpack.c.b16 %v4054, %v4053
        %v4069 = vpack.c.b16 %v4056, %v4055
        %v4070 = vpack.c.b16 %v4058, %v4057
        %v4071 = vpack.c.b16 %v4060, %v4059
        %v4072 = vpack.c.b16 %v4062, %v4061
        %v4073 = vpack.c.b16 %v4064, %v4063
        %v4074 = vpack.c.b16 %v4066, %v4065
        %4083 = vmatprep.subr.bf16.mxu0 %v3044
        %4084 = vmatpush1.bf16.msra.mxu0 %v3043
        %4085 = vmatprep.subr.bf16.mxu0 %v3048
        %4086 = vmatpush1.bf16.msra.mxu0 %v3047
        %4087 = vmatprep.subr.bf16.mxu0 %v3052
        %4088 = vmatpush1.bf16.msra.mxu0 %v3051
        %4089 = vmatprep.subr.bf16.mxu0 %v3056
        %4090 = vmatpush1.bf16.msra.mxu0 %v3055
        %4091 = vmatprep.subr.bf16.mxu0 %v3060
        %4092 = vmatpush1.bf16.msra.mxu0 %v3059
        %4093 = vmatprep.subr.bf16.mxu0 %v3064
        %4094 = vmatpush1.bf16.msra.mxu0 %v3063
        %4095 = vmatprep.subr.bf16.mxu0 %v3068
        %4096 = vmatpush1.bf16.msra.mxu0 %v3067
        %4097 = vmatprep.subr.bf16.mxu0 %v3072
        %4098 = vmatpush1.bf16.msra.mxu0 %v3071
        %4099 = vmatprep.subr.bf16.mxu0 0
        %4100 = vmatpush1.bf16.msra.mxu0 0
        %4101 = vmatprep.subr.bf16.mxu0 0
        %4102 = vmatpush1.bf16.msra.mxu0 0
        %4103 = vmatprep.subr.bf16.mxu0 0
        %4104 = vmatpush1.bf16.msra.mxu0 0
        %4105 = vmatprep.subr.bf16.mxu0 0
        %4106 = vmatpush1.bf16.msra.mxu0 0
        %4107 = vmatprep.subr.bf16.mxu0 0
        %4108 = vmatpush1.bf16.msra.mxu0 0
        %4109 = vmatprep.subr.bf16.mxu0 0
        %4110 = vmatpush1.bf16.msra.mxu0 0
        %4111 = vmatprep.subr.bf16.mxu0 0
        %4112 = vmatpush1.bf16.msra.mxu0 0
        %4113 = vmatprep.subr.bf16.mxu0 0
        %4114 = vmatpush1.bf16.msra.mxu0 0
        %4115 = vmatprep.mubr.bf16.mxu0 0
        %4116 = vmatmul.mubr.bf16.gmra.mrb[0].mxu0 %v4067
        %v4117 = vpop.f32.mrb[0].mxu0
        %v4118 = vadd.f32 %v3958, %v4117
        %v4119 = vpop.f32.mrb[0].mxu0
        %v4120 = vadd.f32 %v3958, %v4119
        %v4121 = vpop.f32.mrb[0].mxu0
        %v4122 = vadd.f32 %v3963, %v4121
        %v4123 = vpop.f32.mrb[0].mxu0
        %v4124 = vadd.f32 %v3963, %v4123
        %4125 = vmatprep.mubr.bf16.mxu0 0
        %4126 = vmatmul.mubr.bf16.gmra.mrb[0].mxu0 %v4068
        %v4127 = vpop.f32.mrb[0].mxu0
        %v4128 = vadd.f32 %v3968, %v4127
        %v4129 = vpop.f32.mrb[0].mxu0
        %v4130 = vadd.f32 %v3968, %v4129
        %v4131 = vpop.f32.mrb[0].mxu0
        %v4132 = vadd.f32 %v3973, %v4131
        %v4133 = vpop.f32.mrb[0].mxu0
        %v4134 = vadd.f32 %v3973, %v4133
        %4135 = vmatprep.mubr.bf16.mxu0 0
        %4136 = vmatmul.mubr.bf16.gmra.mrb[0].mxu0 %v4069
        %v4137 = vpop.f32.mrb[0].mxu0
        %v4138 = vadd.f32 %v3978, %v4137
        %v4139 = vpop.f32.mrb[0].mxu0
        %v4140 = vadd.f32 %v3978, %v4139
        %v4141 = vpop.f32.mrb[0].mxu0
        %v4142 = vadd.f32 %v3983, %v4141
        %v4143 = vpop.f32.mrb[0].mxu0
        %v4144 = vadd.f32 %v3983, %v4143
        %4145 = vmatprep.mubr.bf16.mxu0 0
        %4146 = vmatmul.mubr.bf16.gmra.mrb[0].mxu0 %v4070
        %v4147 = vpop.f32.mrb[0].mxu0
        %v4148 = vadd.f32 %v3988, %v4147
        %v4149 = vpop.f32.mrb[0].mxu0
        %v4150 = vadd.f32 %v3988, %v4149
        %v4151 = vpop.f32.mrb[0].mxu0
        %v4152 = vadd.f32 %v3993, %v4151
        %v4153 = vpop.f32.mrb[0].mxu0
        %v4154 = vadd.f32 %v3993, %v4153
        %4155 = vmatprep.mubr.bf16.mxu0 0
        %4156 = vmatmul.mubr.bf16.gmra.mrb[0].mxu0 %v4071
        %v4157 = vpop.f32.mrb[0].mxu0
        %v4158 = vadd.f32 %v3998, %v4157
        %v4159 = vpop.f32.mrb[0].mxu0
        %v4160 = vadd.f32 %v3998, %v4159
        %v4161 = vpop.f32.mrb[0].mxu0
        %v4162 = vadd.f32 %v4003, %v4161
        %v4163 = vpop.f32.mrb[0].mxu0
        %v4164 = vadd.f32 %v4003, %v4163
        %4165 = vmatprep.mubr.bf16.mxu0 0
        %4166 = vmatmul.mubr.bf16.gmra.mrb[0].mxu0 %v4072
        %v4167 = vpop.f32.mrb[0].mxu0
        %v4168 = vadd.f32 %v4008, %v4167
        %v4169 = vpop.f32.mrb[0].mxu0
        %v4170 = vadd.f32 %v4008, %v4169
        %v4171 = vpop.f32.mrb[0].mxu0
        %v4172 = vadd.f32 %v4013, %v4171
        %v4173 = vpop.f32.mrb[0].mxu0
        %v4174 = vadd.f32 %v4013, %v4173
        %4175 = vmatprep.mubr.bf16.mxu0 0
        %4176 = vmatmul.mubr.bf16.gmra.mrb[0].mxu0 %v4073
        %v4177 = vpop.f32.mrb[0].mxu0
        %v4178 = vadd.f32 %v4018, %v4177
        %v4179 = vpop.f32.mrb[0].mxu0
        %v4180 = vadd.f32 %v4018, %v4179
        %v4181 = vpop.f32.mrb[0].mxu0
        %v4182 = vadd.f32 %v4023, %v4181
        %v4183 = vpop.f32.mrb[0].mxu0
        %v4184 = vadd.f32 %v4023, %v4183
        %4185 = vmatprep.mubr.bf16.mxu0 0
        %4186 = vmatmul.mubr.bf16.gmra.mrb[0].mxu0 %v4074
        %v4187 = vpop.f32.mrb[0].mxu0
        %v4188 = vadd.f32 %v4028, %v4187
        %v4189 = vpop.f32.mrb[0].mxu0
        %v4190 = vadd.f32 %v4028, %v4189
        %v4191 = vpop.f32.mrb[0].mxu0
        %v4192 = vadd.f32 %v4033, %v4191
        %v4193 = vpop.f32.mrb[0].mxu0
        %v4194 = vadd.f32 %v4033, %v4193
        %4195 = vdwg.mxu0
        %4196 = vmatprep.subr.bf16.mxu0 %v3046
        %4197 = vmatpush1.bf16.msra.mxu0 %v3045
        %4198 = vmatprep.subr.bf16.mxu0 %v3050
        %4199 = vmatpush1.bf16.msra.mxu0 %v3049
        %4200 = vmatprep.subr.bf16.mxu0 %v3054
        %4201 = vmatpush1.bf16.msra.mxu0 %v3053
        %4202 = vmatprep.subr.bf16.mxu0 %v3058
        %4203 = vmatpush1.bf16.msra.mxu0 %v3057
        %4204 = vmatprep.subr.bf16.mxu0 %v3062
        %4205 = vmatpush1.bf16.msra.mxu0 %v3061
        %4206 = vmatprep.subr.bf16.mxu0 %v3066
        %4207 = vmatpush1.bf16.msra.mxu0 %v3065
        %4208 = vmatprep.subr.bf16.mxu0 %v3070
        %4209 = vmatpush1.bf16.msra.mxu0 %v3069
        %4210 = vmatprep.subr.bf16.mxu0 %v3074
        %4211 = vmatpush1.bf16.msra.mxu0 %v3073
        %4212 = vmatprep.subr.bf16.mxu0 0
        %4213 = vmatpush1.bf16.msra.mxu0 0
        %4214 = vmatprep.subr.bf16.mxu0 0
        %4215 = vmatpush1.bf16.msra.mxu0 0
        %4216 = vmatprep.subr.bf16.mxu0 0
        %4217 = vmatpush1.bf16.msra.mxu0 0
        %4218 = vmatprep.subr.bf16.mxu0 0
        %4219 = vmatpush1.bf16.msra.mxu0 0
        %4220 = vmatprep.subr.bf16.mxu0 0
        %4221 = vmatpush1.bf16.msra.mxu0 0
        %4222 = vmatprep.subr.bf16.mxu0 0
        %4223 = vmatpush1.bf16.msra.mxu0 0
        %4224 = vmatprep.subr.bf16.mxu0 0
        %4225 = vmatpush1.bf16.msra.mxu0 0
        %4226 = vmatprep.subr.bf16.mxu0 0
        %4227 = vmatpush1.bf16.msra.mxu0 0
        %4228 = vmatprep.mubr.bf16.mxu0 0
        %4229 = vmatmul.mubr.bf16.gmra.mrb[0].mxu0 %v4067
        %v4230 = vpop.f32.mrb[0].mxu0
        %v4231 = vadd.f32 %v3958, %v4230
        %v4232 = vpop.f32.mrb[0].mxu0
        %v4233 = vadd.f32 %v3958, %v4232
        %v4234 = vpop.f32.mrb[0].mxu0
        %v4235 = vadd.f32 %v3963, %v4234
        %v4236 = vpop.f32.mrb[0].mxu0
        %v4237 = vadd.f32 %v3963, %v4236
        %4238 = vmatprep.mubr.bf16.mxu0 0
        %4239 = vmatmul.mubr.bf16.gmra.mrb[0].mxu0 %v4068
        %v4240 = vpop.f32.mrb[0].mxu0
        %v4241 = vadd.f32 %v3968, %v4240
        %v4242 = vpop.f32.mrb[0].mxu0
        %v4243 = vadd.f32 %v3968, %v4242
        %v4244 = vpop.f32.mrb[0].mxu0
        %v4245 = vadd.f32 %v3973, %v4244
        %v4246 = vpop.f32.mrb[0].mxu0
        %v4247 = vadd.f32 %v3973, %v4246
        %4248 = vmatprep.mubr.bf16.mxu0 0
        %4249 = vmatmul.mubr.bf16.gmra.mrb[0].mxu0 %v4069
        %v4250 = vpop.f32.mrb[0].mxu0
        %v4251 = vadd.f32 %v3978, %v4250
        %v4252 = vpop.f32.mrb[0].mxu0
        %v4253 = vadd.f32 %v3978, %v4252
        %v4254 = vpop.f32.mrb[0].mxu0
        %v4255 = vadd.f32 %v3983, %v4254
        %v4256 = vpop.f32.mrb[0].mxu0
        %v4257 = vadd.f32 %v3983, %v4256
        %4258 = vmatprep.mubr.bf16.mxu0 0
        %4259 = vmatmul.mubr.bf16.gmra.mrb[0].mxu0 %v4070
        %v4260 = vpop.f32.mrb[0].mxu0
        %v4261 = vadd.f32 %v3988, %v4260
        %v4262 = vpop.f32.mrb[0].mxu0
        %v4263 = vadd.f32 %v3988, %v4262
        %v4264 = vpop.f32.mrb[0].mxu0
        %v4265 = vadd.f32 %v3993, %v4264
        %v4266 = vpop.f32.mrb[0].mxu0
        %v4267 = vadd.f32 %v3993, %v4266
        %4268 = vmatprep.mubr.bf16.mxu0 0
        %4269 = vmatmul.mubr.bf16.gmra.mrb[0].mxu0 %v4071
        %v4270 = vpop.f32.mrb[0].mxu0
        %v4271 = vadd.f32 %v3998, %v4270
        %v4272 = vpop.f32.mrb[0].mxu0
        %v4273 = vadd.f32 %v3998, %v4272
        %v4274 = vpop.f32.mrb[0].mxu0
        %v4275 = vadd.f32 %v4003, %v4274
        %v4276 = vpop.f32.mrb[0].mxu0
        %v4277 = vadd.f32 %v4003, %v4276
        %4278 = vmatprep.mubr.bf16.mxu0 0
        %4279 = vmatmul.mubr.bf16.gmra.mrb[0].mxu0 %v4072
        %v4280 = vpop.f32.mrb[0].mxu0
        %v4281 = vadd.f32 %v4008, %v4280
        %v4282 = vpop.f32.mrb[0].mxu0
        %v4283 = vadd.f32 %v4008, %v4282
        %v4284 = vpop.f32.mrb[0].mxu0
        %v4285 = vadd.f32 %v4013, %v4284
        %v4286 = vpop.f32.mrb[0].mxu0
        %v4287 = vadd.f32 %v4013, %v4286
        %4288 = vmatprep.mubr.bf16.mxu0 0
        %4289 = vmatmul.mubr.bf16.gmra.mrb[0].mxu0 %v4073
        %v4290 = vpop.f32.mrb[0].mxu0
        %v4291 = vadd.f32 %v4018, %v4290
        %v4292 = vpop.f32.mrb[0].mxu0
        %v4293 = vadd.f32 %v4018, %v4292
        %v4294 = vpop.f32.mrb[0].mxu0
        %v4295 = vadd.f32 %v4023, %v4294
        %v4296 = vpop.f32.mrb[0].mxu0
        %v4297 = vadd.f32 %v4023, %v4296
        %4298 = vmatprep.mubr.bf16.mxu0 0
        %4299 = vmatmul.mubr.bf16.gmra.mrb[0].mxu0 %v4074
        %v4300 = vpop.f32.mrb[0].mxu0
        %v4301 = vadd.f32 %v4028, %v4300
        %v4302 = vpop.f32.mrb[0].mxu0
        %v4303 = vadd.f32 %v4028, %v4302
        %v4304 = vpop.f32.mrb[0].mxu0
        %v4305 = vadd.f32 %v4033, %v4304
        %v4306 = vpop.f32.mrb[0].mxu0
        %v4307 = vadd.f32 %v4033, %v4306
        %4308 = vdwg.mxu0
        %4309 = vmatprep.subr.bf16.mxu0 %v3892
        %4310 = vmatpush1.bf16.msra.mxu0 %v3891
        %4311 = vmatprep.subr.bf16.mxu0 %v3896
        %4312 = vmatpush1.bf16.msra.mxu0 %v3895
        %4313 = vmatprep.subr.bf16.mxu0 %v3900
        %4314 = vmatpush1.bf16.msra.mxu0 %v3899
        %4315 = vmatprep.subr.bf16.mxu0 %v3904
        %4316 = vmatpush1.bf16.msra.mxu0 %v3903
        %4317 = vmatprep.subr.bf16.mxu0 %v3908
        %4318 = vmatpush1.bf16.msra.mxu0 %v3907
        %4319 = vmatprep.subr.bf16.mxu0 %v3912
        %4320 = vmatpush1.bf16.msra.mxu0 %v3911
        %4321 = vmatprep.subr.bf16.mxu0 %v3916
        %4322 = vmatpush1.bf16.msra.mxu0 %v3915
        %4323 = vmatprep.subr.bf16.mxu0 %v3920
        %4324 = vmatpush1.bf16.msra.mxu0 %v3919
        %4325 = vmatprep.subr.bf16.mxu0 0
        %4326 = vmatpush1.bf16.msra.mxu0 0
        %4327 = vmatprep.subr.bf16.mxu0 0
        %4328 = vmatpush1.bf16.msra.mxu0 0
        %4329 = vmatprep.subr.bf16.mxu0 0
        %4330 = vmatpush1.bf16.msra.mxu0 0
        %4331 = vmatprep.subr.bf16.mxu0 0
        %4332 = vmatpush1.bf16.msra.mxu0 0
        %4333 = vmatprep.subr.bf16.mxu0 0
        %4334 = vmatpush1.bf16.msra.mxu0 0
        %4335 = vmatprep.subr.bf16.mxu0 0
        %4336 = vmatpush1.bf16.msra.mxu0 0
        %4337 = vmatprep.subr.bf16.mxu0 0
        %4338 = vmatpush1.bf16.msra.mxu0 0
        %4339 = vmatprep.subr.bf16.mxu0 0
        %4340 = vmatpush1.bf16.msra.mxu0 0
        %4341 = vmatprep.mubr.bf16.mxu0 0
        %4342 = vmatmul.mubr.bf16.gmra.mrb[0].mxu0 %v4067
        %v4343 = vpop.f32.mrb[0].mxu0
        %v4344 = vadd.f32 %v3958, %v4343
        %v4345 = vpop.f32.mrb[0].mxu0
        %v4346 = vadd.f32 %v3958, %v4345
        %v4347 = vpop.f32.mrb[0].mxu0
        %v4348 = vadd.f32 %v3963, %v4347
        %v4349 = vpop.f32.mrb[0].mxu0
        %v4350 = vadd.f32 %v3963, %v4349
        %4351 = vmatprep.mubr.bf16.mxu0 0
        %4352 = vmatmul.mubr.bf16.gmra.mrb[0].mxu0 %v4068
        %v4353 = vpop.f32.mrb[0].mxu0
        %v4354 = vadd.f32 %v3968, %v4353
        %v4355 = vpop.f32.mrb[0].mxu0
        %v4356 = vadd.f32 %v3968, %v4355
        %v4357 = vpop.f32.mrb[0].mxu0
        %v4358 = vadd.f32 %v3973, %v4357
        %v4359 = vpop.f32.mrb[0].mxu0
        %v4360 = vadd.f32 %v3973, %v4359
        %4361 = vmatprep.mubr.bf16.mxu0 0
        %4362 = vmatmul.mubr.bf16.gmra.mrb[0].mxu0 %v4069
        %v4363 = vpop.f32.mrb[0].mxu0
        %v4364 = vadd.f32 %v3978, %v4363
        %v4365 = vpop.f32.mrb[0].mxu0
        %v4366 = vadd.f32 %v3978, %v4365
        %v4367 = vpop.f32.mrb[0].mxu0
        %v4368 = vadd.f32 %v3983, %v4367
        %v4369 = vpop.f32.mrb[0].mxu0
        %v4370 = vadd.f32 %v3983, %v4369
        %4371 = vmatprep.mubr.bf16.mxu0 0
        %4372 = vmatmul.mubr.bf16.gmra.mrb[0].mxu0 %v4070
        %v4373 = vpop.f32.mrb[0].mxu0
        %v4374 = vadd.f32 %v3988, %v4373
        %v4375 = vpop.f32.mrb[0].mxu0
        %v4376 = vadd.f32 %v3988, %v4375
        %v4377 = vpop.f32.mrb[0].mxu0
        %v4378 = vadd.f32 %v3993, %v4377
        %v4379 = vpop.f32.mrb[0].mxu0
        %v4380 = vadd.f32 %v3993, %v4379
        %4381 = vmatprep.mubr.bf16.mxu0 0
        %4382 = vmatmul.mubr.bf16.gmra.mrb[0].mxu0 %v4071
        %v4383 = vpop.f32.mrb[0].mxu0
        %v4384 = vadd.f32 %v3998, %v4383
        %v4385 = vpop.f32.mrb[0].mxu0
        %v4386 = vadd.f32 %v3998, %v4385
        %v4387 = vpop.f32.mrb[0].mxu0
        %v4388 = vadd.f32 %v4003, %v4387
        %v4389 = vpop.f32.mrb[0].mxu0
        %v4390 = vadd.f32 %v4003, %v4389
        %4391 = vmatprep.mubr.bf16.mxu0 0
        %4392 = vmatmul.mubr.bf16.gmra.mrb[0].mxu0 %v4072
        %v4393 = vpop.f32.mrb[0].mxu0
        %v4394 = vadd.f32 %v4008, %v4393
        %v4395 = vpop.f32.mrb[0].mxu0
        %v4396 = vadd.f32 %v4008, %v4395
        %v4397 = vpop.f32.mrb[0].mxu0
        %v4398 = vadd.f32 %v4013, %v4397
        %v4399 = vpop.f32.mrb[0].mxu0
        %v4400 = vadd.f32 %v4013, %v4399
        %4401 = vmatprep.mubr.bf16.mxu0 0
        %4402 = vmatmul.mubr.bf16.gmra.mrb[0].mxu0 %v4073
        %v4403 = vpop.f32.mrb[0].mxu0
        %v4404 = vadd.f32 %v4018, %v4403
        %v4405 = vpop.f32.mrb[0].mxu0
        %v4406 = vadd.f32 %v4018, %v4405
        %v4407 = vpop.f32.mrb[0].mxu0
        %v4408 = vadd.f32 %v4023, %v4407
        %v4409 = vpop.f32.mrb[0].mxu0
        %v4410 = vadd.f32 %v4023, %v4409
        %4411 = vmatprep.mubr.bf16.mxu0 0
        %4412 = vmatmul.mubr.bf16.gmra.mrb[0].mxu0 %v4074
        %v4413 = vpop.f32.mrb[0].mxu0
        %v4414 = vadd.f32 %v4028, %v4413
        %v4415 = vpop.f32.mrb[0].mxu0
        %v4416 = vadd.f32 %v4028, %v4415
        %v4417 = vpop.f32.mrb[0].mxu0
        %v4418 = vadd.f32 %v4033, %v4417
        %v4419 = vpop.f32.mrb[0].mxu0
        %v4420 = vadd.f32 %v4033, %v4419
        %4421 = vdwg.mxu0
        %4422 = vmatprep.subr.bf16.mxu0 %v3894
        %4423 = vmatpush1.bf16.msra.mxu0 %v3893
        %4424 = vmatprep.subr.bf16.mxu0 %v3898
        %4425 = vmatpush1.bf16.msra.mxu0 %v3897
        %4426 = vmatprep.subr.bf16.mxu0 %v3902
        %4427 = vmatpush1.bf16.msra.mxu0 %v3901
        %4428 = vmatprep.subr.bf16.mxu0 %v3906
        %4429 = vmatpush1.bf16.msra.mxu0 %v3905
        %4430 = vmatprep.subr.bf16.mxu0 %v3910
        %4431 = vmatpush1.bf16.msra.mxu0 %v3909
        %4432 = vmatprep.subr.bf16.mxu0 %v3914
        %4433 = vmatpush1.bf16.msra.mxu0 %v3913
        %4434 = vmatprep.subr.bf16.mxu0 %v3918
        %4435 = vmatpush1.bf16.msra.mxu0 %v3917
        %4436 = vmatprep.subr.bf16.mxu0 %v3922
        %4437 = vmatpush1.bf16.msra.mxu0 %v3921
        %4438 = vmatprep.subr.bf16.mxu0 0
        %4439 = vmatpush1.bf16.msra.mxu0 0
        %4440 = vmatprep.subr.bf16.mxu0 0
        %4441 = vmatpush1.bf16.msra.mxu0 0
        %4442 = vmatprep.subr.bf16.mxu0 0
        %4443 = vmatpush1.bf16.msra.mxu0 0
        %4444 = vmatprep.subr.bf16.mxu0 0
        %4445 = vmatpush1.bf16.msra.mxu0 0
        %4446 = vmatprep.subr.bf16.mxu0 0
        %4447 = vmatpush1.bf16.msra.mxu0 0
        %4448 = vmatprep.subr.bf16.mxu0 0
        %4449 = vmatpush1.bf16.msra.mxu0 0
        %4450 = vmatprep.subr.bf16.mxu0 0
        %4451 = vmatpush1.bf16.msra.mxu0 0
        %4452 = vmatprep.subr.bf16.mxu0 0
        %4453 = vmatpush1.bf16.msra.mxu0 0
        %4454 = vmatprep.mubr.bf16.mxu0 0
        %4455 = vmatmul.mubr.bf16.gmra.mrb[0].mxu0 %v4067
        %v4456 = vpop.f32.mrb[0].mxu0
        %v4457 = vadd.f32 %v3958, %v4456
        %v4458 = vpop.f32.mrb[0].mxu0
        %v4459 = vadd.f32 %v3958, %v4458
        %v4460 = vpop.f32.mrb[0].mxu0
        %v4461 = vadd.f32 %v3963, %v4460
        %v4462 = vpop.f32.mrb[0].mxu0
        %v4463 = vadd.f32 %v3963, %v4462
        %4464 = vmatprep.mubr.bf16.mxu0 0
        %4465 = vmatmul.mubr.bf16.gmra.mrb[0].mxu0 %v4068
        %v4466 = vpop.f32.mrb[0].mxu0
        %v4467 = vadd.f32 %v3968, %v4466
        %v4468 = vpop.f32.mrb[0].mxu0
        %v4469 = vadd.f32 %v3968, %v4468
        %v4470 = vpop.f32.mrb[0].mxu0
        %v4471 = vadd.f32 %v3973, %v4470
        %v4472 = vpop.f32.mrb[0].mxu0
        %v4473 = vadd.f32 %v3973, %v4472
        %4474 = vmatprep.mubr.bf16.mxu0 0
        %4475 = vmatmul.mubr.bf16.gmra.mrb[0].mxu0 %v4069
        %v4476 = vpop.f32.mrb[0].mxu0
        %v4477 = vadd.f32 %v3978, %v4476
        %v4478 = vpop.f32.mrb[0].mxu0
        %v4479 = vadd.f32 %v3978, %v4478
        %v4480 = vpop.f32.mrb[0].mxu0
        %v4481 = vadd.f32 %v3983, %v4480
        %v4482 = vpop.f32.mrb[0].mxu0
        %v4483 = vadd.f32 %v3983, %v4482
        %4484 = vmatprep.mubr.bf16.mxu0 0
        %4485 = vmatmul.mubr.bf16.gmra.mrb[0].mxu0 %v4070
        %v4486 = vpop.f32.mrb[0].mxu0
        %v4487 = vadd.f32 %v3988, %v4486
        %v4488 = vpop.f32.mrb[0].mxu0
        %v4489 = vadd.f32 %v3988, %v4488
        %v4490 = vpop.f32.mrb[0].mxu0
        %v4491 = vadd.f32 %v3993, %v4490
        %v4492 = vpop.f32.mrb[0].mxu0
        %v4493 = vadd.f32 %v3993, %v4492
        %4494 = vmatprep.mubr.bf16.mxu0 0
        %4495 = vmatmul.mubr.bf16.gmra.mrb[0].mxu0 %v4071
        %v4496 = vpop.f32.mrb[0].mxu0
        %v4497 = vadd.f32 %v3998, %v4496
        %v4498 = vpop.f32.mrb[0].mxu0
        %v4499 = vadd.f32 %v3998, %v4498
        %v4500 = vpop.f32.mrb[0].mxu0
        %v4501 = vadd.f32 %v4003, %v4500
        %v4502 = vpop.f32.mrb[0].mxu0
        %v4503 = vadd.f32 %v4003, %v4502
        %4504 = vmatprep.mubr.bf16.mxu0 0
        %4505 = vmatmul.mubr.bf16.gmra.mrb[0].mxu0 %v4072
        %v4506 = vpop.f32.mrb[0].mxu0
        %v4507 = vadd.f32 %v4008, %v4506
        %v4508 = vpop.f32.mrb[0].mxu0
        %v4509 = vadd.f32 %v4008, %v4508
        %v4510 = vpop.f32.mrb[0].mxu0
        %v4511 = vadd.f32 %v4013, %v4510
        %v4512 = vpop.f32.mrb[0].mxu0
        %v4513 = vadd.f32 %v4013, %v4512
        %4514 = vmatprep.mubr.bf16.mxu0 0
        %4515 = vmatmul.mubr.bf16.gmra.mrb[0].mxu0 %v4073
        %v4516 = vpop.f32.mrb[0].mxu0
        %v4517 = vadd.f32 %v4018, %v4516
        %v4518 = vpop.f32.mrb[0].mxu0
        %v4519 = vadd.f32 %v4018, %v4518
        %v4520 = vpop.f32.mrb[0].mxu0
        %v4521 = vadd.f32 %v4023, %v4520
        %v4522 = vpop.f32.mrb[0].mxu0
        %v4523 = vadd.f32 %v4023, %v4522
        %4524 = vmatprep.mubr.bf16.mxu0 0
        %4525 = vmatmul.mubr.bf16.gmra.mrb[0].mxu0 %v4074
        %v4526 = vpop.f32.mrb[0].mxu0
        %v4527 = vadd.f32 %v4028, %v4526
        %v4528 = vpop.f32.mrb[0].mxu0
        %v4529 = vadd.f32 %v4028, %v4528
        %v4530 = vpop.f32.mrb[0].mxu0
        %v4531 = vadd.f32 %v4033, %v4530
        %v4532 = vpop.f32.mrb[0].mxu0
        %v4533 = vadd.f32 %v4033, %v4532
        %4534 = vdwg.mxu0
        %v4535 = vadd.f32 %v462, %v4118
        %v4536 = vadd.f32 %v463, %v4120
        %v4537 = vadd.f32 %v464, %v4231
        %v4538 = vadd.f32 %v465, %v4233
        %v4539 = vadd.f32 %v527, %v4344
        %v4540 = vadd.f32 %v528, %v4346
        %v4541 = vadd.f32 %v529, %v4457
        %v4542 = vadd.f32 %v530, %v4459
        %v4543 = vadd.f32 %v466, %v4122
        %v4544 = vadd.f32 %v467, %v4124
        %v4545 = vadd.f32 %v468, %v4235
        %v4546 = vadd.f32 %v469, %v4237
        %v4547 = vadd.f32 %v531, %v4348
        %v4548 = vadd.f32 %v532, %v4350
        %v4549 = vadd.f32 %v533, %v4461
        %v4550 = vadd.f32 %v534, %v4463
        %v4551 = vadd.f32 %v470, %v4128
        %v4552 = vadd.f32 %v471, %v4130
        %v4553 = vadd.f32 %v472, %v4241
        %v4554 = vadd.f32 %v473, %v4243
        %v4555 = vadd.f32 %v535, %v4354
        %v4556 = vadd.f32 %v536, %v4356
        %v4557 = vadd.f32 %v537, %v4467
        %v4558 = vadd.f32 %v538, %v4469
        %v4559 = vadd.f32 %v474, %v4132
        %v4560 = vadd.f32 %v475, %v4134
        %v4561 = vadd.f32 %v476, %v4245
        %v4562 = vadd.f32 %v477, %v4247
        %v4563 = vadd.f32 %v539, %v4358
        %v4564 = vadd.f32 %v540, %v4360
        %v4565 = vadd.f32 %v541, %v4471
        %v4566 = vadd.f32 %v542, %v4473
        %v4567 = vadd.f32 %v478, %v4138
        %v4568 = vadd.f32 %v479, %v4140
        %v4569 = vadd.f32 %v480, %v4251
        %v4570 = vadd.f32 %v481, %v4253
        %v4571 = vadd.f32 %v543, %v4364
        %v4572 = vadd.f32 %v544, %v4366
        %v4573 = vadd.f32 %v545, %v4477
        %v4574 = vadd.f32 %v546, %v4479
        %v4575 = vadd.f32 %v482, %v4142
        %v4576 = vadd.f32 %v483, %v4144
        %v4577 = vadd.f32 %v484, %v4255
        %v4578 = vadd.f32 %v485, %v4257
        %v4579 = vadd.f32 %v547, %v4368
        %v4580 = vadd.f32 %v548, %v4370
        %v4581 = vadd.f32 %v549, %v4481
        %v4582 = vadd.f32 %v550, %v4483
        %v4583 = vadd.f32 %v486, %v4148
        %v4584 = vadd.f32 %v487, %v4150
        %v4585 = vadd.f32 %v488, %v4261
        %v4586 = vadd.f32 %v489, %v4263
        %v4587 = vadd.f32 %v551, %v4374
        %v4588 = vadd.f32 %v552, %v4376
        %v4589 = vadd.f32 %v553, %v4487
        %v4590 = vadd.f32 %v554, %v4489
        %v4591 = vadd.f32 %v490, %v4152
        %v4592 = vadd.f32 %v491, %v4154
        %v4593 = vadd.f32 %v492, %v4265
        %v4594 = vadd.f32 %v493, %v4267
        %v4595 = vadd.f32 %v555, %v4378
        %v4596 = vadd.f32 %v556, %v4380
        %v4597 = vadd.f32 %v557, %v4491
        %v4598 = vadd.f32 %v558, %v4493
        %v4599 = vadd.f32 %v494, %v4158
        %v4600 = vadd.f32 %v495, %v4160
        %v4601 = vadd.f32 %v496, %v4271
        %v4602 = vadd.f32 %v497, %v4273
        %v4603 = vadd.f32 %v559, %v4384
        %v4604 = vadd.f32 %v560, %v4386
        %v4605 = vadd.f32 %v561, %v4497
        %v4606 = vadd.f32 %v562, %v4499
        %v4607 = vadd.f32 %v498, %v4162
        %v4608 = vadd.f32 %v499, %v4164
        %v4609 = vadd.f32 %v500, %v4275
        %v4610 = vadd.f32 %v501, %v4277
        %v4611 = vadd.f32 %v563, %v4388
        %v4612 = vadd.f32 %v564, %v4390
        %v4613 = vadd.f32 %v565, %v4501
        %v4614 = vadd.f32 %v566, %v4503
        %v4615 = vadd.f32 %v502, %v4168
        %v4616 = vadd.f32 %v503, %v4170
        %v4617 = vadd.f32 %v504, %v4281
        %v4618 = vadd.f32 %v505, %v4283
        %v4619 = vadd.f32 %v567, %v4394
        %v4620 = vadd.f32 %v568, %v4396
        %v4621 = vadd.f32 %v569, %v4507
        %v4622 = vadd.f32 %v570, %v4509
        %v4623 = vadd.f32 %v506, %v4172
        %v4624 = vadd.f32 %v507, %v4174
        %v4625 = vadd.f32 %v508, %v4285
        %v4626 = vadd.f32 %v509, %v4287
        %v4627 = vadd.f32 %v571, %v4398
        %v4628 = vadd.f32 %v572, %v4400
        %v4629 = vadd.f32 %v573, %v4511
        %v4630 = vadd.f32 %v574, %v4513
        %v4631 = vadd.f32 %v510, %v4178
        %v4632 = vadd.f32 %v511, %v4180
        %v4633 = vadd.f32 %v512, %v4291
        %v4634 = vadd.f32 %v513, %v4293
        %v4635 = vadd.f32 %v575, %v4404
        %v4636 = vadd.f32 %v576, %v4406
        %v4637 = vadd.f32 %v577, %v4517
        %v4638 = vadd.f32 %v578, %v4519
        %v4639 = vadd.f32 %v514, %v4182
        %v4640 = vadd.f32 %v515, %v4184
        %v4641 = vadd.f32 %v516, %v4295
        %v4642 = vadd.f32 %v517, %v4297
        %v4643 = vadd.f32 %v579, %v4408
        %v4644 = vadd.f32 %v580, %v4410
        %v4645 = vadd.f32 %v581, %v4521
        %v4646 = vadd.f32 %v582, %v4523
        %v4647 = vadd.f32 %v518, %v4188
        %v4648 = vadd.f32 %v519, %v4190
        %v4649 = vadd.f32 %v520, %v4301
        %v4650 = vadd.f32 %v521, %v4303
        %v4651 = vadd.f32 %v583, %v4414
        %v4652 = vadd.f32 %v584, %v4416
        %v4653 = vadd.f32 %v585, %v4527
        %v4654 = vadd.f32 %v586, %v4529
        %v4655 = vadd.f32 %v522, %v4192
        %v4656 = vadd.f32 %v523, %v4194
        %v4657 = vadd.f32 %v524, %v4305
        %v4658 = vadd.f32 %v525, %v4307
        %v4659 = vadd.f32 %v587, %v4418
        %v4660 = vadd.f32 %v588, %v4420
        %v4661 = vadd.f32 %v589, %v4531
        %v4662 = vadd.f32 %v590, %v4533
        %v4663 = vld [vmem:[%s5] sm:$0xff]
        %v4664 = vld [vmem:[%s5 + $0x8] sm:$0xff]
        %v4665 = vld [vmem:[%s5 + $0x10] sm:$0xff]
        %v4666 = vld [vmem:[%s5 + $0x18] sm:$0xff]
        %v4667 = vld [vmem:[%s5 + $0x20] sm:$0xff]
        %v4668 = vld [vmem:[%s5 + $0x28] sm:$0xff]
        %v4669 = vld [vmem:[%s5 + $0x30] sm:$0xff]
        %v4670 = vld [vmem:[%s5 + $0x38] sm:$0xff]
        %v4671 = vld [vmem:[%s5 + $0x40] sm:$0xff]
        %v4672 = vld [vmem:[%s5 + $0x48] sm:$0xff]
        %v4673 = vld [vmem:[%s5 + $0x50] sm:$0xff]
        %v4674 = vld [vmem:[%s5 + $0x58] sm:$0xff]
        %v4675 = vld [vmem:[%s5 + $0x60] sm:$0xff]
        %v4676 = vld [vmem:[%s5 + $0x68] sm:$0xff]
        %v4677 = vld [vmem:[%s5 + $0x70] sm:$0xff]
        %v4678 = vld [vmem:[%s5 + $0x78] sm:$0xff]
        %v4679 = vld [vmem:[%s6] sm:$0xff]
        %v4680 = vld [vmem:[%s6 + $0x8] sm:$0xff]
        %v4681 = vld [vmem:[%s6 + $0x10] sm:$0xff]
        %v4682 = vld [vmem:[%s6 + $0x18] sm:$0xff]
        %v4683 = vld [vmem:[%s6 + $0x20] sm:$0xff]
        %v4684 = vld [vmem:[%s6 + $0x28] sm:$0xff]
        %v4685 = vld [vmem:[%s6 + $0x30] sm:$0xff]
        %v4686 = vld [vmem:[%s6 + $0x38] sm:$0xff]
        %v4687 = vld [vmem:[%s6 + $0x40] sm:$0xff]
        %v4688 = vld [vmem:[%s6 + $0x48] sm:$0xff]
        %v4689 = vld [vmem:[%s6 + $0x50] sm:$0xff]
        %v4690 = vld [vmem:[%s6 + $0x58] sm:$0xff]
        %v4691 = vld [vmem:[%s6 + $0x60] sm:$0xff]
        %v4692 = vld [vmem:[%s6 + $0x68] sm:$0xff]
        %v4693 = vld [vmem:[%s6 + $0x70] sm:$0xff]
        %v4694 = vld [vmem:[%s6 + $0x78] sm:$0xff]
        %v4695 = vadd.f32 %v4535, %v4543
        %v4696 = vadd.f32 %v4695, %v4551
        %v4697 = vadd.f32 %v4696, %v4559
        %v4698 = vadd.f32 %v4697, %v4567
        %v4699 = vadd.f32 %v4698, %v4575
        %v4700 = vadd.f32 %v4699, %v4583
        %v4701 = vadd.f32 %v4700, %v4591
        %v4702 = vadd.f32 %v4701, %v4599
        %v4703 = vadd.f32 %v4702, %v4607
        %v4704 = vadd.f32 %v4703, %v4615
        %v4705 = vadd.f32 %v4704, %v4623
        %v4706 = vadd.f32 %v4705, %v4631
        %v4707 = vadd.f32 %v4706, %v4639
        %v4708 = vadd.f32 %v4707, %v4647
        %v4709 = vadd.f32 %v4708, %v4655
        %v4710 = vrot.slane %v4709, 4
        %v4711 = vadd.f32 %v4709, %v4710
        %v4712 = vrot.slane %v4711, 2
        %v4713 = vadd.f32 %v4711, %v4712
        %v4714 = vrot.slane %v4713, 1
        %v4715 = vadd.f32 %v4713, %v4714
        %v4716 = vadd.f32 %v4536, %v4544
        %v4717 = vadd.f32 %v4716, %v4552
        %v4718 = vadd.f32 %v4717, %v4560
        %v4719 = vadd.f32 %v4718, %v4568
        %v4720 = vadd.f32 %v4719, %v4576
        %v4721 = vadd.f32 %v4720, %v4584
        %v4722 = vadd.f32 %v4721, %v4592
        %v4723 = vadd.f32 %v4722, %v4600
        %v4724 = vadd.f32 %v4723, %v4608
        %v4725 = vadd.f32 %v4724, %v4616
        %v4726 = vadd.f32 %v4725, %v4624
        %v4727 = vadd.f32 %v4726, %v4632
        %v4728 = vadd.f32 %v4727, %v4640
        %v4729 = vadd.f32 %v4728, %v4648
        %v4730 = vadd.f32 %v4729, %v4656
        %v4731 = vrot.slane %v4730, 4
        %v4732 = vadd.f32 %v4730, %v4731
        %v4733 = vrot.slane %v4732, 2
        %v4734 = vadd.f32 %v4732, %v4733
        %v4735 = vrot.slane %v4734, 1
        %v4736 = vadd.f32 %v4734, %v4735
        %v4737 = vadd.f32 %v4537, %v4545
        %v4738 = vadd.f32 %v4737, %v4553
        %v4739 = vadd.f32 %v4738, %v4561
        %v4740 = vadd.f32 %v4739, %v4569
        %v4741 = vadd.f32 %v4740, %v4577
        %v4742 = vadd.f32 %v4741, %v4585
        %v4743 = vadd.f32 %v4742, %v4593
        %v4744 = vadd.f32 %v4743, %v4601
        %v4745 = vadd.f32 %v4744, %v4609
        %v4746 = vadd.f32 %v4745, %v4617
        %v4747 = vadd.f32 %v4746, %v4625
        %v4748 = vadd.f32 %v4747, %v4633
        %v4749 = vadd.f32 %v4748, %v4641
        %v4750 = vadd.f32 %v4749, %v4649
        %v4751 = vadd.f32 %v4750, %v4657
        %v4752 = vrot.slane %v4751, 4
        %v4753 = vadd.f32 %v4751, %v4752
        %v4754 = vrot.slane %v4753, 2
        %v4755 = vadd.f32 %v4753, %v4754
        %v4756 = vrot.slane %v4755, 1
        %v4757 = vadd.f32 %v4755, %v4756
        %v4758 = vadd.f32 %v4538, %v4546
        %v4759 = vadd.f32 %v4758, %v4554
        %v4760 = vadd.f32 %v4759, %v4562
        %v4761 = vadd.f32 %v4760, %v4570
        %v4762 = vadd.f32 %v4761, %v4578
        %v4763 = vadd.f32 %v4762, %v4586
        %v4764 = vadd.f32 %v4763, %v4594
        %v4765 = vadd.f32 %v4764, %v4602
        %v4766 = vadd.f32 %v4765, %v4610
        %v4767 = vadd.f32 %v4766, %v4618
        %v4768 = vadd.f32 %v4767, %v4626
        %v4769 = vadd.f32 %v4768, %v4634
        %v4770 = vadd.f32 %v4769, %v4642
        %v4771 = vadd.f32 %v4770, %v4650
        %v4772 = vadd.f32 %v4771, %v4658
        %v4773 = vrot.slane %v4772, 4
        %v4774 = vadd.f32 %v4772, %v4773
        %v4775 = vrot.slane %v4774, 2
        %v4776 = vadd.f32 %v4774, %v4775
        %v4777 = vrot.slane %v4776, 1
        %v4778 = vadd.f32 %v4776, %v4777
        %v4779 = vadd.f32 %v4539, %v4547
        %v4780 = vadd.f32 %v4779, %v4555
        %v4781 = vadd.f32 %v4780, %v4563
        %v4782 = vadd.f32 %v4781, %v4571
        %v4783 = vadd.f32 %v4782, %v4579
        %v4784 = vadd.f32 %v4783, %v4587
        %v4785 = vadd.f32 %v4784, %v4595
        %v4786 = vadd.f32 %v4785, %v4603
        %v4787 = vadd.f32 %v4786, %v4611
        %v4788 = vadd.f32 %v4787, %v4619
        %v4789 = vadd.f32 %v4788, %v4627
        %v4790 = vadd.f32 %v4789, %v4635
        %v4791 = vadd.f32 %v4790, %v4643
        %v4792 = vadd.f32 %v4791, %v4651
        %v4793 = vadd.f32 %v4792, %v4659
        %v4794 = vrot.slane %v4793, 4
        %v4795 = vadd.f32 %v4793, %v4794
        %v4796 = vrot.slane %v4795, 2
        %v4797 = vadd.f32 %v4795, %v4796
        %v4798 = vrot.slane %v4797, 1
        %v4799 = vadd.f32 %v4797, %v4798
        %v4800 = vadd.f32 %v4540, %v4548
        %v4801 = vadd.f32 %v4800, %v4556
        %v4802 = vadd.f32 %v4801, %v4564
        %v4803 = vadd.f32 %v4802, %v4572
        %v4804 = vadd.f32 %v4803, %v4580
        %v4805 = vadd.f32 %v4804, %v4588
        %v4806 = vadd.f32 %v4805, %v4596
        %v4807 = vadd.f32 %v4806, %v4604
        %v4808 = vadd.f32 %v4807, %v4612
        %v4809 = vadd.f32 %v4808, %v4620
        %v4810 = vadd.f32 %v4809, %v4628
        %v4811 = vadd.f32 %v4810, %v4636
        %v4812 = vadd.f32 %v4811, %v4644
        %v4813 = vadd.f32 %v4812, %v4652
        %v4814 = vadd.f32 %v4813, %v4660
        %v4815 = vrot.slane %v4814, 4
        %v4816 = vadd.f32 %v4814, %v4815
        %v4817 = vrot.slane %v4816, 2
        %v4818 = vadd.f32 %v4816, %v4817
        %v4819 = vrot.slane %v4818, 1
        %v4820 = vadd.f32 %v4818, %v4819
        %v4821 = vadd.f32 %v4541, %v4549
        %v4822 = vadd.f32 %v4821, %v4557
        %v4823 = vadd.f32 %v4822, %v4565
        %v4824 = vadd.f32 %v4823, %v4573
        %v4825 = vadd.f32 %v4824, %v4581
        %v4826 = vadd.f32 %v4825, %v4589
        %v4827 = vadd.f32 %v4826, %v4597
        %v4828 = vadd.f32 %v4827, %v4605
        %v4829 = vadd.f32 %v4828, %v4613
        %v4830 = vadd.f32 %v4829, %v4621
        %v4831 = vadd.f32 %v4830, %v4629
        %v4832 = vadd.f32 %v4831, %v4637
        %v4833 = vadd.f32 %v4832, %v4645
        %v4834 = vadd.f32 %v4833, %v4653
        %v4835 = vadd.f32 %v4834, %v4661
        %v4836 = vrot.slane %v4835, 4
        %v4837 = vadd.f32 %v4835, %v4836
        %v4838 = vrot.slane %v4837, 2
        %v4839 = vadd.f32 %v4837, %v4838
        %v4840 = vrot.slane %v4839, 1
        %v4841 = vadd.f32 %v4839, %v4840
        %v4842 = vadd.f32 %v4542, %v4550
        %v4843 = vadd.f32 %v4842, %v4558
        %v4844 = vadd.f32 %v4843, %v4566
        %v4845 = vadd.f32 %v4844, %v4574
        %v4846 = vadd.f32 %v4845, %v4582
        %v4847 = vadd.f32 %v4846, %v4590
        %v4848 = vadd.f32 %v4847, %v4598
        %v4849 = vadd.f32 %v4848, %v4606
        %v4850 = vadd.f32 %v4849, %v4614
        %v4851 = vadd.f32 %v4850, %v4622
        %v4852 = vadd.f32 %v4851, %v4630
        %v4853 = vadd.f32 %v4852, %v4638
        %v4854 = vadd.f32 %v4853, %v4646
        %v4855 = vadd.f32 %v4854, %v4654
        %v4856 = vadd.f32 %v4855, %v4662
        %v4857 = vrot.slane %v4856, 4
        %v4858 = vadd.f32 %v4856, %v4857
        %v4859 = vrot.slane %v4858, 2
        %v4860 = vadd.f32 %v4858, %v4859
        %v4861 = vrot.slane %v4860, 1
        %v4862 = vadd.f32 %v4860, %v4861
        %v4863 = vmul.f32 %v4535, %v4535
        %v4864 = vmul.f32 %v4536, %v4536
        %v4865 = vmul.f32 %v4537, %v4537
        %v4866 = vmul.f32 %v4538, %v4538
        %v4867 = vmul.f32 %v4539, %v4539
        %v4868 = vmul.f32 %v4540, %v4540
        %v4869 = vmul.f32 %v4541, %v4541
        %v4870 = vmul.f32 %v4542, %v4542
        %v4871 = vmul.f32 %v4543, %v4543
        %v4872 = vmul.f32 %v4544, %v4544
        %v4873 = vmul.f32 %v4545, %v4545
        %v4874 = vmul.f32 %v4546, %v4546
        %v4875 = vmul.f32 %v4547, %v4547
        %v4876 = vmul.f32 %v4548, %v4548
        %v4877 = vmul.f32 %v4549, %v4549
        %v4878 = vmul.f32 %v4550, %v4550
        %v4879 = vmul.f32 %v4551, %v4551
        %v4880 = vmul.f32 %v4552, %v4552
        %v4881 = vmul.f32 %v4553, %v4553
        %v4882 = vmul.f32 %v4554, %v4554
        %v4883 = vmul.f32 %v4555, %v4555
        %v4884 = vmul.f32 %v4556, %v4556
        %v4885 = vmul.f32 %v4557, %v4557
        %v4886 = vmul.f32 %v4558, %v4558
        %v4887 = vmul.f32 %v4559, %v4559
        %v4888 = vmul.f32 %v4560, %v4560
        %v4889 = vmul.f32 %v4561, %v4561
        %v4890 = vmul.f32 %v4562, %v4562
        %v4891 = vmul.f32 %v4563, %v4563
        %v4892 = vmul.f32 %v4564, %v4564
        %v4893 = vmul.f32 %v4565, %v4565
        %v4894 = vmul.f32 %v4566, %v4566
        %v4895 = vmul.f32 %v4567, %v4567
        %v4896 = vmul.f32 %v4568, %v4568
        %v4897 = vmul.f32 %v4569, %v4569
        %v4898 = vmul.f32 %v4570, %v4570
        %v4899 = vmul.f32 %v4571, %v4571
        %v4900 = vmul.f32 %v4572, %v4572
        %v4901 = vmul.f32 %v4573, %v4573
        %v4902 = vmul.f32 %v4574, %v4574
        %v4903 = vmul.f32 %v4575, %v4575
        %v4904 = vmul.f32 %v4576, %v4576
        %v4905 = vmul.f32 %v4577, %v4577
        %v4906 = vmul.f32 %v4578, %v4578
        %v4907 = vmul.f32 %v4579, %v4579
        %v4908 = vmul.f32 %v4580, %v4580
        %v4909 = vmul.f32 %v4581, %v4581
        %v4910 = vmul.f32 %v4582, %v4582
        %v4911 = vmul.f32 %v4583, %v4583
        %v4912 = vmul.f32 %v4584, %v4584
        %v4913 = vmul.f32 %v4585, %v4585
        %v4914 = vmul.f32 %v4586, %v4586
        %v4915 = vmul.f32 %v4587, %v4587
        %v4916 = vmul.f32 %v4588, %v4588
        %v4917 = vmul.f32 %v4589, %v4589
        %v4918 = vmul.f32 %v4590, %v4590
        %v4919 = vmul.f32 %v4591, %v4591
        %v4920 = vmul.f32 %v4592, %v4592
        %v4921 = vmul.f32 %v4593, %v4593
        %v4922 = vmul.f32 %v4594, %v4594
        %v4923 = vmul.f32 %v4595, %v4595
        %v4924 = vmul.f32 %v4596, %v4596
        %v4925 = vmul.f32 %v4597, %v4597
        %v4926 = vmul.f32 %v4598, %v4598
        %v4927 = vmul.f32 %v4599, %v4599
        %v4928 = vmul.f32 %v4600, %v4600
        %v4929 = vmul.f32 %v4601, %v4601
        %v4930 = vmul.f32 %v4602, %v4602
        %v4931 = vmul.f32 %v4603, %v4603
        %v4932 = vmul.f32 %v4604, %v4604
        %v4933 = vmul.f32 %v4605, %v4605
        %v4934 = vmul.f32 %v4606, %v4606
        %v4935 = vmul.f32 %v4607, %v4607
        %v4936 = vmul.f32 %v4608, %v4608
        %v4937 = vmul.f32 %v4609, %v4609
        %v4938 = vmul.f32 %v4610, %v4610
        %v4939 = vmul.f32 %v4611, %v4611
        %v4940 = vmul.f32 %v4612, %v4612
        %v4941 = vmul.f32 %v4613, %v4613
        %v4942 = vmul.f32 %v4614, %v4614
        %v4943 = vmul.f32 %v4615, %v4615
        %v4944 = vmul.f32 %v4616, %v4616
        %v4945 = vmul.f32 %v4617, %v4617
        %v4946 = vmul.f32 %v4618, %v4618
        %v4947 = vmul.f32 %v4619, %v4619
        %v4948 = vmul.f32 %v4620, %v4620
        %v4949 = vmul.f32 %v4621, %v4621
        %v4950 = vmul.f32 %v4622, %v4622
        %v4951 = vmul.f32 %v4623, %v4623
        %v4952 = vmul.f32 %v4624, %v4624
        %v4953 = vmul.f32 %v4625, %v4625
        %v4954 = vmul.f32 %v4626, %v4626
        %v4955 = vmul.f32 %v4627, %v4627
        %v4956 = vmul.f32 %v4628, %v4628
        %v4957 = vmul.f32 %v4629, %v4629
        %v4958 = vmul.f32 %v4630, %v4630
        %v4959 = vmul.f32 %v4631, %v4631
        %v4960 = vmul.f32 %v4632, %v4632
        %v4961 = vmul.f32 %v4633, %v4633
        %v4962 = vmul.f32 %v4634, %v4634
        %v4963 = vmul.f32 %v4635, %v4635
        %v4964 = vmul.f32 %v4636, %v4636
        %v4965 = vmul.f32 %v4637, %v4637
        %v4966 = vmul.f32 %v4638, %v4638
        %v4967 = vmul.f32 %v4639, %v4639
        %v4968 = vmul.f32 %v4640, %v4640
        %v4969 = vmul.f32 %v4641, %v4641
        %v4970 = vmul.f32 %v4642, %v4642
        %v4971 = vmul.f32 %v4643, %v4643
        %v4972 = vmul.f32 %v4644, %v4644
        %v4973 = vmul.f32 %v4645, %v4645
        %v4974 = vmul.f32 %v4646, %v4646
        %v4975 = vmul.f32 %v4647, %v4647
        %v4976 = vmul.f32 %v4648, %v4648
        %v4977 = vmul.f32 %v4649, %v4649
        %v4978 = vmul.f32 %v4650, %v4650
        %v4979 = vmul.f32 %v4651, %v4651
        %v4980 = vmul.f32 %v4652, %v4652
        %v4981 = vmul.f32 %v4653, %v4653
        %v4982 = vmul.f32 %v4654, %v4654
        %v4983 = vmul.f32 %v4655, %v4655
        %v4984 = vmul.f32 %v4656, %v4656
        %v4985 = vmul.f32 %v4657, %v4657
        %v4986 = vmul.f32 %v4658, %v4658
        %v4987 = vmul.f32 %v4659, %v4659
        %v4988 = vmul.f32 %v4660, %v4660
        %v4989 = vmul.f32 %v4661, %v4661
        %v4990 = vmul.f32 %v4662, %v4662
        %v4991 = vadd.f32 %v4863, %v4871
        %v4992 = vadd.f32 %v4991, %v4879
        %v4993 = vadd.f32 %v4992, %v4887
        %v4994 = vadd.f32 %v4993, %v4895
        %v4995 = vadd.f32 %v4994, %v4903
        %v4996 = vadd.f32 %v4995, %v4911
        %v4997 = vadd.f32 %v4996, %v4919
        %v4998 = vadd.f32 %v4997, %v4927
        %v4999 = vadd.f32 %v4998, %v4935
        %v5000 = vadd.f32 %v4999, %v4943
        %v5001 = vadd.f32 %v5000, %v4951
        %v5002 = vadd.f32 %v5001, %v4959
        %v5003 = vadd.f32 %v5002, %v4967
        %v5004 = vadd.f32 %v5003, %v4975
        %v5005 = vadd.f32 %v5004, %v4983
        %v5006 = vrot.slane %v5005, 4
        %v5007 = vadd.f32 %v5005, %v5006
        %v5008 = vrot.slane %v5007, 2
        %v5009 = vadd.f32 %v5007, %v5008
        %v5010 = vrot.slane %v5009, 1
        %v5011 = vadd.f32 %v5009, %v5010
        %v5012 = vadd.f32 %v4864, %v4872
        %v5013 = vadd.f32 %v5012, %v4880
        %v5014 = vadd.f32 %v5013, %v4888
        %v5015 = vadd.f32 %v5014, %v4896
        %v5016 = vadd.f32 %v5015, %v4904
        %v5017 = vadd.f32 %v5016, %v4912
        %v5018 = vadd.f32 %v5017, %v4920
        %v5019 = vadd.f32 %v5018, %v4928
        %v5020 = vadd.f32 %v5019, %v4936
        %v5021 = vadd.f32 %v5020, %v4944
        %v5022 = vadd.f32 %v5021, %v4952
        %v5023 = vadd.f32 %v5022, %v4960
        %v5024 = vadd.f32 %v5023, %v4968
        %v5025 = vadd.f32 %v5024, %v4976
        %v5026 = vadd.f32 %v5025, %v4984
        %v5027 = vrot.slane %v5026, 4
        %v5028 = vadd.f32 %v5026, %v5027
        %v5029 = vrot.slane %v5028, 2
        %v5030 = vadd.f32 %v5028, %v5029
        %v5031 = vrot.slane %v5030, 1
        %v5032 = vadd.f32 %v5030, %v5031
        %v5033 = vadd.f32 %v4865, %v4873
        %v5034 = vadd.f32 %v5033, %v4881
        %v5035 = vadd.f32 %v5034, %v4889
        %v5036 = vadd.f32 %v5035, %v4897
        %v5037 = vadd.f32 %v5036, %v4905
        %v5038 = vadd.f32 %v5037, %v4913
        %v5039 = vadd.f32 %v5038, %v4921
        %v5040 = vadd.f32 %v5039, %v4929
        %v5041 = vadd.f32 %v5040, %v4937
        %v5042 = vadd.f32 %v5041, %v4945
        %v5043 = vadd.f32 %v5042, %v4953
        %v5044 = vadd.f32 %v5043, %v4961
        %v5045 = vadd.f32 %v5044, %v4969
        %v5046 = vadd.f32 %v5045, %v4977
        %v5047 = vadd.f32 %v5046, %v4985
        %v5048 = vrot.slane %v5047, 4
        %v5049 = vadd.f32 %v5047, %v5048
        %v5050 = vrot.slane %v5049, 2
        %v5051 = vadd.f32 %v5049, %v5050
        %v5052 = vrot.slane %v5051, 1
        %v5053 = vadd.f32 %v5051, %v5052
        %v5054 = vadd.f32 %v4866, %v4874
        %v5055 = vadd.f32 %v5054, %v4882
        %v5056 = vadd.f32 %v5055, %v4890
        %v5057 = vadd.f32 %v5056, %v4898
        %v5058 = vadd.f32 %v5057, %v4906
        %v5059 = vadd.f32 %v5058, %v4914
        %v5060 = vadd.f32 %v5059, %v4922
        %v5061 = vadd.f32 %v5060, %v4930
        %v5062 = vadd.f32 %v5061, %v4938
        %v5063 = vadd.f32 %v5062, %v4946
        %v5064 = vadd.f32 %v5063, %v4954
        %v5065 = vadd.f32 %v5064, %v4962
        %v5066 = vadd.f32 %v5065, %v4970
        %v5067 = vadd.f32 %v5066, %v4978
        %v5068 = vadd.f32 %v5067, %v4986
        %v5069 = vrot.slane %v5068, 4
        %v5070 = vadd.f32 %v5068, %v5069
        %v5071 = vrot.slane %v5070, 2
        %v5072 = vadd.f32 %v5070, %v5071
        %v5073 = vrot.slane %v5072, 1
        %v5074 = vadd.f32 %v5072, %v5073
        %v5075 = vadd.f32 %v4867, %v4875
        %v5076 = vadd.f32 %v5075, %v4883
        %v5077 = vadd.f32 %v5076, %v4891
        %v5078 = vadd.f32 %v5077, %v4899
        %v5079 = vadd.f32 %v5078, %v4907
        %v5080 = vadd.f32 %v5079, %v4915
        %v5081 = vadd.f32 %v5080, %v4923
        %v5082 = vadd.f32 %v5081, %v4931
        %v5083 = vadd.f32 %v5082, %v4939
        %v5084 = vadd.f32 %v5083, %v4947
        %v5085 = vadd.f32 %v5084, %v4955
        %v5086 = vadd.f32 %v5085, %v4963
        %v5087 = vadd.f32 %v5086, %v4971
        %v5088 = vadd.f32 %v5087, %v4979
        %v5089 = vadd.f32 %v5088, %v4987
        %v5090 = vrot.slane %v5089, 4
        %v5091 = vadd.f32 %v5089, %v5090
        %v5092 = vrot.slane %v5091, 2
        %v5093 = vadd.f32 %v5091, %v5092
        %v5094 = vrot.slane %v5093, 1
        %v5095 = vadd.f32 %v5093, %v5094
        %v5096 = vadd.f32 %v4868, %v4876
        %v5097 = vadd.f32 %v5096, %v4884
        %v5098 = vadd.f32 %v5097, %v4892
        %v5099 = vadd.f32 %v5098, %v4900
        %v5100 = vadd.f32 %v5099, %v4908
        %v5101 = vadd.f32 %v5100, %v4916
        %v5102 = vadd.f32 %v5101, %v4924
        %v5103 = vadd.f32 %v5102, %v4932
        %v5104 = vadd.f32 %v5103, %v4940
        %v5105 = vadd.f32 %v5104, %v4948
        %v5106 = vadd.f32 %v5105, %v4956
        %v5107 = vadd.f32 %v5106, %v4964
        %v5108 = vadd.f32 %v5107, %v4972
        %v5109 = vadd.f32 %v5108, %v4980
        %v5110 = vadd.f32 %v5109, %v4988
        %v5111 = vrot.slane %v5110, 4
        %v5112 = vadd.f32 %v5110, %v5111
        %v5113 = vrot.slane %v5112, 2
        %v5114 = vadd.f32 %v5112, %v5113
        %v5115 = vrot.slane %v5114, 1
        %v5116 = vadd.f32 %v5114, %v5115
        %v5117 = vadd.f32 %v4869, %v4877
        %v5118 = vadd.f32 %v5117, %v4885
        %v5119 = vadd.f32 %v5118, %v4893
        %v5120 = vadd.f32 %v5119, %v4901
        %v5121 = vadd.f32 %v5120, %v4909
        %v5122 = vadd.f32 %v5121, %v4917
        %v5123 = vadd.f32 %v5122, %v4925
        %v5124 = vadd.f32 %v5123, %v4933
        %v5125 = vadd.f32 %v5124, %v4941
        %v5126 = vadd.f32 %v5125, %v4949
        %v5127 = vadd.f32 %v5126, %v4957
        %v5128 = vadd.f32 %v5127, %v4965
        %v5129 = vadd.f32 %v5128, %v4973
        %v5130 = vadd.f32 %v5129, %v4981
        %v5131 = vadd.f32 %v5130, %v4989
        %v5132 = vrot.slane %v5131, 4
        %v5133 = vadd.f32 %v5131, %v5132
        %v5134 = vrot.slane %v5133, 2
        %v5135 = vadd.f32 %v5133, %v5134
        %v5136 = vrot.slane %v5135, 1
        %v5137 = vadd.f32 %v5135, %v5136
        %v5138 = vadd.f32 %v4870, %v4878
        %v5139 = vadd.f32 %v5138, %v4886
        %v5140 = vadd.f32 %v5139, %v4894
        %v5141 = vadd.f32 %v5140, %v4902
        %v5142 = vadd.f32 %v5141, %v4910
        %v5143 = vadd.f32 %v5142, %v4918
        %v5144 = vadd.f32 %v5143, %v4926
        %v5145 = vadd.f32 %v5144, %v4934
        %v5146 = vadd.f32 %v5145, %v4942
        %v5147 = vadd.f32 %v5146, %v4950
        %v5148 = vadd.f32 %v5147, %v4958
        %v5149 = vadd.f32 %v5148, %v4966
        %v5150 = vadd.f32 %v5149, %v4974
        %v5151 = vadd.f32 %v5150, %v4982
        %v5152 = vadd.f32 %v5151, %v4990
        %v5153 = vrot.slane %v5152, 4
        %v5154 = vadd.f32 %v5152, %v5153
        %v5155 = vrot.slane %v5154, 2
        %v5156 = vadd.f32 %v5154, %v5155
        %v5157 = vrot.slane %v5156, 1
        %v5158 = vadd.f32 %v5156, %v5157
        %v5159 = vmul.f32 %v4715, 0.0078125
        %v5160 = vmul.f32 %v4736, 0.0078125
        %v5161 = vmul.f32 %v4757, 0.0078125
        %v5162 = vmul.f32 %v4778, 0.0078125
        %v5163 = vmul.f32 %v4799, 0.0078125
        %v5164 = vmul.f32 %v4820, 0.0078125
        %v5165 = vmul.f32 %v4841, 0.0078125
        %v5166 = vmul.f32 %v4862, 0.0078125
        %v5167 = vmul.f32 %v5011, 0.0078125
        %v5168 = vmul.f32 %v5032, 0.0078125
        %v5169 = vmul.f32 %v5053, 0.0078125
        %v5170 = vmul.f32 %v5074, 0.0078125
        %v5171 = vmul.f32 %v5095, 0.0078125
        %v5172 = vmul.f32 %v5116, 0.0078125
        %v5173 = vmul.f32 %v5137, 0.0078125
        %v5174 = vmul.f32 %v5158, 0.0078125
        %v5175 = vmul.f32 %v5159, %v5159
        %v5176 = vmul.f32 %v5160, %v5160
        %v5177 = vmul.f32 %v5161, %v5161
        %v5178 = vmul.f32 %v5162, %v5162
        %v5179 = vmul.f32 %v5163, %v5163
        %v5180 = vmul.f32 %v5164, %v5164
        %v5181 = vmul.f32 %v5165, %v5165
        %v5182 = vmul.f32 %v5166, %v5166
        %v5183 = vsub.f32 %v5167, %v5175
        %v5184 = vsub.f32 %v5168, %v5176
        %v5185 = vsub.f32 %v5169, %v5177
        %v5186 = vsub.f32 %v5170, %v5178
        %v5187 = vsub.f32 %v5171, %v5179
        %v5188 = vsub.f32 %v5172, %v5180
        %v5189 = vsub.f32 %v5173, %v5181
        %v5190 = vsub.f32 %v5174, %v5182
        %v5191 = vmax.f32 %v5183, 0.0
        %v5192 = vmax.f32 %v5184, 0.0
        %v5193 = vmax.f32 %v5185, 0.0
        %v5194 = vmax.f32 %v5186, 0.0
        %v5195 = vmax.f32 %v5187, 0.0
        %v5196 = vmax.f32 %v5188, 0.0
        %v5197 = vmax.f32 %v5189, 0.0
        %v5198 = vmax.f32 %v5190, 0.0
        %v5199 = vsub.f32 %v4535, %v5159
        %v5200 = vsub.f32 %v4536, %v5160
        %v5201 = vsub.f32 %v4537, %v5161
        %v5202 = vsub.f32 %v4538, %v5162
        %v5203 = vsub.f32 %v4539, %v5163
        %v5204 = vsub.f32 %v4540, %v5164
        %v5205 = vsub.f32 %v4541, %v5165
        %v5206 = vsub.f32 %v4542, %v5166
        %v5207 = vsub.f32 %v4543, %v5159
        %v5208 = vsub.f32 %v4544, %v5160
        %v5209 = vsub.f32 %v4545, %v5161
        %v5210 = vsub.f32 %v4546, %v5162
        %v5211 = vsub.f32 %v4547, %v5163
        %v5212 = vsub.f32 %v4548, %v5164
        %v5213 = vsub.f32 %v4549, %v5165
        %v5214 = vsub.f32 %v4550, %v5166
        %v5215 = vsub.f32 %v4551, %v5159
        %v5216 = vsub.f32 %v4552, %v5160
        %v5217 = vsub.f32 %v4553, %v5161
        %v5218 = vsub.f32 %v4554, %v5162
        %v5219 = vsub.f32 %v4555, %v5163
        %v5220 = vsub.f32 %v4556, %v5164
        %v5221 = vsub.f32 %v4557, %v5165
        %v5222 = vsub.f32 %v4558, %v5166
        %v5223 = vsub.f32 %v4559, %v5159
        %v5224 = vsub.f32 %v4560, %v5160
        %v5225 = vsub.f32 %v4561, %v5161
        %v5226 = vsub.f32 %v4562, %v5162
        %v5227 = vsub.f32 %v4563, %v5163
        %v5228 = vsub.f32 %v4564, %v5164
        %v5229 = vsub.f32 %v4565, %v5165
        %v5230 = vsub.f32 %v4566, %v5166
        %v5231 = vsub.f32 %v4567, %v5159
        %v5232 = vsub.f32 %v4568, %v5160
        %v5233 = vsub.f32 %v4569, %v5161
        %v5234 = vsub.f32 %v4570, %v5162
        %v5235 = vsub.f32 %v4571, %v5163
        %v5236 = vsub.f32 %v4572, %v5164
        %v5237 = vsub.f32 %v4573, %v5165
        %v5238 = vsub.f32 %v4574, %v5166
        %v5239 = vsub.f32 %v4575, %v5159
        %v5240 = vsub.f32 %v4576, %v5160
        %v5241 = vsub.f32 %v4577, %v5161
        %v5242 = vsub.f32 %v4578, %v5162
        %v5243 = vsub.f32 %v4579, %v5163
        %v5244 = vsub.f32 %v4580, %v5164
        %v5245 = vsub.f32 %v4581, %v5165
        %v5246 = vsub.f32 %v4582, %v5166
        %v5247 = vsub.f32 %v4583, %v5159
        %v5248 = vsub.f32 %v4584, %v5160
        %v5249 = vsub.f32 %v4585, %v5161
        %v5250 = vsub.f32 %v4586, %v5162
        %v5251 = vsub.f32 %v4587, %v5163
        %v5252 = vsub.f32 %v4588, %v5164
        %v5253 = vsub.f32 %v4589, %v5165
        %v5254 = vsub.f32 %v4590, %v5166
        %v5255 = vsub.f32 %v4591, %v5159
        %v5256 = vsub.f32 %v4592, %v5160
        %v5257 = vsub.f32 %v4593, %v5161
        %v5258 = vsub.f32 %v4594, %v5162
        %v5259 = vsub.f32 %v4595, %v5163
        %v5260 = vsub.f32 %v4596, %v5164
        %v5261 = vsub.f32 %v4597, %v5165
        %v5262 = vsub.f32 %v4598, %v5166
        %v5263 = vsub.f32 %v4599, %v5159
        %v5264 = vsub.f32 %v4600, %v5160
        %v5265 = vsub.f32 %v4601, %v5161
        %v5266 = vsub.f32 %v4602, %v5162
        %v5267 = vsub.f32 %v4603, %v5163
        %v5268 = vsub.f32 %v4604, %v5164
        %v5269 = vsub.f32 %v4605, %v5165
        %v5270 = vsub.f32 %v4606, %v5166
        %v5271 = vsub.f32 %v4607, %v5159
        %v5272 = vsub.f32 %v4608, %v5160
        %v5273 = vsub.f32 %v4609, %v5161
        %v5274 = vsub.f32 %v4610, %v5162
        %v5275 = vsub.f32 %v4611, %v5163
        %v5276 = vsub.f32 %v4612, %v5164
        %v5277 = vsub.f32 %v4613, %v5165
        %v5278 = vsub.f32 %v4614, %v5166
        %v5279 = vsub.f32 %v4615, %v5159
        %v5280 = vsub.f32 %v4616, %v5160
        %v5281 = vsub.f32 %v4617, %v5161
        %v5282 = vsub.f32 %v4618, %v5162
        %v5283 = vsub.f32 %v4619, %v5163
        %v5284 = vsub.f32 %v4620, %v5164
        %v5285 = vsub.f32 %v4621, %v5165
        %v5286 = vsub.f32 %v4622, %v5166
        %v5287 = vsub.f32 %v4623, %v5159
        %v5288 = vsub.f32 %v4624, %v5160
        %v5289 = vsub.f32 %v4625, %v5161
        %v5290 = vsub.f32 %v4626, %v5162
        %v5291 = vsub.f32 %v4627, %v5163
        %v5292 = vsub.f32 %v4628, %v5164
        %v5293 = vsub.f32 %v4629, %v5165
        %v5294 = vsub.f32 %v4630, %v5166
        %v5295 = vsub.f32 %v4631, %v5159
        %v5296 = vsub.f32 %v4632, %v5160
        %v5297 = vsub.f32 %v4633, %v5161
        %v5298 = vsub.f32 %v4634, %v5162
        %v5299 = vsub.f32 %v4635, %v5163
        %v5300 = vsub.f32 %v4636, %v5164
        %v5301 = vsub.f32 %v4637, %v5165
        %v5302 = vsub.f32 %v4638, %v5166
        %v5303 = vsub.f32 %v4639, %v5159
        %v5304 = vsub.f32 %v4640, %v5160
        %v5305 = vsub.f32 %v4641, %v5161
        %v5306 = vsub.f32 %v4642, %v5162
        %v5307 = vsub.f32 %v4643, %v5163
        %v5308 = vsub.f32 %v4644, %v5164
        %v5309 = vsub.f32 %v4645, %v5165
        %v5310 = vsub.f32 %v4646, %v5166
        %v5311 = vsub.f32 %v4647, %v5159
        %v5312 = vsub.f32 %v4648, %v5160
        %v5313 = vsub.f32 %v4649, %v5161
        %v5314 = vsub.f32 %v4650, %v5162
        %v5315 = vsub.f32 %v4651, %v5163
        %v5316 = vsub.f32 %v4652, %v5164
        %v5317 = vsub.f32 %v4653, %v5165
        %v5318 = vsub.f32 %v4654, %v5166
        %v5319 = vsub.f32 %v4655, %v5159
        %v5320 = vsub.f32 %v4656, %v5160
        %v5321 = vsub.f32 %v4657, %v5161
        %v5322 = vsub.f32 %v4658, %v5162
        %v5323 = vsub.f32 %v4659, %v5163
        %v5324 = vsub.f32 %v4660, %v5164
        %v5325 = vsub.f32 %v4661, %v5165
        %v5326 = vsub.f32 %v4662, %v5166
        %v5327 = vadd.f32 %v5191, 1e-05
        %v5328 = vadd.f32 %v5192, 1e-05
        %v5329 = vadd.f32 %v5193, 1e-05
        %v5330 = vadd.f32 %v5194, 1e-05
        %v5331 = vadd.f32 %v5195, 1e-05
        %v5332 = vadd.f32 %v5196, 1e-05
        %v5333 = vadd.f32 %v5197, 1e-05
        %v5334 = vadd.f32 %v5198, 1e-05
        %v5335 = vrsqrt.pop %v5327
        %v5336 = vrsqrt.pop %v5328
        %v5337 = vrsqrt.pop %v5329
        %v5338 = vrsqrt.pop %v5330
        %v5339 = vrsqrt.pop %v5331
        %v5340 = vrsqrt.pop %v5332
        %v5341 = vrsqrt.pop %v5333
        %v5342 = vrsqrt.pop %v5334
        %v5343 = vmul.f32 %v5199, %v5335
        %v5344 = vmul.f32 %v5200, %v5336
        %v5345 = vmul.f32 %v5201, %v5337
        %v5346 = vmul.f32 %v5202, %v5338
        %v5347 = vmul.f32 %v5203, %v5339
        %v5348 = vmul.f32 %v5204, %v5340
        %v5349 = vmul.f32 %v5205, %v5341
        %v5350 = vmul.f32 %v5206, %v5342
        %v5351 = vmul.f32 %v5207, %v5335
        %v5352 = vmul.f32 %v5208, %v5336
        %v5353 = vmul.f32 %v5209, %v5337
        %v5354 = vmul.f32 %v5210, %v5338
        %v5355 = vmul.f32 %v5211, %v5339
        %v5356 = vmul.f32 %v5212, %v5340
        %v5357 = vmul.f32 %v5213, %v5341
        %v5358 = vmul.f32 %v5214, %v5342
        %v5359 = vmul.f32 %v5215, %v5335
        %v5360 = vmul.f32 %v5216, %v5336
        %v5361 = vmul.f32 %v5217, %v5337
        %v5362 = vmul.f32 %v5218, %v5338
        %v5363 = vmul.f32 %v5219, %v5339
        %v5364 = vmul.f32 %v5220, %v5340
        %v5365 = vmul.f32 %v5221, %v5341
        %v5366 = vmul.f32 %v5222, %v5342
        %v5367 = vmul.f32 %v5223, %v5335
        %v5368 = vmul.f32 %v5224, %v5336
        %v5369 = vmul.f32 %v5225, %v5337
        %v5370 = vmul.f32 %v5226, %v5338
        %v5371 = vmul.f32 %v5227, %v5339
        %v5372 = vmul.f32 %v5228, %v5340
        %v5373 = vmul.f32 %v5229, %v5341
        %v5374 = vmul.f32 %v5230, %v5342
        %v5375 = vmul.f32 %v5231, %v5335
        %v5376 = vmul.f32 %v5232, %v5336
        %v5377 = vmul.f32 %v5233, %v5337
        %v5378 = vmul.f32 %v5234, %v5338
        %v5379 = vmul.f32 %v5235, %v5339
        %v5380 = vmul.f32 %v5236, %v5340
        %v5381 = vmul.f32 %v5237, %v5341
        %v5382 = vmul.f32 %v5238, %v5342
        %v5383 = vmul.f32 %v5239, %v5335
        %v5384 = vmul.f32 %v5240, %v5336
        %v5385 = vmul.f32 %v5241, %v5337
        %v5386 = vmul.f32 %v5242, %v5338
        %v5387 = vmul.f32 %v5243, %v5339
        %v5388 = vmul.f32 %v5244, %v5340
        %v5389 = vmul.f32 %v5245, %v5341
        %v5390 = vmul.f32 %v5246, %v5342
        %v5391 = vmul.f32 %v5247, %v5335
        %v5392 = vmul.f32 %v5248, %v5336
        %v5393 = vmul.f32 %v5249, %v5337
        %v5394 = vmul.f32 %v5250, %v5338
        %v5395 = vmul.f32 %v5251, %v5339
        %v5396 = vmul.f32 %v5252, %v5340
        %v5397 = vmul.f32 %v5253, %v5341
        %v5398 = vmul.f32 %v5254, %v5342
        %v5399 = vmul.f32 %v5255, %v5335
        %v5400 = vmul.f32 %v5256, %v5336
        %v5401 = vmul.f32 %v5257, %v5337
        %v5402 = vmul.f32 %v5258, %v5338
        %v5403 = vmul.f32 %v5259, %v5339
        %v5404 = vmul.f32 %v5260, %v5340
        %v5405 = vmul.f32 %v5261, %v5341
        %v5406 = vmul.f32 %v5262, %v5342
        %v5407 = vmul.f32 %v5263, %v5335
        %v5408 = vmul.f32 %v5264, %v5336
        %v5409 = vmul.f32 %v5265, %v5337
        %v5410 = vmul.f32 %v5266, %v5338
        %v5411 = vmul.f32 %v5267, %v5339
        %v5412 = vmul.f32 %v5268, %v5340
        %v5413 = vmul.f32 %v5269, %v5341
        %v5414 = vmul.f32 %v5270, %v5342
        %v5415 = vmul.f32 %v5271, %v5335
        %v5416 = vmul.f32 %v5272, %v5336
        %v5417 = vmul.f32 %v5273, %v5337
        %v5418 = vmul.f32 %v5274, %v5338
        %v5419 = vmul.f32 %v5275, %v5339
        %v5420 = vmul.f32 %v5276, %v5340
        %v5421 = vmul.f32 %v5277, %v5341
        %v5422 = vmul.f32 %v5278, %v5342
        %v5423 = vmul.f32 %v5279, %v5335
        %v5424 = vmul.f32 %v5280, %v5336
        %v5425 = vmul.f32 %v5281, %v5337
        %v5426 = vmul.f32 %v5282, %v5338
        %v5427 = vmul.f32 %v5283, %v5339
        %v5428 = vmul.f32 %v5284, %v5340
        %v5429 = vmul.f32 %v5285, %v5341
        %v5430 = vmul.f32 %v5286, %v5342
        %v5431 = vmul.f32 %v5287, %v5335
        %v5432 = vmul.f32 %v5288, %v5336
        %v5433 = vmul.f32 %v5289, %v5337
        %v5434 = vmul.f32 %v5290, %v5338
        %v5435 = vmul.f32 %v5291, %v5339
        %v5436 = vmul.f32 %v5292, %v5340
        %v5437 = vmul.f32 %v5293, %v5341
        %v5438 = vmul.f32 %v5294, %v5342
        %v5439 = vmul.f32 %v5295, %v5335
        %v5440 = vmul.f32 %v5296, %v5336
        %v5441 = vmul.f32 %v5297, %v5337
        %v5442 = vmul.f32 %v5298, %v5338
        %v5443 = vmul.f32 %v5299, %v5339
        %v5444 = vmul.f32 %v5300, %v5340
        %v5445 = vmul.f32 %v5301, %v5341
        %v5446 = vmul.f32 %v5302, %v5342
        %v5447 = vmul.f32 %v5303, %v5335
        %v5448 = vmul.f32 %v5304, %v5336
        %v5449 = vmul.f32 %v5305, %v5337
        %v5450 = vmul.f32 %v5306, %v5338
        %v5451 = vmul.f32 %v5307, %v5339
        %v5452 = vmul.f32 %v5308, %v5340
        %v5453 = vmul.f32 %v5309, %v5341
        %v5454 = vmul.f32 %v5310, %v5342
        %v5455 = vmul.f32 %v5311, %v5335
        %v5456 = vmul.f32 %v5312, %v5336
        %v5457 = vmul.f32 %v5313, %v5337
        %v5458 = vmul.f32 %v5314, %v5338
        %v5459 = vmul.f32 %v5315, %v5339
        %v5460 = vmul.f32 %v5316, %v5340
        %v5461 = vmul.f32 %v5317, %v5341
        %v5462 = vmul.f32 %v5318, %v5342
        %v5463 = vmul.f32 %v5319, %v5335
        %v5464 = vmul.f32 %v5320, %v5336
        %v5465 = vmul.f32 %v5321, %v5337
        %v5466 = vmul.f32 %v5322, %v5338
        %v5467 = vmul.f32 %v5323, %v5339
        %v5468 = vmul.f32 %v5324, %v5340
        %v5469 = vmul.f32 %v5325, %v5341
        %v5470 = vmul.f32 %v5326, %v5342
        %5472 = vset.pattern.permute.xlu0 0
        %5473 = vperm.xlu0 %5472, %v4663
        %v5474 = vpop.permute.xlu0 %5473
        %5477 = vset.pattern.permute.xlu0 0
        %5478 = vperm.xlu0 %5477, %v4664
        %v5479 = vpop.permute.xlu0 %5478
        %5482 = vset.pattern.permute.xlu0 0
        %5483 = vperm.xlu0 %5482, %v4665
        %v5484 = vpop.permute.xlu0 %5483
        %5487 = vset.pattern.permute.xlu0 0
        %5488 = vperm.xlu0 %5487, %v4666
        %v5489 = vpop.permute.xlu0 %5488
        %5492 = vset.pattern.permute.xlu0 0
        %5493 = vperm.xlu0 %5492, %v4667
        %v5494 = vpop.permute.xlu0 %5493
        %5497 = vset.pattern.permute.xlu0 0
        %5498 = vperm.xlu0 %5497, %v4668
        %v5499 = vpop.permute.xlu0 %5498
        %5502 = vset.pattern.permute.xlu0 0
        %5503 = vperm.xlu0 %5502, %v4669
        %v5504 = vpop.permute.xlu0 %5503
        %5507 = vset.pattern.permute.xlu0 0
        %5508 = vperm.xlu0 %5507, %v4670
        %v5509 = vpop.permute.xlu0 %5508
        %5512 = vset.pattern.permute.xlu0 0
        %5513 = vperm.xlu0 %5512, %v4671
        %v5514 = vpop.permute.xlu0 %5513
        %5517 = vset.pattern.permute.xlu0 0
        %5518 = vperm.xlu0 %5517, %v4672
        %v5519 = vpop.permute.xlu0 %5518
        %5522 = vset.pattern.permute.xlu0 0
        %5523 = vperm.xlu0 %5522, %v4673
        %v5524 = vpop.permute.xlu0 %5523
        %5527 = vset.pattern.permute.xlu0 0
        %5528 = vperm.xlu0 %5527, %v4674
        %v5529 = vpop.permute.xlu0 %5528
        %5532 = vset.pattern.permute.xlu0 0
        %5533 = vperm.xlu0 %5532, %v4675
        %v5534 = vpop.permute.xlu0 %5533
        %5537 = vset.pattern.permute.xlu0 0
        %5538 = vperm.xlu0 %5537, %v4676
        %v5539 = vpop.permute.xlu0 %5538
        %5542 = vset.pattern.permute.xlu0 0
        %5543 = vperm.xlu0 %5542, %v4677
        %v5544 = vpop.permute.xlu0 %5543
        %5547 = vset.pattern.permute.xlu0 0
        %5548 = vperm.xlu0 %5547, %v4678
        %v5549 = vpop.permute.xlu0 %5548
        %v5551 = vmul.f32 %v5343, %v5474
        %v5552 = vmul.f32 %v5344, %v5474
        %v5553 = vmul.f32 %v5345, %v5474
        %v5554 = vmul.f32 %v5346, %v5474
        %v5555 = vmul.f32 %v5347, %v5474
        %v5556 = vmul.f32 %v5348, %v5474
        %v5557 = vmul.f32 %v5349, %v5474
        %v5558 = vmul.f32 %v5350, %v5474
        %v5559 = vmul.f32 %v5351, %v5479
        %v5560 = vmul.f32 %v5352, %v5479
        %v5561 = vmul.f32 %v5353, %v5479
        %v5562 = vmul.f32 %v5354, %v5479
        %v5563 = vmul.f32 %v5355, %v5479
        %v5564 = vmul.f32 %v5356, %v5479
        %v5565 = vmul.f32 %v5357, %v5479
        %v5566 = vmul.f32 %v5358, %v5479
        %v5567 = vmul.f32 %v5359, %v5484
        %v5568 = vmul.f32 %v5360, %v5484
        %v5569 = vmul.f32 %v5361, %v5484
        %v5570 = vmul.f32 %v5362, %v5484
        %v5571 = vmul.f32 %v5363, %v5484
        %v5572 = vmul.f32 %v5364, %v5484
        %v5573 = vmul.f32 %v5365, %v5484
        %v5574 = vmul.f32 %v5366, %v5484
        %v5575 = vmul.f32 %v5367, %v5489
        %v5576 = vmul.f32 %v5368, %v5489
        %v5577 = vmul.f32 %v5369, %v5489
        %v5578 = vmul.f32 %v5370, %v5489
        %v5579 = vmul.f32 %v5371, %v5489
        %v5580 = vmul.f32 %v5372, %v5489
        %v5581 = vmul.f32 %v5373, %v5489
        %v5582 = vmul.f32 %v5374, %v5489
        %v5583 = vmul.f32 %v5375, %v5494
        %v5584 = vmul.f32 %v5376, %v5494
        %v5585 = vmul.f32 %v5377, %v5494
        %v5586 = vmul.f32 %v5378, %v5494
        %v5587 = vmul.f32 %v5379, %v5494
        %v5588 = vmul.f32 %v5380, %v5494
        %v5589 = vmul.f32 %v5381, %v5494
        %v5590 = vmul.f32 %v5382, %v5494
        %v5591 = vmul.f32 %v5383, %v5499
        %v5592 = vmul.f32 %v5384, %v5499
        %v5593 = vmul.f32 %v5385, %v5499
        %v5594 = vmul.f32 %v5386, %v5499
        %v5595 = vmul.f32 %v5387, %v5499
        %v5596 = vmul.f32 %v5388, %v5499
        %v5597 = vmul.f32 %v5389, %v5499
        %v5598 = vmul.f32 %v5390, %v5499
        %v5599 = vmul.f32 %v5391, %v5504
        %v5600 = vmul.f32 %v5392, %v5504
        %v5601 = vmul.f32 %v5393, %v5504
        %v5602 = vmul.f32 %v5394, %v5504
        %v5603 = vmul.f32 %v5395, %v5504
        %v5604 = vmul.f32 %v5396, %v5504
        %v5605 = vmul.f32 %v5397, %v5504
        %v5606 = vmul.f32 %v5398, %v5504
        %v5607 = vmul.f32 %v5399, %v5509
        %v5608 = vmul.f32 %v5400, %v5509
        %v5609 = vmul.f32 %v5401, %v5509
        %v5610 = vmul.f32 %v5402, %v5509
        %v5611 = vmul.f32 %v5403, %v5509
        %v5612 = vmul.f32 %v5404, %v5509
        %v5613 = vmul.f32 %v5405, %v5509
        %v5614 = vmul.f32 %v5406, %v5509
        %v5615 = vmul.f32 %v5407, %v5514
        %v5616 = vmul.f32 %v5408, %v5514
        %v5617 = vmul.f32 %v5409, %v5514
        %v5618 = vmul.f32 %v5410, %v5514
        %v5619 = vmul.f32 %v5411, %v5514
        %v5620 = vmul.f32 %v5412, %v5514
        %v5621 = vmul.f32 %v5413, %v5514
        %v5622 = vmul.f32 %v5414, %v5514
        %v5623 = vmul.f32 %v5415, %v5519
        %v5624 = vmul.f32 %v5416, %v5519
        %v5625 = vmul.f32 %v5417, %v5519
        %v5626 = vmul.f32 %v5418, %v5519
        %v5627 = vmul.f32 %v5419, %v5519
        %v5628 = vmul.f32 %v5420, %v5519
        %v5629 = vmul.f32 %v5421, %v5519
        %v5630 = vmul.f32 %v5422, %v5519
        %v5631 = vmul.f32 %v5423, %v5524
        %v5632 = vmul.f32 %v5424, %v5524
        %v5633 = vmul.f32 %v5425, %v5524
        %v5634 = vmul.f32 %v5426, %v5524
        %v5635 = vmul.f32 %v5427, %v5524
        %v5636 = vmul.f32 %v5428, %v5524
        %v5637 = vmul.f32 %v5429, %v5524
        %v5638 = vmul.f32 %v5430, %v5524
        %v5639 = vmul.f32 %v5431, %v5529
        %v5640 = vmul.f32 %v5432, %v5529
        %v5641 = vmul.f32 %v5433, %v5529
        %v5642 = vmul.f32 %v5434, %v5529
        %v5643 = vmul.f32 %v5435, %v5529
        %v5644 = vmul.f32 %v5436, %v5529
        %v5645 = vmul.f32 %v5437, %v5529
        %v5646 = vmul.f32 %v5438, %v5529
        %v5647 = vmul.f32 %v5439, %v5534
        %v5648 = vmul.f32 %v5440, %v5534
        %v5649 = vmul.f32 %v5441, %v5534
        %v5650 = vmul.f32 %v5442, %v5534
        %v5651 = vmul.f32 %v5443, %v5534
        %v5652 = vmul.f32 %v5444, %v5534
        %v5653 = vmul.f32 %v5445, %v5534
        %v5654 = vmul.f32 %v5446, %v5534
        %v5655 = vmul.f32 %v5447, %v5539
        %v5656 = vmul.f32 %v5448, %v5539
        %v5657 = vmul.f32 %v5449, %v5539
        %v5658 = vmul.f32 %v5450, %v5539
        %v5659 = vmul.f32 %v5451, %v5539
        %v5660 = vmul.f32 %v5452, %v5539
        %v5661 = vmul.f32 %v5453, %v5539
        %v5662 = vmul.f32 %v5454, %v5539
        %v5663 = vmul.f32 %v5455, %v5544
        %v5664 = vmul.f32 %v5456, %v5544
        %v5665 = vmul.f32 %v5457, %v5544
        %v5666 = vmul.f32 %v5458, %v5544
        %v5667 = vmul.f32 %v5459, %v5544
        %v5668 = vmul.f32 %v5460, %v5544
        %v5669 = vmul.f32 %v5461, %v5544
        %v5670 = vmul.f32 %v5462, %v5544
        %v5671 = vmul.f32 %v5463, %v5549
        %v5672 = vmul.f32 %v5464, %v5549
        %v5673 = vmul.f32 %v5465, %v5549
        %v5674 = vmul.f32 %v5466, %v5549
        %v5675 = vmul.f32 %v5467, %v5549
        %v5676 = vmul.f32 %v5468, %v5549
        %v5677 = vmul.f32 %v5469, %v5549
        %v5678 = vmul.f32 %v5470, %v5549
        %5680 = vset.pattern.permute.xlu0 0
        %5681 = vperm.xlu0 %5680, %v4679
        %v5682 = vpop.permute.xlu0 %5681
        %5685 = vset.pattern.permute.xlu0 0
        %5686 = vperm.xlu0 %5685, %v4680
        %v5687 = vpop.permute.xlu0 %5686
        %5690 = vset.pattern.permute.xlu0 0
        %5691 = vperm.xlu0 %5690, %v4681
        %v5692 = vpop.permute.xlu0 %5691
        %5695 = vset.pattern.permute.xlu0 0
        %5696 = vperm.xlu0 %5695, %v4682
        %v5697 = vpop.permute.xlu0 %5696
        %5700 = vset.pattern.permute.xlu0 0
        %5701 = vperm.xlu0 %5700, %v4683
        %v5702 = vpop.permute.xlu0 %5701
        %5705 = vset.pattern.permute.xlu0 0
        %5706 = vperm.xlu0 %5705, %v4684
        %v5707 = vpop.permute.xlu0 %5706
        %5710 = vset.pattern.permute.xlu0 0
        %5711 = vperm.xlu0 %5710, %v4685
        %v5712 = vpop.permute.xlu0 %5711
        %5715 = vset.pattern.permute.xlu0 0
        %5716 = vperm.xlu0 %5715, %v4686
        %v5717 = vpop.permute.xlu0 %5716
        %5720 = vset.pattern.permute.xlu0 0
        %5721 = vperm.xlu0 %5720, %v4687
        %v5722 = vpop.permute.xlu0 %5721
        %5725 = vset.pattern.permute.xlu0 0
        %5726 = vperm.xlu0 %5725, %v4688
        %v5727 = vpop.permute.xlu0 %5726
        %5730 = vset.pattern.permute.xlu0 0
        %5731 = vperm.xlu0 %5730, %v4689
        %v5732 = vpop.permute.xlu0 %5731
        %5735 = vset.pattern.permute.xlu0 0
        %5736 = vperm.xlu0 %5735, %v4690
        %v5737 = vpop.permute.xlu0 %5736
        %5740 = vset.pattern.permute.xlu0 0
        %5741 = vperm.xlu0 %5740, %v4691
        %v5742 = vpop.permute.xlu0 %5741
        %5745 = vset.pattern.permute.xlu0 0
        %5746 = vperm.xlu0 %5745, %v4692
        %v5747 = vpop.permute.xlu0 %5746
        %5750 = vset.pattern.permute.xlu0 0
        %5751 = vperm.xlu0 %5750, %v4693
        %v5752 = vpop.permute.xlu0 %5751
        %5755 = vset.pattern.permute.xlu0 0
        %5756 = vperm.xlu0 %5755, %v4694
        %v5757 = vpop.permute.xlu0 %5756
        %v5759 = vadd.f32 %v5551, %v5682
        %v5760 = vadd.f32 %v5552, %v5682
        %v5761 = vadd.f32 %v5553, %v5682
        %v5762 = vadd.f32 %v5554, %v5682
        %v5763 = vadd.f32 %v5555, %v5682
        %v5764 = vadd.f32 %v5556, %v5682
        %v5765 = vadd.f32 %v5557, %v5682
        %v5766 = vadd.f32 %v5558, %v5682
        %v5767 = vadd.f32 %v5559, %v5687
        %v5768 = vadd.f32 %v5560, %v5687
        %v5769 = vadd.f32 %v5561, %v5687
        %v5770 = vadd.f32 %v5562, %v5687
        %v5771 = vadd.f32 %v5563, %v5687
        %v5772 = vadd.f32 %v5564, %v5687
        %v5773 = vadd.f32 %v5565, %v5687
        %v5774 = vadd.f32 %v5566, %v5687
        %v5775 = vadd.f32 %v5567, %v5692
        %v5776 = vadd.f32 %v5568, %v5692
        %v5777 = vadd.f32 %v5569, %v5692
        %v5778 = vadd.f32 %v5570, %v5692
        %v5779 = vadd.f32 %v5571, %v5692
        %v5780 = vadd.f32 %v5572, %v5692
        %v5781 = vadd.f32 %v5573, %v5692
        %v5782 = vadd.f32 %v5574, %v5692
        %v5783 = vadd.f32 %v5575, %v5697
        %v5784 = vadd.f32 %v5576, %v5697
        %v5785 = vadd.f32 %v5577, %v5697
        %v5786 = vadd.f32 %v5578, %v5697
        %v5787 = vadd.f32 %v5579, %v5697
        %v5788 = vadd.f32 %v5580, %v5697
        %v5789 = vadd.f32 %v5581, %v5697
        %v5790 = vadd.f32 %v5582, %v5697
        %v5791 = vadd.f32 %v5583, %v5702
        %v5792 = vadd.f32 %v5584, %v5702
        %v5793 = vadd.f32 %v5585, %v5702
        %v5794 = vadd.f32 %v5586, %v5702
        %v5795 = vadd.f32 %v5587, %v5702
        %v5796 = vadd.f32 %v5588, %v5702
        %v5797 = vadd.f32 %v5589, %v5702
        %v5798 = vadd.f32 %v5590, %v5702
        %v5799 = vadd.f32 %v5591, %v5707
        %v5800 = vadd.f32 %v5592, %v5707
        %v5801 = vadd.f32 %v5593, %v5707
        %v5802 = vadd.f32 %v5594, %v5707
        %v5803 = vadd.f32 %v5595, %v5707
        %v5804 = vadd.f32 %v5596, %v5707
        %v5805 = vadd.f32 %v5597, %v5707
        %v5806 = vadd.f32 %v5598, %v5707
        %v5807 = vadd.f32 %v5599, %v5712
        %v5808 = vadd.f32 %v5600, %v5712
        %v5809 = vadd.f32 %v5601, %v5712
        %v5810 = vadd.f32 %v5602, %v5712
        %v5811 = vadd.f32 %v5603, %v5712
        %v5812 = vadd.f32 %v5604, %v5712
        %v5813 = vadd.f32 %v5605, %v5712
        %v5814 = vadd.f32 %v5606, %v5712
        %v5815 = vadd.f32 %v5607, %v5717
        %v5816 = vadd.f32 %v5608, %v5717
        %v5817 = vadd.f32 %v5609, %v5717
        %v5818 = vadd.f32 %v5610, %v5717
        %v5819 = vadd.f32 %v5611, %v5717
        %v5820 = vadd.f32 %v5612, %v5717
        %v5821 = vadd.f32 %v5613, %v5717
        %v5822 = vadd.f32 %v5614, %v5717
        %v5823 = vadd.f32 %v5615, %v5722
        %v5824 = vadd.f32 %v5616, %v5722
        %v5825 = vadd.f32 %v5617, %v5722
        %v5826 = vadd.f32 %v5618, %v5722
        %v5827 = vadd.f32 %v5619, %v5722
        %v5828 = vadd.f32 %v5620, %v5722
        %v5829 = vadd.f32 %v5621, %v5722
        %v5830 = vadd.f32 %v5622, %v5722
        %v5831 = vadd.f32 %v5623, %v5727
        %v5832 = vadd.f32 %v5624, %v5727
        %v5833 = vadd.f32 %v5625, %v5727
        %v5834 = vadd.f32 %v5626, %v5727
        %v5835 = vadd.f32 %v5627, %v5727
        %v5836 = vadd.f32 %v5628, %v5727
        %v5837 = vadd.f32 %v5629, %v5727
        %v5838 = vadd.f32 %v5630, %v5727
        %v5839 = vadd.f32 %v5631, %v5732
        %v5840 = vadd.f32 %v5632, %v5732
        %v5841 = vadd.f32 %v5633, %v5732
        %v5842 = vadd.f32 %v5634, %v5732
        %v5843 = vadd.f32 %v5635, %v5732
        %v5844 = vadd.f32 %v5636, %v5732
        %v5845 = vadd.f32 %v5637, %v5732
        %v5846 = vadd.f32 %v5638, %v5732
        %v5847 = vadd.f32 %v5639, %v5737
        %v5848 = vadd.f32 %v5640, %v5737
        %v5849 = vadd.f32 %v5641, %v5737
        %v5850 = vadd.f32 %v5642, %v5737
        %v5851 = vadd.f32 %v5643, %v5737
        %v5852 = vadd.f32 %v5644, %v5737
        %v5853 = vadd.f32 %v5645, %v5737
        %v5854 = vadd.f32 %v5646, %v5737
        %v5855 = vadd.f32 %v5647, %v5742
        %v5856 = vadd.f32 %v5648, %v5742
        %v5857 = vadd.f32 %v5649, %v5742
        %v5858 = vadd.f32 %v5650, %v5742
        %v5859 = vadd.f32 %v5651, %v5742
        %v5860 = vadd.f32 %v5652, %v5742
        %v5861 = vadd.f32 %v5653, %v5742
        %v5862 = vadd.f32 %v5654, %v5742
        %v5863 = vadd.f32 %v5655, %v5747
        %v5864 = vadd.f32 %v5656, %v5747
        %v5865 = vadd.f32 %v5657, %v5747
        %v5866 = vadd.f32 %v5658, %v5747
        %v5867 = vadd.f32 %v5659, %v5747
        %v5868 = vadd.f32 %v5660, %v5747
        %v5869 = vadd.f32 %v5661, %v5747
        %v5870 = vadd.f32 %v5662, %v5747
        %v5871 = vadd.f32 %v5663, %v5752
        %v5872 = vadd.f32 %v5664, %v5752
        %v5873 = vadd.f32 %v5665, %v5752
        %v5874 = vadd.f32 %v5666, %v5752
        %v5875 = vadd.f32 %v5667, %v5752
        %v5876 = vadd.f32 %v5668, %v5752
        %v5877 = vadd.f32 %v5669, %v5752
        %v5878 = vadd.f32 %v5670, %v5752
        %v5879 = vadd.f32 %v5671, %v5757
        %v5880 = vadd.f32 %v5672, %v5757
        %v5881 = vadd.f32 %v5673, %v5757
        %v5882 = vadd.f32 %v5674, %v5757
        %v5883 = vadd.f32 %v5675, %v5757
        %v5884 = vadd.f32 %v5676, %v5757
        %v5885 = vadd.f32 %v5677, %v5757
        %v5886 = vadd.f32 %v5678, %v5757
        %v5887 = vld [vmem:[%s7] sm:$0xf]
        %v5888 = vld [vmem:[%s7 + $0x4] sm:$0xf]
        %v5889 = vld [vmem:[%s7 + $0x8] sm:$0xf]
        %v5890 = vld [vmem:[%s7 + $0xc] sm:$0xf]
        %v5891 = vld [vmem:[%s7 + $0x10] sm:$0xf]
        %v5892 = vld [vmem:[%s7 + $0x14] sm:$0xf]
        %v5893 = vld [vmem:[%s7 + $0x18] sm:$0xf]
        %v5894 = vld [vmem:[%s7 + $0x1c] sm:$0xf]
        %v5895 = vld [vmem:[%s7 + $0x20] sm:$0xf]
        %v5896 = vld [vmem:[%s7 + $0x24] sm:$0xf]
        %v5897 = vld [vmem:[%s7 + $0x28] sm:$0xf]
        %v5898 = vld [vmem:[%s7 + $0x2c] sm:$0xf]
        %v5899 = vld [vmem:[%s7 + $0x30] sm:$0xf]
        %v5900 = vld [vmem:[%s7 + $0x34] sm:$0xf]
        %v5901 = vld [vmem:[%s7 + $0x38] sm:$0xf]
        %v5902 = vld [vmem:[%s7 + $0x3c] sm:$0xf]
        %v5903 = vld [vmem:[%s7 + $0x40] sm:$0xf]
        %v5904 = vld [vmem:[%s7 + $0x44] sm:$0xf]
        %v5905 = vld [vmem:[%s7 + $0x48] sm:$0xf]
        %v5906 = vld [vmem:[%s7 + $0x4c] sm:$0xf]
        %v5907 = vld [vmem:[%s7 + $0x50] sm:$0xf]
        %v5908 = vld [vmem:[%s7 + $0x54] sm:$0xf]
        %v5909 = vld [vmem:[%s7 + $0x58] sm:$0xf]
        %v5910 = vld [vmem:[%s7 + $0x5c] sm:$0xf]
        %v5911 = vld [vmem:[%s7 + $0x60] sm:$0xf]
        %v5912 = vld [vmem:[%s7 + $0x64] sm:$0xf]
        %v5913 = vld [vmem:[%s7 + $0x68] sm:$0xf]
        %v5914 = vld [vmem:[%s7 + $0x6c] sm:$0xf]
        %v5915 = vld [vmem:[%s7 + $0x70] sm:$0xf]
        %v5916 = vld [vmem:[%s7 + $0x74] sm:$0xf]
        %v5917 = vld [vmem:[%s7 + $0x78] sm:$0xf]
        %v5918 = vld [vmem:[%s7 + $0x7c] sm:$0xf]
        %v5919 = vpack.c.bf16 %v5767, %v5759
        %v5920 = vpack.c.bf16 %v5768, %v5760
        %v5921 = vpack.c.bf16 %v5769, %v5761
        %v5922 = vpack.c.bf16 %v5770, %v5762
        %v5923 = vpack.c.bf16 %v5771, %v5763
        %v5924 = vpack.c.bf16 %v5772, %v5764
        %v5925 = vpack.c.bf16 %v5773, %v5765
        %v5926 = vpack.c.bf16 %v5774, %v5766
        %v5927 = vpack.c.bf16 %v5783, %v5775
        %v5928 = vpack.c.bf16 %v5784, %v5776
        %v5929 = vpack.c.bf16 %v5785, %v5777
        %v5930 = vpack.c.bf16 %v5786, %v5778
        %v5931 = vpack.c.bf16 %v5787, %v5779
        %v5932 = vpack.c.bf16 %v5788, %v5780
        %v5933 = vpack.c.bf16 %v5789, %v5781
        %v5934 = vpack.c.bf16 %v5790, %v5782
        %v5935 = vpack.c.bf16 %v5799, %v5791
        %v5936 = vpack.c.bf16 %v5800, %v5792
        %v5937 = vpack.c.bf16 %v5801, %v5793
        %v5938 = vpack.c.bf16 %v5802, %v5794
        %v5939 = vpack.c.bf16 %v5803, %v5795
        %v5940 = vpack.c.bf16 %v5804, %v5796
        %v5941 = vpack.c.bf16 %v5805, %v5797
        %v5942 = vpack.c.bf16 %v5806, %v5798
        %v5943 = vpack.c.bf16 %v5815, %v5807
        %v5944 = vpack.c.bf16 %v5816, %v5808
        %v5945 = vpack.c.bf16 %v5817, %v5809
        %v5946 = vpack.c.bf16 %v5818, %v5810
        %v5947 = vpack.c.bf16 %v5819, %v5811
        %v5948 = vpack.c.bf16 %v5820, %v5812
        %v5949 = vpack.c.bf16 %v5821, %v5813
        %v5950 = vpack.c.bf16 %v5822, %v5814
        %v5951 = vpack.c.bf16 %v5831, %v5823
        %v5952 = vpack.c.bf16 %v5832, %v5824
        %v5953 = vpack.c.bf16 %v5833, %v5825
        %v5954 = vpack.c.bf16 %v5834, %v5826
        %v5955 = vpack.c.bf16 %v5835, %v5827
        %v5956 = vpack.c.bf16 %v5836, %v5828
        %v5957 = vpack.c.bf16 %v5837, %v5829
        %v5958 = vpack.c.bf16 %v5838, %v5830
        %v5959 = vpack.c.bf16 %v5847, %v5839
        %v5960 = vpack.c.bf16 %v5848, %v5840
        %v5961 = vpack.c.bf16 %v5849, %v5841
        %v5962 = vpack.c.bf16 %v5850, %v5842
        %v5963 = vpack.c.bf16 %v5851, %v5843
        %v5964 = vpack.c.bf16 %v5852, %v5844
        %v5965 = vpack.c.bf16 %v5853, %v5845
        %v5966 = vpack.c.bf16 %v5854, %v5846
        %v5967 = vpack.c.bf16 %v5863, %v5855
        %v5968 = vpack.c.bf16 %v5864, %v5856
        %v5969 = vpack.c.bf16 %v5865, %v5857
        %v5970 = vpack.c.bf16 %v5866, %v5858
        %v5971 = vpack.c.bf16 %v5867, %v5859
        %v5972 = vpack.c.bf16 %v5868, %v5860
        %v5973 = vpack.c.bf16 %v5869, %v5861
        %v5974 = vpack.c.bf16 %v5870, %v5862
        %v5975 = vpack.c.bf16 %v5879, %v5871
        %v5976 = vpack.c.bf16 %v5880, %v5872
        %v5977 = vpack.c.bf16 %v5881, %v5873
        %v5978 = vpack.c.bf16 %v5882, %v5874
        %v5979 = vpack.c.bf16 %v5883, %v5875
        %v5980 = vpack.c.bf16 %v5884, %v5876
        %v5981 = vpack.c.bf16 %v5885, %v5877
        %v5982 = vpack.c.bf16 %v5886, %v5878
        %v5983 = vld [vmem:[%s8] sm:$0xff]
        %v5984 = vld [vmem:[%s8 + $0x8] sm:$0xff]
        %v5985 = vld [vmem:[%s8 + $0x10] sm:$0xff]
        %v5986 = vld [vmem:[%s8 + $0x18] sm:$0xff]
        %v5987 = vld [vmem:[%s8 + $0x20] sm:$0xff]
        %v5988 = vld [vmem:[%s8 + $0x28] sm:$0xff]
        %v5989 = vld [vmem:[%s8 + $0x30] sm:$0xff]
        %v5990 = vld [vmem:[%s8 + $0x38] sm:$0xff]
        %v5991 = vld [vmem:[%s8 + $0x40] sm:$0xff]
        %v5992 = vld [vmem:[%s8 + $0x48] sm:$0xff]
        %v5993 = vld [vmem:[%s8 + $0x50] sm:$0xff]
        %v5994 = vld [vmem:[%s8 + $0x58] sm:$0xff]
        %v5995 = vld [vmem:[%s8 + $0x60] sm:$0xff]
        %v5996 = vld [vmem:[%s8 + $0x68] sm:$0xff]
        %v5997 = vld [vmem:[%s8 + $0x70] sm:$0xff]
        %v5998 = vld [vmem:[%s8 + $0x78] sm:$0xff]
        %v5999 = vld [vmem:[%s8 + $0x80] sm:$0xff]
        %v6000 = vld [vmem:[%s8 + $0x88] sm:$0xff]
        %v6001 = vld [vmem:[%s8 + $0x90] sm:$0xff]
        %v6002 = vld [vmem:[%s8 + $0x98] sm:$0xff]
        %v6003 = vld [vmem:[%s8 + $0xa0] sm:$0xff]
        %v6004 = vld [vmem:[%s8 + $0xa8] sm:$0xff]
        %v6005 = vld [vmem:[%s8 + $0xb0] sm:$0xff]
        %v6006 = vld [vmem:[%s8 + $0xb8] sm:$0xff]
        %v6007 = vld [vmem:[%s8 + $0xc0] sm:$0xff]
        %v6008 = vld [vmem:[%s8 + $0xc8] sm:$0xff]
        %v6009 = vld [vmem:[%s8 + $0xd0] sm:$0xff]
        %v6010 = vld [vmem:[%s8 + $0xd8] sm:$0xff]
        %v6011 = vld [vmem:[%s8 + $0xe0] sm:$0xff]
        %v6012 = vld [vmem:[%s8 + $0xe8] sm:$0xff]
        %v6013 = vld [vmem:[%s8 + $0xf0] sm:$0xff]
        %v6014 = vld [vmem:[%s8 + $0xf8] sm:$0xff]
        %6016 = vset.pattern.permute.xlu0 0
        %6017 = vperm.xlu0 %6016, %v5983
        %v6018 = vpop.permute.xlu0 %6017
        %6021 = vset.pattern.permute.xlu0 0
        %6022 = vperm.xlu0 %6021, %v5984
        %v6023 = vpop.permute.xlu0 %6022
        %6026 = vset.pattern.permute.xlu0 0
        %6027 = vperm.xlu0 %6026, %v5985
        %v6028 = vpop.permute.xlu0 %6027
        %6031 = vset.pattern.permute.xlu0 0
        %6032 = vperm.xlu0 %6031, %v5986
        %v6033 = vpop.permute.xlu0 %6032
        %6036 = vset.pattern.permute.xlu0 0
        %6037 = vperm.xlu0 %6036, %v5987
        %v6038 = vpop.permute.xlu0 %6037
        %6041 = vset.pattern.permute.xlu0 0
        %6042 = vperm.xlu0 %6041, %v5988
        %v6043 = vpop.permute.xlu0 %6042
        %6046 = vset.pattern.permute.xlu0 0
        %6047 = vperm.xlu0 %6046, %v5989
        %v6048 = vpop.permute.xlu0 %6047
        %6051 = vset.pattern.permute.xlu0 0
        %6052 = vperm.xlu0 %6051, %v5990
        %v6053 = vpop.permute.xlu0 %6052
        %6056 = vset.pattern.permute.xlu0 0
        %6057 = vperm.xlu0 %6056, %v5991
        %v6058 = vpop.permute.xlu0 %6057
        %6061 = vset.pattern.permute.xlu0 0
        %6062 = vperm.xlu0 %6061, %v5992
        %v6063 = vpop.permute.xlu0 %6062
        %6066 = vset.pattern.permute.xlu0 0
        %6067 = vperm.xlu0 %6066, %v5993
        %v6068 = vpop.permute.xlu0 %6067
        %6071 = vset.pattern.permute.xlu0 0
        %6072 = vperm.xlu0 %6071, %v5994
        %v6073 = vpop.permute.xlu0 %6072
        %6076 = vset.pattern.permute.xlu0 0
        %6077 = vperm.xlu0 %6076, %v5995
        %v6078 = vpop.permute.xlu0 %6077
        %6081 = vset.pattern.permute.xlu0 0
        %6082 = vperm.xlu0 %6081, %v5996
        %v6083 = vpop.permute.xlu0 %6082
        %6086 = vset.pattern.permute.xlu0 0
        %6087 = vperm.xlu0 %6086, %v5997
        %v6088 = vpop.permute.xlu0 %6087
        %6091 = vset.pattern.permute.xlu0 0
        %6092 = vperm.xlu0 %6091, %v5998
        %v6093 = vpop.permute.xlu0 %6092
        %6096 = vset.pattern.permute.xlu0 0
        %6097 = vperm.xlu0 %6096, %v5999
        %v6098 = vpop.permute.xlu0 %6097
        %6101 = vset.pattern.permute.xlu0 0
        %6102 = vperm.xlu0 %6101, %v6000
        %v6103 = vpop.permute.xlu0 %6102
        %6106 = vset.pattern.permute.xlu0 0
        %6107 = vperm.xlu0 %6106, %v6001
        %v6108 = vpop.permute.xlu0 %6107
        %6111 = vset.pattern.permute.xlu0 0
        %6112 = vperm.xlu0 %6111, %v6002
        %v6113 = vpop.permute.xlu0 %6112
        %6116 = vset.pattern.permute.xlu0 0
        %6117 = vperm.xlu0 %6116, %v6003
        %v6118 = vpop.permute.xlu0 %6117
        %6121 = vset.pattern.permute.xlu0 0
        %6122 = vperm.xlu0 %6121, %v6004
        %v6123 = vpop.permute.xlu0 %6122
        %6126 = vset.pattern.permute.xlu0 0
        %6127 = vperm.xlu0 %6126, %v6005
        %v6128 = vpop.permute.xlu0 %6127
        %6131 = vset.pattern.permute.xlu0 0
        %6132 = vperm.xlu0 %6131, %v6006
        %v6133 = vpop.permute.xlu0 %6132
        %6136 = vset.pattern.permute.xlu0 0
        %6137 = vperm.xlu0 %6136, %v6007
        %v6138 = vpop.permute.xlu0 %6137
        %6141 = vset.pattern.permute.xlu0 0
        %6142 = vperm.xlu0 %6141, %v6008
        %v6143 = vpop.permute.xlu0 %6142
        %6146 = vset.pattern.permute.xlu0 0
        %6147 = vperm.xlu0 %6146, %v6009
        %v6148 = vpop.permute.xlu0 %6147
        %6151 = vset.pattern.permute.xlu0 0
        %6152 = vperm.xlu0 %6151, %v6010
        %v6153 = vpop.permute.xlu0 %6152
        %6156 = vset.pattern.permute.xlu0 0
        %6157 = vperm.xlu0 %6156, %v6011
        %v6158 = vpop.permute.xlu0 %6157
        %6161 = vset.pattern.permute.xlu0 0
        %6162 = vperm.xlu0 %6161, %v6012
        %v6163 = vpop.permute.xlu0 %6162
        %6166 = vset.pattern.permute.xlu0 0
        %6167 = vperm.xlu0 %6166, %v6013
        %v6168 = vpop.permute.xlu0 %6167
        %6171 = vset.pattern.permute.xlu0 0
        %6172 = vperm.xlu0 %6171, %v6014
        %v6173 = vpop.permute.xlu0 %6172
        %v6207 = vunpack.c.l.b16 %v5887
        %v6208 = vunpack.c.l.b16 %v5888
        %v6209 = vunpack.c.l.b16 %v5889
        %v6210 = vunpack.c.l.b16 %v5890
        %v6211 = vunpack.c.l.b16 %v5891
        %v6212 = vunpack.c.l.b16 %v5892
        %v6213 = vunpack.c.l.b16 %v5893
        %v6214 = vunpack.c.l.b16 %v5894
        %v6215 = vunpack.c.l.b16 %v5895
        %v6216 = vunpack.c.l.b16 %v5896
        %v6217 = vunpack.c.l.b16 %v5897
        %v6218 = vunpack.c.l.b16 %v5898
        %v6219 = vunpack.c.l.b16 %v5899
        %v6220 = vunpack.c.l.b16 %v5900
        %v6221 = vunpack.c.l.b16 %v5901
        %v6222 = vunpack.c.l.b16 %v5902
        %v6223 = vunpack.c.l.b16 %v5903
        %v6224 = vunpack.c.l.b16 %v5904
        %v6225 = vunpack.c.l.b16 %v5905
        %v6226 = vunpack.c.l.b16 %v5906
        %v6227 = vunpack.c.l.b16 %v5907
        %v6228 = vunpack.c.l.b16 %v5908
        %v6229 = vunpack.c.l.b16 %v5909
        %v6230 = vunpack.c.l.b16 %v5910
        %v6231 = vunpack.c.l.b16 %v5911
        %v6232 = vunpack.c.l.b16 %v5912
        %v6233 = vunpack.c.l.b16 %v5913
        %v6234 = vunpack.c.l.b16 %v5914
        %v6235 = vunpack.c.l.b16 %v5915
        %v6236 = vunpack.c.l.b16 %v5916
        %v6237 = vunpack.c.l.b16 %v5917
        %v6238 = vunpack.c.l.b16 %v5918
        %v6239 = vpack.c.b16 %v6208, %v6207
        %v6240 = vpack.c.b16 %v6210, %v6209
        %v6241 = vpack.c.b16 %v6212, %v6211
        %v6242 = vpack.c.b16 %v6214, %v6213
        %v6243 = vpack.c.b16 %v6216, %v6215
        %v6244 = vpack.c.b16 %v6218, %v6217
        %v6245 = vpack.c.b16 %v6220, %v6219
        %v6246 = vpack.c.b16 %v6222, %v6221
        %v6247 = vpack.c.b16 %v6224, %v6223
        %v6248 = vpack.c.b16 %v6226, %v6225
        %v6249 = vpack.c.b16 %v6228, %v6227
        %v6250 = vpack.c.b16 %v6230, %v6229
        %v6251 = vpack.c.b16 %v6232, %v6231
        %v6252 = vpack.c.b16 %v6234, %v6233
        %v6253 = vpack.c.b16 %v6236, %v6235
        %v6254 = vpack.c.b16 %v6238, %v6237
        %6271 = vmatprep.subr.bf16.mxu0 %v5920
        %6272 = vmatpush1.bf16.msra.mxu0 %v5919
        %6273 = vmatprep.subr.bf16.mxu0 %v5928
        %6274 = vmatpush1.bf16.msra.mxu0 %v5927
        %6275 = vmatprep.subr.bf16.mxu0 %v5936
        %6276 = vmatpush1.bf16.msra.mxu0 %v5935
        %6277 = vmatprep.subr.bf16.mxu0 %v5944
        %6278 = vmatpush1.bf16.msra.mxu0 %v5943
        %6279 = vmatprep.subr.bf16.mxu0 %v5952
        %6280 = vmatpush1.bf16.msra.mxu0 %v5951
        %6281 = vmatprep.subr.bf16.mxu0 %v5960
        %6282 = vmatpush1.bf16.msra.mxu0 %v5959
        %6283 = vmatprep.subr.bf16.mxu0 %v5968
        %6284 = vmatpush1.bf16.msra.mxu0 %v5967
        %6285 = vmatprep.subr.bf16.mxu0 %v5976
        %6286 = vmatpush1.bf16.msra.mxu0 %v5975
        %6287 = vmatprep.subr.bf16.mxu0 0
        %6288 = vmatpush1.bf16.msra.mxu0 0
        %6289 = vmatprep.subr.bf16.mxu0 0
        %6290 = vmatpush1.bf16.msra.mxu0 0
        %6291 = vmatprep.subr.bf16.mxu0 0
        %6292 = vmatpush1.bf16.msra.mxu0 0
        %6293 = vmatprep.subr.bf16.mxu0 0
        %6294 = vmatpush1.bf16.msra.mxu0 0
        %6295 = vmatprep.subr.bf16.mxu0 0
        %6296 = vmatpush1.bf16.msra.mxu0 0
        %6297 = vmatprep.subr.bf16.mxu0 0
        %6298 = vmatpush1.bf16.msra.mxu0 0
        %6299 = vmatprep.subr.bf16.mxu0 0
        %6300 = vmatpush1.bf16.msra.mxu0 0
        %6301 = vmatprep.subr.bf16.mxu0 0
        %6302 = vmatpush1.bf16.msra.mxu0 0
        %6303 = vmatprep.mubr.bf16.mxu0 0
        %6304 = vmatmul.mubr.bf16.gmra.mrb[0].mxu0 %v6239
        %v6305 = vpop.f32.mrb[0].mxu0
        %v6306 = vadd.f32 %v6018, %v6305
        %v6307 = vpop.f32.mrb[0].mxu0
        %v6308 = vadd.f32 %v6018, %v6307
        %v6309 = vpop.f32.mrb[0].mxu0
        %v6310 = vadd.f32 %v6023, %v6309
        %v6311 = vpop.f32.mrb[0].mxu0
        %v6312 = vadd.f32 %v6023, %v6311
        %6313 = vmatprep.mubr.bf16.mxu0 0
        %6314 = vmatmul.mubr.bf16.gmra.mrb[0].mxu0 %v6240
        %v6315 = vpop.f32.mrb[0].mxu0
        %v6316 = vadd.f32 %v6028, %v6315
        %v6317 = vpop.f32.mrb[0].mxu0
        %v6318 = vadd.f32 %v6028, %v6317
        %v6319 = vpop.f32.mrb[0].mxu0
        %v6320 = vadd.f32 %v6033, %v6319
        %v6321 = vpop.f32.mrb[0].mxu0
        %v6322 = vadd.f32 %v6033, %v6321
        %6323 = vmatprep.mubr.bf16.mxu0 0
        %6324 = vmatmul.mubr.bf16.gmra.mrb[0].mxu0 %v6241
        %v6325 = vpop.f32.mrb[0].mxu0
        %v6326 = vadd.f32 %v6038, %v6325
        %v6327 = vpop.f32.mrb[0].mxu0
        %v6328 = vadd.f32 %v6038, %v6327
        %v6329 = vpop.f32.mrb[0].mxu0
        %v6330 = vadd.f32 %v6043, %v6329
        %v6331 = vpop.f32.mrb[0].mxu0
        %v6332 = vadd.f32 %v6043, %v6331
        %6333 = vmatprep.mubr.bf16.mxu0 0
        %6334 = vmatmul.mubr.bf16.gmra.mrb[0].mxu0 %v6242
        %v6335 = vpop.f32.mrb[0].mxu0
        %v6336 = vadd.f32 %v6048, %v6335
        %v6337 = vpop.f32.mrb[0].mxu0
        %v6338 = vadd.f32 %v6048, %v6337
        %v6339 = vpop.f32.mrb[0].mxu0
        %v6340 = vadd.f32 %v6053, %v6339
        %v6341 = vpop.f32.mrb[0].mxu0
        %v6342 = vadd.f32 %v6053, %v6341
        %6343 = vmatprep.mubr.bf16.mxu0 0
        %6344 = vmatmul.mubr.bf16.gmra.mrb[0].mxu0 %v6243
        %v6345 = vpop.f32.mrb[0].mxu0
        %v6346 = vadd.f32 %v6058, %v6345
        %v6347 = vpop.f32.mrb[0].mxu0
        %v6348 = vadd.f32 %v6058, %v6347
        %v6349 = vpop.f32.mrb[0].mxu0
        %v6350 = vadd.f32 %v6063, %v6349
        %v6351 = vpop.f32.mrb[0].mxu0
        %v6352 = vadd.f32 %v6063, %v6351
        %6353 = vmatprep.mubr.bf16.mxu0 0
        %6354 = vmatmul.mubr.bf16.gmra.mrb[0].mxu0 %v6244
        %v6355 = vpop.f32.mrb[0].mxu0
        %v6356 = vadd.f32 %v6068, %v6355
        %v6357 = vpop.f32.mrb[0].mxu0
        %v6358 = vadd.f32 %v6068, %v6357
        %v6359 = vpop.f32.mrb[0].mxu0
        %v6360 = vadd.f32 %v6073, %v6359
        %v6361 = vpop.f32.mrb[0].mxu0
        %v6362 = vadd.f32 %v6073, %v6361
        %6363 = vmatprep.mubr.bf16.mxu0 0
        %6364 = vmatmul.mubr.bf16.gmra.mrb[0].mxu0 %v6245
        %v6365 = vpop.f32.mrb[0].mxu0
        %v6366 = vadd.f32 %v6078, %v6365
        %v6367 = vpop.f32.mrb[0].mxu0
        %v6368 = vadd.f32 %v6078, %v6367
        %v6369 = vpop.f32.mrb[0].mxu0
        %v6370 = vadd.f32 %v6083, %v6369
        %v6371 = vpop.f32.mrb[0].mxu0
        %v6372 = vadd.f32 %v6083, %v6371
        %6373 = vmatprep.mubr.bf16.mxu0 0
        %6374 = vmatmul.mubr.bf16.gmra.mrb[0].mxu0 %v6246
        %v6375 = vpop.f32.mrb[0].mxu0
        %v6376 = vadd.f32 %v6088, %v6375
        %v6377 = vpop.f32.mrb[0].mxu0
        %v6378 = vadd.f32 %v6088, %v6377
        %v6379 = vpop.f32.mrb[0].mxu0
        %v6380 = vadd.f32 %v6093, %v6379
        %v6381 = vpop.f32.mrb[0].mxu0
        %v6382 = vadd.f32 %v6093, %v6381
        %6383 = vmatprep.mubr.bf16.mxu0 0
        %6384 = vmatmul.mubr.bf16.gmra.mrb[0].mxu0 %v6247
        %v6385 = vpop.f32.mrb[0].mxu0
        %v6386 = vadd.f32 %v6098, %v6385
        %v6387 = vpop.f32.mrb[0].mxu0
        %v6388 = vadd.f32 %v6098, %v6387
        %v6389 = vpop.f32.mrb[0].mxu0
        %v6390 = vadd.f32 %v6103, %v6389
        %v6391 = vpop.f32.mrb[0].mxu0
        %v6392 = vadd.f32 %v6103, %v6391
        %6393 = vmatprep.mubr.bf16.mxu0 0
        %6394 = vmatmul.mubr.bf16.gmra.mrb[0].mxu0 %v6248
        %v6395 = vpop.f32.mrb[0].mxu0
        %v6396 = vadd.f32 %v6108, %v6395
        %v6397 = vpop.f32.mrb[0].mxu0
        %v6398 = vadd.f32 %v6108, %v6397
        %v6399 = vpop.f32.mrb[0].mxu0
        %v6400 = vadd.f32 %v6113, %v6399
        %v6401 = vpop.f32.mrb[0].mxu0
        %v6402 = vadd.f32 %v6113, %v6401
        %6403 = vmatprep.mubr.bf16.mxu0 0
        %6404 = vmatmul.mubr.bf16.gmra.mrb[0].mxu0 %v6249
        %v6405 = vpop.f32.mrb[0].mxu0
        %v6406 = vadd.f32 %v6118, %v6405
        %v6407 = vpop.f32.mrb[0].mxu0
        %v6408 = vadd.f32 %v6118, %v6407
        %v6409 = vpop.f32.mrb[0].mxu0
        %v6410 = vadd.f32 %v6123, %v6409
        %v6411 = vpop.f32.mrb[0].mxu0
        %v6412 = vadd.f32 %v6123, %v6411
        %6413 = vmatprep.mubr.bf16.mxu0 0
        %6414 = vmatmul.mubr.bf16.gmra.mrb[0].mxu0 %v6250
        %v6415 = vpop.f32.mrb[0].mxu0
        %v6416 = vadd.f32 %v6128, %v6415
        %v6417 = vpop.f32.mrb[0].mxu0
        %v6418 = vadd.f32 %v6128, %v6417
        %v6419 = vpop.f32.mrb[0].mxu0
        %v6420 = vadd.f32 %v6133, %v6419
        %v6421 = vpop.f32.mrb[0].mxu0
        %v6422 = vadd.f32 %v6133, %v6421
        %6423 = vmatprep.mubr.bf16.mxu0 0
        %6424 = vmatmul.mubr.bf16.gmra.mrb[0].mxu0 %v6251
        %v6425 = vpop.f32.mrb[0].mxu0
        %v6426 = vadd.f32 %v6138, %v6425
        %v6427 = vpop.f32.mrb[0].mxu0
        %v6428 = vadd.f32 %v6138, %v6427
        %v6429 = vpop.f32.mrb[0].mxu0
        %v6430 = vadd.f32 %v6143, %v6429
        %v6431 = vpop.f32.mrb[0].mxu0
        %v6432 = vadd.f32 %v6143, %v6431
        %6433 = vmatprep.mubr.bf16.mxu0 0
        %6434 = vmatmul.mubr.bf16.gmra.mrb[0].mxu0 %v6252
        %v6435 = vpop.f32.mrb[0].mxu0
        %v6436 = vadd.f32 %v6148, %v6435
        %v6437 = vpop.f32.mrb[0].mxu0
        %v6438 = vadd.f32 %v6148, %v6437
        %v6439 = vpop.f32.mrb[0].mxu0
        %v6440 = vadd.f32 %v6153, %v6439
        %v6441 = vpop.f32.mrb[0].mxu0
        %v6442 = vadd.f32 %v6153, %v6441
        %6443 = vmatprep.mubr.bf16.mxu0 0
        %6444 = vmatmul.mubr.bf16.gmra.mrb[0].mxu0 %v6253
        %v6445 = vpop.f32.mrb[0].mxu0
        %v6446 = vadd.f32 %v6158, %v6445
        %v6447 = vpop.f32.mrb[0].mxu0
        %v6448 = vadd.f32 %v6158, %v6447
        %v6449 = vpop.f32.mrb[0].mxu0
        %v6450 = vadd.f32 %v6163, %v6449
        %v6451 = vpop.f32.mrb[0].mxu0
        %v6452 = vadd.f32 %v6163, %v6451
        %6453 = vmatprep.mubr.bf16.mxu0 0
        %6454 = vmatmul.mubr.bf16.gmra.mrb[0].mxu0 %v6254
        %v6455 = vpop.f32.mrb[0].mxu0
        %v6456 = vadd.f32 %v6168, %v6455
        %v6457 = vpop.f32.mrb[0].mxu0
        %v6458 = vadd.f32 %v6168, %v6457
        %v6459 = vpop.f32.mrb[0].mxu0
        %v6460 = vadd.f32 %v6173, %v6459
        %v6461 = vpop.f32.mrb[0].mxu0
        %v6462 = vadd.f32 %v6173, %v6461
        %6463 = vdwg.mxu0
        %6464 = vmatprep.subr.bf16.mxu0 %v5922
        %6465 = vmatpush1.bf16.msra.mxu0 %v5921
        %6466 = vmatprep.subr.bf16.mxu0 %v5930
        %6467 = vmatpush1.bf16.msra.mxu0 %v5929
        %6468 = vmatprep.subr.bf16.mxu0 %v5938
        %6469 = vmatpush1.bf16.msra.mxu0 %v5937
        %6470 = vmatprep.subr.bf16.mxu0 %v5946
        %6471 = vmatpush1.bf16.msra.mxu0 %v5945
        %6472 = vmatprep.subr.bf16.mxu0 %v5954
        %6473 = vmatpush1.bf16.msra.mxu0 %v5953
        %6474 = vmatprep.subr.bf16.mxu0 %v5962
        %6475 = vmatpush1.bf16.msra.mxu0 %v5961
        %6476 = vmatprep.subr.bf16.mxu0 %v5970
        %6477 = vmatpush1.bf16.msra.mxu0 %v5969
        %6478 = vmatprep.subr.bf16.mxu0 %v5978
        %6479 = vmatpush1.bf16.msra.mxu0 %v5977
        %6480 = vmatprep.subr.bf16.mxu0 0
        %6481 = vmatpush1.bf16.msra.mxu0 0
        %6482 = vmatprep.subr.bf16.mxu0 0
        %6483 = vmatpush1.bf16.msra.mxu0 0
        %6484 = vmatprep.subr.bf16.mxu0 0
        %6485 = vmatpush1.bf16.msra.mxu0 0
        %6486 = vmatprep.subr.bf16.mxu0 0
        %6487 = vmatpush1.bf16.msra.mxu0 0
        %6488 = vmatprep.subr.bf16.mxu0 0
        %6489 = vmatpush1.bf16.msra.mxu0 0
        %6490 = vmatprep.subr.bf16.mxu0 0
        %6491 = vmatpush1.bf16.msra.mxu0 0
        %6492 = vmatprep.subr.bf16.mxu0 0
        %6493 = vmatpush1.bf16.msra.mxu0 0
        %6494 = vmatprep.subr.bf16.mxu0 0
        %6495 = vmatpush1.bf16.msra.mxu0 0
        %6496 = vmatprep.mubr.bf16.mxu0 0
        %6497 = vmatmul.mubr.bf16.gmra.mrb[0].mxu0 %v6239
        %v6498 = vpop.f32.mrb[0].mxu0
        %v6499 = vadd.f32 %v6018, %v6498
        %v6500 = vpop.f32.mrb[0].mxu0
        %v6501 = vadd.f32 %v6018, %v6500
        %v6502 = vpop.f32.mrb[0].mxu0
        %v6503 = vadd.f32 %v6023, %v6502
        %v6504 = vpop.f32.mrb[0].mxu0
        %v6505 = vadd.f32 %v6023, %v6504
        %6506 = vmatprep.mubr.bf16.mxu0 0
        %6507 = vmatmul.mubr.bf16.gmra.mrb[0].mxu0 %v6240
        %v6508 = vpop.f32.mrb[0].mxu0
        %v6509 = vadd.f32 %v6028, %v6508
        %v6510 = vpop.f32.mrb[0].mxu0
        %v6511 = vadd.f32 %v6028, %v6510
        %v6512 = vpop.f32.mrb[0].mxu0
        %v6513 = vadd.f32 %v6033, %v6512
        %v6514 = vpop.f32.mrb[0].mxu0
        %v6515 = vadd.f32 %v6033, %v6514
        %6516 = vmatprep.mubr.bf16.mxu0 0
        %6517 = vmatmul.mubr.bf16.gmra.mrb[0].mxu0 %v6241
        %v6518 = vpop.f32.mrb[0].mxu0
        %v6519 = vadd.f32 %v6038, %v6518
        %v6520 = vpop.f32.mrb[0].mxu0
        %v6521 = vadd.f32 %v6038, %v6520
        %v6522 = vpop.f32.mrb[0].mxu0
        %v6523 = vadd.f32 %v6043, %v6522
        %v6524 = vpop.f32.mrb[0].mxu0
        %v6525 = vadd.f32 %v6043, %v6524
        %6526 = vmatprep.mubr.bf16.mxu0 0
        %6527 = vmatmul.mubr.bf16.gmra.mrb[0].mxu0 %v6242
        %v6528 = vpop.f32.mrb[0].mxu0
        %v6529 = vadd.f32 %v6048, %v6528
        %v6530 = vpop.f32.mrb[0].mxu0
        %v6531 = vadd.f32 %v6048, %v6530
        %v6532 = vpop.f32.mrb[0].mxu0
        %v6533 = vadd.f32 %v6053, %v6532
        %v6534 = vpop.f32.mrb[0].mxu0
        %v6535 = vadd.f32 %v6053, %v6534
        %6536 = vmatprep.mubr.bf16.mxu0 0
        %6537 = vmatmul.mubr.bf16.gmra.mrb[0].mxu0 %v6243
        %v6538 = vpop.f32.mrb[0].mxu0
        %v6539 = vadd.f32 %v6058, %v6538
        %v6540 = vpop.f32.mrb[0].mxu0
        %v6541 = vadd.f32 %v6058, %v6540
        %v6542 = vpop.f32.mrb[0].mxu0
        %v6543 = vadd.f32 %v6063, %v6542
        %v6544 = vpop.f32.mrb[0].mxu0
        %v6545 = vadd.f32 %v6063, %v6544
        %6546 = vmatprep.mubr.bf16.mxu0 0
        %6547 = vmatmul.mubr.bf16.gmra.mrb[0].mxu0 %v6244
        %v6548 = vpop.f32.mrb[0].mxu0
        %v6549 = vadd.f32 %v6068, %v6548
        %v6550 = vpop.f32.mrb[0].mxu0
        %v6551 = vadd.f32 %v6068, %v6550
        %v6552 = vpop.f32.mrb[0].mxu0
        %v6553 = vadd.f32 %v6073, %v6552
        %v6554 = vpop.f32.mrb[0].mxu0
        %v6555 = vadd.f32 %v6073, %v6554
        %6556 = vmatprep.mubr.bf16.mxu0 0
        %6557 = vmatmul.mubr.bf16.gmra.mrb[0].mxu0 %v6245
        %v6558 = vpop.f32.mrb[0].mxu0
        %v6559 = vadd.f32 %v6078, %v6558
        %v6560 = vpop.f32.mrb[0].mxu0
        %v6561 = vadd.f32 %v6078, %v6560
        %v6562 = vpop.f32.mrb[0].mxu0
        %v6563 = vadd.f32 %v6083, %v6562
        %v6564 = vpop.f32.mrb[0].mxu0
        %v6565 = vadd.f32 %v6083, %v6564
        %6566 = vmatprep.mubr.bf16.mxu0 0
        %6567 = vmatmul.mubr.bf16.gmra.mrb[0].mxu0 %v6246
        %v6568 = vpop.f32.mrb[0].mxu0
        %v6569 = vadd.f32 %v6088, %v6568
        %v6570 = vpop.f32.mrb[0].mxu0
        %v6571 = vadd.f32 %v6088, %v6570
        %v6572 = vpop.f32.mrb[0].mxu0
        %v6573 = vadd.f32 %v6093, %v6572
        %v6574 = vpop.f32.mrb[0].mxu0
        %v6575 = vadd.f32 %v6093, %v6574
        %6576 = vmatprep.mubr.bf16.mxu0 0
        %6577 = vmatmul.mubr.bf16.gmra.mrb[0].mxu0 %v6247
        %v6578 = vpop.f32.mrb[0].mxu0
        %v6579 = vadd.f32 %v6098, %v6578
        %v6580 = vpop.f32.mrb[0].mxu0
        %v6581 = vadd.f32 %v6098, %v6580
        %v6582 = vpop.f32.mrb[0].mxu0
        %v6583 = vadd.f32 %v6103, %v6582
        %v6584 = vpop.f32.mrb[0].mxu0
        %v6585 = vadd.f32 %v6103, %v6584
        %6586 = vmatprep.mubr.bf16.mxu0 0
        %6587 = vmatmul.mubr.bf16.gmra.mrb[0].mxu0 %v6248
        %v6588 = vpop.f32.mrb[0].mxu0
        %v6589 = vadd.f32 %v6108, %v6588
        %v6590 = vpop.f32.mrb[0].mxu0
        %v6591 = vadd.f32 %v6108, %v6590
        %v6592 = vpop.f32.mrb[0].mxu0
        %v6593 = vadd.f32 %v6113, %v6592
        %v6594 = vpop.f32.mrb[0].mxu0
        %v6595 = vadd.f32 %v6113, %v6594
        %6596 = vmatprep.mubr.bf16.mxu0 0
        %6597 = vmatmul.mubr.bf16.gmra.mrb[0].mxu0 %v6249
        %v6598 = vpop.f32.mrb[0].mxu0
        %v6599 = vadd.f32 %v6118, %v6598
        %v6600 = vpop.f32.mrb[0].mxu0
        %v6601 = vadd.f32 %v6118, %v6600
        %v6602 = vpop.f32.mrb[0].mxu0
        %v6603 = vadd.f32 %v6123, %v6602
        %v6604 = vpop.f32.mrb[0].mxu0
        %v6605 = vadd.f32 %v6123, %v6604
        %6606 = vmatprep.mubr.bf16.mxu0 0
        %6607 = vmatmul.mubr.bf16.gmra.mrb[0].mxu0 %v6250
        %v6608 = vpop.f32.mrb[0].mxu0
        %v6609 = vadd.f32 %v6128, %v6608
        %v6610 = vpop.f32.mrb[0].mxu0
        %v6611 = vadd.f32 %v6128, %v6610
        %v6612 = vpop.f32.mrb[0].mxu0
        %v6613 = vadd.f32 %v6133, %v6612
        %v6614 = vpop.f32.mrb[0].mxu0
        %v6615 = vadd.f32 %v6133, %v6614
        %6616 = vmatprep.mubr.bf16.mxu0 0
        %6617 = vmatmul.mubr.bf16.gmra.mrb[0].mxu0 %v6251
        %v6618 = vpop.f32.mrb[0].mxu0
        %v6619 = vadd.f32 %v6138, %v6618
        %v6620 = vpop.f32.mrb[0].mxu0
        %v6621 = vadd.f32 %v6138, %v6620
        %v6622 = vpop.f32.mrb[0].mxu0
        %v6623 = vadd.f32 %v6143, %v6622
        %v6624 = vpop.f32.mrb[0].mxu0
        %v6625 = vadd.f32 %v6143, %v6624
        %6626 = vmatprep.mubr.bf16.mxu0 0
        %6627 = vmatmul.mubr.bf16.gmra.mrb[0].mxu0 %v6252
        %v6628 = vpop.f32.mrb[0].mxu0
        %v6629 = vadd.f32 %v6148, %v6628
        %v6630 = vpop.f32.mrb[0].mxu0
        %v6631 = vadd.f32 %v6148, %v6630
        %v6632 = vpop.f32.mrb[0].mxu0
        %v6633 = vadd.f32 %v6153, %v6632
        %v6634 = vpop.f32.mrb[0].mxu0
        %v6635 = vadd.f32 %v6153, %v6634
        %6636 = vmatprep.mubr.bf16.mxu0 0
        %6637 = vmatmul.mubr.bf16.gmra.mrb[0].mxu0 %v6253
        %v6638 = vpop.f32.mrb[0].mxu0
        %v6639 = vadd.f32 %v6158, %v6638
        %v6640 = vpop.f32.mrb[0].mxu0
        %v6641 = vadd.f32 %v6158, %v6640
        %v6642 = vpop.f32.mrb[0].mxu0
        %v6643 = vadd.f32 %v6163, %v6642
        %v6644 = vpop.f32.mrb[0].mxu0
        %v6645 = vadd.f32 %v6163, %v6644
        %6646 = vmatprep.mubr.bf16.mxu0 0
        %6647 = vmatmul.mubr.bf16.gmra.mrb[0].mxu0 %v6254
        %v6648 = vpop.f32.mrb[0].mxu0
        %v6649 = vadd.f32 %v6168, %v6648
        %v6650 = vpop.f32.mrb[0].mxu0
        %v6651 = vadd.f32 %v6168, %v6650
        %v6652 = vpop.f32.mrb[0].mxu0
        %v6653 = vadd.f32 %v6173, %v6652
        %v6654 = vpop.f32.mrb[0].mxu0
        %v6655 = vadd.f32 %v6173, %v6654
        %6656 = vdwg.mxu0
        %6657 = vmatprep.subr.bf16.mxu0 %v5924
        %6658 = vmatpush1.bf16.msra.mxu0 %v5923
        %6659 = vmatprep.subr.bf16.mxu0 %v5932
        %6660 = vmatpush1.bf16.msra.mxu0 %v5931
        %6661 = vmatprep.subr.bf16.mxu0 %v5940
        %6662 = vmatpush1.bf16.msra.mxu0 %v5939
        %6663 = vmatprep.subr.bf16.mxu0 %v5948
        %6664 = vmatpush1.bf16.msra.mxu0 %v5947
        %6665 = vmatprep.subr.bf16.mxu0 %v5956
        %6666 = vmatpush1.bf16.msra.mxu0 %v5955
        %6667 = vmatprep.subr.bf16.mxu0 %v5964
        %6668 = vmatpush1.bf16.msra.mxu0 %v5963
        %6669 = vmatprep.subr.bf16.mxu0 %v5972
        %6670 = vmatpush1.bf16.msra.mxu0 %v5971
        %6671 = vmatprep.subr.bf16.mxu0 %v5980
        %6672 = vmatpush1.bf16.msra.mxu0 %v5979
        %6673 = vmatprep.subr.bf16.mxu0 0
        %6674 = vmatpush1.bf16.msra.mxu0 0
        %6675 = vmatprep.subr.bf16.mxu0 0
        %6676 = vmatpush1.bf16.msra.mxu0 0
        %6677 = vmatprep.subr.bf16.mxu0 0
        %6678 = vmatpush1.bf16.msra.mxu0 0
        %6679 = vmatprep.subr.bf16.mxu0 0
        %6680 = vmatpush1.bf16.msra.mxu0 0
        %6681 = vmatprep.subr.bf16.mxu0 0
        %6682 = vmatpush1.bf16.msra.mxu0 0
        %6683 = vmatprep.subr.bf16.mxu0 0
        %6684 = vmatpush1.bf16.msra.mxu0 0
        %6685 = vmatprep.subr.bf16.mxu0 0
        %6686 = vmatpush1.bf16.msra.mxu0 0
        %6687 = vmatprep.subr.bf16.mxu0 0
        %6688 = vmatpush1.bf16.msra.mxu0 0
        %6689 = vmatprep.mubr.bf16.mxu0 0
        %6690 = vmatmul.mubr.bf16.gmra.mrb[0].mxu0 %v6239
        %v6691 = vpop.f32.mrb[0].mxu0
        %v6692 = vadd.f32 %v6018, %v6691
        %v6693 = vpop.f32.mrb[0].mxu0
        %v6694 = vadd.f32 %v6018, %v6693
        %v6695 = vpop.f32.mrb[0].mxu0
        %v6696 = vadd.f32 %v6023, %v6695
        %v6697 = vpop.f32.mrb[0].mxu0
        %v6698 = vadd.f32 %v6023, %v6697
        %6699 = vmatprep.mubr.bf16.mxu0 0
        %6700 = vmatmul.mubr.bf16.gmra.mrb[0].mxu0 %v6240
        %v6701 = vpop.f32.mrb[0].mxu0
        %v6702 = vadd.f32 %v6028, %v6701
        %v6703 = vpop.f32.mrb[0].mxu0
        %v6704 = vadd.f32 %v6028, %v6703
        %v6705 = vpop.f32.mrb[0].mxu0
        %v6706 = vadd.f32 %v6033, %v6705
        %v6707 = vpop.f32.mrb[0].mxu0
        %v6708 = vadd.f32 %v6033, %v6707
        %6709 = vmatprep.mubr.bf16.mxu0 0
        %6710 = vmatmul.mubr.bf16.gmra.mrb[0].mxu0 %v6241
        %v6711 = vpop.f32.mrb[0].mxu0
        %v6712 = vadd.f32 %v6038, %v6711
        %v6713 = vpop.f32.mrb[0].mxu0
        %v6714 = vadd.f32 %v6038, %v6713
        %v6715 = vpop.f32.mrb[0].mxu0
        %v6716 = vadd.f32 %v6043, %v6715
        %v6717 = vpop.f32.mrb[0].mxu0
        %v6718 = vadd.f32 %v6043, %v6717
        %6719 = vmatprep.mubr.bf16.mxu0 0
        %6720 = vmatmul.mubr.bf16.gmra.mrb[0].mxu0 %v6242
        %v6721 = vpop.f32.mrb[0].mxu0
        %v6722 = vadd.f32 %v6048, %v6721
        %v6723 = vpop.f32.mrb[0].mxu0
        %v6724 = vadd.f32 %v6048, %v6723
        %v6725 = vpop.f32.mrb[0].mxu0
        %v6726 = vadd.f32 %v6053, %v6725
        %v6727 = vpop.f32.mrb[0].mxu0
        %v6728 = vadd.f32 %v6053, %v6727
        %6729 = vmatprep.mubr.bf16.mxu0 0
        %6730 = vmatmul.mubr.bf16.gmra.mrb[0].mxu0 %v6243
        %v6731 = vpop.f32.mrb[0].mxu0
        %v6732 = vadd.f32 %v6058, %v6731
        %v6733 = vpop.f32.mrb[0].mxu0
        %v6734 = vadd.f32 %v6058, %v6733
        %v6735 = vpop.f32.mrb[0].mxu0
        %v6736 = vadd.f32 %v6063, %v6735
        %v6737 = vpop.f32.mrb[0].mxu0
        %v6738 = vadd.f32 %v6063, %v6737
        %6739 = vmatprep.mubr.bf16.mxu0 0
        %6740 = vmatmul.mubr.bf16.gmra.mrb[0].mxu0 %v6244
        %v6741 = vpop.f32.mrb[0].mxu0
        %v6742 = vadd.f32 %v6068, %v6741
        %v6743 = vpop.f32.mrb[0].mxu0
        %v6744 = vadd.f32 %v6068, %v6743
        %v6745 = vpop.f32.mrb[0].mxu0
        %v6746 = vadd.f32 %v6073, %v6745
        %v6747 = vpop.f32.mrb[0].mxu0
        %v6748 = vadd.f32 %v6073, %v6747
        %6749 = vmatprep.mubr.bf16.mxu0 0
        %6750 = vmatmul.mubr.bf16.gmra.mrb[0].mxu0 %v6245
        %v6751 = vpop.f32.mrb[0].mxu0
        %v6752 = vadd.f32 %v6078, %v6751
        %v6753 = vpop.f32.mrb[0].mxu0
        %v6754 = vadd.f32 %v6078, %v6753
        %v6755 = vpop.f32.mrb[0].mxu0
        %v6756 = vadd.f32 %v6083, %v6755
        %v6757 = vpop.f32.mrb[0].mxu0
        %v6758 = vadd.f32 %v6083, %v6757
        %6759 = vmatprep.mubr.bf16.mxu0 0
        %6760 = vmatmul.mubr.bf16.gmra.mrb[0].mxu0 %v6246
        %v6761 = vpop.f32.mrb[0].mxu0
        %v6762 = vadd.f32 %v6088, %v6761
        %v6763 = vpop.f32.mrb[0].mxu0
        %v6764 = vadd.f32 %v6088, %v6763
        %v6765 = vpop.f32.mrb[0].mxu0
        %v6766 = vadd.f32 %v6093, %v6765
        %v6767 = vpop.f32.mrb[0].mxu0
        %v6768 = vadd.f32 %v6093, %v6767
        %6769 = vmatprep.mubr.bf16.mxu0 0
        %6770 = vmatmul.mubr.bf16.gmra.mrb[0].mxu0 %v6247
        %v6771 = vpop.f32.mrb[0].mxu0
        %v6772 = vadd.f32 %v6098, %v6771
        %v6773 = vpop.f32.mrb[0].mxu0
        %v6774 = vadd.f32 %v6098, %v6773
        %v6775 = vpop.f32.mrb[0].mxu0
        %v6776 = vadd.f32 %v6103, %v6775
        %v6777 = vpop.f32.mrb[0].mxu0
        %v6778 = vadd.f32 %v6103, %v6777
        %6779 = vmatprep.mubr.bf16.mxu0 0
        %6780 = vmatmul.mubr.bf16.gmra.mrb[0].mxu0 %v6248
        %v6781 = vpop.f32.mrb[0].mxu0
        %v6782 = vadd.f32 %v6108, %v6781
        %v6783 = vpop.f32.mrb[0].mxu0
        %v6784 = vadd.f32 %v6108, %v6783
        %v6785 = vpop.f32.mrb[0].mxu0
        %v6786 = vadd.f32 %v6113, %v6785
        %v6787 = vpop.f32.mrb[0].mxu0
        %v6788 = vadd.f32 %v6113, %v6787
        %6789 = vmatprep.mubr.bf16.mxu0 0
        %6790 = vmatmul.mubr.bf16.gmra.mrb[0].mxu0 %v6249
        %v6791 = vpop.f32.mrb[0].mxu0
        %v6792 = vadd.f32 %v6118, %v6791
        %v6793 = vpop.f32.mrb[0].mxu0
        %v6794 = vadd.f32 %v6118, %v6793
        %v6795 = vpop.f32.mrb[0].mxu0
        %v6796 = vadd.f32 %v6123, %v6795
        %v6797 = vpop.f32.mrb[0].mxu0
        %v6798 = vadd.f32 %v6123, %v6797
        %6799 = vmatprep.mubr.bf16.mxu0 0
        %6800 = vmatmul.mubr.bf16.gmra.mrb[0].mxu0 %v6250
        %v6801 = vpop.f32.mrb[0].mxu0
        %v6802 = vadd.f32 %v6128, %v6801
        %v6803 = vpop.f32.mrb[0].mxu0
        %v6804 = vadd.f32 %v6128, %v6803
        %v6805 = vpop.f32.mrb[0].mxu0
        %v6806 = vadd.f32 %v6133, %v6805
        %v6807 = vpop.f32.mrb[0].mxu0
        %v6808 = vadd.f32 %v6133, %v6807
        %6809 = vmatprep.mubr.bf16.mxu0 0
        %6810 = vmatmul.mubr.bf16.gmra.mrb[0].mxu0 %v6251
        %v6811 = vpop.f32.mrb[0].mxu0
        %v6812 = vadd.f32 %v6138, %v6811
        %v6813 = vpop.f32.mrb[0].mxu0
        %v6814 = vadd.f32 %v6138, %v6813
        %v6815 = vpop.f32.mrb[0].mxu0
        %v6816 = vadd.f32 %v6143, %v6815
        %v6817 = vpop.f32.mrb[0].mxu0
        %v6818 = vadd.f32 %v6143, %v6817
        %6819 = vmatprep.mubr.bf16.mxu0 0
        %6820 = vmatmul.mubr.bf16.gmra.mrb[0].mxu0 %v6252
        %v6821 = vpop.f32.mrb[0].mxu0
        %v6822 = vadd.f32 %v6148, %v6821
        %v6823 = vpop.f32.mrb[0].mxu0
        %v6824 = vadd.f32 %v6148, %v6823
        %v6825 = vpop.f32.mrb[0].mxu0
        %v6826 = vadd.f32 %v6153, %v6825
        %v6827 = vpop.f32.mrb[0].mxu0
        %v6828 = vadd.f32 %v6153, %v6827
        %6829 = vmatprep.mubr.bf16.mxu0 0
        %6830 = vmatmul.mubr.bf16.gmra.mrb[0].mxu0 %v6253
        %v6831 = vpop.f32.mrb[0].mxu0
        %v6832 = vadd.f32 %v6158, %v6831
        %v6833 = vpop.f32.mrb[0].mxu0
        %v6834 = vadd.f32 %v6158, %v6833
        %v6835 = vpop.f32.mrb[0].mxu0
        %v6836 = vadd.f32 %v6163, %v6835
        %v6837 = vpop.f32.mrb[0].mxu0
        %v6838 = vadd.f32 %v6163, %v6837
        %6839 = vmatprep.mubr.bf16.mxu0 0
        %6840 = vmatmul.mubr.bf16.gmra.mrb[0].mxu0 %v6254
        %v6841 = vpop.f32.mrb[0].mxu0
        %v6842 = vadd.f32 %v6168, %v6841
        %v6843 = vpop.f32.mrb[0].mxu0
        %v6844 = vadd.f32 %v6168, %v6843
        %v6845 = vpop.f32.mrb[0].mxu0
        %v6846 = vadd.f32 %v6173, %v6845
        %v6847 = vpop.f32.mrb[0].mxu0
        %v6848 = vadd.f32 %v6173, %v6847
        %6849 = vdwg.mxu0
        %6850 = vmatprep.subr.bf16.mxu0 %v5926
        %6851 = vmatpush1.bf16.msra.mxu0 %v5925
        %6852 = vmatprep.subr.bf16.mxu0 %v5934
        %6853 = vmatpush1.bf16.msra.mxu0 %v5933
        %6854 = vmatprep.subr.bf16.mxu0 %v5942
        %6855 = vmatpush1.bf16.msra.mxu0 %v5941
        %6856 = vmatprep.subr.bf16.mxu0 %v5950
        %6857 = vmatpush1.bf16.msra.mxu0 %v5949
        %6858 = vmatprep.subr.bf16.mxu0 %v5958
        %6859 = vmatpush1.bf16.msra.mxu0 %v5957
        %6860 = vmatprep.subr.bf16.mxu0 %v5966
        %6861 = vmatpush1.bf16.msra.mxu0 %v5965
        %6862 = vmatprep.subr.bf16.mxu0 %v5974
        %6863 = vmatpush1.bf16.msra.mxu0 %v5973
        %6864 = vmatprep.subr.bf16.mxu0 %v5982
        %6865 = vmatpush1.bf16.msra.mxu0 %v5981
        %6866 = vmatprep.subr.bf16.mxu0 0
        %6867 = vmatpush1.bf16.msra.mxu0 0
        %6868 = vmatprep.subr.bf16.mxu0 0
        %6869 = vmatpush1.bf16.msra.mxu0 0
        %6870 = vmatprep.subr.bf16.mxu0 0
        %6871 = vmatpush1.bf16.msra.mxu0 0
        %6872 = vmatprep.subr.bf16.mxu0 0
        %6873 = vmatpush1.bf16.msra.mxu0 0
        %6874 = vmatprep.subr.bf16.mxu0 0
        %6875 = vmatpush1.bf16.msra.mxu0 0
        %6876 = vmatprep.subr.bf16.mxu0 0
        %6877 = vmatpush1.bf16.msra.mxu0 0
        %6878 = vmatprep.subr.bf16.mxu0 0
        %6879 = vmatpush1.bf16.msra.mxu0 0
        %6880 = vmatprep.subr.bf16.mxu0 0
        %6881 = vmatpush1.bf16.msra.mxu0 0
        %6882 = vmatprep.mubr.bf16.mxu0 0
        %6883 = vmatmul.mubr.bf16.gmra.mrb[0].mxu0 %v6239
        %v6884 = vpop.f32.mrb[0].mxu0
        %v6885 = vadd.f32 %v6018, %v6884
        %v6886 = vpop.f32.mrb[0].mxu0
        %v6887 = vadd.f32 %v6018, %v6886
        %v6888 = vpop.f32.mrb[0].mxu0
        %v6889 = vadd.f32 %v6023, %v6888
        %v6890 = vpop.f32.mrb[0].mxu0
        %v6891 = vadd.f32 %v6023, %v6890
        %6892 = vmatprep.mubr.bf16.mxu0 0
        %6893 = vmatmul.mubr.bf16.gmra.mrb[0].mxu0 %v6240
        %v6894 = vpop.f32.mrb[0].mxu0
        %v6895 = vadd.f32 %v6028, %v6894
        %v6896 = vpop.f32.mrb[0].mxu0
        %v6897 = vadd.f32 %v6028, %v6896
        %v6898 = vpop.f32.mrb[0].mxu0
        %v6899 = vadd.f32 %v6033, %v6898
        %v6900 = vpop.f32.mrb[0].mxu0
        %v6901 = vadd.f32 %v6033, %v6900
        %6902 = vmatprep.mubr.bf16.mxu0 0
        %6903 = vmatmul.mubr.bf16.gmra.mrb[0].mxu0 %v6241
        %v6904 = vpop.f32.mrb[0].mxu0
        %v6905 = vadd.f32 %v6038, %v6904
        %v6906 = vpop.f32.mrb[0].mxu0
        %v6907 = vadd.f32 %v6038, %v6906
        %v6908 = vpop.f32.mrb[0].mxu0
        %v6909 = vadd.f32 %v6043, %v6908
        %v6910 = vpop.f32.mrb[0].mxu0
        %v6911 = vadd.f32 %v6043, %v6910
        %6912 = vmatprep.mubr.bf16.mxu0 0
        %6913 = vmatmul.mubr.bf16.gmra.mrb[0].mxu0 %v6242
        %v6914 = vpop.f32.mrb[0].mxu0
        %v6915 = vadd.f32 %v6048, %v6914
        %v6916 = vpop.f32.mrb[0].mxu0
        %v6917 = vadd.f32 %v6048, %v6916
        %v6918 = vpop.f32.mrb[0].mxu0
        %v6919 = vadd.f32 %v6053, %v6918
        %v6920 = vpop.f32.mrb[0].mxu0
        %v6921 = vadd.f32 %v6053, %v6920
        %6922 = vmatprep.mubr.bf16.mxu0 0
        %6923 = vmatmul.mubr.bf16.gmra.mrb[0].mxu0 %v6243
        %v6924 = vpop.f32.mrb[0].mxu0
        %v6925 = vadd.f32 %v6058, %v6924
        %v6926 = vpop.f32.mrb[0].mxu0
        %v6927 = vadd.f32 %v6058, %v6926
        %v6928 = vpop.f32.mrb[0].mxu0
        %v6929 = vadd.f32 %v6063, %v6928
        %v6930 = vpop.f32.mrb[0].mxu0
        %v6931 = vadd.f32 %v6063, %v6930
        %6932 = vmatprep.mubr.bf16.mxu0 0
        %6933 = vmatmul.mubr.bf16.gmra.mrb[0].mxu0 %v6244
        %v6934 = vpop.f32.mrb[0].mxu0
        %v6935 = vadd.f32 %v6068, %v6934
        %v6936 = vpop.f32.mrb[0].mxu0
        %v6937 = vadd.f32 %v6068, %v6936
        %v6938 = vpop.f32.mrb[0].mxu0
        %v6939 = vadd.f32 %v6073, %v6938
        %v6940 = vpop.f32.mrb[0].mxu0
        %v6941 = vadd.f32 %v6073, %v6940
        %6942 = vmatprep.mubr.bf16.mxu0 0
        %6943 = vmatmul.mubr.bf16.gmra.mrb[0].mxu0 %v6245
        %v6944 = vpop.f32.mrb[0].mxu0
        %v6945 = vadd.f32 %v6078, %v6944
        %v6946 = vpop.f32.mrb[0].mxu0
        %v6947 = vadd.f32 %v6078, %v6946
        %v6948 = vpop.f32.mrb[0].mxu0
        %v6949 = vadd.f32 %v6083, %v6948
        %v6950 = vpop.f32.mrb[0].mxu0
        %v6951 = vadd.f32 %v6083, %v6950
        %6952 = vmatprep.mubr.bf16.mxu0 0
        %6953 = vmatmul.mubr.bf16.gmra.mrb[0].mxu0 %v6246
        %v6954 = vpop.f32.mrb[0].mxu0
        %v6955 = vadd.f32 %v6088, %v6954
        %v6956 = vpop.f32.mrb[0].mxu0
        %v6957 = vadd.f32 %v6088, %v6956
        %v6958 = vpop.f32.mrb[0].mxu0
        %v6959 = vadd.f32 %v6093, %v6958
        %v6960 = vpop.f32.mrb[0].mxu0
        %v6961 = vadd.f32 %v6093, %v6960
        %6962 = vmatprep.mubr.bf16.mxu0 0
        %6963 = vmatmul.mubr.bf16.gmra.mrb[0].mxu0 %v6247
        %v6964 = vpop.f32.mrb[0].mxu0
        %v6965 = vadd.f32 %v6098, %v6964
        %v6966 = vpop.f32.mrb[0].mxu0
        %v6967 = vadd.f32 %v6098, %v6966
        %v6968 = vpop.f32.mrb[0].mxu0
        %v6969 = vadd.f32 %v6103, %v6968
        %v6970 = vpop.f32.mrb[0].mxu0
        %v6971 = vadd.f32 %v6103, %v6970
        %6972 = vmatprep.mubr.bf16.mxu0 0
        %6973 = vmatmul.mubr.bf16.gmra.mrb[0].mxu0 %v6248
        %v6974 = vpop.f32.mrb[0].mxu0
        %v6975 = vadd.f32 %v6108, %v6974
        %v6976 = vpop.f32.mrb[0].mxu0
        %v6977 = vadd.f32 %v6108, %v6976
        %v6978 = vpop.f32.mrb[0].mxu0
        %v6979 = vadd.f32 %v6113, %v6978
        %v6980 = vpop.f32.mrb[0].mxu0
        %v6981 = vadd.f32 %v6113, %v6980
        %6982 = vmatprep.mubr.bf16.mxu0 0
        %6983 = vmatmul.mubr.bf16.gmra.mrb[0].mxu0 %v6249
        %v6984 = vpop.f32.mrb[0].mxu0
        %v6985 = vadd.f32 %v6118, %v6984
        %v6986 = vpop.f32.mrb[0].mxu0
        %v6987 = vadd.f32 %v6118, %v6986
        %v6988 = vpop.f32.mrb[0].mxu0
        %v6989 = vadd.f32 %v6123, %v6988
        %v6990 = vpop.f32.mrb[0].mxu0
        %v6991 = vadd.f32 %v6123, %v6990
        %6992 = vmatprep.mubr.bf16.mxu0 0
        %6993 = vmatmul.mubr.bf16.gmra.mrb[0].mxu0 %v6250
        %v6994 = vpop.f32.mrb[0].mxu0
        %v6995 = vadd.f32 %v6128, %v6994
        %v6996 = vpop.f32.mrb[0].mxu0
        %v6997 = vadd.f32 %v6128, %v6996
        %v6998 = vpop.f32.mrb[0].mxu0
        %v6999 = vadd.f32 %v6133, %v6998
        %v7000 = vpop.f32.mrb[0].mxu0
        %v7001 = vadd.f32 %v6133, %v7000
        %7002 = vmatprep.mubr.bf16.mxu0 0
        %7003 = vmatmul.mubr.bf16.gmra.mrb[0].mxu0 %v6251
        %v7004 = vpop.f32.mrb[0].mxu0
        %v7005 = vadd.f32 %v6138, %v7004
        %v7006 = vpop.f32.mrb[0].mxu0
        %v7007 = vadd.f32 %v6138, %v7006
        %v7008 = vpop.f32.mrb[0].mxu0
        %v7009 = vadd.f32 %v6143, %v7008
        %v7010 = vpop.f32.mrb[0].mxu0
        %v7011 = vadd.f32 %v6143, %v7010
        %7012 = vmatprep.mubr.bf16.mxu0 0
        %7013 = vmatmul.mubr.bf16.gmra.mrb[0].mxu0 %v6252
        %v7014 = vpop.f32.mrb[0].mxu0
        %v7015 = vadd.f32 %v6148, %v7014
        %v7016 = vpop.f32.mrb[0].mxu0
        %v7017 = vadd.f32 %v6148, %v7016
        %v7018 = vpop.f32.mrb[0].mxu0
        %v7019 = vadd.f32 %v6153, %v7018
        %v7020 = vpop.f32.mrb[0].mxu0
        %v7021 = vadd.f32 %v6153, %v7020
        %7022 = vmatprep.mubr.bf16.mxu0 0
        %7023 = vmatmul.mubr.bf16.gmra.mrb[0].mxu0 %v6253
        %v7024 = vpop.f32.mrb[0].mxu0
        %v7025 = vadd.f32 %v6158, %v7024
        %v7026 = vpop.f32.mrb[0].mxu0
        %v7027 = vadd.f32 %v6158, %v7026
        %v7028 = vpop.f32.mrb[0].mxu0
        %v7029 = vadd.f32 %v6163, %v7028
        %v7030 = vpop.f32.mrb[0].mxu0
        %v7031 = vadd.f32 %v6163, %v7030
        %7032 = vmatprep.mubr.bf16.mxu0 0
        %7033 = vmatmul.mubr.bf16.gmra.mrb[0].mxu0 %v6254
        %v7034 = vpop.f32.mrb[0].mxu0
        %v7035 = vadd.f32 %v6168, %v7034
        %v7036 = vpop.f32.mrb[0].mxu0
        %v7037 = vadd.f32 %v6168, %v7036
        %v7038 = vpop.f32.mrb[0].mxu0
        %v7039 = vadd.f32 %v6173, %v7038
        %v7040 = vpop.f32.mrb[0].mxu0
        %v7041 = vadd.f32 %v6173, %v7040
        %7042 = vdwg.mxu0
        %v7043 = vmax.f32 %v6306, 0.0
        %v7044 = vmax.f32 %v6308, 0.0
        %v7045 = vmax.f32 %v6499, 0.0
        %v7046 = vmax.f32 %v6501, 0.0
        %v7047 = vmax.f32 %v6692, 0.0
        %v7048 = vmax.f32 %v6694, 0.0
        %v7049 = vmax.f32 %v6885, 0.0
        %v7050 = vmax.f32 %v6887, 0.0
        %v7051 = vmax.f32 %v6310, 0.0
        %v7052 = vmax.f32 %v6312, 0.0
        %v7053 = vmax.f32 %v6503, 0.0
        %v7054 = vmax.f32 %v6505, 0.0
        %v7055 = vmax.f32 %v6696, 0.0
        %v7056 = vmax.f32 %v6698, 0.0
        %v7057 = vmax.f32 %v6889, 0.0
        %v7058 = vmax.f32 %v6891, 0.0
        %v7059 = vmax.f32 %v6316, 0.0
        %v7060 = vmax.f32 %v6318, 0.0
        %v7061 = vmax.f32 %v6509, 0.0
        %v7062 = vmax.f32 %v6511, 0.0
        %v7063 = vmax.f32 %v6702, 0.0
        %v7064 = vmax.f32 %v6704, 0.0
        %v7065 = vmax.f32 %v6895, 0.0
        %v7066 = vmax.f32 %v6897, 0.0
        %v7067 = vmax.f32 %v6320, 0.0
        %v7068 = vmax.f32 %v6322, 0.0
        %v7069 = vmax.f32 %v6513, 0.0
        %v7070 = vmax.f32 %v6515, 0.0
        %v7071 = vmax.f32 %v6706, 0.0
        %v7072 = vmax.f32 %v6708, 0.0
        %v7073 = vmax.f32 %v6899, 0.0
        %v7074 = vmax.f32 %v6901, 0.0
        %v7075 = vmax.f32 %v6326, 0.0
        %v7076 = vmax.f32 %v6328, 0.0
        %v7077 = vmax.f32 %v6519, 0.0
        %v7078 = vmax.f32 %v6521, 0.0
        %v7079 = vmax.f32 %v6712, 0.0
        %v7080 = vmax.f32 %v6714, 0.0
        %v7081 = vmax.f32 %v6905, 0.0
        %v7082 = vmax.f32 %v6907, 0.0
        %v7083 = vmax.f32 %v6330, 0.0
        %v7084 = vmax.f32 %v6332, 0.0
        %v7085 = vmax.f32 %v6523, 0.0
        %v7086 = vmax.f32 %v6525, 0.0
        %v7087 = vmax.f32 %v6716, 0.0
        %v7088 = vmax.f32 %v6718, 0.0
        %v7089 = vmax.f32 %v6909, 0.0
        %v7090 = vmax.f32 %v6911, 0.0
        %v7091 = vmax.f32 %v6336, 0.0
        %v7092 = vmax.f32 %v6338, 0.0
        %v7093 = vmax.f32 %v6529, 0.0
        %v7094 = vmax.f32 %v6531, 0.0
        %v7095 = vmax.f32 %v6722, 0.0
        %v7096 = vmax.f32 %v6724, 0.0
        %v7097 = vmax.f32 %v6915, 0.0
        %v7098 = vmax.f32 %v6917, 0.0
        %v7099 = vmax.f32 %v6340, 0.0
        %v7100 = vmax.f32 %v6342, 0.0
        %v7101 = vmax.f32 %v6533, 0.0
        %v7102 = vmax.f32 %v6535, 0.0
        %v7103 = vmax.f32 %v6726, 0.0
        %v7104 = vmax.f32 %v6728, 0.0
        %v7105 = vmax.f32 %v6919, 0.0
        %v7106 = vmax.f32 %v6921, 0.0
        %v7107 = vmax.f32 %v6346, 0.0
        %v7108 = vmax.f32 %v6348, 0.0
        %v7109 = vmax.f32 %v6539, 0.0
        %v7110 = vmax.f32 %v6541, 0.0
        %v7111 = vmax.f32 %v6732, 0.0
        %v7112 = vmax.f32 %v6734, 0.0
        %v7113 = vmax.f32 %v6925, 0.0
        %v7114 = vmax.f32 %v6927, 0.0
        %v7115 = vmax.f32 %v6350, 0.0
        %v7116 = vmax.f32 %v6352, 0.0
        %v7117 = vmax.f32 %v6543, 0.0
        %v7118 = vmax.f32 %v6545, 0.0
        %v7119 = vmax.f32 %v6736, 0.0
        %v7120 = vmax.f32 %v6738, 0.0
        %v7121 = vmax.f32 %v6929, 0.0
        %v7122 = vmax.f32 %v6931, 0.0
        %v7123 = vmax.f32 %v6356, 0.0
        %v7124 = vmax.f32 %v6358, 0.0
        %v7125 = vmax.f32 %v6549, 0.0
        %v7126 = vmax.f32 %v6551, 0.0
        %v7127 = vmax.f32 %v6742, 0.0
        %v7128 = vmax.f32 %v6744, 0.0
        %v7129 = vmax.f32 %v6935, 0.0
        %v7130 = vmax.f32 %v6937, 0.0
        %v7131 = vmax.f32 %v6360, 0.0
        %v7132 = vmax.f32 %v6362, 0.0
        %v7133 = vmax.f32 %v6553, 0.0
        %v7134 = vmax.f32 %v6555, 0.0
        %v7135 = vmax.f32 %v6746, 0.0
        %v7136 = vmax.f32 %v6748, 0.0
        %v7137 = vmax.f32 %v6939, 0.0
        %v7138 = vmax.f32 %v6941, 0.0
        %v7139 = vmax.f32 %v6366, 0.0
        %v7140 = vmax.f32 %v6368, 0.0
        %v7141 = vmax.f32 %v6559, 0.0
        %v7142 = vmax.f32 %v6561, 0.0
        %v7143 = vmax.f32 %v6752, 0.0
        %v7144 = vmax.f32 %v6754, 0.0
        %v7145 = vmax.f32 %v6945, 0.0
        %v7146 = vmax.f32 %v6947, 0.0
        %v7147 = vmax.f32 %v6370, 0.0
        %v7148 = vmax.f32 %v6372, 0.0
        %v7149 = vmax.f32 %v6563, 0.0
        %v7150 = vmax.f32 %v6565, 0.0
        %v7151 = vmax.f32 %v6756, 0.0
        %v7152 = vmax.f32 %v6758, 0.0
        %v7153 = vmax.f32 %v6949, 0.0
        %v7154 = vmax.f32 %v6951, 0.0
        %v7155 = vmax.f32 %v6376, 0.0
        %v7156 = vmax.f32 %v6378, 0.0
        %v7157 = vmax.f32 %v6569, 0.0
        %v7158 = vmax.f32 %v6571, 0.0
        %v7159 = vmax.f32 %v6762, 0.0
        %v7160 = vmax.f32 %v6764, 0.0
        %v7161 = vmax.f32 %v6955, 0.0
        %v7162 = vmax.f32 %v6957, 0.0
        %v7163 = vmax.f32 %v6380, 0.0
        %v7164 = vmax.f32 %v6382, 0.0
        %v7165 = vmax.f32 %v6573, 0.0
        %v7166 = vmax.f32 %v6575, 0.0
        %v7167 = vmax.f32 %v6766, 0.0
        %v7168 = vmax.f32 %v6768, 0.0
        %v7169 = vmax.f32 %v6959, 0.0
        %v7170 = vmax.f32 %v6961, 0.0
        %v7171 = vmax.f32 %v6386, 0.0
        %v7172 = vmax.f32 %v6388, 0.0
        %v7173 = vmax.f32 %v6579, 0.0
        %v7174 = vmax.f32 %v6581, 0.0
        %v7175 = vmax.f32 %v6772, 0.0
        %v7176 = vmax.f32 %v6774, 0.0
        %v7177 = vmax.f32 %v6965, 0.0
        %v7178 = vmax.f32 %v6967, 0.0
        %v7179 = vmax.f32 %v6390, 0.0
        %v7180 = vmax.f32 %v6392, 0.0
        %v7181 = vmax.f32 %v6583, 0.0
        %v7182 = vmax.f32 %v6585, 0.0
        %v7183 = vmax.f32 %v6776, 0.0
        %v7184 = vmax.f32 %v6778, 0.0
        %v7185 = vmax.f32 %v6969, 0.0
        %v7186 = vmax.f32 %v6971, 0.0
        %v7187 = vmax.f32 %v6396, 0.0
        %v7188 = vmax.f32 %v6398, 0.0
        %v7189 = vmax.f32 %v6589, 0.0
        %v7190 = vmax.f32 %v6591, 0.0
        %v7191 = vmax.f32 %v6782, 0.0
        %v7192 = vmax.f32 %v6784, 0.0
        %v7193 = vmax.f32 %v6975, 0.0
        %v7194 = vmax.f32 %v6977, 0.0
        %v7195 = vmax.f32 %v6400, 0.0
        %v7196 = vmax.f32 %v6402, 0.0
        %v7197 = vmax.f32 %v6593, 0.0
        %v7198 = vmax.f32 %v6595, 0.0
        %v7199 = vmax.f32 %v6786, 0.0
        %v7200 = vmax.f32 %v6788, 0.0
        %v7201 = vmax.f32 %v6979, 0.0
        %v7202 = vmax.f32 %v6981, 0.0
        %v7203 = vmax.f32 %v6406, 0.0
        %v7204 = vmax.f32 %v6408, 0.0
        %v7205 = vmax.f32 %v6599, 0.0
        %v7206 = vmax.f32 %v6601, 0.0
        %v7207 = vmax.f32 %v6792, 0.0
        %v7208 = vmax.f32 %v6794, 0.0
        %v7209 = vmax.f32 %v6985, 0.0
        %v7210 = vmax.f32 %v6987, 0.0
        %v7211 = vmax.f32 %v6410, 0.0
        %v7212 = vmax.f32 %v6412, 0.0
        %v7213 = vmax.f32 %v6603, 0.0
        %v7214 = vmax.f32 %v6605, 0.0
        %v7215 = vmax.f32 %v6796, 0.0
        %v7216 = vmax.f32 %v6798, 0.0
        %v7217 = vmax.f32 %v6989, 0.0
        %v7218 = vmax.f32 %v6991, 0.0
        %v7219 = vmax.f32 %v6416, 0.0
        %v7220 = vmax.f32 %v6418, 0.0
        %v7221 = vmax.f32 %v6609, 0.0
        %v7222 = vmax.f32 %v6611, 0.0
        %v7223 = vmax.f32 %v6802, 0.0
        %v7224 = vmax.f32 %v6804, 0.0
        %v7225 = vmax.f32 %v6995, 0.0
        %v7226 = vmax.f32 %v6997, 0.0
        %v7227 = vmax.f32 %v6420, 0.0
        %v7228 = vmax.f32 %v6422, 0.0
        %v7229 = vmax.f32 %v6613, 0.0
        %v7230 = vmax.f32 %v6615, 0.0
        %v7231 = vmax.f32 %v6806, 0.0
        %v7232 = vmax.f32 %v6808, 0.0
        %v7233 = vmax.f32 %v6999, 0.0
        %v7234 = vmax.f32 %v7001, 0.0
        %v7235 = vmax.f32 %v6426, 0.0
        %v7236 = vmax.f32 %v6428, 0.0
        %v7237 = vmax.f32 %v6619, 0.0
        %v7238 = vmax.f32 %v6621, 0.0
        %v7239 = vmax.f32 %v6812, 0.0
        %v7240 = vmax.f32 %v6814, 0.0
        %v7241 = vmax.f32 %v7005, 0.0
        %v7242 = vmax.f32 %v7007, 0.0
        %v7243 = vmax.f32 %v6430, 0.0
        %v7244 = vmax.f32 %v6432, 0.0
        %v7245 = vmax.f32 %v6623, 0.0
        %v7246 = vmax.f32 %v6625, 0.0
        %v7247 = vmax.f32 %v6816, 0.0
        %v7248 = vmax.f32 %v6818, 0.0
        %v7249 = vmax.f32 %v7009, 0.0
        %v7250 = vmax.f32 %v7011, 0.0
        %v7251 = vmax.f32 %v6436, 0.0
        %v7252 = vmax.f32 %v6438, 0.0
        %v7253 = vmax.f32 %v6629, 0.0
        %v7254 = vmax.f32 %v6631, 0.0
        %v7255 = vmax.f32 %v6822, 0.0
        %v7256 = vmax.f32 %v6824, 0.0
        %v7257 = vmax.f32 %v7015, 0.0
        %v7258 = vmax.f32 %v7017, 0.0
        %v7259 = vmax.f32 %v6440, 0.0
        %v7260 = vmax.f32 %v6442, 0.0
        %v7261 = vmax.f32 %v6633, 0.0
        %v7262 = vmax.f32 %v6635, 0.0
        %v7263 = vmax.f32 %v6826, 0.0
        %v7264 = vmax.f32 %v6828, 0.0
        %v7265 = vmax.f32 %v7019, 0.0
        %v7266 = vmax.f32 %v7021, 0.0
        %v7267 = vmax.f32 %v6446, 0.0
        %v7268 = vmax.f32 %v6448, 0.0
        %v7269 = vmax.f32 %v6639, 0.0
        %v7270 = vmax.f32 %v6641, 0.0
        %v7271 = vmax.f32 %v6832, 0.0
        %v7272 = vmax.f32 %v6834, 0.0
        %v7273 = vmax.f32 %v7025, 0.0
        %v7274 = vmax.f32 %v7027, 0.0
        %v7275 = vmax.f32 %v6450, 0.0
        %v7276 = vmax.f32 %v6452, 0.0
        %v7277 = vmax.f32 %v6643, 0.0
        %v7278 = vmax.f32 %v6645, 0.0
        %v7279 = vmax.f32 %v6836, 0.0
        %v7280 = vmax.f32 %v6838, 0.0
        %v7281 = vmax.f32 %v7029, 0.0
        %v7282 = vmax.f32 %v7031, 0.0
        %v7283 = vmax.f32 %v6456, 0.0
        %v7284 = vmax.f32 %v6458, 0.0
        %v7285 = vmax.f32 %v6649, 0.0
        %v7286 = vmax.f32 %v6651, 0.0
        %v7287 = vmax.f32 %v6842, 0.0
        %v7288 = vmax.f32 %v6844, 0.0
        %v7289 = vmax.f32 %v7035, 0.0
        %v7290 = vmax.f32 %v7037, 0.0
        %v7291 = vmax.f32 %v6460, 0.0
        %v7292 = vmax.f32 %v6462, 0.0
        %v7293 = vmax.f32 %v6653, 0.0
        %v7294 = vmax.f32 %v6655, 0.0
        %v7295 = vmax.f32 %v6846, 0.0
        %v7296 = vmax.f32 %v6848, 0.0
        %v7297 = vmax.f32 %v7039, 0.0
        %v7298 = vmax.f32 %v7041, 0.0
        %v7299 = vld [vmem:[%s9] sm:$0xff]
        %v7300 = vld [vmem:[%s9 + $0x8] sm:$0xff]
        %v7301 = vld [vmem:[%s9 + $0x10] sm:$0xff]
        %v7302 = vld [vmem:[%s9 + $0x18] sm:$0xff]
        %v7303 = vld [vmem:[%s9 + $0x20] sm:$0xff]
        %v7304 = vld [vmem:[%s9 + $0x28] sm:$0xff]
        %v7305 = vld [vmem:[%s9 + $0x30] sm:$0xff]
        %v7306 = vld [vmem:[%s9 + $0x38] sm:$0xff]
        %v7307 = vld [vmem:[%s9 + $0x40] sm:$0xff]
        %v7308 = vld [vmem:[%s9 + $0x48] sm:$0xff]
        %v7309 = vld [vmem:[%s9 + $0x50] sm:$0xff]
        %v7310 = vld [vmem:[%s9 + $0x58] sm:$0xff]
        %v7311 = vld [vmem:[%s9 + $0x60] sm:$0xff]
        %v7312 = vld [vmem:[%s9 + $0x68] sm:$0xff]
        %v7313 = vld [vmem:[%s9 + $0x70] sm:$0xff]
        %v7314 = vld [vmem:[%s9 + $0x78] sm:$0xff]
        %v7315 = vpack.c.bf16 %v7051, %v7043
        %v7316 = vpack.c.bf16 %v7052, %v7044
        %v7317 = vpack.c.bf16 %v7053, %v7045
        %v7318 = vpack.c.bf16 %v7054, %v7046
        %v7319 = vpack.c.bf16 %v7055, %v7047
        %v7320 = vpack.c.bf16 %v7056, %v7048
        %v7321 = vpack.c.bf16 %v7057, %v7049
        %v7322 = vpack.c.bf16 %v7058, %v7050
        %v7323 = vpack.c.bf16 %v7067, %v7059
        %v7324 = vpack.c.bf16 %v7068, %v7060
        %v7325 = vpack.c.bf16 %v7069, %v7061
        %v7326 = vpack.c.bf16 %v7070, %v7062
        %v7327 = vpack.c.bf16 %v7071, %v7063
        %v7328 = vpack.c.bf16 %v7072, %v7064
        %v7329 = vpack.c.bf16 %v7073, %v7065
        %v7330 = vpack.c.bf16 %v7074, %v7066
        %v7331 = vpack.c.bf16 %v7083, %v7075
        %v7332 = vpack.c.bf16 %v7084, %v7076
        %v7333 = vpack.c.bf16 %v7085, %v7077
        %v7334 = vpack.c.bf16 %v7086, %v7078
        %v7335 = vpack.c.bf16 %v7087, %v7079
        %v7336 = vpack.c.bf16 %v7088, %v7080
        %v7337 = vpack.c.bf16 %v7089, %v7081
        %v7338 = vpack.c.bf16 %v7090, %v7082
        %v7339 = vpack.c.bf16 %v7099, %v7091
        %v7340 = vpack.c.bf16 %v7100, %v7092
        %v7341 = vpack.c.bf16 %v7101, %v7093
        %v7342 = vpack.c.bf16 %v7102, %v7094
        %v7343 = vpack.c.bf16 %v7103, %v7095
        %v7344 = vpack.c.bf16 %v7104, %v7096
        %v7345 = vpack.c.bf16 %v7105, %v7097
        %v7346 = vpack.c.bf16 %v7106, %v7098
        %v7347 = vpack.c.bf16 %v7115, %v7107
        %v7348 = vpack.c.bf16 %v7116, %v7108
        %v7349 = vpack.c.bf16 %v7117, %v7109
        %v7350 = vpack.c.bf16 %v7118, %v7110
        %v7351 = vpack.c.bf16 %v7119, %v7111
        %v7352 = vpack.c.bf16 %v7120, %v7112
        %v7353 = vpack.c.bf16 %v7121, %v7113
        %v7354 = vpack.c.bf16 %v7122, %v7114
        %v7355 = vpack.c.bf16 %v7131, %v7123
        %v7356 = vpack.c.bf16 %v7132, %v7124
        %v7357 = vpack.c.bf16 %v7133, %v7125
        %v7358 = vpack.c.bf16 %v7134, %v7126
        %v7359 = vpack.c.bf16 %v7135, %v7127
        %v7360 = vpack.c.bf16 %v7136, %v7128
        %v7361 = vpack.c.bf16 %v7137, %v7129
        %v7362 = vpack.c.bf16 %v7138, %v7130
        %v7363 = vpack.c.bf16 %v7147, %v7139
        %v7364 = vpack.c.bf16 %v7148, %v7140
        %v7365 = vpack.c.bf16 %v7149, %v7141
        %v7366 = vpack.c.bf16 %v7150, %v7142
        %v7367 = vpack.c.bf16 %v7151, %v7143
        %v7368 = vpack.c.bf16 %v7152, %v7144
        %v7369 = vpack.c.bf16 %v7153, %v7145
        %v7370 = vpack.c.bf16 %v7154, %v7146
        %v7371 = vpack.c.bf16 %v7163, %v7155
        %v7372 = vpack.c.bf16 %v7164, %v7156
        %v7373 = vpack.c.bf16 %v7165, %v7157
        %v7374 = vpack.c.bf16 %v7166, %v7158
        %v7375 = vpack.c.bf16 %v7167, %v7159
        %v7376 = vpack.c.bf16 %v7168, %v7160
        %v7377 = vpack.c.bf16 %v7169, %v7161
        %v7378 = vpack.c.bf16 %v7170, %v7162
        %v7379 = vpack.c.bf16 %v7179, %v7171
        %v7380 = vpack.c.bf16 %v7180, %v7172
        %v7381 = vpack.c.bf16 %v7181, %v7173
        %v7382 = vpack.c.bf16 %v7182, %v7174
        %v7383 = vpack.c.bf16 %v7183, %v7175
        %v7384 = vpack.c.bf16 %v7184, %v7176
        %v7385 = vpack.c.bf16 %v7185, %v7177
        %v7386 = vpack.c.bf16 %v7186, %v7178
        %v7387 = vpack.c.bf16 %v7195, %v7187
        %v7388 = vpack.c.bf16 %v7196, %v7188
        %v7389 = vpack.c.bf16 %v7197, %v7189
        %v7390 = vpack.c.bf16 %v7198, %v7190
        %v7391 = vpack.c.bf16 %v7199, %v7191
        %v7392 = vpack.c.bf16 %v7200, %v7192
        %v7393 = vpack.c.bf16 %v7201, %v7193
        %v7394 = vpack.c.bf16 %v7202, %v7194
        %v7395 = vpack.c.bf16 %v7211, %v7203
        %v7396 = vpack.c.bf16 %v7212, %v7204
        %v7397 = vpack.c.bf16 %v7213, %v7205
        %v7398 = vpack.c.bf16 %v7214, %v7206
        %v7399 = vpack.c.bf16 %v7215, %v7207
        %v7400 = vpack.c.bf16 %v7216, %v7208
        %v7401 = vpack.c.bf16 %v7217, %v7209
        %v7402 = vpack.c.bf16 %v7218, %v7210
        %v7403 = vpack.c.bf16 %v7227, %v7219
        %v7404 = vpack.c.bf16 %v7228, %v7220
        %v7405 = vpack.c.bf16 %v7229, %v7221
        %v7406 = vpack.c.bf16 %v7230, %v7222
        %v7407 = vpack.c.bf16 %v7231, %v7223
        %v7408 = vpack.c.bf16 %v7232, %v7224
        %v7409 = vpack.c.bf16 %v7233, %v7225
        %v7410 = vpack.c.bf16 %v7234, %v7226
        %v7411 = vpack.c.bf16 %v7243, %v7235
        %v7412 = vpack.c.bf16 %v7244, %v7236
        %v7413 = vpack.c.bf16 %v7245, %v7237
        %v7414 = vpack.c.bf16 %v7246, %v7238
        %v7415 = vpack.c.bf16 %v7247, %v7239
        %v7416 = vpack.c.bf16 %v7248, %v7240
        %v7417 = vpack.c.bf16 %v7249, %v7241
        %v7418 = vpack.c.bf16 %v7250, %v7242
        %v7419 = vpack.c.bf16 %v7259, %v7251
        %v7420 = vpack.c.bf16 %v7260, %v7252
        %v7421 = vpack.c.bf16 %v7261, %v7253
        %v7422 = vpack.c.bf16 %v7262, %v7254
        %v7423 = vpack.c.bf16 %v7263, %v7255
        %v7424 = vpack.c.bf16 %v7264, %v7256
        %v7425 = vpack.c.bf16 %v7265, %v7257
        %v7426 = vpack.c.bf16 %v7266, %v7258
        %v7427 = vpack.c.bf16 %v7275, %v7267
        %v7428 = vpack.c.bf16 %v7276, %v7268
        %v7429 = vpack.c.bf16 %v7277, %v7269
        %v7430 = vpack.c.bf16 %v7278, %v7270
        %v7431 = vpack.c.bf16 %v7279, %v7271
        %v7432 = vpack.c.bf16 %v7280, %v7272
        %v7433 = vpack.c.bf16 %v7281, %v7273
        %v7434 = vpack.c.bf16 %v7282, %v7274
        %v7435 = vpack.c.bf16 %v7291, %v7283
        %v7436 = vpack.c.bf16 %v7292, %v7284
        %v7437 = vpack.c.bf16 %v7293, %v7285
        %v7438 = vpack.c.bf16 %v7294, %v7286
        %v7439 = vpack.c.bf16 %v7295, %v7287
        %v7440 = vpack.c.bf16 %v7296, %v7288
        %v7441 = vpack.c.bf16 %v7297, %v7289
        %v7442 = vpack.c.bf16 %v7298, %v7290
        %v7443 = vld [vmem:[%s10] sm:$0xff]
        %v7444 = vld [vmem:[%s10 + $0x8] sm:$0xff]
        %v7445 = vld [vmem:[%s10 + $0x10] sm:$0xff]
        %v7446 = vld [vmem:[%s10 + $0x18] sm:$0xff]
        %v7447 = vld [vmem:[%s10 + $0x20] sm:$0xff]
        %v7448 = vld [vmem:[%s10 + $0x28] sm:$0xff]
        %v7449 = vld [vmem:[%s10 + $0x30] sm:$0xff]
        %v7450 = vld [vmem:[%s10 + $0x38] sm:$0xff]
        %v7451 = vld [vmem:[%s10 + $0x40] sm:$0xff]
        %v7452 = vld [vmem:[%s10 + $0x48] sm:$0xff]
        %v7453 = vld [vmem:[%s10 + $0x50] sm:$0xff]
        %v7454 = vld [vmem:[%s10 + $0x58] sm:$0xff]
        %v7455 = vld [vmem:[%s10 + $0x60] sm:$0xff]
        %v7456 = vld [vmem:[%s10 + $0x68] sm:$0xff]
        %v7457 = vld [vmem:[%s10 + $0x70] sm:$0xff]
        %v7458 = vld [vmem:[%s10 + $0x78] sm:$0xff]
        %7460 = vset.pattern.permute.xlu0 0
        %7461 = vperm.xlu0 %7460, %v7443
        %v7462 = vpop.permute.xlu0 %7461
        %7465 = vset.pattern.permute.xlu0 0
        %7466 = vperm.xlu0 %7465, %v7444
        %v7467 = vpop.permute.xlu0 %7466
        %7470 = vset.pattern.permute.xlu0 0
        %7471 = vperm.xlu0 %7470, %v7445
        %v7472 = vpop.permute.xlu0 %7471
        %7475 = vset.pattern.permute.xlu0 0
        %7476 = vperm.xlu0 %7475, %v7446
        %v7477 = vpop.permute.xlu0 %7476
        %7480 = vset.pattern.permute.xlu0 0
        %7481 = vperm.xlu0 %7480, %v7447
        %v7482 = vpop.permute.xlu0 %7481
        %7485 = vset.pattern.permute.xlu0 0
        %7486 = vperm.xlu0 %7485, %v7448
        %v7487 = vpop.permute.xlu0 %7486
        %7490 = vset.pattern.permute.xlu0 0
        %7491 = vperm.xlu0 %7490, %v7449
        %v7492 = vpop.permute.xlu0 %7491
        %7495 = vset.pattern.permute.xlu0 0
        %7496 = vperm.xlu0 %7495, %v7450
        %v7497 = vpop.permute.xlu0 %7496
        %7500 = vset.pattern.permute.xlu0 0
        %7501 = vperm.xlu0 %7500, %v7451
        %v7502 = vpop.permute.xlu0 %7501
        %7505 = vset.pattern.permute.xlu0 0
        %7506 = vperm.xlu0 %7505, %v7452
        %v7507 = vpop.permute.xlu0 %7506
        %7510 = vset.pattern.permute.xlu0 0
        %7511 = vperm.xlu0 %7510, %v7453
        %v7512 = vpop.permute.xlu0 %7511
        %7515 = vset.pattern.permute.xlu0 0
        %7516 = vperm.xlu0 %7515, %v7454
        %v7517 = vpop.permute.xlu0 %7516
        %7520 = vset.pattern.permute.xlu0 0
        %7521 = vperm.xlu0 %7520, %v7455
        %v7522 = vpop.permute.xlu0 %7521
        %7525 = vset.pattern.permute.xlu0 0
        %7526 = vperm.xlu0 %7525, %v7456
        %v7527 = vpop.permute.xlu0 %7526
        %7530 = vset.pattern.permute.xlu0 0
        %7531 = vperm.xlu0 %7530, %v7457
        %v7532 = vpop.permute.xlu0 %7531
        %7535 = vset.pattern.permute.xlu0 0
        %7536 = vperm.xlu0 %7535, %v7458
        %v7537 = vpop.permute.xlu0 %7536
        %v7555 = vunpack.c.l.b16 %v7299
        %v7556 = vunpack.c.h.b16 %v7299
        %v7557 = vunpack.c.l.b16 %v7300
        %v7558 = vunpack.c.h.b16 %v7300
        %v7559 = vunpack.c.l.b16 %v7301
        %v7560 = vunpack.c.h.b16 %v7301
        %v7561 = vunpack.c.l.b16 %v7302
        %v7562 = vunpack.c.h.b16 %v7302
        %v7563 = vunpack.c.l.b16 %v7303
        %v7564 = vunpack.c.h.b16 %v7303
        %v7565 = vunpack.c.l.b16 %v7304
        %v7566 = vunpack.c.h.b16 %v7304
        %v7567 = vunpack.c.l.b16 %v7305
        %v7568 = vunpack.c.h.b16 %v7305
        %v7569 = vunpack.c.l.b16 %v7306
        %v7570 = vunpack.c.h.b16 %v7306
        %v7571 = vunpack.c.l.b16 %v7307
        %v7572 = vunpack.c.h.b16 %v7307
        %v7573 = vunpack.c.l.b16 %v7308
        %v7574 = vunpack.c.h.b16 %v7308
        %v7575 = vunpack.c.l.b16 %v7309
        %v7576 = vunpack.c.h.b16 %v7309
        %v7577 = vunpack.c.l.b16 %v7310
        %v7578 = vunpack.c.h.b16 %v7310
        %v7579 = vunpack.c.l.b16 %v7311
        %v7580 = vunpack.c.h.b16 %v7311
        %v7581 = vunpack.c.l.b16 %v7312
        %v7582 = vunpack.c.h.b16 %v7312
        %v7583 = vunpack.c.l.b16 %v7313
        %v7584 = vunpack.c.h.b16 %v7313
        %v7585 = vunpack.c.l.b16 %v7314
        %v7586 = vunpack.c.h.b16 %v7314
        %v7587 = vpack.c.b16 %v7557, %v7555
        %v7588 = vpack.c.b16 %v7558, %v7556
        %v7589 = vpack.c.b16 %v7561, %v7559
        %v7590 = vpack.c.b16 %v7562, %v7560
        %v7591 = vpack.c.b16 %v7565, %v7563
        %v7592 = vpack.c.b16 %v7566, %v7564
        %v7593 = vpack.c.b16 %v7569, %v7567
        %v7594 = vpack.c.b16 %v7570, %v7568
        %v7595 = vpack.c.b16 %v7573, %v7571
        %v7596 = vpack.c.b16 %v7574, %v7572
        %v7597 = vpack.c.b16 %v7577, %v7575
        %v7598 = vpack.c.b16 %v7578, %v7576
        %v7599 = vpack.c.b16 %v7581, %v7579
        %v7600 = vpack.c.b16 %v7582, %v7580
        %v7601 = vpack.c.b16 %v7585, %v7583
        %v7602 = vpack.c.b16 %v7586, %v7584
        %7619 = vmatprep.subr.bf16.mxu0 %v7316
        %7620 = vmatpush1.bf16.msra.mxu0 %v7315
        %7621 = vmatprep.subr.bf16.mxu0 %v7324
        %7622 = vmatpush1.bf16.msra.mxu0 %v7323
        %7623 = vmatprep.subr.bf16.mxu0 %v7332
        %7624 = vmatpush1.bf16.msra.mxu0 %v7331
        %7625 = vmatprep.subr.bf16.mxu0 %v7340
        %7626 = vmatpush1.bf16.msra.mxu0 %v7339
        %7627 = vmatprep.subr.bf16.mxu0 %v7348
        %7628 = vmatpush1.bf16.msra.mxu0 %v7347
        %7629 = vmatprep.subr.bf16.mxu0 %v7356
        %7630 = vmatpush1.bf16.msra.mxu0 %v7355
        %7631 = vmatprep.subr.bf16.mxu0 %v7364
        %7632 = vmatpush1.bf16.msra.mxu0 %v7363
        %7633 = vmatprep.subr.bf16.mxu0 %v7372
        %7634 = vmatpush1.bf16.msra.mxu0 %v7371
        %7635 = vmatprep.subr.bf16.mxu0 %v7380
        %7636 = vmatpush1.bf16.msra.mxu0 %v7379
        %7637 = vmatprep.subr.bf16.mxu0 %v7388
        %7638 = vmatpush1.bf16.msra.mxu0 %v7387
        %7639 = vmatprep.subr.bf16.mxu0 %v7396
        %7640 = vmatpush1.bf16.msra.mxu0 %v7395
        %7641 = vmatprep.subr.bf16.mxu0 %v7404
        %7642 = vmatpush1.bf16.msra.mxu0 %v7403
        %7643 = vmatprep.subr.bf16.mxu0 %v7412
        %7644 = vmatpush1.bf16.msra.mxu0 %v7411
        %7645 = vmatprep.subr.bf16.mxu0 %v7420
        %7646 = vmatpush1.bf16.msra.mxu0 %v7419
        %7647 = vmatprep.subr.bf16.mxu0 %v7428
        %7648 = vmatpush1.bf16.msra.mxu0 %v7427
        %7649 = vmatprep.subr.bf16.mxu0 %v7436
        %7650 = vmatpush1.bf16.msra.mxu0 %v7435
        %7651 = vmatprep.mubr.bf16.mxu0 %v7588
        %7652 = vmatmul.mubr.bf16.gmra.mrb[0].mxu0 %v7587
        %v7653 = vpop.f32.mrb[0].mxu0
        %v7654 = vadd.f32 %v7462, %v7653
        %v7655 = vpop.f32.mrb[0].mxu0
        %v7656 = vadd.f32 %v7462, %v7655
        %v7657 = vpop.f32.mrb[0].mxu0
        %v7658 = vadd.f32 %v7467, %v7657
        %v7659 = vpop.f32.mrb[0].mxu0
        %v7660 = vadd.f32 %v7467, %v7659
        %7661 = vmatprep.mubr.bf16.mxu0 %v7590
        %7662 = vmatmul.mubr.bf16.gmra.mrb[0].mxu0 %v7589
        %v7663 = vpop.f32.mrb[0].mxu0
        %v7664 = vadd.f32 %v7472, %v7663
        %v7665 = vpop.f32.mrb[0].mxu0
        %v7666 = vadd.f32 %v7472, %v7665
        %v7667 = vpop.f32.mrb[0].mxu0
        %v7668 = vadd.f32 %v7477, %v7667
        %v7669 = vpop.f32.mrb[0].mxu0
        %v7670 = vadd.f32 %v7477, %v7669
        %7671 = vmatprep.mubr.bf16.mxu0 %v7592
        %7672 = vmatmul.mubr.bf16.gmra.mrb[0].mxu0 %v7591
        %v7673 = vpop.f32.mrb[0].mxu0
        %v7674 = vadd.f32 %v7482, %v7673
        %v7675 = vpop.f32.mrb[0].mxu0
        %v7676 = vadd.f32 %v7482, %v7675
        %v7677 = vpop.f32.mrb[0].mxu0
        %v7678 = vadd.f32 %v7487, %v7677
        %v7679 = vpop.f32.mrb[0].mxu0
        %v7680 = vadd.f32 %v7487, %v7679
        %7681 = vmatprep.mubr.bf16.mxu0 %v7594
        %7682 = vmatmul.mubr.bf16.gmra.mrb[0].mxu0 %v7593
        %v7683 = vpop.f32.mrb[0].mxu0
        %v7684 = vadd.f32 %v7492, %v7683
        %v7685 = vpop.f32.mrb[0].mxu0
        %v7686 = vadd.f32 %v7492, %v7685
        %v7687 = vpop.f32.mrb[0].mxu0
        %v7688 = vadd.f32 %v7497, %v7687
        %v7689 = vpop.f32.mrb[0].mxu0
        %v7690 = vadd.f32 %v7497, %v7689
        %7691 = vmatprep.mubr.bf16.mxu0 %v7596
        %7692 = vmatmul.mubr.bf16.gmra.mrb[0].mxu0 %v7595
        %v7693 = vpop.f32.mrb[0].mxu0
        %v7694 = vadd.f32 %v7502, %v7693
        %v7695 = vpop.f32.mrb[0].mxu0
        %v7696 = vadd.f32 %v7502, %v7695
        %v7697 = vpop.f32.mrb[0].mxu0
        %v7698 = vadd.f32 %v7507, %v7697
        %v7699 = vpop.f32.mrb[0].mxu0
        %v7700 = vadd.f32 %v7507, %v7699
        %7701 = vmatprep.mubr.bf16.mxu0 %v7598
        %7702 = vmatmul.mubr.bf16.gmra.mrb[0].mxu0 %v7597
        %v7703 = vpop.f32.mrb[0].mxu0
        %v7704 = vadd.f32 %v7512, %v7703
        %v7705 = vpop.f32.mrb[0].mxu0
        %v7706 = vadd.f32 %v7512, %v7705
        %v7707 = vpop.f32.mrb[0].mxu0
        %v7708 = vadd.f32 %v7517, %v7707
        %v7709 = vpop.f32.mrb[0].mxu0
        %v7710 = vadd.f32 %v7517, %v7709
        %7711 = vmatprep.mubr.bf16.mxu0 %v7600
        %7712 = vmatmul.mubr.bf16.gmra.mrb[0].mxu0 %v7599
        %v7713 = vpop.f32.mrb[0].mxu0
        %v7714 = vadd.f32 %v7522, %v7713
        %v7715 = vpop.f32.mrb[0].mxu0
        %v7716 = vadd.f32 %v7522, %v7715
        %v7717 = vpop.f32.mrb[0].mxu0
        %v7718 = vadd.f32 %v7527, %v7717
        %v7719 = vpop.f32.mrb[0].mxu0
        %v7720 = vadd.f32 %v7527, %v7719
        %7721 = vmatprep.mubr.bf16.mxu0 %v7602
        %7722 = vmatmul.mubr.bf16.gmra.mrb[0].mxu0 %v7601
        %v7723 = vpop.f32.mrb[0].mxu0
        %v7724 = vadd.f32 %v7532, %v7723
        %v7725 = vpop.f32.mrb[0].mxu0
        %v7726 = vadd.f32 %v7532, %v7725
        %v7727 = vpop.f32.mrb[0].mxu0
        %v7728 = vadd.f32 %v7537, %v7727
        %v7729 = vpop.f32.mrb[0].mxu0
        %v7730 = vadd.f32 %v7537, %v7729
        %7731 = vdwg.mxu0
        %7732 = vmatprep.subr.bf16.mxu0 %v7318
        %7733 = vmatpush1.bf16.msra.mxu0 %v7317
        %7734 = vmatprep.subr.bf16.mxu0 %v7326
        %7735 = vmatpush1.bf16.msra.mxu0 %v7325
        %7736 = vmatprep.subr.bf16.mxu0 %v7334
        %7737 = vmatpush1.bf16.msra.mxu0 %v7333
        %7738 = vmatprep.subr.bf16.mxu0 %v7342
        %7739 = vmatpush1.bf16.msra.mxu0 %v7341
        %7740 = vmatprep.subr.bf16.mxu0 %v7350
        %7741 = vmatpush1.bf16.msra.mxu0 %v7349
        %7742 = vmatprep.subr.bf16.mxu0 %v7358
        %7743 = vmatpush1.bf16.msra.mxu0 %v7357
        %7744 = vmatprep.subr.bf16.mxu0 %v7366
        %7745 = vmatpush1.bf16.msra.mxu0 %v7365
        %7746 = vmatprep.subr.bf16.mxu0 %v7374
        %7747 = vmatpush1.bf16.msra.mxu0 %v7373
        %7748 = vmatprep.subr.bf16.mxu0 %v7382
        %7749 = vmatpush1.bf16.msra.mxu0 %v7381
        %7750 = vmatprep.subr.bf16.mxu0 %v7390
        %7751 = vmatpush1.bf16.msra.mxu0 %v7389
        %7752 = vmatprep.subr.bf16.mxu0 %v7398
        %7753 = vmatpush1.bf16.msra.mxu0 %v7397
        %7754 = vmatprep.subr.bf16.mxu0 %v7406
        %7755 = vmatpush1.bf16.msra.mxu0 %v7405
        %7756 = vmatprep.subr.bf16.mxu0 %v7414
        %7757 = vmatpush1.bf16.msra.mxu0 %v7413
        %7758 = vmatprep.subr.bf16.mxu0 %v7422
        %7759 = vmatpush1.bf16.msra.mxu0 %v7421
        %7760 = vmatprep.subr.bf16.mxu0 %v7430
        %7761 = vmatpush1.bf16.msra.mxu0 %v7429
        %7762 = vmatprep.subr.bf16.mxu0 %v7438
        %7763 = vmatpush1.bf16.msra.mxu0 %v7437
        %7764 = vmatprep.mubr.bf16.mxu0 %v7588
        %7765 = vmatmul.mubr.bf16.gmra.mrb[0].mxu0 %v7587
        %v7766 = vpop.f32.mrb[0].mxu0
        %v7767 = vadd.f32 %v7462, %v7766
        %v7768 = vpop.f32.mrb[0].mxu0
        %v7769 = vadd.f32 %v7462, %v7768
        %v7770 = vpop.f32.mrb[0].mxu0
        %v7771 = vadd.f32 %v7467, %v7770
        %v7772 = vpop.f32.mrb[0].mxu0
        %v7773 = vadd.f32 %v7467, %v7772
        %7774 = vmatprep.mubr.bf16.mxu0 %v7590
        %7775 = vmatmul.mubr.bf16.gmra.mrb[0].mxu0 %v7589
        %v7776 = vpop.f32.mrb[0].mxu0
        %v7777 = vadd.f32 %v7472, %v7776
        %v7778 = vpop.f32.mrb[0].mxu0
        %v7779 = vadd.f32 %v7472, %v7778
        %v7780 = vpop.f32.mrb[0].mxu0
        %v7781 = vadd.f32 %v7477, %v7780
        %v7782 = vpop.f32.mrb[0].mxu0
        %v7783 = vadd.f32 %v7477, %v7782
        %7784 = vmatprep.mubr.bf16.mxu0 %v7592
        %7785 = vmatmul.mubr.bf16.gmra.mrb[0].mxu0 %v7591
        %v7786 = vpop.f32.mrb[0].mxu0
        %v7787 = vadd.f32 %v7482, %v7786
        %v7788 = vpop.f32.mrb[0].mxu0
        %v7789 = vadd.f32 %v7482, %v7788
        %v7790 = vpop.f32.mrb[0].mxu0
        %v7791 = vadd.f32 %v7487, %v7790
        %v7792 = vpop.f32.mrb[0].mxu0
        %v7793 = vadd.f32 %v7487, %v7792
        %7794 = vmatprep.mubr.bf16.mxu0 %v7594
        %7795 = vmatmul.mubr.bf16.gmra.mrb[0].mxu0 %v7593
        %v7796 = vpop.f32.mrb[0].mxu0
        %v7797 = vadd.f32 %v7492, %v7796
        %v7798 = vpop.f32.mrb[0].mxu0
        %v7799 = vadd.f32 %v7492, %v7798
        %v7800 = vpop.f32.mrb[0].mxu0
        %v7801 = vadd.f32 %v7497, %v7800
        %v7802 = vpop.f32.mrb[0].mxu0
        %v7803 = vadd.f32 %v7497, %v7802
        %7804 = vmatprep.mubr.bf16.mxu0 %v7596
        %7805 = vmatmul.mubr.bf16.gmra.mrb[0].mxu0 %v7595
        %v7806 = vpop.f32.mrb[0].mxu0
        %v7807 = vadd.f32 %v7502, %v7806
        %v7808 = vpop.f32.mrb[0].mxu0
        %v7809 = vadd.f32 %v7502, %v7808
        %v7810 = vpop.f32.mrb[0].mxu0
        %v7811 = vadd.f32 %v7507, %v7810
        %v7812 = vpop.f32.mrb[0].mxu0
        %v7813 = vadd.f32 %v7507, %v7812
        %7814 = vmatprep.mubr.bf16.mxu0 %v7598
        %7815 = vmatmul.mubr.bf16.gmra.mrb[0].mxu0 %v7597
        %v7816 = vpop.f32.mrb[0].mxu0
        %v7817 = vadd.f32 %v7512, %v7816
        %v7818 = vpop.f32.mrb[0].mxu0
        %v7819 = vadd.f32 %v7512, %v7818
        %v7820 = vpop.f32.mrb[0].mxu0
        %v7821 = vadd.f32 %v7517, %v7820
        %v7822 = vpop.f32.mrb[0].mxu0
        %v7823 = vadd.f32 %v7517, %v7822
        %7824 = vmatprep.mubr.bf16.mxu0 %v7600
        %7825 = vmatmul.mubr.bf16.gmra.mrb[0].mxu0 %v7599
        %v7826 = vpop.f32.mrb[0].mxu0
        %v7827 = vadd.f32 %v7522, %v7826
        %v7828 = vpop.f32.mrb[0].mxu0
        %v7829 = vadd.f32 %v7522, %v7828
        %v7830 = vpop.f32.mrb[0].mxu0
        %v7831 = vadd.f32 %v7527, %v7830
        %v7832 = vpop.f32.mrb[0].mxu0
        %v7833 = vadd.f32 %v7527, %v7832
        %7834 = vmatprep.mubr.bf16.mxu0 %v7602
        %7835 = vmatmul.mubr.bf16.gmra.mrb[0].mxu0 %v7601
        %v7836 = vpop.f32.mrb[0].mxu0
        %v7837 = vadd.f32 %v7532, %v7836
        %v7838 = vpop.f32.mrb[0].mxu0
        %v7839 = vadd.f32 %v7532, %v7838
        %v7840 = vpop.f32.mrb[0].mxu0
        %v7841 = vadd.f32 %v7537, %v7840
        %v7842 = vpop.f32.mrb[0].mxu0
        %v7843 = vadd.f32 %v7537, %v7842
        %7844 = vdwg.mxu0
        %7845 = vmatprep.subr.bf16.mxu0 %v7320
        %7846 = vmatpush1.bf16.msra.mxu0 %v7319
        %7847 = vmatprep.subr.bf16.mxu0 %v7328
        %7848 = vmatpush1.bf16.msra.mxu0 %v7327
        %7849 = vmatprep.subr.bf16.mxu0 %v7336
        %7850 = vmatpush1.bf16.msra.mxu0 %v7335
        %7851 = vmatprep.subr.bf16.mxu0 %v7344
        %7852 = vmatpush1.bf16.msra.mxu0 %v7343
        %7853 = vmatprep.subr.bf16.mxu0 %v7352
        %7854 = vmatpush1.bf16.msra.mxu0 %v7351
        %7855 = vmatprep.subr.bf16.mxu0 %v7360
        %7856 = vmatpush1.bf16.msra.mxu0 %v7359
        %7857 = vmatprep.subr.bf16.mxu0 %v7368
        %7858 = vmatpush1.bf16.msra.mxu0 %v7367
        %7859 = vmatprep.subr.bf16.mxu0 %v7376
        %7860 = vmatpush1.bf16.msra.mxu0 %v7375
        %7861 = vmatprep.subr.bf16.mxu0 %v7384
        %7862 = vmatpush1.bf16.msra.mxu0 %v7383
        %7863 = vmatprep.subr.bf16.mxu0 %v7392
        %7864 = vmatpush1.bf16.msra.mxu0 %v7391
        %7865 = vmatprep.subr.bf16.mxu0 %v7400
        %7866 = vmatpush1.bf16.msra.mxu0 %v7399
        %7867 = vmatprep.subr.bf16.mxu0 %v7408
        %7868 = vmatpush1.bf16.msra.mxu0 %v7407
        %7869 = vmatprep.subr.bf16.mxu0 %v7416
        %7870 = vmatpush1.bf16.msra.mxu0 %v7415
        %7871 = vmatprep.subr.bf16.mxu0 %v7424
        %7872 = vmatpush1.bf16.msra.mxu0 %v7423
        %7873 = vmatprep.subr.bf16.mxu0 %v7432
        %7874 = vmatpush1.bf16.msra.mxu0 %v7431
        %7875 = vmatprep.subr.bf16.mxu0 %v7440
        %7876 = vmatpush1.bf16.msra.mxu0 %v7439
        %7877 = vmatprep.mubr.bf16.mxu0 %v7588
        %7878 = vmatmul.mubr.bf16.gmra.mrb[0].mxu0 %v7587
        %v7879 = vpop.f32.mrb[0].mxu0
        %v7880 = vadd.f32 %v7462, %v7879
        %v7881 = vpop.f32.mrb[0].mxu0
        %v7882 = vadd.f32 %v7462, %v7881
        %v7883 = vpop.f32.mrb[0].mxu0
        %v7884 = vadd.f32 %v7467, %v7883
        %v7885 = vpop.f32.mrb[0].mxu0
        %v7886 = vadd.f32 %v7467, %v7885
        %7887 = vmatprep.mubr.bf16.mxu0 %v7590
        %7888 = vmatmul.mubr.bf16.gmra.mrb[0].mxu0 %v7589
        %v7889 = vpop.f32.mrb[0].mxu0
        %v7890 = vadd.f32 %v7472, %v7889
        %v7891 = vpop.f32.mrb[0].mxu0
        %v7892 = vadd.f32 %v7472, %v7891
        %v7893 = vpop.f32.mrb[0].mxu0
        %v7894 = vadd.f32 %v7477, %v7893
        %v7895 = vpop.f32.mrb[0].mxu0
        %v7896 = vadd.f32 %v7477, %v7895
        %7897 = vmatprep.mubr.bf16.mxu0 %v7592
        %7898 = vmatmul.mubr.bf16.gmra.mrb[0].mxu0 %v7591
        %v7899 = vpop.f32.mrb[0].mxu0
        %v7900 = vadd.f32 %v7482, %v7899
        %v7901 = vpop.f32.mrb[0].mxu0
        %v7902 = vadd.f32 %v7482, %v7901
        %v7903 = vpop.f32.mrb[0].mxu0
        %v7904 = vadd.f32 %v7487, %v7903
        %v7905 = vpop.f32.mrb[0].mxu0
        %v7906 = vadd.f32 %v7487, %v7905
        %7907 = vmatprep.mubr.bf16.mxu0 %v7594
        %7908 = vmatmul.mubr.bf16.gmra.mrb[0].mxu0 %v7593
        %v7909 = vpop.f32.mrb[0].mxu0
        %v7910 = vadd.f32 %v7492, %v7909
        %v7911 = vpop.f32.mrb[0].mxu0
        %v7912 = vadd.f32 %v7492, %v7911
        %v7913 = vpop.f32.mrb[0].mxu0
        %v7914 = vadd.f32 %v7497, %v7913
        %v7915 = vpop.f32.mrb[0].mxu0
        %v7916 = vadd.f32 %v7497, %v7915
        %7917 = vmatprep.mubr.bf16.mxu0 %v7596
        %7918 = vmatmul.mubr.bf16.gmra.mrb[0].mxu0 %v7595
        %v7919 = vpop.f32.mrb[0].mxu0
        %v7920 = vadd.f32 %v7502, %v7919
        %v7921 = vpop.f32.mrb[0].mxu0
        %v7922 = vadd.f32 %v7502, %v7921
        %v7923 = vpop.f32.mrb[0].mxu0
        %v7924 = vadd.f32 %v7507, %v7923
        %v7925 = vpop.f32.mrb[0].mxu0
        %v7926 = vadd.f32 %v7507, %v7925
        %7927 = vmatprep.mubr.bf16.mxu0 %v7598
        %7928 = vmatmul.mubr.bf16.gmra.mrb[0].mxu0 %v7597
        %v7929 = vpop.f32.mrb[0].mxu0
        %v7930 = vadd.f32 %v7512, %v7929
        %v7931 = vpop.f32.mrb[0].mxu0
        %v7932 = vadd.f32 %v7512, %v7931
        %v7933 = vpop.f32.mrb[0].mxu0
        %v7934 = vadd.f32 %v7517, %v7933
        %v7935 = vpop.f32.mrb[0].mxu0
        %v7936 = vadd.f32 %v7517, %v7935
        %7937 = vmatprep.mubr.bf16.mxu0 %v7600
        %7938 = vmatmul.mubr.bf16.gmra.mrb[0].mxu0 %v7599
        %v7939 = vpop.f32.mrb[0].mxu0
        %v7940 = vadd.f32 %v7522, %v7939
        %v7941 = vpop.f32.mrb[0].mxu0
        %v7942 = vadd.f32 %v7522, %v7941
        %v7943 = vpop.f32.mrb[0].mxu0
        %v7944 = vadd.f32 %v7527, %v7943
        %v7945 = vpop.f32.mrb[0].mxu0
        %v7946 = vadd.f32 %v7527, %v7945
        %7947 = vmatprep.mubr.bf16.mxu0 %v7602
        %7948 = vmatmul.mubr.bf16.gmra.mrb[0].mxu0 %v7601
        %v7949 = vpop.f32.mrb[0].mxu0
        %v7950 = vadd.f32 %v7532, %v7949
        %v7951 = vpop.f32.mrb[0].mxu0
        %v7952 = vadd.f32 %v7532, %v7951
        %v7953 = vpop.f32.mrb[0].mxu0
        %v7954 = vadd.f32 %v7537, %v7953
        %v7955 = vpop.f32.mrb[0].mxu0
        %v7956 = vadd.f32 %v7537, %v7955
        %7957 = vdwg.mxu0
        %7958 = vmatprep.subr.bf16.mxu0 %v7322
        %7959 = vmatpush1.bf16.msra.mxu0 %v7321
        %7960 = vmatprep.subr.bf16.mxu0 %v7330
        %7961 = vmatpush1.bf16.msra.mxu0 %v7329
        %7962 = vmatprep.subr.bf16.mxu0 %v7338
        %7963 = vmatpush1.bf16.msra.mxu0 %v7337
        %7964 = vmatprep.subr.bf16.mxu0 %v7346
        %7965 = vmatpush1.bf16.msra.mxu0 %v7345
        %7966 = vmatprep.subr.bf16.mxu0 %v7354
        %7967 = vmatpush1.bf16.msra.mxu0 %v7353
        %7968 = vmatprep.subr.bf16.mxu0 %v7362
        %7969 = vmatpush1.bf16.msra.mxu0 %v7361
        %7970 = vmatprep.subr.bf16.mxu0 %v7370
        %7971 = vmatpush1.bf16.msra.mxu0 %v7369
        %7972 = vmatprep.subr.bf16.mxu0 %v7378
        %7973 = vmatpush1.bf16.msra.mxu0 %v7377
        %7974 = vmatprep.subr.bf16.mxu0 %v7386
        %7975 = vmatpush1.bf16.msra.mxu0 %v7385
        %7976 = vmatprep.subr.bf16.mxu0 %v7394
        %7977 = vmatpush1.bf16.msra.mxu0 %v7393
        %7978 = vmatprep.subr.bf16.mxu0 %v7402
        %7979 = vmatpush1.bf16.msra.mxu0 %v7401
        %7980 = vmatprep.subr.bf16.mxu0 %v7410
        %7981 = vmatpush1.bf16.msra.mxu0 %v7409
        %7982 = vmatprep.subr.bf16.mxu0 %v7418
        %7983 = vmatpush1.bf16.msra.mxu0 %v7417
        %7984 = vmatprep.subr.bf16.mxu0 %v7426
        %7985 = vmatpush1.bf16.msra.mxu0 %v7425
        %7986 = vmatprep.subr.bf16.mxu0 %v7434
        %7987 = vmatpush1.bf16.msra.mxu0 %v7433
        %7988 = vmatprep.subr.bf16.mxu0 %v7442
        %7989 = vmatpush1.bf16.msra.mxu0 %v7441
        %7990 = vmatprep.mubr.bf16.mxu0 %v7588
        %7991 = vmatmul.mubr.bf16.gmra.mrb[0].mxu0 %v7587
        %v7992 = vpop.f32.mrb[0].mxu0
        %v7993 = vadd.f32 %v7462, %v7992
        %v7994 = vpop.f32.mrb[0].mxu0
        %v7995 = vadd.f32 %v7462, %v7994
        %v7996 = vpop.f32.mrb[0].mxu0
        %v7997 = vadd.f32 %v7467, %v7996
        %v7998 = vpop.f32.mrb[0].mxu0
        %v7999 = vadd.f32 %v7467, %v7998
        %8000 = vmatprep.mubr.bf16.mxu0 %v7590
        %8001 = vmatmul.mubr.bf16.gmra.mrb[0].mxu0 %v7589
        %v8002 = vpop.f32.mrb[0].mxu0
        %v8003 = vadd.f32 %v7472, %v8002
        %v8004 = vpop.f32.mrb[0].mxu0
        %v8005 = vadd.f32 %v7472, %v8004
        %v8006 = vpop.f32.mrb[0].mxu0
        %v8007 = vadd.f32 %v7477, %v8006
        %v8008 = vpop.f32.mrb[0].mxu0
        %v8009 = vadd.f32 %v7477, %v8008
        %8010 = vmatprep.mubr.bf16.mxu0 %v7592
        %8011 = vmatmul.mubr.bf16.gmra.mrb[0].mxu0 %v7591
        %v8012 = vpop.f32.mrb[0].mxu0
        %v8013 = vadd.f32 %v7482, %v8012
        %v8014 = vpop.f32.mrb[0].mxu0
        %v8015 = vadd.f32 %v7482, %v8014
        %v8016 = vpop.f32.mrb[0].mxu0
        %v8017 = vadd.f32 %v7487, %v8016
        %v8018 = vpop.f32.mrb[0].mxu0
        %v8019 = vadd.f32 %v7487, %v8018
        %8020 = vmatprep.mubr.bf16.mxu0 %v7594
        %8021 = vmatmul.mubr.bf16.gmra.mrb[0].mxu0 %v7593
        %v8022 = vpop.f32.mrb[0].mxu0
        %v8023 = vadd.f32 %v7492, %v8022
        %v8024 = vpop.f32.mrb[0].mxu0
        %v8025 = vadd.f32 %v7492, %v8024
        %v8026 = vpop.f32.mrb[0].mxu0
        %v8027 = vadd.f32 %v7497, %v8026
        %v8028 = vpop.f32.mrb[0].mxu0
        %v8029 = vadd.f32 %v7497, %v8028
        %8030 = vmatprep.mubr.bf16.mxu0 %v7596
        %8031 = vmatmul.mubr.bf16.gmra.mrb[0].mxu0 %v7595
        %v8032 = vpop.f32.mrb[0].mxu0
        %v8033 = vadd.f32 %v7502, %v8032
        %v8034 = vpop.f32.mrb[0].mxu0
        %v8035 = vadd.f32 %v7502, %v8034
        %v8036 = vpop.f32.mrb[0].mxu0
        %v8037 = vadd.f32 %v7507, %v8036
        %v8038 = vpop.f32.mrb[0].mxu0
        %v8039 = vadd.f32 %v7507, %v8038
        %8040 = vmatprep.mubr.bf16.mxu0 %v7598
        %8041 = vmatmul.mubr.bf16.gmra.mrb[0].mxu0 %v7597
        %v8042 = vpop.f32.mrb[0].mxu0
        %v8043 = vadd.f32 %v7512, %v8042
        %v8044 = vpop.f32.mrb[0].mxu0
        %v8045 = vadd.f32 %v7512, %v8044
        %v8046 = vpop.f32.mrb[0].mxu0
        %v8047 = vadd.f32 %v7517, %v8046
        %v8048 = vpop.f32.mrb[0].mxu0
        %v8049 = vadd.f32 %v7517, %v8048
        %8050 = vmatprep.mubr.bf16.mxu0 %v7600
        %8051 = vmatmul.mubr.bf16.gmra.mrb[0].mxu0 %v7599
        %v8052 = vpop.f32.mrb[0].mxu0
        %v8053 = vadd.f32 %v7522, %v8052
        %v8054 = vpop.f32.mrb[0].mxu0
        %v8055 = vadd.f32 %v7522, %v8054
        %v8056 = vpop.f32.mrb[0].mxu0
        %v8057 = vadd.f32 %v7527, %v8056
        %v8058 = vpop.f32.mrb[0].mxu0
        %v8059 = vadd.f32 %v7527, %v8058
        %8060 = vmatprep.mubr.bf16.mxu0 %v7602
        %8061 = vmatmul.mubr.bf16.gmra.mrb[0].mxu0 %v7601
        %v8062 = vpop.f32.mrb[0].mxu0
        %v8063 = vadd.f32 %v7532, %v8062
        %v8064 = vpop.f32.mrb[0].mxu0
        %v8065 = vadd.f32 %v7532, %v8064
        %v8066 = vpop.f32.mrb[0].mxu0
        %v8067 = vadd.f32 %v7537, %v8066
        %v8068 = vpop.f32.mrb[0].mxu0
        %v8069 = vadd.f32 %v7537, %v8068
        %8070 = vdwg.mxu0
        %v8071 = vadd.f32 %v5759, %v7654
        %v8072 = vadd.f32 %v5760, %v7656
        %v8073 = vadd.f32 %v5761, %v7767
        %v8074 = vadd.f32 %v5762, %v7769
        %v8075 = vadd.f32 %v5763, %v7880
        %v8076 = vadd.f32 %v5764, %v7882
        %v8077 = vadd.f32 %v5765, %v7993
        %v8078 = vadd.f32 %v5766, %v7995
        %v8079 = vadd.f32 %v5767, %v7658
        %v8080 = vadd.f32 %v5768, %v7660
        %v8081 = vadd.f32 %v5769, %v7771
        %v8082 = vadd.f32 %v5770, %v7773
        %v8083 = vadd.f32 %v5771, %v7884
        %v8084 = vadd.f32 %v5772, %v7886
        %v8085 = vadd.f32 %v5773, %v7997
        %v8086 = vadd.f32 %v5774, %v7999
        %v8087 = vadd.f32 %v5775, %v7664
        %v8088 = vadd.f32 %v5776, %v7666
        %v8089 = vadd.f32 %v5777, %v7777
        %v8090 = vadd.f32 %v5778, %v7779
        %v8091 = vadd.f32 %v5779, %v7890
        %v8092 = vadd.f32 %v5780, %v7892
        %v8093 = vadd.f32 %v5781, %v8003
        %v8094 = vadd.f32 %v5782, %v8005
        %v8095 = vadd.f32 %v5783, %v7668
        %v8096 = vadd.f32 %v5784, %v7670
        %v8097 = vadd.f32 %v5785, %v7781
        %v8098 = vadd.f32 %v5786, %v7783
        %v8099 = vadd.f32 %v5787, %v7894
        %v8100 = vadd.f32 %v5788, %v7896
        %v8101 = vadd.f32 %v5789, %v8007
        %v8102 = vadd.f32 %v5790, %v8009
        %v8103 = vadd.f32 %v5791, %v7674
        %v8104 = vadd.f32 %v5792, %v7676
        %v8105 = vadd.f32 %v5793, %v7787
        %v8106 = vadd.f32 %v5794, %v7789
        %v8107 = vadd.f32 %v5795, %v7900
        %v8108 = vadd.f32 %v5796, %v7902
        %v8109 = vadd.f32 %v5797, %v8013
        %v8110 = vadd.f32 %v5798, %v8015
        %v8111 = vadd.f32 %v5799, %v7678
        %v8112 = vadd.f32 %v5800, %v7680
        %v8113 = vadd.f32 %v5801, %v7791
        %v8114 = vadd.f32 %v5802, %v7793
        %v8115 = vadd.f32 %v5803, %v7904
        %v8116 = vadd.f32 %v5804, %v7906
        %v8117 = vadd.f32 %v5805, %v8017
        %v8118 = vadd.f32 %v5806, %v8019
        %v8119 = vadd.f32 %v5807, %v7684
        %v8120 = vadd.f32 %v5808, %v7686
        %v8121 = vadd.f32 %v5809, %v7797
        %v8122 = vadd.f32 %v5810, %v7799
        %v8123 = vadd.f32 %v5811, %v7910
        %v8124 = vadd.f32 %v5812, %v7912
        %v8125 = vadd.f32 %v5813, %v8023
        %v8126 = vadd.f32 %v5814, %v8025
        %v8127 = vadd.f32 %v5815, %v7688
        %v8128 = vadd.f32 %v5816, %v7690
        %v8129 = vadd.f32 %v5817, %v7801
        %v8130 = vadd.f32 %v5818, %v7803
        %v8131 = vadd.f32 %v5819, %v7914
        %v8132 = vadd.f32 %v5820, %v7916
        %v8133 = vadd.f32 %v5821, %v8027
        %v8134 = vadd.f32 %v5822, %v8029
        %v8135 = vadd.f32 %v5823, %v7694
        %v8136 = vadd.f32 %v5824, %v7696
        %v8137 = vadd.f32 %v5825, %v7807
        %v8138 = vadd.f32 %v5826, %v7809
        %v8139 = vadd.f32 %v5827, %v7920
        %v8140 = vadd.f32 %v5828, %v7922
        %v8141 = vadd.f32 %v5829, %v8033
        %v8142 = vadd.f32 %v5830, %v8035
        %v8143 = vadd.f32 %v5831, %v7698
        %v8144 = vadd.f32 %v5832, %v7700
        %v8145 = vadd.f32 %v5833, %v7811
        %v8146 = vadd.f32 %v5834, %v7813
        %v8147 = vadd.f32 %v5835, %v7924
        %v8148 = vadd.f32 %v5836, %v7926
        %v8149 = vadd.f32 %v5837, %v8037
        %v8150 = vadd.f32 %v5838, %v8039
        %v8151 = vadd.f32 %v5839, %v7704
        %v8152 = vadd.f32 %v5840, %v7706
        %v8153 = vadd.f32 %v5841, %v7817
        %v8154 = vadd.f32 %v5842, %v7819
        %v8155 = vadd.f32 %v5843, %v7930
        %v8156 = vadd.f32 %v5844, %v7932
        %v8157 = vadd.f32 %v5845, %v8043
        %v8158 = vadd.f32 %v5846, %v8045
        %v8159 = vadd.f32 %v5847, %v7708
        %v8160 = vadd.f32 %v5848, %v7710
        %v8161 = vadd.f32 %v5849, %v7821
        %v8162 = vadd.f32 %v5850, %v7823
        %v8163 = vadd.f32 %v5851, %v7934
        %v8164 = vadd.f32 %v5852, %v7936
        %v8165 = vadd.f32 %v5853, %v8047
        %v8166 = vadd.f32 %v5854, %v8049
        %v8167 = vadd.f32 %v5855, %v7714
        %v8168 = vadd.f32 %v5856, %v7716
        %v8169 = vadd.f32 %v5857, %v7827
        %v8170 = vadd.f32 %v5858, %v7829
        %v8171 = vadd.f32 %v5859, %v7940
        %v8172 = vadd.f32 %v5860, %v7942
        %v8173 = vadd.f32 %v5861, %v8053
        %v8174 = vadd.f32 %v5862, %v8055
        %v8175 = vadd.f32 %v5863, %v7718
        %v8176 = vadd.f32 %v5864, %v7720
        %v8177 = vadd.f32 %v5865, %v7831
        %v8178 = vadd.f32 %v5866, %v7833
        %v8179 = vadd.f32 %v5867, %v7944
        %v8180 = vadd.f32 %v5868, %v7946
        %v8181 = vadd.f32 %v5869, %v8057
        %v8182 = vadd.f32 %v5870, %v8059
        %v8183 = vadd.f32 %v5871, %v7724
        %v8184 = vadd.f32 %v5872, %v7726
        %v8185 = vadd.f32 %v5873, %v7837
        %v8186 = vadd.f32 %v5874, %v7839
        %v8187 = vadd.f32 %v5875, %v7950
        %v8188 = vadd.f32 %v5876, %v7952
        %v8189 = vadd.f32 %v5877, %v8063
        %v8190 = vadd.f32 %v5878, %v8065
        %v8191 = vadd.f32 %v5879, %v7728
        %v8192 = vadd.f32 %v5880, %v7730
        %v8193 = vadd.f32 %v5881, %v7841
        %v8194 = vadd.f32 %v5882, %v7843
        %v8195 = vadd.f32 %v5883, %v7954
        %v8196 = vadd.f32 %v5884, %v7956
        %v8197 = vadd.f32 %v5885, %v8067
        %v8198 = vadd.f32 %v5886, %v8069
        %v8199 = vld [vmem:[%s11] sm:$0xff]
        %v8200 = vld [vmem:[%s11 + $0x8] sm:$0xff]
        %v8201 = vld [vmem:[%s11 + $0x10] sm:$0xff]
        %v8202 = vld [vmem:[%s11 + $0x18] sm:$0xff]
        %v8203 = vld [vmem:[%s11 + $0x20] sm:$0xff]
        %v8204 = vld [vmem:[%s11 + $0x28] sm:$0xff]
        %v8205 = vld [vmem:[%s11 + $0x30] sm:$0xff]
        %v8206 = vld [vmem:[%s11 + $0x38] sm:$0xff]
        %v8207 = vld [vmem:[%s11 + $0x40] sm:$0xff]
        %v8208 = vld [vmem:[%s11 + $0x48] sm:$0xff]
        %v8209 = vld [vmem:[%s11 + $0x50] sm:$0xff]
        %v8210 = vld [vmem:[%s11 + $0x58] sm:$0xff]
        %v8211 = vld [vmem:[%s11 + $0x60] sm:$0xff]
        %v8212 = vld [vmem:[%s11 + $0x68] sm:$0xff]
        %v8213 = vld [vmem:[%s11 + $0x70] sm:$0xff]
        %v8214 = vld [vmem:[%s11 + $0x78] sm:$0xff]
        %v8215 = vld [vmem:[%s12] sm:$0xff]
        %v8216 = vld [vmem:[%s12 + $0x8] sm:$0xff]
        %v8217 = vld [vmem:[%s12 + $0x10] sm:$0xff]
        %v8218 = vld [vmem:[%s12 + $0x18] sm:$0xff]
        %v8219 = vld [vmem:[%s12 + $0x20] sm:$0xff]
        %v8220 = vld [vmem:[%s12 + $0x28] sm:$0xff]
        %v8221 = vld [vmem:[%s12 + $0x30] sm:$0xff]
        %v8222 = vld [vmem:[%s12 + $0x38] sm:$0xff]
        %v8223 = vld [vmem:[%s12 + $0x40] sm:$0xff]
        %v8224 = vld [vmem:[%s12 + $0x48] sm:$0xff]
        %v8225 = vld [vmem:[%s12 + $0x50] sm:$0xff]
        %v8226 = vld [vmem:[%s12 + $0x58] sm:$0xff]
        %v8227 = vld [vmem:[%s12 + $0x60] sm:$0xff]
        %v8228 = vld [vmem:[%s12 + $0x68] sm:$0xff]
        %v8229 = vld [vmem:[%s12 + $0x70] sm:$0xff]
        %v8230 = vld [vmem:[%s12 + $0x78] sm:$0xff]
        %v8231 = vadd.f32 %v8071, %v8079
        %v8232 = vadd.f32 %v8231, %v8087
        %v8233 = vadd.f32 %v8232, %v8095
        %v8234 = vadd.f32 %v8233, %v8103
        %v8235 = vadd.f32 %v8234, %v8111
        %v8236 = vadd.f32 %v8235, %v8119
        %v8237 = vadd.f32 %v8236, %v8127
        %v8238 = vadd.f32 %v8237, %v8135
        %v8239 = vadd.f32 %v8238, %v8143
        %v8240 = vadd.f32 %v8239, %v8151
        %v8241 = vadd.f32 %v8240, %v8159
        %v8242 = vadd.f32 %v8241, %v8167
        %v8243 = vadd.f32 %v8242, %v8175
        %v8244 = vadd.f32 %v8243, %v8183
        %v8245 = vadd.f32 %v8244, %v8191
        %v8246 = vrot.slane %v8245, 4
        %v8247 = vadd.f32 %v8245, %v8246
        %v8248 = vrot.slane %v8247, 2
        %v8249 = vadd.f32 %v8247, %v8248
        %v8250 = vrot.slane %v8249, 1
        %v8251 = vadd.f32 %v8249, %v8250
        %v8252 = vadd.f32 %v8072, %v8080
        %v8253 = vadd.f32 %v8252, %v8088
        %v8254 = vadd.f32 %v8253, %v8096
        %v8255 = vadd.f32 %v8254, %v8104
        %v8256 = vadd.f32 %v8255, %v8112
        %v8257 = vadd.f32 %v8256, %v8120
        %v8258 = vadd.f32 %v8257, %v8128
        %v8259 = vadd.f32 %v8258, %v8136
        %v8260 = vadd.f32 %v8259, %v8144
        %v8261 = vadd.f32 %v8260, %v8152
        %v8262 = vadd.f32 %v8261, %v8160
        %v8263 = vadd.f32 %v8262, %v8168
        %v8264 = vadd.f32 %v8263, %v8176
        %v8265 = vadd.f32 %v8264, %v8184
        %v8266 = vadd.f32 %v8265, %v8192
        %v8267 = vrot.slane %v8266, 4
        %v8268 = vadd.f32 %v8266, %v8267
        %v8269 = vrot.slane %v8268, 2
        %v8270 = vadd.f32 %v8268, %v8269
        %v8271 = vrot.slane %v8270, 1
        %v8272 = vadd.f32 %v8270, %v8271
        %v8273 = vadd.f32 %v8073, %v8081
        %v8274 = vadd.f32 %v8273, %v8089
        %v8275 = vadd.f32 %v8274, %v8097
        %v8276 = vadd.f32 %v8275, %v8105
        %v8277 = vadd.f32 %v8276, %v8113
        %v8278 = vadd.f32 %v8277, %v8121
        %v8279 = vadd.f32 %v8278, %v8129
        %v8280 = vadd.f32 %v8279, %v8137
        %v8281 = vadd.f32 %v8280, %v8145
        %v8282 = vadd.f32 %v8281, %v8153
        %v8283 = vadd.f32 %v8282, %v8161
        %v8284 = vadd.f32 %v8283, %v8169
        %v8285 = vadd.f32 %v8284, %v8177
        %v8286 = vadd.f32 %v8285, %v8185
        %v8287 = vadd.f32 %v8286, %v8193
        %v8288 = vrot.slane %v8287, 4
        %v8289 = vadd.f32 %v8287, %v8288
        %v8290 = vrot.slane %v8289, 2
        %v8291 = vadd.f32 %v8289, %v8290
        %v8292 = vrot.slane %v8291, 1
        %v8293 = vadd.f32 %v8291, %v8292
        %v8294 = vadd.f32 %v8074, %v8082
        %v8295 = vadd.f32 %v8294, %v8090
        %v8296 = vadd.f32 %v8295, %v8098
        %v8297 = vadd.f32 %v8296, %v8106
        %v8298 = vadd.f32 %v8297, %v8114
        %v8299 = vadd.f32 %v8298, %v8122
        %v8300 = vadd.f32 %v8299, %v8130
        %v8301 = vadd.f32 %v8300, %v8138
        %v8302 = vadd.f32 %v8301, %v8146
        %v8303 = vadd.f32 %v8302, %v8154
        %v8304 = vadd.f32 %v8303, %v8162
        %v8305 = vadd.f32 %v8304, %v8170
        %v8306 = vadd.f32 %v8305, %v8178
        %v8307 = vadd.f32 %v8306, %v8186
        %v8308 = vadd.f32 %v8307, %v8194
        %v8309 = vrot.slane %v8308, 4
        %v8310 = vadd.f32 %v8308, %v8309
        %v8311 = vrot.slane %v8310, 2
        %v8312 = vadd.f32 %v8310, %v8311
        %v8313 = vrot.slane %v8312, 1
        %v8314 = vadd.f32 %v8312, %v8313
        %v8315 = vadd.f32 %v8075, %v8083
        %v8316 = vadd.f32 %v8315, %v8091
        %v8317 = vadd.f32 %v8316, %v8099
        %v8318 = vadd.f32 %v8317, %v8107
        %v8319 = vadd.f32 %v8318, %v8115
        %v8320 = vadd.f32 %v8319, %v8123
        %v8321 = vadd.f32 %v8320, %v8131
        %v8322 = vadd.f32 %v8321, %v8139
        %v8323 = vadd.f32 %v8322, %v8147
        %v8324 = vadd.f32 %v8323, %v8155
        %v8325 = vadd.f32 %v8324, %v8163
        %v8326 = vadd.f32 %v8325, %v8171
        %v8327 = vadd.f32 %v8326, %v8179
        %v8328 = vadd.f32 %v8327, %v8187
        %v8329 = vadd.f32 %v8328, %v8195
        %v8330 = vrot.slane %v8329, 4
        %v8331 = vadd.f32 %v8329, %v8330
        %v8332 = vrot.slane %v8331, 2
        %v8333 = vadd.f32 %v8331, %v8332
        %v8334 = vrot.slane %v8333, 1
        %v8335 = vadd.f32 %v8333, %v8334
        %v8336 = vadd.f32 %v8076, %v8084
        %v8337 = vadd.f32 %v8336, %v8092
        %v8338 = vadd.f32 %v8337, %v8100
        %v8339 = vadd.f32 %v8338, %v8108
        %v8340 = vadd.f32 %v8339, %v8116
        %v8341 = vadd.f32 %v8340, %v8124
        %v8342 = vadd.f32 %v8341, %v8132
        %v8343 = vadd.f32 %v8342, %v8140
        %v8344 = vadd.f32 %v8343, %v8148
        %v8345 = vadd.f32 %v8344, %v8156
        %v8346 = vadd.f32 %v8345, %v8164
        %v8347 = vadd.f32 %v8346, %v8172
        %v8348 = vadd.f32 %v8347, %v8180
        %v8349 = vadd.f32 %v8348, %v8188
        %v8350 = vadd.f32 %v8349, %v8196
        %v8351 = vrot.slane %v8350, 4
        %v8352 = vadd.f32 %v8350, %v8351
        %v8353 = vrot.slane %v8352, 2
        %v8354 = vadd.f32 %v8352, %v8353
        %v8355 = vrot.slane %v8354, 1
        %v8356 = vadd.f32 %v8354, %v8355
        %v8357 = vadd.f32 %v8077, %v8085
        %v8358 = vadd.f32 %v8357, %v8093
        %v8359 = vadd.f32 %v8358, %v8101
        %v8360 = vadd.f32 %v8359, %v8109
        %v8361 = vadd.f32 %v8360, %v8117
        %v8362 = vadd.f32 %v8361, %v8125
        %v8363 = vadd.f32 %v8362, %v8133
        %v8364 = vadd.f32 %v8363, %v8141
        %v8365 = vadd.f32 %v8364, %v8149
        %v8366 = vadd.f32 %v8365, %v8157
        %v8367 = vadd.f32 %v8366, %v8165
        %v8368 = vadd.f32 %v8367, %v8173
        %v8369 = vadd.f32 %v8368, %v8181
        %v8370 = vadd.f32 %v8369, %v8189
        %v8371 = vadd.f32 %v8370, %v8197
        %v8372 = vrot.slane %v8371, 4
        %v8373 = vadd.f32 %v8371, %v8372
        %v8374 = vrot.slane %v8373, 2
        %v8375 = vadd.f32 %v8373, %v8374
        %v8376 = vrot.slane %v8375, 1
        %v8377 = vadd.f32 %v8375, %v8376
        %v8378 = vadd.f32 %v8078, %v8086
        %v8379 = vadd.f32 %v8378, %v8094
        %v8380 = vadd.f32 %v8379, %v8102
        %v8381 = vadd.f32 %v8380, %v8110
        %v8382 = vadd.f32 %v8381, %v8118
        %v8383 = vadd.f32 %v8382, %v8126
        %v8384 = vadd.f32 %v8383, %v8134
        %v8385 = vadd.f32 %v8384, %v8142
        %v8386 = vadd.f32 %v8385, %v8150
        %v8387 = vadd.f32 %v8386, %v8158
        %v8388 = vadd.f32 %v8387, %v8166
        %v8389 = vadd.f32 %v8388, %v8174
        %v8390 = vadd.f32 %v8389, %v8182
        %v8391 = vadd.f32 %v8390, %v8190
        %v8392 = vadd.f32 %v8391, %v8198
        %v8393 = vrot.slane %v8392, 4
        %v8394 = vadd.f32 %v8392, %v8393
        %v8395 = vrot.slane %v8394, 2
        %v8396 = vadd.f32 %v8394, %v8395
        %v8397 = vrot.slane %v8396, 1
        %v8398 = vadd.f32 %v8396, %v8397
        %v8399 = vmul.f32 %v8071, %v8071
        %v8400 = vmul.f32 %v8072, %v8072
        %v8401 = vmul.f32 %v8073, %v8073
        %v8402 = vmul.f32 %v8074, %v8074
        %v8403 = vmul.f32 %v8075, %v8075
        %v8404 = vmul.f32 %v8076, %v8076
        %v8405 = vmul.f32 %v8077, %v8077
        %v8406 = vmul.f32 %v8078, %v8078
        %v8407 = vmul.f32 %v8079, %v8079
        %v8408 = vmul.f32 %v8080, %v8080
        %v8409 = vmul.f32 %v8081, %v8081
        %v8410 = vmul.f32 %v8082, %v8082
        %v8411 = vmul.f32 %v8083, %v8083
        %v8412 = vmul.f32 %v8084, %v8084
        %v8413 = vmul.f32 %v8085, %v8085
        %v8414 = vmul.f32 %v8086, %v8086
        %v8415 = vmul.f32 %v8087, %v8087
        %v8416 = vmul.f32 %v8088, %v8088
        %v8417 = vmul.f32 %v8089, %v8089
        %v8418 = vmul.f32 %v8090, %v8090
        %v8419 = vmul.f32 %v8091, %v8091
        %v8420 = vmul.f32 %v8092, %v8092
        %v8421 = vmul.f32 %v8093, %v8093
        %v8422 = vmul.f32 %v8094, %v8094
        %v8423 = vmul.f32 %v8095, %v8095
        %v8424 = vmul.f32 %v8096, %v8096
        %v8425 = vmul.f32 %v8097, %v8097
        %v8426 = vmul.f32 %v8098, %v8098
        %v8427 = vmul.f32 %v8099, %v8099
        %v8428 = vmul.f32 %v8100, %v8100
        %v8429 = vmul.f32 %v8101, %v8101
        %v8430 = vmul.f32 %v8102, %v8102
        %v8431 = vmul.f32 %v8103, %v8103
        %v8432 = vmul.f32 %v8104, %v8104
        %v8433 = vmul.f32 %v8105, %v8105
        %v8434 = vmul.f32 %v8106, %v8106
        %v8435 = vmul.f32 %v8107, %v8107
        %v8436 = vmul.f32 %v8108, %v8108
        %v8437 = vmul.f32 %v8109, %v8109
        %v8438 = vmul.f32 %v8110, %v8110
        %v8439 = vmul.f32 %v8111, %v8111
        %v8440 = vmul.f32 %v8112, %v8112
        %v8441 = vmul.f32 %v8113, %v8113
        %v8442 = vmul.f32 %v8114, %v8114
        %v8443 = vmul.f32 %v8115, %v8115
        %v8444 = vmul.f32 %v8116, %v8116
        %v8445 = vmul.f32 %v8117, %v8117
        %v8446 = vmul.f32 %v8118, %v8118
        %v8447 = vmul.f32 %v8119, %v8119
        %v8448 = vmul.f32 %v8120, %v8120
        %v8449 = vmul.f32 %v8121, %v8121
        %v8450 = vmul.f32 %v8122, %v8122
        %v8451 = vmul.f32 %v8123, %v8123
        %v8452 = vmul.f32 %v8124, %v8124
        %v8453 = vmul.f32 %v8125, %v8125
        %v8454 = vmul.f32 %v8126, %v8126
        %v8455 = vmul.f32 %v8127, %v8127
        %v8456 = vmul.f32 %v8128, %v8128
        %v8457 = vmul.f32 %v8129, %v8129
        %v8458 = vmul.f32 %v8130, %v8130
        %v8459 = vmul.f32 %v8131, %v8131
        %v8460 = vmul.f32 %v8132, %v8132
        %v8461 = vmul.f32 %v8133, %v8133
        %v8462 = vmul.f32 %v8134, %v8134
        %v8463 = vmul.f32 %v8135, %v8135
        %v8464 = vmul.f32 %v8136, %v8136
        %v8465 = vmul.f32 %v8137, %v8137
        %v8466 = vmul.f32 %v8138, %v8138
        %v8467 = vmul.f32 %v8139, %v8139
        %v8468 = vmul.f32 %v8140, %v8140
        %v8469 = vmul.f32 %v8141, %v8141
        %v8470 = vmul.f32 %v8142, %v8142
        %v8471 = vmul.f32 %v8143, %v8143
        %v8472 = vmul.f32 %v8144, %v8144
        %v8473 = vmul.f32 %v8145, %v8145
        %v8474 = vmul.f32 %v8146, %v8146
        %v8475 = vmul.f32 %v8147, %v8147
        %v8476 = vmul.f32 %v8148, %v8148
        %v8477 = vmul.f32 %v8149, %v8149
        %v8478 = vmul.f32 %v8150, %v8150
        %v8479 = vmul.f32 %v8151, %v8151
        %v8480 = vmul.f32 %v8152, %v8152
        %v8481 = vmul.f32 %v8153, %v8153
        %v8482 = vmul.f32 %v8154, %v8154
        %v8483 = vmul.f32 %v8155, %v8155
        %v8484 = vmul.f32 %v8156, %v8156
        %v8485 = vmul.f32 %v8157, %v8157
        %v8486 = vmul.f32 %v8158, %v8158
        %v8487 = vmul.f32 %v8159, %v8159
        %v8488 = vmul.f32 %v8160, %v8160
        %v8489 = vmul.f32 %v8161, %v8161
        %v8490 = vmul.f32 %v8162, %v8162
        %v8491 = vmul.f32 %v8163, %v8163
        %v8492 = vmul.f32 %v8164, %v8164
        %v8493 = vmul.f32 %v8165, %v8165
        %v8494 = vmul.f32 %v8166, %v8166
        %v8495 = vmul.f32 %v8167, %v8167
        %v8496 = vmul.f32 %v8168, %v8168
        %v8497 = vmul.f32 %v8169, %v8169
        %v8498 = vmul.f32 %v8170, %v8170
        %v8499 = vmul.f32 %v8171, %v8171
        %v8500 = vmul.f32 %v8172, %v8172
        %v8501 = vmul.f32 %v8173, %v8173
        %v8502 = vmul.f32 %v8174, %v8174
        %v8503 = vmul.f32 %v8175, %v8175
        %v8504 = vmul.f32 %v8176, %v8176
        %v8505 = vmul.f32 %v8177, %v8177
        %v8506 = vmul.f32 %v8178, %v8178
        %v8507 = vmul.f32 %v8179, %v8179
        %v8508 = vmul.f32 %v8180, %v8180
        %v8509 = vmul.f32 %v8181, %v8181
        %v8510 = vmul.f32 %v8182, %v8182
        %v8511 = vmul.f32 %v8183, %v8183
        %v8512 = vmul.f32 %v8184, %v8184
        %v8513 = vmul.f32 %v8185, %v8185
        %v8514 = vmul.f32 %v8186, %v8186
        %v8515 = vmul.f32 %v8187, %v8187
        %v8516 = vmul.f32 %v8188, %v8188
        %v8517 = vmul.f32 %v8189, %v8189
        %v8518 = vmul.f32 %v8190, %v8190
        %v8519 = vmul.f32 %v8191, %v8191
        %v8520 = vmul.f32 %v8192, %v8192
        %v8521 = vmul.f32 %v8193, %v8193
        %v8522 = vmul.f32 %v8194, %v8194
        %v8523 = vmul.f32 %v8195, %v8195
        %v8524 = vmul.f32 %v8196, %v8196
        %v8525 = vmul.f32 %v8197, %v8197
        %v8526 = vmul.f32 %v8198, %v8198
        %v8527 = vadd.f32 %v8399, %v8407
        %v8528 = vadd.f32 %v8527, %v8415
        %v8529 = vadd.f32 %v8528, %v8423
        %v8530 = vadd.f32 %v8529, %v8431
        %v8531 = vadd.f32 %v8530, %v8439
        %v8532 = vadd.f32 %v8531, %v8447
        %v8533 = vadd.f32 %v8532, %v8455
        %v8534 = vadd.f32 %v8533, %v8463
        %v8535 = vadd.f32 %v8534, %v8471
        %v8536 = vadd.f32 %v8535, %v8479
        %v8537 = vadd.f32 %v8536, %v8487
        %v8538 = vadd.f32 %v8537, %v8495
        %v8539 = vadd.f32 %v8538, %v8503
        %v8540 = vadd.f32 %v8539, %v8511
        %v8541 = vadd.f32 %v8540, %v8519
        %v8542 = vrot.slane %v8541, 4
        %v8543 = vadd.f32 %v8541, %v8542
        %v8544 = vrot.slane %v8543, 2
        %v8545 = vadd.f32 %v8543, %v8544
        %v8546 = vrot.slane %v8545, 1
        %v8547 = vadd.f32 %v8545, %v8546
        %v8548 = vadd.f32 %v8400, %v8408
        %v8549 = vadd.f32 %v8548, %v8416
        %v8550 = vadd.f32 %v8549, %v8424
        %v8551 = vadd.f32 %v8550, %v8432
        %v8552 = vadd.f32 %v8551, %v8440
        %v8553 = vadd.f32 %v8552, %v8448
        %v8554 = vadd.f32 %v8553, %v8456
        %v8555 = vadd.f32 %v8554, %v8464
        %v8556 = vadd.f32 %v8555, %v8472
        %v8557 = vadd.f32 %v8556, %v8480
        %v8558 = vadd.f32 %v8557, %v8488
        %v8559 = vadd.f32 %v8558, %v8496
        %v8560 = vadd.f32 %v8559, %v8504
        %v8561 = vadd.f32 %v8560, %v8512
        %v8562 = vadd.f32 %v8561, %v8520
        %v8563 = vrot.slane %v8562, 4
        %v8564 = vadd.f32 %v8562, %v8563
        %v8565 = vrot.slane %v8564, 2
        %v8566 = vadd.f32 %v8564, %v8565
        %v8567 = vrot.slane %v8566, 1
        %v8568 = vadd.f32 %v8566, %v8567
        %v8569 = vadd.f32 %v8401, %v8409
        %v8570 = vadd.f32 %v8569, %v8417
        %v8571 = vadd.f32 %v8570, %v8425
        %v8572 = vadd.f32 %v8571, %v8433
        %v8573 = vadd.f32 %v8572, %v8441
        %v8574 = vadd.f32 %v8573, %v8449
        %v8575 = vadd.f32 %v8574, %v8457
        %v8576 = vadd.f32 %v8575, %v8465
        %v8577 = vadd.f32 %v8576, %v8473
        %v8578 = vadd.f32 %v8577, %v8481
        %v8579 = vadd.f32 %v8578, %v8489
        %v8580 = vadd.f32 %v8579, %v8497
        %v8581 = vadd.f32 %v8580, %v8505
        %v8582 = vadd.f32 %v8581, %v8513
        %v8583 = vadd.f32 %v8582, %v8521
        %v8584 = vrot.slane %v8583, 4
        %v8585 = vadd.f32 %v8583, %v8584
        %v8586 = vrot.slane %v8585, 2
        %v8587 = vadd.f32 %v8585, %v8586
        %v8588 = vrot.slane %v8587, 1
        %v8589 = vadd.f32 %v8587, %v8588
        %v8590 = vadd.f32 %v8402, %v8410
        %v8591 = vadd.f32 %v8590, %v8418
        %v8592 = vadd.f32 %v8591, %v8426
        %v8593 = vadd.f32 %v8592, %v8434
        %v8594 = vadd.f32 %v8593, %v8442
        %v8595 = vadd.f32 %v8594, %v8450
        %v8596 = vadd.f32 %v8595, %v8458
        %v8597 = vadd.f32 %v8596, %v8466
        %v8598 = vadd.f32 %v8597, %v8474
        %v8599 = vadd.f32 %v8598, %v8482
        %v8600 = vadd.f32 %v8599, %v8490
        %v8601 = vadd.f32 %v8600, %v8498
        %v8602 = vadd.f32 %v8601, %v8506
        %v8603 = vadd.f32 %v8602, %v8514
        %v8604 = vadd.f32 %v8603, %v8522
        %v8605 = vrot.slane %v8604, 4
        %v8606 = vadd.f32 %v8604, %v8605
        %v8607 = vrot.slane %v8606, 2
        %v8608 = vadd.f32 %v8606, %v8607
        %v8609 = vrot.slane %v8608, 1
        %v8610 = vadd.f32 %v8608, %v8609
        %v8611 = vadd.f32 %v8403, %v8411
        %v8612 = vadd.f32 %v8611, %v8419
        %v8613 = vadd.f32 %v8612, %v8427
        %v8614 = vadd.f32 %v8613, %v8435
        %v8615 = vadd.f32 %v8614, %v8443
        %v8616 = vadd.f32 %v8615, %v8451
        %v8617 = vadd.f32 %v8616, %v8459
        %v8618 = vadd.f32 %v8617, %v8467
        %v8619 = vadd.f32 %v8618, %v8475
        %v8620 = vadd.f32 %v8619, %v8483
        %v8621 = vadd.f32 %v8620, %v8491
        %v8622 = vadd.f32 %v8621, %v8499
        %v8623 = vadd.f32 %v8622, %v8507
        %v8624 = vadd.f32 %v8623, %v8515
        %v8625 = vadd.f32 %v8624, %v8523
        %v8626 = vrot.slane %v8625, 4
        %v8627 = vadd.f32 %v8625, %v8626
        %v8628 = vrot.slane %v8627, 2
        %v8629 = vadd.f32 %v8627, %v8628
        %v8630 = vrot.slane %v8629, 1
        %v8631 = vadd.f32 %v8629, %v8630
        %v8632 = vadd.f32 %v8404, %v8412
        %v8633 = vadd.f32 %v8632, %v8420
        %v8634 = vadd.f32 %v8633, %v8428
        %v8635 = vadd.f32 %v8634, %v8436
        %v8636 = vadd.f32 %v8635, %v8444
        %v8637 = vadd.f32 %v8636, %v8452
        %v8638 = vadd.f32 %v8637, %v8460
        %v8639 = vadd.f32 %v8638, %v8468
        %v8640 = vadd.f32 %v8639, %v8476
        %v8641 = vadd.f32 %v8640, %v8484
        %v8642 = vadd.f32 %v8641, %v8492
        %v8643 = vadd.f32 %v8642, %v8500
        %v8644 = vadd.f32 %v8643, %v8508
        %v8645 = vadd.f32 %v8644, %v8516
        %v8646 = vadd.f32 %v8645, %v8524
        %v8647 = vrot.slane %v8646, 4
        %v8648 = vadd.f32 %v8646, %v8647
        %v8649 = vrot.slane %v8648, 2
        %v8650 = vadd.f32 %v8648, %v8649
        %v8651 = vrot.slane %v8650, 1
        %v8652 = vadd.f32 %v8650, %v8651
        %v8653 = vadd.f32 %v8405, %v8413
        %v8654 = vadd.f32 %v8653, %v8421
        %v8655 = vadd.f32 %v8654, %v8429
        %v8656 = vadd.f32 %v8655, %v8437
        %v8657 = vadd.f32 %v8656, %v8445
        %v8658 = vadd.f32 %v8657, %v8453
        %v8659 = vadd.f32 %v8658, %v8461
        %v8660 = vadd.f32 %v8659, %v8469
        %v8661 = vadd.f32 %v8660, %v8477
        %v8662 = vadd.f32 %v8661, %v8485
        %v8663 = vadd.f32 %v8662, %v8493
        %v8664 = vadd.f32 %v8663, %v8501
        %v8665 = vadd.f32 %v8664, %v8509
        %v8666 = vadd.f32 %v8665, %v8517
        %v8667 = vadd.f32 %v8666, %v8525
        %v8668 = vrot.slane %v8667, 4
        %v8669 = vadd.f32 %v8667, %v8668
        %v8670 = vrot.slane %v8669, 2
        %v8671 = vadd.f32 %v8669, %v8670
        %v8672 = vrot.slane %v8671, 1
        %v8673 = vadd.f32 %v8671, %v8672
        %v8674 = vadd.f32 %v8406, %v8414
        %v8675 = vadd.f32 %v8674, %v8422
        %v8676 = vadd.f32 %v8675, %v8430
        %v8677 = vadd.f32 %v8676, %v8438
        %v8678 = vadd.f32 %v8677, %v8446
        %v8679 = vadd.f32 %v8678, %v8454
        %v8680 = vadd.f32 %v8679, %v8462
        %v8681 = vadd.f32 %v8680, %v8470
        %v8682 = vadd.f32 %v8681, %v8478
        %v8683 = vadd.f32 %v8682, %v8486
        %v8684 = vadd.f32 %v8683, %v8494
        %v8685 = vadd.f32 %v8684, %v8502
        %v8686 = vadd.f32 %v8685, %v8510
        %v8687 = vadd.f32 %v8686, %v8518
        %v8688 = vadd.f32 %v8687, %v8526
        %v8689 = vrot.slane %v8688, 4
        %v8690 = vadd.f32 %v8688, %v8689
        %v8691 = vrot.slane %v8690, 2
        %v8692 = vadd.f32 %v8690, %v8691
        %v8693 = vrot.slane %v8692, 1
        %v8694 = vadd.f32 %v8692, %v8693
        %v8695 = vmul.f32 %v8251, 0.0078125
        %v8696 = vmul.f32 %v8272, 0.0078125
        %v8697 = vmul.f32 %v8293, 0.0078125
        %v8698 = vmul.f32 %v8314, 0.0078125
        %v8699 = vmul.f32 %v8335, 0.0078125
        %v8700 = vmul.f32 %v8356, 0.0078125
        %v8701 = vmul.f32 %v8377, 0.0078125
        %v8702 = vmul.f32 %v8398, 0.0078125
        %v8703 = vmul.f32 %v8547, 0.0078125
        %v8704 = vmul.f32 %v8568, 0.0078125
        %v8705 = vmul.f32 %v8589, 0.0078125
        %v8706 = vmul.f32 %v8610, 0.0078125
        %v8707 = vmul.f32 %v8631, 0.0078125
        %v8708 = vmul.f32 %v8652, 0.0078125
        %v8709 = vmul.f32 %v8673, 0.0078125
        %v8710 = vmul.f32 %v8694, 0.0078125
        %v8711 = vmul.f32 %v8695, %v8695
        %v8712 = vmul.f32 %v8696, %v8696
        %v8713 = vmul.f32 %v8697, %v8697
        %v8714 = vmul.f32 %v8698, %v8698
        %v8715 = vmul.f32 %v8699, %v8699
        %v8716 = vmul.f32 %v8700, %v8700
        %v8717 = vmul.f32 %v8701, %v8701
        %v8718 = vmul.f32 %v8702, %v8702
        %v8719 = vsub.f32 %v8703, %v8711
        %v8720 = vsub.f32 %v8704, %v8712
        %v8721 = vsub.f32 %v8705, %v8713
        %v8722 = vsub.f32 %v8706, %v8714
        %v8723 = vsub.f32 %v8707, %v8715
        %v8724 = vsub.f32 %v8708, %v8716
        %v8725 = vsub.f32 %v8709, %v8717
        %v8726 = vsub.f32 %v8710, %v8718
        %v8727 = vmax.f32 %v8719, 0.0
        %v8728 = vmax.f32 %v8720, 0.0
        %v8729 = vmax.f32 %v8721, 0.0
        %v8730 = vmax.f32 %v8722, 0.0
        %v8731 = vmax.f32 %v8723, 0.0
        %v8732 = vmax.f32 %v8724, 0.0
        %v8733 = vmax.f32 %v8725, 0.0
        %v8734 = vmax.f32 %v8726, 0.0
        %v8735 = vsub.f32 %v8071, %v8695
        %v8736 = vsub.f32 %v8072, %v8696
        %v8737 = vsub.f32 %v8073, %v8697
        %v8738 = vsub.f32 %v8074, %v8698
        %v8739 = vsub.f32 %v8075, %v8699
        %v8740 = vsub.f32 %v8076, %v8700
        %v8741 = vsub.f32 %v8077, %v8701
        %v8742 = vsub.f32 %v8078, %v8702
        %v8743 = vsub.f32 %v8079, %v8695
        %v8744 = vsub.f32 %v8080, %v8696
        %v8745 = vsub.f32 %v8081, %v8697
        %v8746 = vsub.f32 %v8082, %v8698
        %v8747 = vsub.f32 %v8083, %v8699
        %v8748 = vsub.f32 %v8084, %v8700
        %v8749 = vsub.f32 %v8085, %v8701
        %v8750 = vsub.f32 %v8086, %v8702
        %v8751 = vsub.f32 %v8087, %v8695
        %v8752 = vsub.f32 %v8088, %v8696
        %v8753 = vsub.f32 %v8089, %v8697
        %v8754 = vsub.f32 %v8090, %v8698
        %v8755 = vsub.f32 %v8091, %v8699
        %v8756 = vsub.f32 %v8092, %v8700
        %v8757 = vsub.f32 %v8093, %v8701
        %v8758 = vsub.f32 %v8094, %v8702
        %v8759 = vsub.f32 %v8095, %v8695
        %v8760 = vsub.f32 %v8096, %v8696
        %v8761 = vsub.f32 %v8097, %v8697
        %v8762 = vsub.f32 %v8098, %v8698
        %v8763 = vsub.f32 %v8099, %v8699
        %v8764 = vsub.f32 %v8100, %v8700
        %v8765 = vsub.f32 %v8101, %v8701
        %v8766 = vsub.f32 %v8102, %v8702
        %v8767 = vsub.f32 %v8103, %v8695
        %v8768 = vsub.f32 %v8104, %v8696
        %v8769 = vsub.f32 %v8105, %v8697
        %v8770 = vsub.f32 %v8106, %v8698
        %v8771 = vsub.f32 %v8107, %v8699
        %v8772 = vsub.f32 %v8108, %v8700
        %v8773 = vsub.f32 %v8109, %v8701
        %v8774 = vsub.f32 %v8110, %v8702
        %v8775 = vsub.f32 %v8111, %v8695
        %v8776 = vsub.f32 %v8112, %v8696
        %v8777 = vsub.f32 %v8113, %v8697
        %v8778 = vsub.f32 %v8114, %v8698
        %v8779 = vsub.f32 %v8115, %v8699
        %v8780 = vsub.f32 %v8116, %v8700
        %v8781 = vsub.f32 %v8117, %v8701
        %v8782 = vsub.f32 %v8118, %v8702
        %v8783 = vsub.f32 %v8119, %v8695
        %v8784 = vsub.f32 %v8120, %v8696
        %v8785 = vsub.f32 %v8121, %v8697
        %v8786 = vsub.f32 %v8122, %v8698
        %v8787 = vsub.f32 %v8123, %v8699
        %v8788 = vsub.f32 %v8124, %v8700
        %v8789 = vsub.f32 %v8125, %v8701
        %v8790 = vsub.f32 %v8126, %v8702
        %v8791 = vsub.f32 %v8127, %v8695
        %v8792 = vsub.f32 %v8128, %v8696
        %v8793 = vsub.f32 %v8129, %v8697
        %v8794 = vsub.f32 %v8130, %v8698
        %v8795 = vsub.f32 %v8131, %v8699
        %v8796 = vsub.f32 %v8132, %v8700
        %v8797 = vsub.f32 %v8133, %v8701
        %v8798 = vsub.f32 %v8134, %v8702
        %v8799 = vsub.f32 %v8135, %v8695
        %v8800 = vsub.f32 %v8136, %v8696
        %v8801 = vsub.f32 %v8137, %v8697
        %v8802 = vsub.f32 %v8138, %v8698
        %v8803 = vsub.f32 %v8139, %v8699
        %v8804 = vsub.f32 %v8140, %v8700
        %v8805 = vsub.f32 %v8141, %v8701
        %v8806 = vsub.f32 %v8142, %v8702
        %v8807 = vsub.f32 %v8143, %v8695
        %v8808 = vsub.f32 %v8144, %v8696
        %v8809 = vsub.f32 %v8145, %v8697
        %v8810 = vsub.f32 %v8146, %v8698
        %v8811 = vsub.f32 %v8147, %v8699
        %v8812 = vsub.f32 %v8148, %v8700
        %v8813 = vsub.f32 %v8149, %v8701
        %v8814 = vsub.f32 %v8150, %v8702
        %v8815 = vsub.f32 %v8151, %v8695
        %v8816 = vsub.f32 %v8152, %v8696
        %v8817 = vsub.f32 %v8153, %v8697
        %v8818 = vsub.f32 %v8154, %v8698
        %v8819 = vsub.f32 %v8155, %v8699
        %v8820 = vsub.f32 %v8156, %v8700
        %v8821 = vsub.f32 %v8157, %v8701
        %v8822 = vsub.f32 %v8158, %v8702
        %v8823 = vsub.f32 %v8159, %v8695
        %v8824 = vsub.f32 %v8160, %v8696
        %v8825 = vsub.f32 %v8161, %v8697
        %v8826 = vsub.f32 %v8162, %v8698
        %v8827 = vsub.f32 %v8163, %v8699
        %v8828 = vsub.f32 %v8164, %v8700
        %v8829 = vsub.f32 %v8165, %v8701
        %v8830 = vsub.f32 %v8166, %v8702
        %v8831 = vsub.f32 %v8167, %v8695
        %v8832 = vsub.f32 %v8168, %v8696
        %v8833 = vsub.f32 %v8169, %v8697
        %v8834 = vsub.f32 %v8170, %v8698
        %v8835 = vsub.f32 %v8171, %v8699
        %v8836 = vsub.f32 %v8172, %v8700
        %v8837 = vsub.f32 %v8173, %v8701
        %v8838 = vsub.f32 %v8174, %v8702
        %v8839 = vsub.f32 %v8175, %v8695
        %v8840 = vsub.f32 %v8176, %v8696
        %v8841 = vsub.f32 %v8177, %v8697
        %v8842 = vsub.f32 %v8178, %v8698
        %v8843 = vsub.f32 %v8179, %v8699
        %v8844 = vsub.f32 %v8180, %v8700
        %v8845 = vsub.f32 %v8181, %v8701
        %v8846 = vsub.f32 %v8182, %v8702
        %v8847 = vsub.f32 %v8183, %v8695
        %v8848 = vsub.f32 %v8184, %v8696
        %v8849 = vsub.f32 %v8185, %v8697
        %v8850 = vsub.f32 %v8186, %v8698
        %v8851 = vsub.f32 %v8187, %v8699
        %v8852 = vsub.f32 %v8188, %v8700
        %v8853 = vsub.f32 %v8189, %v8701
        %v8854 = vsub.f32 %v8190, %v8702
        %v8855 = vsub.f32 %v8191, %v8695
        %v8856 = vsub.f32 %v8192, %v8696
        %v8857 = vsub.f32 %v8193, %v8697
        %v8858 = vsub.f32 %v8194, %v8698
        %v8859 = vsub.f32 %v8195, %v8699
        %v8860 = vsub.f32 %v8196, %v8700
        %v8861 = vsub.f32 %v8197, %v8701
        %v8862 = vsub.f32 %v8198, %v8702
        %v8863 = vadd.f32 %v8727, 1e-05
        %v8864 = vadd.f32 %v8728, 1e-05
        %v8865 = vadd.f32 %v8729, 1e-05
        %v8866 = vadd.f32 %v8730, 1e-05
        %v8867 = vadd.f32 %v8731, 1e-05
        %v8868 = vadd.f32 %v8732, 1e-05
        %v8869 = vadd.f32 %v8733, 1e-05
        %v8870 = vadd.f32 %v8734, 1e-05
        %v8871 = vrsqrt.pop %v8863
        %v8872 = vrsqrt.pop %v8864
        %v8873 = vrsqrt.pop %v8865
        %v8874 = vrsqrt.pop %v8866
        %v8875 = vrsqrt.pop %v8867
        %v8876 = vrsqrt.pop %v8868
        %v8877 = vrsqrt.pop %v8869
        %v8878 = vrsqrt.pop %v8870
        %v8879 = vmul.f32 %v8735, %v8871
        %v8880 = vmul.f32 %v8736, %v8872
        %v8881 = vmul.f32 %v8737, %v8873
        %v8882 = vmul.f32 %v8738, %v8874
        %v8883 = vmul.f32 %v8739, %v8875
        %v8884 = vmul.f32 %v8740, %v8876
        %v8885 = vmul.f32 %v8741, %v8877
        %v8886 = vmul.f32 %v8742, %v8878
        %v8887 = vmul.f32 %v8743, %v8871
        %v8888 = vmul.f32 %v8744, %v8872
        %v8889 = vmul.f32 %v8745, %v8873
        %v8890 = vmul.f32 %v8746, %v8874
        %v8891 = vmul.f32 %v8747, %v8875
        %v8892 = vmul.f32 %v8748, %v8876
        %v8893 = vmul.f32 %v8749, %v8877
        %v8894 = vmul.f32 %v8750, %v8878
        %v8895 = vmul.f32 %v8751, %v8871
        %v8896 = vmul.f32 %v8752, %v8872
        %v8897 = vmul.f32 %v8753, %v8873
        %v8898 = vmul.f32 %v8754, %v8874
        %v8899 = vmul.f32 %v8755, %v8875
        %v8900 = vmul.f32 %v8756, %v8876
        %v8901 = vmul.f32 %v8757, %v8877
        %v8902 = vmul.f32 %v8758, %v8878
        %v8903 = vmul.f32 %v8759, %v8871
        %v8904 = vmul.f32 %v8760, %v8872
        %v8905 = vmul.f32 %v8761, %v8873
        %v8906 = vmul.f32 %v8762, %v8874
        %v8907 = vmul.f32 %v8763, %v8875
        %v8908 = vmul.f32 %v8764, %v8876
        %v8909 = vmul.f32 %v8765, %v8877
        %v8910 = vmul.f32 %v8766, %v8878
        %v8911 = vmul.f32 %v8767, %v8871
        %v8912 = vmul.f32 %v8768, %v8872
        %v8913 = vmul.f32 %v8769, %v8873
        %v8914 = vmul.f32 %v8770, %v8874
        %v8915 = vmul.f32 %v8771, %v8875
        %v8916 = vmul.f32 %v8772, %v8876
        %v8917 = vmul.f32 %v8773, %v8877
        %v8918 = vmul.f32 %v8774, %v8878
        %v8919 = vmul.f32 %v8775, %v8871
        %v8920 = vmul.f32 %v8776, %v8872
        %v8921 = vmul.f32 %v8777, %v8873
        %v8922 = vmul.f32 %v8778, %v8874
        %v8923 = vmul.f32 %v8779, %v8875
        %v8924 = vmul.f32 %v8780, %v8876
        %v8925 = vmul.f32 %v8781, %v8877
        %v8926 = vmul.f32 %v8782, %v8878
        %v8927 = vmul.f32 %v8783, %v8871
        %v8928 = vmul.f32 %v8784, %v8872
        %v8929 = vmul.f32 %v8785, %v8873
        %v8930 = vmul.f32 %v8786, %v8874
        %v8931 = vmul.f32 %v8787, %v8875
        %v8932 = vmul.f32 %v8788, %v8876
        %v8933 = vmul.f32 %v8789, %v8877
        %v8934 = vmul.f32 %v8790, %v8878
        %v8935 = vmul.f32 %v8791, %v8871
        %v8936 = vmul.f32 %v8792, %v8872
        %v8937 = vmul.f32 %v8793, %v8873
        %v8938 = vmul.f32 %v8794, %v8874
        %v8939 = vmul.f32 %v8795, %v8875
        %v8940 = vmul.f32 %v8796, %v8876
        %v8941 = vmul.f32 %v8797, %v8877
        %v8942 = vmul.f32 %v8798, %v8878
        %v8943 = vmul.f32 %v8799, %v8871
        %v8944 = vmul.f32 %v8800, %v8872
        %v8945 = vmul.f32 %v8801, %v8873
        %v8946 = vmul.f32 %v8802, %v8874
        %v8947 = vmul.f32 %v8803, %v8875
        %v8948 = vmul.f32 %v8804, %v8876
        %v8949 = vmul.f32 %v8805, %v8877
        %v8950 = vmul.f32 %v8806, %v8878
        %v8951 = vmul.f32 %v8807, %v8871
        %v8952 = vmul.f32 %v8808, %v8872
        %v8953 = vmul.f32 %v8809, %v8873
        %v8954 = vmul.f32 %v8810, %v8874
        %v8955 = vmul.f32 %v8811, %v8875
        %v8956 = vmul.f32 %v8812, %v8876
        %v8957 = vmul.f32 %v8813, %v8877
        %v8958 = vmul.f32 %v8814, %v8878
        %v8959 = vmul.f32 %v8815, %v8871
        %v8960 = vmul.f32 %v8816, %v8872
        %v8961 = vmul.f32 %v8817, %v8873
        %v8962 = vmul.f32 %v8818, %v8874
        %v8963 = vmul.f32 %v8819, %v8875
        %v8964 = vmul.f32 %v8820, %v8876
        %v8965 = vmul.f32 %v8821, %v8877
        %v8966 = vmul.f32 %v8822, %v8878
        %v8967 = vmul.f32 %v8823, %v8871
        %v8968 = vmul.f32 %v8824, %v8872
        %v8969 = vmul.f32 %v8825, %v8873
        %v8970 = vmul.f32 %v8826, %v8874
        %v8971 = vmul.f32 %v8827, %v8875
        %v8972 = vmul.f32 %v8828, %v8876
        %v8973 = vmul.f32 %v8829, %v8877
        %v8974 = vmul.f32 %v8830, %v8878
        %v8975 = vmul.f32 %v8831, %v8871
        %v8976 = vmul.f32 %v8832, %v8872
        %v8977 = vmul.f32 %v8833, %v8873
        %v8978 = vmul.f32 %v8834, %v8874
        %v8979 = vmul.f32 %v8835, %v8875
        %v8980 = vmul.f32 %v8836, %v8876
        %v8981 = vmul.f32 %v8837, %v8877
        %v8982 = vmul.f32 %v8838, %v8878
        %v8983 = vmul.f32 %v8839, %v8871
        %v8984 = vmul.f32 %v8840, %v8872
        %v8985 = vmul.f32 %v8841, %v8873
        %v8986 = vmul.f32 %v8842, %v8874
        %v8987 = vmul.f32 %v8843, %v8875
        %v8988 = vmul.f32 %v8844, %v8876
        %v8989 = vmul.f32 %v8845, %v8877
        %v8990 = vmul.f32 %v8846, %v8878
        %v8991 = vmul.f32 %v8847, %v8871
        %v8992 = vmul.f32 %v8848, %v8872
        %v8993 = vmul.f32 %v8849, %v8873
        %v8994 = vmul.f32 %v8850, %v8874
        %v8995 = vmul.f32 %v8851, %v8875
        %v8996 = vmul.f32 %v8852, %v8876
        %v8997 = vmul.f32 %v8853, %v8877
        %v8998 = vmul.f32 %v8854, %v8878
        %v8999 = vmul.f32 %v8855, %v8871
        %v9000 = vmul.f32 %v8856, %v8872
        %v9001 = vmul.f32 %v8857, %v8873
        %v9002 = vmul.f32 %v8858, %v8874
        %v9003 = vmul.f32 %v8859, %v8875
        %v9004 = vmul.f32 %v8860, %v8876
        %v9005 = vmul.f32 %v8861, %v8877
        %v9006 = vmul.f32 %v8862, %v8878
        %9008 = vset.pattern.permute.xlu0 0
        %9009 = vperm.xlu0 %9008, %v8199
        %v9010 = vpop.permute.xlu0 %9009
        %9013 = vset.pattern.permute.xlu0 0
        %9014 = vperm.xlu0 %9013, %v8200
        %v9015 = vpop.permute.xlu0 %9014
        %9018 = vset.pattern.permute.xlu0 0
        %9019 = vperm.xlu0 %9018, %v8201
        %v9020 = vpop.permute.xlu0 %9019
        %9023 = vset.pattern.permute.xlu0 0
        %9024 = vperm.xlu0 %9023, %v8202
        %v9025 = vpop.permute.xlu0 %9024
        %9028 = vset.pattern.permute.xlu0 0
        %9029 = vperm.xlu0 %9028, %v8203
        %v9030 = vpop.permute.xlu0 %9029
        %9033 = vset.pattern.permute.xlu0 0
        %9034 = vperm.xlu0 %9033, %v8204
        %v9035 = vpop.permute.xlu0 %9034
        %9038 = vset.pattern.permute.xlu0 0
        %9039 = vperm.xlu0 %9038, %v8205
        %v9040 = vpop.permute.xlu0 %9039
        %9043 = vset.pattern.permute.xlu0 0
        %9044 = vperm.xlu0 %9043, %v8206
        %v9045 = vpop.permute.xlu0 %9044
        %9048 = vset.pattern.permute.xlu0 0
        %9049 = vperm.xlu0 %9048, %v8207
        %v9050 = vpop.permute.xlu0 %9049
        %9053 = vset.pattern.permute.xlu0 0
        %9054 = vperm.xlu0 %9053, %v8208
        %v9055 = vpop.permute.xlu0 %9054
        %9058 = vset.pattern.permute.xlu0 0
        %9059 = vperm.xlu0 %9058, %v8209
        %v9060 = vpop.permute.xlu0 %9059
        %9063 = vset.pattern.permute.xlu0 0
        %9064 = vperm.xlu0 %9063, %v8210
        %v9065 = vpop.permute.xlu0 %9064
        %9068 = vset.pattern.permute.xlu0 0
        %9069 = vperm.xlu0 %9068, %v8211
        %v9070 = vpop.permute.xlu0 %9069
        %9073 = vset.pattern.permute.xlu0 0
        %9074 = vperm.xlu0 %9073, %v8212
        %v9075 = vpop.permute.xlu0 %9074
        %9078 = vset.pattern.permute.xlu0 0
        %9079 = vperm.xlu0 %9078, %v8213
        %v9080 = vpop.permute.xlu0 %9079
        %9083 = vset.pattern.permute.xlu0 0
        %9084 = vperm.xlu0 %9083, %v8214
        %v9085 = vpop.permute.xlu0 %9084
        %v9087 = vmul.f32 %v8879, %v9010
        %v9088 = vmul.f32 %v8880, %v9010
        %v9089 = vmul.f32 %v8881, %v9010
        %v9090 = vmul.f32 %v8882, %v9010
        %v9091 = vmul.f32 %v8883, %v9010
        %v9092 = vmul.f32 %v8884, %v9010
        %v9093 = vmul.f32 %v8885, %v9010
        %v9094 = vmul.f32 %v8886, %v9010
        %v9095 = vmul.f32 %v8887, %v9015
        %v9096 = vmul.f32 %v8888, %v9015
        %v9097 = vmul.f32 %v8889, %v9015
        %v9098 = vmul.f32 %v8890, %v9015
        %v9099 = vmul.f32 %v8891, %v9015
        %v9100 = vmul.f32 %v8892, %v9015
        %v9101 = vmul.f32 %v8893, %v9015
        %v9102 = vmul.f32 %v8894, %v9015
        %v9103 = vmul.f32 %v8895, %v9020
        %v9104 = vmul.f32 %v8896, %v9020
        %v9105 = vmul.f32 %v8897, %v9020
        %v9106 = vmul.f32 %v8898, %v9020
        %v9107 = vmul.f32 %v8899, %v9020
        %v9108 = vmul.f32 %v8900, %v9020
        %v9109 = vmul.f32 %v8901, %v9020
        %v9110 = vmul.f32 %v8902, %v9020
        %v9111 = vmul.f32 %v8903, %v9025
        %v9112 = vmul.f32 %v8904, %v9025
        %v9113 = vmul.f32 %v8905, %v9025
        %v9114 = vmul.f32 %v8906, %v9025
        %v9115 = vmul.f32 %v8907, %v9025
        %v9116 = vmul.f32 %v8908, %v9025
        %v9117 = vmul.f32 %v8909, %v9025
        %v9118 = vmul.f32 %v8910, %v9025
        %v9119 = vmul.f32 %v8911, %v9030
        %v9120 = vmul.f32 %v8912, %v9030
        %v9121 = vmul.f32 %v8913, %v9030
        %v9122 = vmul.f32 %v8914, %v9030
        %v9123 = vmul.f32 %v8915, %v9030
        %v9124 = vmul.f32 %v8916, %v9030
        %v9125 = vmul.f32 %v8917, %v9030
        %v9126 = vmul.f32 %v8918, %v9030
        %v9127 = vmul.f32 %v8919, %v9035
        %v9128 = vmul.f32 %v8920, %v9035
        %v9129 = vmul.f32 %v8921, %v9035
        %v9130 = vmul.f32 %v8922, %v9035
        %v9131 = vmul.f32 %v8923, %v9035
        %v9132 = vmul.f32 %v8924, %v9035
        %v9133 = vmul.f32 %v8925, %v9035
        %v9134 = vmul.f32 %v8926, %v9035
        %v9135 = vmul.f32 %v8927, %v9040
        %v9136 = vmul.f32 %v8928, %v9040
        %v9137 = vmul.f32 %v8929, %v9040
        %v9138 = vmul.f32 %v8930, %v9040
        %v9139 = vmul.f32 %v8931, %v9040
        %v9140 = vmul.f32 %v8932, %v9040
        %v9141 = vmul.f32 %v8933, %v9040
        %v9142 = vmul.f32 %v8934, %v9040
        %v9143 = vmul.f32 %v8935, %v9045
        %v9144 = vmul.f32 %v8936, %v9045
        %v9145 = vmul.f32 %v8937, %v9045
        %v9146 = vmul.f32 %v8938, %v9045
        %v9147 = vmul.f32 %v8939, %v9045
        %v9148 = vmul.f32 %v8940, %v9045
        %v9149 = vmul.f32 %v8941, %v9045
        %v9150 = vmul.f32 %v8942, %v9045
        %v9151 = vmul.f32 %v8943, %v9050
        %v9152 = vmul.f32 %v8944, %v9050
        %v9153 = vmul.f32 %v8945, %v9050
        %v9154 = vmul.f32 %v8946, %v9050
        %v9155 = vmul.f32 %v8947, %v9050
        %v9156 = vmul.f32 %v8948, %v9050
        %v9157 = vmul.f32 %v8949, %v9050
        %v9158 = vmul.f32 %v8950, %v9050
        %v9159 = vmul.f32 %v8951, %v9055
        %v9160 = vmul.f32 %v8952, %v9055
        %v9161 = vmul.f32 %v8953, %v9055
        %v9162 = vmul.f32 %v8954, %v9055
        %v9163 = vmul.f32 %v8955, %v9055
        %v9164 = vmul.f32 %v8956, %v9055
        %v9165 = vmul.f32 %v8957, %v9055
        %v9166 = vmul.f32 %v8958, %v9055
        %v9167 = vmul.f32 %v8959, %v9060
        %v9168 = vmul.f32 %v8960, %v9060
        %v9169 = vmul.f32 %v8961, %v9060
        %v9170 = vmul.f32 %v8962, %v9060
        %v9171 = vmul.f32 %v8963, %v9060
        %v9172 = vmul.f32 %v8964, %v9060
        %v9173 = vmul.f32 %v8965, %v9060
        %v9174 = vmul.f32 %v8966, %v9060
        %v9175 = vmul.f32 %v8967, %v9065
        %v9176 = vmul.f32 %v8968, %v9065
        %v9177 = vmul.f32 %v8969, %v9065
        %v9178 = vmul.f32 %v8970, %v9065
        %v9179 = vmul.f32 %v8971, %v9065
        %v9180 = vmul.f32 %v8972, %v9065
        %v9181 = vmul.f32 %v8973, %v9065
        %v9182 = vmul.f32 %v8974, %v9065
        %v9183 = vmul.f32 %v8975, %v9070
        %v9184 = vmul.f32 %v8976, %v9070
        %v9185 = vmul.f32 %v8977, %v9070
        %v9186 = vmul.f32 %v8978, %v9070
        %v9187 = vmul.f32 %v8979, %v9070
        %v9188 = vmul.f32 %v8980, %v9070
        %v9189 = vmul.f32 %v8981, %v9070
        %v9190 = vmul.f32 %v8982, %v9070
        %v9191 = vmul.f32 %v8983, %v9075
        %v9192 = vmul.f32 %v8984, %v9075
        %v9193 = vmul.f32 %v8985, %v9075
        %v9194 = vmul.f32 %v8986, %v9075
        %v9195 = vmul.f32 %v8987, %v9075
        %v9196 = vmul.f32 %v8988, %v9075
        %v9197 = vmul.f32 %v8989, %v9075
        %v9198 = vmul.f32 %v8990, %v9075
        %v9199 = vmul.f32 %v8991, %v9080
        %v9200 = vmul.f32 %v8992, %v9080
        %v9201 = vmul.f32 %v8993, %v9080
        %v9202 = vmul.f32 %v8994, %v9080
        %v9203 = vmul.f32 %v8995, %v9080
        %v9204 = vmul.f32 %v8996, %v9080
        %v9205 = vmul.f32 %v8997, %v9080
        %v9206 = vmul.f32 %v8998, %v9080
        %v9207 = vmul.f32 %v8999, %v9085
        %v9208 = vmul.f32 %v9000, %v9085
        %v9209 = vmul.f32 %v9001, %v9085
        %v9210 = vmul.f32 %v9002, %v9085
        %v9211 = vmul.f32 %v9003, %v9085
        %v9212 = vmul.f32 %v9004, %v9085
        %v9213 = vmul.f32 %v9005, %v9085
        %v9214 = vmul.f32 %v9006, %v9085
        %9216 = vset.pattern.permute.xlu0 0
        %9217 = vperm.xlu0 %9216, %v8215
        %v9218 = vpop.permute.xlu0 %9217
        %9221 = vset.pattern.permute.xlu0 0
        %9222 = vperm.xlu0 %9221, %v8216
        %v9223 = vpop.permute.xlu0 %9222
        %9226 = vset.pattern.permute.xlu0 0
        %9227 = vperm.xlu0 %9226, %v8217
        %v9228 = vpop.permute.xlu0 %9227
        %9231 = vset.pattern.permute.xlu0 0
        %9232 = vperm.xlu0 %9231, %v8218
        %v9233 = vpop.permute.xlu0 %9232
        %9236 = vset.pattern.permute.xlu0 0
        %9237 = vperm.xlu0 %9236, %v8219
        %v9238 = vpop.permute.xlu0 %9237
        %9241 = vset.pattern.permute.xlu0 0
        %9242 = vperm.xlu0 %9241, %v8220
        %v9243 = vpop.permute.xlu0 %9242
        %9246 = vset.pattern.permute.xlu0 0
        %9247 = vperm.xlu0 %9246, %v8221
        %v9248 = vpop.permute.xlu0 %9247
        %9251 = vset.pattern.permute.xlu0 0
        %9252 = vperm.xlu0 %9251, %v8222
        %v9253 = vpop.permute.xlu0 %9252
        %9256 = vset.pattern.permute.xlu0 0
        %9257 = vperm.xlu0 %9256, %v8223
        %v9258 = vpop.permute.xlu0 %9257
        %9261 = vset.pattern.permute.xlu0 0
        %9262 = vperm.xlu0 %9261, %v8224
        %v9263 = vpop.permute.xlu0 %9262
        %9266 = vset.pattern.permute.xlu0 0
        %9267 = vperm.xlu0 %9266, %v8225
        %v9268 = vpop.permute.xlu0 %9267
        %9271 = vset.pattern.permute.xlu0 0
        %9272 = vperm.xlu0 %9271, %v8226
        %v9273 = vpop.permute.xlu0 %9272
        %9276 = vset.pattern.permute.xlu0 0
        %9277 = vperm.xlu0 %9276, %v8227
        %v9278 = vpop.permute.xlu0 %9277
        %9281 = vset.pattern.permute.xlu0 0
        %9282 = vperm.xlu0 %9281, %v8228
        %v9283 = vpop.permute.xlu0 %9282
        %9286 = vset.pattern.permute.xlu0 0
        %9287 = vperm.xlu0 %9286, %v8229
        %v9288 = vpop.permute.xlu0 %9287
        %9291 = vset.pattern.permute.xlu0 0
        %9292 = vperm.xlu0 %9291, %v8230
        %v9293 = vpop.permute.xlu0 %9292
        %v9295 = vadd.f32 %v9087, %v9218
        %v9296 = vadd.f32 %v9088, %v9218
        %v9297 = vadd.f32 %v9089, %v9218
        %v9298 = vadd.f32 %v9090, %v9218
        %v9299 = vadd.f32 %v9091, %v9218
        %v9300 = vadd.f32 %v9092, %v9218
        %v9301 = vadd.f32 %v9093, %v9218
        %v9302 = vadd.f32 %v9094, %v9218
        %v9303 = vadd.f32 %v9095, %v9223
        %v9304 = vadd.f32 %v9096, %v9223
        %v9305 = vadd.f32 %v9097, %v9223
        %v9306 = vadd.f32 %v9098, %v9223
        %v9307 = vadd.f32 %v9099, %v9223
        %v9308 = vadd.f32 %v9100, %v9223
        %v9309 = vadd.f32 %v9101, %v9223
        %v9310 = vadd.f32 %v9102, %v9223
        %v9311 = vadd.f32 %v9103, %v9228
        %v9312 = vadd.f32 %v9104, %v9228
        %v9313 = vadd.f32 %v9105, %v9228
        %v9314 = vadd.f32 %v9106, %v9228
        %v9315 = vadd.f32 %v9107, %v9228
        %v9316 = vadd.f32 %v9108, %v9228
        %v9317 = vadd.f32 %v9109, %v9228
        %v9318 = vadd.f32 %v9110, %v9228
        %v9319 = vadd.f32 %v9111, %v9233
        %v9320 = vadd.f32 %v9112, %v9233
        %v9321 = vadd.f32 %v9113, %v9233
        %v9322 = vadd.f32 %v9114, %v9233
        %v9323 = vadd.f32 %v9115, %v9233
        %v9324 = vadd.f32 %v9116, %v9233
        %v9325 = vadd.f32 %v9117, %v9233
        %v9326 = vadd.f32 %v9118, %v9233
        %v9327 = vadd.f32 %v9119, %v9238
        %v9328 = vadd.f32 %v9120, %v9238
        %v9329 = vadd.f32 %v9121, %v9238
        %v9330 = vadd.f32 %v9122, %v9238
        %v9331 = vadd.f32 %v9123, %v9238
        %v9332 = vadd.f32 %v9124, %v9238
        %v9333 = vadd.f32 %v9125, %v9238
        %v9334 = vadd.f32 %v9126, %v9238
        %v9335 = vadd.f32 %v9127, %v9243
        %v9336 = vadd.f32 %v9128, %v9243
        %v9337 = vadd.f32 %v9129, %v9243
        %v9338 = vadd.f32 %v9130, %v9243
        %v9339 = vadd.f32 %v9131, %v9243
        %v9340 = vadd.f32 %v9132, %v9243
        %v9341 = vadd.f32 %v9133, %v9243
        %v9342 = vadd.f32 %v9134, %v9243
        %v9343 = vadd.f32 %v9135, %v9248
        %v9344 = vadd.f32 %v9136, %v9248
        %v9345 = vadd.f32 %v9137, %v9248
        %v9346 = vadd.f32 %v9138, %v9248
        %v9347 = vadd.f32 %v9139, %v9248
        %v9348 = vadd.f32 %v9140, %v9248
        %v9349 = vadd.f32 %v9141, %v9248
        %v9350 = vadd.f32 %v9142, %v9248
        %v9351 = vadd.f32 %v9143, %v9253
        %v9352 = vadd.f32 %v9144, %v9253
        %v9353 = vadd.f32 %v9145, %v9253
        %v9354 = vadd.f32 %v9146, %v9253
        %v9355 = vadd.f32 %v9147, %v9253
        %v9356 = vadd.f32 %v9148, %v9253
        %v9357 = vadd.f32 %v9149, %v9253
        %v9358 = vadd.f32 %v9150, %v9253
        %v9359 = vadd.f32 %v9151, %v9258
        %v9360 = vadd.f32 %v9152, %v9258
        %v9361 = vadd.f32 %v9153, %v9258
        %v9362 = vadd.f32 %v9154, %v9258
        %v9363 = vadd.f32 %v9155, %v9258
        %v9364 = vadd.f32 %v9156, %v9258
        %v9365 = vadd.f32 %v9157, %v9258
        %v9366 = vadd.f32 %v9158, %v9258
        %v9367 = vadd.f32 %v9159, %v9263
        %v9368 = vadd.f32 %v9160, %v9263
        %v9369 = vadd.f32 %v9161, %v9263
        %v9370 = vadd.f32 %v9162, %v9263
        %v9371 = vadd.f32 %v9163, %v9263
        %v9372 = vadd.f32 %v9164, %v9263
        %v9373 = vadd.f32 %v9165, %v9263
        %v9374 = vadd.f32 %v9166, %v9263
        %v9375 = vadd.f32 %v9167, %v9268
        %v9376 = vadd.f32 %v9168, %v9268
        %v9377 = vadd.f32 %v9169, %v9268
        %v9378 = vadd.f32 %v9170, %v9268
        %v9379 = vadd.f32 %v9171, %v9268
        %v9380 = vadd.f32 %v9172, %v9268
        %v9381 = vadd.f32 %v9173, %v9268
        %v9382 = vadd.f32 %v9174, %v9268
        %v9383 = vadd.f32 %v9175, %v9273
        %v9384 = vadd.f32 %v9176, %v9273
        %v9385 = vadd.f32 %v9177, %v9273
        %v9386 = vadd.f32 %v9178, %v9273
        %v9387 = vadd.f32 %v9179, %v9273
        %v9388 = vadd.f32 %v9180, %v9273
        %v9389 = vadd.f32 %v9181, %v9273
        %v9390 = vadd.f32 %v9182, %v9273
        %v9391 = vadd.f32 %v9183, %v9278
        %v9392 = vadd.f32 %v9184, %v9278
        %v9393 = vadd.f32 %v9185, %v9278
        %v9394 = vadd.f32 %v9186, %v9278
        %v9395 = vadd.f32 %v9187, %v9278
        %v9396 = vadd.f32 %v9188, %v9278
        %v9397 = vadd.f32 %v9189, %v9278
        %v9398 = vadd.f32 %v9190, %v9278
        %v9399 = vadd.f32 %v9191, %v9283
        %v9400 = vadd.f32 %v9192, %v9283
        %v9401 = vadd.f32 %v9193, %v9283
        %v9402 = vadd.f32 %v9194, %v9283
        %v9403 = vadd.f32 %v9195, %v9283
        %v9404 = vadd.f32 %v9196, %v9283
        %v9405 = vadd.f32 %v9197, %v9283
        %v9406 = vadd.f32 %v9198, %v9283
        %v9407 = vadd.f32 %v9199, %v9288
        %v9408 = vadd.f32 %v9200, %v9288
        %v9409 = vadd.f32 %v9201, %v9288
        %v9410 = vadd.f32 %v9202, %v9288
        %v9411 = vadd.f32 %v9203, %v9288
        %v9412 = vadd.f32 %v9204, %v9288
        %v9413 = vadd.f32 %v9205, %v9288
        %v9414 = vadd.f32 %v9206, %v9288
        %v9415 = vadd.f32 %v9207, %v9293
        %v9416 = vadd.f32 %v9208, %v9293
        %v9417 = vadd.f32 %v9209, %v9293
        %v9418 = vadd.f32 %v9210, %v9293
        %v9419 = vadd.f32 %v9211, %v9293
        %v9420 = vadd.f32 %v9212, %v9293
        %v9421 = vadd.f32 %v9213, %v9293
        %v9422 = vadd.f32 %v9214, %v9293
        %9423 = vst [vmem:[%s458] sm:$0xff] %v9295
        %9424 = vst [vmem:[%s458 + $0x8] sm:$0xff] %v9296
        %9425 = vst [vmem:[%s458 + $0x10] sm:$0xff] %v9297
        %9426 = vst [vmem:[%s458 + $0x18] sm:$0xff] %v9298
        %9427 = vst [vmem:[%s458 + $0x20] sm:$0xff] %v9303
        %9428 = vst [vmem:[%s458 + $0x28] sm:$0xff] %v9304
        %9429 = vst [vmem:[%s458 + $0x30] sm:$0xff] %v9305
        %9430 = vst [vmem:[%s458 + $0x38] sm:$0xff] %v9306
        %9431 = vst [vmem:[%s458 + $0x40] sm:$0xff] %v9311
        %9432 = vst [vmem:[%s458 + $0x48] sm:$0xff] %v9312
        %9433 = vst [vmem:[%s458 + $0x50] sm:$0xff] %v9313
        %9434 = vst [vmem:[%s458 + $0x58] sm:$0xff] %v9314
        %9435 = vst [vmem:[%s458 + $0x60] sm:$0xff] %v9319
        %9436 = vst [vmem:[%s458 + $0x68] sm:$0xff] %v9320
        %9437 = vst [vmem:[%s458 + $0x70] sm:$0xff] %v9321
        %9438 = vst [vmem:[%s458 + $0x78] sm:$0xff] %v9322
        %9439 = vst [vmem:[%s458 + $0x80] sm:$0xff] %v9327
        %9440 = vst [vmem:[%s458 + $0x88] sm:$0xff] %v9328
        %9441 = vst [vmem:[%s458 + $0x90] sm:$0xff] %v9329
        %9442 = vst [vmem:[%s458 + $0x98] sm:$0xff] %v9330
        %9443 = vst [vmem:[%s458 + $0xa0] sm:$0xff] %v9335
        %9444 = vst [vmem:[%s458 + $0xa8] sm:$0xff] %v9336
        %9445 = vst [vmem:[%s458 + $0xb0] sm:$0xff] %v9337
        %9446 = vst [vmem:[%s458 + $0xb8] sm:$0xff] %v9338
        %9447 = vst [vmem:[%s458 + $0xc0] sm:$0xff] %v9343
        %9448 = vst [vmem:[%s458 + $0xc8] sm:$0xff] %v9344
        %9449 = vst [vmem:[%s458 + $0xd0] sm:$0xff] %v9345
        %9450 = vst [vmem:[%s458 + $0xd8] sm:$0xff] %v9346
        %9451 = vst [vmem:[%s458 + $0xe0] sm:$0xff] %v9351
        %9452 = vst [vmem:[%s458 + $0xe8] sm:$0xff] %v9352
        %9453 = vst [vmem:[%s458 + $0xf0] sm:$0xff] %v9353
        %9454 = vst [vmem:[%s458 + $0xf8] sm:$0xff] %v9354
        %9455 = vst [vmem:[%s458 + $0x100] sm:$0xff] %v9359
        %9456 = vst [vmem:[%s458 + $0x108] sm:$0xff] %v9360
        %9457 = vst [vmem:[%s458 + $0x110] sm:$0xff] %v9361
        %9458 = vst [vmem:[%s458 + $0x118] sm:$0xff] %v9362
        %9459 = vst [vmem:[%s458 + $0x120] sm:$0xff] %v9367
        %9460 = vst [vmem:[%s458 + $0x128] sm:$0xff] %v9368
        %9461 = vst [vmem:[%s458 + $0x130] sm:$0xff] %v9369
        %9462 = vst [vmem:[%s458 + $0x138] sm:$0xff] %v9370
        %9463 = vst [vmem:[%s458 + $0x140] sm:$0xff] %v9375
        %9464 = vst [vmem:[%s458 + $0x148] sm:$0xff] %v9376
        %9465 = vst [vmem:[%s458 + $0x150] sm:$0xff] %v9377
        %9466 = vst [vmem:[%s458 + $0x158] sm:$0xff] %v9378
        %9467 = vst [vmem:[%s458 + $0x160] sm:$0xff] %v9383
        %9468 = vst [vmem:[%s458 + $0x168] sm:$0xff] %v9384
        %9469 = vst [vmem:[%s458 + $0x170] sm:$0xff] %v9385
        %9470 = vst [vmem:[%s458 + $0x178] sm:$0xff] %v9386
        %9471 = vst [vmem:[%s458 + $0x180] sm:$0xff] %v9391
        %9472 = vst [vmem:[%s458 + $0x188] sm:$0xff] %v9392
        %9473 = vst [vmem:[%s458 + $0x190] sm:$0xff] %v9393
        %9474 = vst [vmem:[%s458 + $0x198] sm:$0xff] %v9394
        %9475 = vst [vmem:[%s458 + $0x1a0] sm:$0xff] %v9399
        %9476 = vst [vmem:[%s458 + $0x1a8] sm:$0xff] %v9400
        %9477 = vst [vmem:[%s458 + $0x1b0] sm:$0xff] %v9401
        %9478 = vst [vmem:[%s458 + $0x1b8] sm:$0xff] %v9402
        %9479 = vst [vmem:[%s458 + $0x1c0] sm:$0xff] %v9407
        %9480 = vst [vmem:[%s458 + $0x1c8] sm:$0xff] %v9408
        %9481 = vst [vmem:[%s458 + $0x1d0] sm:$0xff] %v9409
        %9482 = vst [vmem:[%s458 + $0x1d8] sm:$0xff] %v9410
        %9483 = vst [vmem:[%s458 + $0x1e0] sm:$0xff] %v9415
        %9484 = vst [vmem:[%s458 + $0x1e8] sm:$0xff] %v9416
        %9485 = vst [vmem:[%s458 + $0x1f0] sm:$0xff] %v9417
        %9486 = vst [vmem:[%s458 + $0x1f8] sm:$0xff] %v9418
        %s9487 = scalar_lea.vmem %s458, 512 [#allocation5]
        %9488 = vst [vmem:[%s9487] sm:$0xff] %v9299
        %9489 = vst [vmem:[%s9487 + $0x8] sm:$0xff] %v9300
        %9490 = vst [vmem:[%s9487 + $0x10] sm:$0xff] %v9301
        %9491 = vst [vmem:[%s9487 + $0x18] sm:$0xff] %v9302
        %9492 = vst [vmem:[%s9487 + $0x20] sm:$0xff] %v9307
        %9493 = vst [vmem:[%s9487 + $0x28] sm:$0xff] %v9308
        %9494 = vst [vmem:[%s9487 + $0x30] sm:$0xff] %v9309
        %9495 = vst [vmem:[%s9487 + $0x38] sm:$0xff] %v9310
        %9496 = vst [vmem:[%s9487 + $0x40] sm:$0xff] %v9315
        %9497 = vst [vmem:[%s9487 + $0x48] sm:$0xff] %v9316
        %9498 = vst [vmem:[%s9487 + $0x50] sm:$0xff] %v9317
        %9499 = vst [vmem:[%s9487 + $0x58] sm:$0xff] %v9318
        %9500 = vst [vmem:[%s9487 + $0x60] sm:$0xff] %v9323
        %9501 = vst [vmem:[%s9487 + $0x68] sm:$0xff] %v9324
        %9502 = vst [vmem:[%s9487 + $0x70] sm:$0xff] %v9325
        %9503 = vst [vmem:[%s9487 + $0x78] sm:$0xff] %v9326
        %9504 = vst [vmem:[%s9487 + $0x80] sm:$0xff] %v9331
        %9505 = vst [vmem:[%s9487 + $0x88] sm:$0xff] %v9332
        %9506 = vst [vmem:[%s9487 + $0x90] sm:$0xff] %v9333
        %9507 = vst [vmem:[%s9487 + $0x98] sm:$0xff] %v9334
        %9508 = vst [vmem:[%s9487 + $0xa0] sm:$0xff] %v9339
        %9509 = vst [vmem:[%s9487 + $0xa8] sm:$0xff] %v9340
        %9510 = vst [vmem:[%s9487 + $0xb0] sm:$0xff] %v9341
        %9511 = vst [vmem:[%s9487 + $0xb8] sm:$0xff] %v9342
        %9512 = vst [vmem:[%s9487 + $0xc0] sm:$0xff] %v9347
        %9513 = vst [vmem:[%s9487 + $0xc8] sm:$0xff] %v9348
        %9514 = vst [vmem:[%s9487 + $0xd0] sm:$0xff] %v9349
        %9515 = vst [vmem:[%s9487 + $0xd8] sm:$0xff] %v9350
        %9516 = vst [vmem:[%s9487 + $0xe0] sm:$0xff] %v9355
        %9517 = vst [vmem:[%s9487 + $0xe8] sm:$0xff] %v9356
        %9518 = vst [vmem:[%s9487 + $0xf0] sm:$0xff] %v9357
        %9519 = vst [vmem:[%s9487 + $0xf8] sm:$0xff] %v9358
        %9520 = vst [vmem:[%s9487 + $0x100] sm:$0xff] %v9363
        %9521 = vst [vmem:[%s9487 + $0x108] sm:$0xff] %v9364
        %9522 = vst [vmem:[%s9487 + $0x110] sm:$0xff] %v9365
        %9523 = vst [vmem:[%s9487 + $0x118] sm:$0xff] %v9366
        %9524 = vst [vmem:[%s9487 + $0x120] sm:$0xff] %v9371
        %9525 = vst [vmem:[%s9487 + $0x128] sm:$0xff] %v9372
        %9526 = vst [vmem:[%s9487 + $0x130] sm:$0xff] %v9373
        %9527 = vst [vmem:[%s9487 + $0x138] sm:$0xff] %v9374
        %9528 = vst [vmem:[%s9487 + $0x140] sm:$0xff] %v9379
        %9529 = vst [vmem:[%s9487 + $0x148] sm:$0xff] %v9380
        %9530 = vst [vmem:[%s9487 + $0x150] sm:$0xff] %v9381
        %9531 = vst [vmem:[%s9487 + $0x158] sm:$0xff] %v9382
        %9532 = vst [vmem:[%s9487 + $0x160] sm:$0xff] %v9387
        %9533 = vst [vmem:[%s9487 + $0x168] sm:$0xff] %v9388
        %9534 = vst [vmem:[%s9487 + $0x170] sm:$0xff] %v9389
        %9535 = vst [vmem:[%s9487 + $0x178] sm:$0xff] %v9390
        %9536 = vst [vmem:[%s9487 + $0x180] sm:$0xff] %v9395
        %9537 = vst [vmem:[%s9487 + $0x188] sm:$0xff] %v9396
        %9538 = vst [vmem:[%s9487 + $0x190] sm:$0xff] %v9397
        %9539 = vst [vmem:[%s9487 + $0x198] sm:$0xff] %v9398
        %9540 = vst [vmem:[%s9487 + $0x1a0] sm:$0xff] %v9403
        %9541 = vst [vmem:[%s9487 + $0x1a8] sm:$0xff] %v9404
        %9542 = vst [vmem:[%s9487 + $0x1b0] sm:$0xff] %v9405
        %9543 = vst [vmem:[%s9487 + $0x1b8] sm:$0xff] %v9406
        %9544 = vst [vmem:[%s9487 + $0x1c0] sm:$0xff] %v9411
        %9545 = vst [vmem:[%s9487 + $0x1c8] sm:$0xff] %v9412
        %9546 = vst [vmem:[%s9487 + $0x1d0] sm:$0xff] %v9413
        %9547 = vst [vmem:[%s9487 + $0x1d8] sm:$0xff] %v9414
        %9548 = vst [vmem:[%s9487 + $0x1e0] sm:$0xff] %v9419
        %9549 = vst [vmem:[%s9487 + $0x1e8] sm:$0xff] %v9420
        %9550 = vst [vmem:[%s9487 + $0x1f0] sm:$0xff] %v9421
        %9551 = vst [vmem:[%s9487 + $0x1f8] sm:$0xff] %v9422
        %s9552 = sand.u32 %s316, 1
        %s9553 = scalar_lea.sflag [#allocation4], %s9552
        %s9554 = sand.u32 %s316, 1
        %s9555 = smul.addr %s9554, 1024
        %s9556 = scalar_lea.vmem [#allocation5], %s9555
        // Predicated region
        $region77: #{tpu_custom_call.1} parent=71 // pred_check
          %p9557 = pneg %p326
        $region78: #{tpu_custom_call.1} parent=71 // pred_check_branch
          %9559 = sbr.rel (%p9557) target = $region80
        $region79: #{tpu_custom_call.1} parent=71 // pred_region
          %s9560 = smul.u32 4, %s30
          %s9562 = ssub.s32 16384, 16384
          %9563 = vsyncadd %s9553, %s9562
          %s9564 = smul.addr %s9560, 128
          %s9565 = scalar_lea.hbm %s13, %s9564
          %s9566 = sshll.u32 %s9556, 4
          %s9567 = int_to_ptr.vmem [resolvable:$true] %s9566
          %9572 = dma.vmem_to_hbm [thread:$0]  %s9567, 16384, %s9565, %s9553, 512, 1024, 32
        $region80: #{tpu_custom_call.1} parent=71 // pred_fallthru
          _
      $region72: #{tpu_custom_call.1} parent=5 // pred_fallthru
        _
      %p9573 = scmp.le.s32.totalorder 2, %s25
      // Predicated region
      $region81: #{tpu_custom_call.1} parent=5 // pred_check
        %p9574 = pneg %p9573
      $region82: #{tpu_custom_call.1} parent=5 // pred_check_branch
        %9576 = sbr.rel (%p9574) target = $region84
      $region83: #{tpu_custom_call.1} parent=5 // pred_region
        %s9577 = ssub.s32 %s25, 2
        // Predicated region
        $region85: #{tpu_custom_call.1} parent=83 // pred_check
          %p9578 = pneg %p332
        $region86: #{tpu_custom_call.1} parent=83 // pred_check_branch
          %9580 = sbr.rel (%p9578) target = $region88
        $region87: #{tpu_custom_call.1} parent=83 // pred_region
          %s9581 = sand.u32 %s317, 1
          %s9582 = scalar_lea.sflag [#allocation4], %s9581
          %s9583 = sand.u32 %s317, 1
          %s9584 = smul.addr %s9583, 1024
          %s9585 = scalar_lea.vmem [#allocation5], %s9584
          %9586 = dma.done %s9582, 16384
        $region88: #{tpu_custom_call.1} parent=83 // pred_fallthru
          _
      $region84: #{tpu_custom_call.1} parent=5 // pred_fallthru
        _
    $region6: #{tpu_custom_call.1} parent=1 // loop_footer
      %s29 = sadd.s32 1, %s25
    $region7: #{tpu_custom_call.1} parent=1 // loop_footer_branch
      %24 = sbr.rel target = $region3
    $region8: #{tpu_custom_call.1} parent=1 // loop_exit
      _
    %9587 = vsyncpa [#allocation3], 1
    %s9588 = scalar_lea.sflag [#allocation3], 1
    %9589 = vsyncpa %s9588, 1
    %9590 = vsyncpa [#allocation4], 1
    %s9591 = scalar_lea.sflag [#allocation4], 1
    %9592 = vsyncpa %s9591, 1

</llo_original>
